<compile_context>
chip_gen: v7x
topology: tpu7x:2x2x1
jax: 0.10.0
libtpu: 0.0.40
codegen_flags: <defaults>
</compile_context>

<pallas_src>
import jax
import jax.numpy as jnp
from jax.experimental import pallas as pl
from jax.experimental.pallas import tpu as pltpu

# ---- model config (small, consistent with the module's __init__) ----
POS_VOCAB, WORD_VOCAB = 16, 64        # vocab = (pos_vocab, word_vocab)
POS_EMB, WORD_EMB = 8, 16             # emb_dim = (pos_emb_dim, word_emb_dim)
POS_HID, WORD_HID = 32, 32            # hid_dim = (pos_hid_dim, word_hid_dim)
POS_LAYERS, WORD_LAYERS = 2, 2        # num_layers = (pos, word)
SEQ_LEN, BATCH = 8, 8                 # cell = 'LSTM', dropout = 0.0


# ----------------------------- kernel ---------------------------------------
def _log_softmax(z):
    m = jnp.max(z, axis=-1, keepdims=True)
    return z - m - jnp.log(jnp.sum(jnp.exp(z - m), axis=-1, keepdims=True))


def _make_kernel(seq_len, batch, pos_layers, word_layers, pos_hid, word_hid):
    f32 = jnp.float32
    bf16 = jnp.bfloat16

    def kernel(p_emb_ref, w_emb_ref, w0p_ref, b0p_ref, w0w_ref, b0w_ref,
               lstm_w_ref, lstm_b_ref, wp_ref, bp_ref, ww_ref, bw_ref,
               p_out_ref, w_out_ref, state_ref,
               pre_p_ref, pre_w_ref, ph_slab, wh_slab):
        B = batch

        # ---- prologue (off the serial chain): batched layer-0 embedding
        # contribution to the gates for all T steps, biases folded in.
        # Parked in VMEM scratch so nothing sits in vregs across the loop.
        pre_p_ref[...] = jnp.dot(p_emb_ref[...], w0p_ref[...],
                                 preferred_element_type=f32) + b0p_ref[...]
        pre_w_ref[...] = jnp.dot(w_emb_ref[...], w0w_ref[...],
                                 preferred_element_type=f32) + b0w_ref[...]

        def mm(x, idx):
            # weight slice read from the VMEM ref at the dot site (no hoist);
            # bf16 x bf16 -> single-pass MXU, f32 accumulate.
            return jnp.dot(x.astype(bf16), lstm_w_ref[idx],
                           preferred_element_type=f32)

        def lstm_gate(gates, c, hid):
            sig = jax.nn.sigmoid(gates)      # one full-width EUP pass
            th = jnp.tanh(gates)             # one full-width EUP pass
            i = sig[:, 0 * hid:1 * hid]
            f = sig[:, 1 * hid:2 * hid]
            g = th[:, 2 * hid:3 * hid]
            o = sig[:, 3 * hid:4 * hid]
            c_new = f * c + i * g
            return o * jnp.tanh(c_new), c_new

        # hidden=None in the PyTorch module -> zero-initialised state.
        # Recurrent state stays register-resident across the unrolled loop.
        ph = [jnp.zeros((B, pos_hid), f32) for _ in range(pos_layers)]
        pc = [jnp.zeros((B, pos_hid), f32) for _ in range(pos_layers)]
        wh = [jnp.zeros((B, word_hid), f32) for _ in range(word_layers)]
        wc = [jnp.zeros((B, word_hid), f32) for _ in range(word_layers)]

        wbase = 2 * pos_layers
        for t in range(seq_len):
            r = t * B
            # -------- POS RNN: consumes the *previous* word last-layer h ----
            g = (pre_p_ref[r:r + B, :]
                 + mm(wh[word_layers - 1], 0)        # cross (word -> pos)
                 + mm(ph[0], 1))                     # recurrent
            ph[0], pc[0] = lstm_gate(g, pc[0], pos_hid)
            for l in range(1, pos_layers):
                g = (mm(ph[l - 1], 2 * l) + mm(ph[l], 2 * l + 1)
                     + lstm_b_ref[l - 1])
                ph[l], pc[l] = lstm_gate(g, pc[l], pos_hid)
            ph_slab[r:r + B, :] = ph[pos_layers - 1]

            # -------- word RNN: consumes the freshly-updated POS last h -----
            g = (pre_w_ref[r:r + B, :]
                 + mm(ph[pos_layers - 1], wbase + 0)  # cross (pos -> word)
                 + mm(wh[0], wbase + 1))              # recurrent
            wh[0], wc[0] = lstm_gate(g, wc[0], word_hid)
            for l in range(1, word_layers):
                g = (mm(wh[l - 1], wbase + 2 * l)
                     + mm(wh[l], wbase + 2 * l + 1)
                     + lstm_b_ref[(pos_layers - 1) + (l - 1)])
                wh[l], wc[l] = lstm_gate(g, wc[l], word_hid)
            wh_slab[r:r + B, :] = wh[word_layers - 1]

        # ---- deferred nn.Sequential(Linear, LogSoftmax): one 64-row matmul
        # per head, batched log_softmax, single store each.
        p_logits = jnp.dot(ph_slab[...], wp_ref[...],
                           preferred_element_type=f32) + bp_ref[...]
        w_logits = jnp.dot(wh_slab[...], ww_ref[...],
                           preferred_element_type=f32) + bw_ref[...]
        p_out_ref[...] = _log_softmax(p_logits)
        w_out_ref[...] = _log_softmax(w_logits)

        # ---- final recurrent state: single lane-dense (B, 256) store -------
        state_ref[...] = jnp.concatenate(ph + pc + wh + wc, axis=-1)

    return kernel


# ----------------------------- wrapper ---------------------------------------
def _pack_params(params, batch):
    """Split layer-0 weights into (embedding part, in-loop part) and pack all
    in-loop (hid, 4*hid) matrices into one bf16 tensor; fold/broadcast biases."""
    assert POS_HID == WORD_HID, "packed layout requires equal hidden sizes"
    bf16 = jnp.bfloat16
    pos, word = params['pos_rnn'], params['word_rnn']

    w0p = pos[0]['Wih_T'][:POS_EMB, :].astype(bf16)            # (POS_EMB, 4H)
    b0p = pos[0]['bih'] + pos[0]['bhh']                        # (1, 4H)
    w0w = word[0]['Wih_T'][:WORD_EMB, :].astype(bf16)          # (WORD_EMB, 4H)
    b0w = word[0]['bih'] + word[0]['bhh']

    mats = [pos[0]['Wih_T'][POS_EMB:, :], pos[0]['Whh_T']]     # cross, recur
    for l in range(1, POS_LAYERS):
        mats += [pos[l]['Wih_T'], pos[l]['Whh_T']]
    mats += [word[0]['Wih_T'][WORD_EMB:, :], word[0]['Whh_T']]
    for l in range(1, WORD_LAYERS):
        mats += [word[l]['Wih_T'], word[l]['Whh_T']]
    lstm_w = jnp.stack(mats).astype(bf16)                      # (8, H, 4H)

    bias = []
    for l in range(1, POS_LAYERS):
        bias.append(jnp.broadcast_to(pos[l]['bih'] + pos[l]['bhh'],
                                     (batch, 4 * POS_HID)))
    for l in range(1, WORD_LAYERS):
        bias.append(jnp.broadcast_to(word[l]['bih'] + word[l]['bhh'],
                                     (batch, 4 * WORD_HID)))
    lstm_b = jnp.stack(bias)                                   # (2, B, 4H)
    return w0p, b0p, w0w, b0w, lstm_w, lstm_b


def double_rnn_pos_aware_lm(pos_ids, word_ids, params):
    T, B = pos_ids.shape
    # glue: embedding lookup (gather) in plain JAX; bf16 for the MXU prologue
    p_emb = jnp.take(params['pos_emb'], pos_ids.reshape(-1),
                     axis=0).astype(jnp.bfloat16)              # (T*B, POS_EMB)
    w_emb = jnp.take(params['word_emb'], word_ids.reshape(-1),
                     axis=0).astype(jnp.bfloat16)              # (T*B, WORD_EMB)

    w0p, b0p, w0w, b0w, lstm_w, lstm_b = _pack_params(params, B)
    kernel = _make_kernel(T, B, POS_LAYERS, WORD_LAYERS, POS_HID, WORD_HID)

    vmem = pl.BlockSpec(memory_space=pltpu.MemorySpace.VMEM)
    state_w = 2 * (POS_LAYERS * POS_HID + WORD_LAYERS * WORD_HID)   # 256

    out_shape = (
        jax.ShapeDtypeStruct((T * B, POS_VOCAB), jnp.float32),      # (64, 16)
        jax.ShapeDtypeStruct((T * B, WORD_VOCAB), jnp.float32),     # (64, 64)
        jax.ShapeDtypeStruct((B, state_w), jnp.float32),            # (8, 256)
    )
    scratch = [
        pltpu.VMEM((T * B, 4 * POS_HID), jnp.float32),    # pre-computed pos L0 gates
        pltpu.VMEM((T * B, 4 * WORD_HID), jnp.float32),   # pre-computed word L0 gates
        pltpu.VMEM((T * B, POS_HID), jnp.float32),        # pos last-layer h slab
        pltpu.VMEM((T * B, WORD_HID), jnp.float32),       # word last-layer h slab
    ]

    p_slab, w_slab, state = pl.pallas_call(
        kernel,
        out_shape=out_shape,
        in_specs=[vmem] * 12,
        out_specs=tuple([vmem] * 3),
        scratch_shapes=scratch,
    )(p_emb, w_emb, w0p, b0p, w0w, b0w, lstm_w, lstm_b,
      params['Wp_T'], params['bp'], params['Ww_T'], params['bw'])

    # (T*B, V) rows are t-major -> free reshape, no transpose needed.
    p_logp = p_slab.reshape(T, B, POS_VOCAB)
    w_logp = w_slab.reshape(T, B, WORD_VOCAB)

    off = 0
    def split(n_layers, hid):
        nonlocal off
        chunks = []
        for _ in range(n_layers):
            chunks.append(state[:, off:off + hid])
            off += hid
        return jnp.stack(chunks)

    ph = split(POS_LAYERS, POS_HID)
    pc = split(POS_LAYERS, POS_HID)
    wh = split(WORD_LAYERS, WORD_HID)
    wc = split(WORD_LAYERS, WORD_HID)
    return (p_logp, w_logp), ((ph, pc), (wh, wc))


# ----------------------------- params ----------------------------------------
def init_params(key):
    def uni(k, shape, scale):
        return jax.random.uniform(k, shape, jnp.float32, -scale, scale)

    keys = iter(jax.random.split(key, 64))
    params = {
        'pos_emb': jax.random.normal(next(keys), (POS_VOCAB, POS_EMB),
                                     jnp.float32) * 0.1,
        'word_emb': jax.random.normal(next(keys), (WORD_VOCAB, WORD_EMB),
                                      jnp.float32) * 0.1,
    }

    def lstm_layer(in_dim, hid):
        s = 1.0 / (hid ** 0.5)
        return {
            'Wih_T': uni(next(keys), (in_dim, 4 * hid), s),  # pre-transposed
            'Whh_T': uni(next(keys), (hid, 4 * hid), s),
            'bih': uni(next(keys), (1, 4 * hid), s),
            'bhh': uni(next(keys), (1, 4 * hid), s),
        }

    pos_in = POS_EMB + WORD_HID
    params['pos_rnn'] = [lstm_layer(pos_in if l == 0 else POS_HID, POS_HID)
                         for l in range(POS_LAYERS)]
    word_in = WORD_EMB + POS_HID
    params['word_rnn'] = [lstm_layer(word_in if l == 0 else WORD_HID, WORD_HID)
                          for l in range(WORD_LAYERS)]

    sp = 1.0 / (POS_HID ** 0.5)
    sw = 1.0 / (WORD_HID ** 0.5)
    params['Wp_T'] = uni(next(keys), (POS_HID, POS_VOCAB), sp)
    params['bp'] = uni(next(keys), (1, POS_VOCAB), sp)
    params['Ww_T'] = uni(next(keys), (WORD_HID, WORD_VOCAB), sw)
    params['bw'] = uni(next(keys), (1, WORD_VOCAB), sw)
    return params


# ----------------------------- reference -------------------------------------
def reference_forward(pos_ids, word_ids, params):
    T, B = pos_ids.shape
    p_emb = params['pos_emb'][pos_ids]
    w_emb = params['word_emb'][word_ids]
    ph = jnp.zeros((POS_LAYERS, B, POS_HID), jnp.float32)
    pc = jnp.zeros_like(ph)
    wh = jnp.zeros((WORD_LAYERS, B, WORD_HID), jnp.float32)
    wc = jnp.zeros_like(wh)

    def cell(x, h, c, lp, hid):
        gates = x @ lp['Wih_T'] + lp['bih'] + h @ lp['Whh_T'] + lp['bhh']
        i = jax.nn.sigmoid(gates[:, :hid])
        f = jax.nn.sigmoid(gates[:, hid:2 * hid])
        g = jnp.tanh(gates[:, 2 * hid:3 * hid])
        o = jax.nn.sigmoid(gates[:, 3 * hid:])
        c_new = f * c + i * g
        return o * jnp.tanh(c_new), c_new

    p_outs, w_outs = [], []
    for t in range(T):
        x = jnp.concatenate([p_emb[t], wh[-1]], axis=-1)
        nh, nc = [], []
        for l in range(POS_LAYERS):
            h, c = cell(x, ph[l], pc[l], params['pos_rnn'][l], POS_HID)
            nh.append(h); nc.append(c); x = h
        ph, pc = jnp.stack(nh), jnp.stack(nc)
        p_out = x
        x = jnp.concatenate([w_emb[t], ph[-1]], axis=-1)
        nh, nc = [], []
        for l in range(WORD_LAYERS):
            h, c = cell(x, wh[l], wc[l], params['word_rnn'][l], WORD_HID)
            nh.append(h); nc.append(c); x = h
        wh, wc = jnp.stack(nh), jnp.stack(nc)
        w_out = x
        p_outs.append(jax.nn.log_softmax(p_out @ params['Wp_T'] + params['bp'],
                                         axis=-1))
        w_outs.append(jax.nn.log_softmax(w_out @ params['Ww_T'] + params['bw'],
                                         axis=-1))
    return (jnp.stack(p_outs), jnp.stack(w_outs)), ((ph, pc), (wh, wc))


# TODO(synk): generate() (multinomial sampling + host-side early stopping) is a
# host-driven decode loop, not part of the forward hot path; not ported.

if __name__ == "__main__":
    key = jax.random.PRNGKey(0)
    kp, kw, kparam = jax.random.split(key, 3)
    pos_ids = jax.random.randint(kp, (SEQ_LEN, BATCH), 0, POS_VOCAB, jnp.int32)
    word_ids = jax.random.randint(kw, (SEQ_LEN, BATCH), 0, WORD_VOCAB, jnp.int32)
    params = init_params(kparam)

    (p_logp, w_logp), ((ph, pc), (wh, wc)) = double_rnn_pos_aware_lm(
        pos_ids, word_ids, params)
    jax.block_until_ready((p_logp, w_logp, ph, pc, wh, wc))

    (p_ref, w_ref), ((ph_r, pc_r), (wh_r, wc_r)) = reference_forward(
        pos_ids, word_ids, params)

    assert p_logp.shape == (SEQ_LEN, BATCH, POS_VOCAB)
    assert w_logp.shape == (SEQ_LEN, BATCH, WORD_VOCAB)
    for a, b in [(p_logp, p_ref), (w_logp, w_ref),
                 (ph, ph_r), (pc, pc_r), (wh, wh_r), (wc, wc_r)]:
        err = float(jnp.max(jnp.abs(a - b)))
        assert jnp.allclose(a, b, atol=5e-2, rtol=5e-2), f"max abs err {err}"

    print("KERNEL_OK")
</pallas_src>

<mosaic_0001>
module attributes {stable_mosaic.version = 11 : i64} {
  func.func @kernel(%arg0: memref<64x8xbf16, #tpu.memory_space<vmem>>, %arg1: memref<64x16xbf16, #tpu.memory_space<vmem>>, %arg2: memref<8x128xbf16, #tpu.memory_space<vmem>>, %arg3: memref<1x128xf32, #tpu.memory_space<vmem>>, %arg4: memref<16x128xbf16, #tpu.memory_space<vmem>>, %arg5: memref<1x128xf32, #tpu.memory_space<vmem>>, %arg6: memref<8x32x128xbf16, #tpu.memory_space<vmem>>, %arg7: memref<2x8x128xf32, #tpu.memory_space<vmem>>, %arg8: memref<32x16xf32, #tpu.memory_space<vmem>>, %arg9: memref<1x16xf32, #tpu.memory_space<vmem>>, %arg10: memref<32x64xf32, #tpu.memory_space<vmem>>, %arg11: memref<1x64xf32, #tpu.memory_space<vmem>>, %arg12: memref<64x16xf32, #tpu.memory_space<vmem>>, %arg13: memref<64x64xf32, #tpu.memory_space<vmem>>, %arg14: memref<8x256xf32, #tpu.memory_space<vmem>>, %arg15: memref<64x128xf32, #tpu.memory_space<vmem>>, %arg16: memref<64x128xf32, #tpu.memory_space<vmem>>, %arg17: memref<64x32xf32, #tpu.memory_space<vmem>>, %arg18: memref<64x32xf32, #tpu.memory_space<vmem>>) attributes {dimension_semantics = [], scalar_prefetch = 0 : i64, scratch_operands = 4 : i64, tpu.core_type = #tpu.core_type<tc>} {
    %c0 = arith.constant 0 : index
    %c0_0 = arith.constant 0 : index
    %0 = vector.load %arg0[%c0, %c0_0] : memref<64x8xbf16, #tpu.memory_space<vmem>>, vector<64x8xbf16>
    %c0_1 = arith.constant 0 : index
    %c0_2 = arith.constant 0 : index
    %1 = vector.load %arg2[%c0_1, %c0_2] : memref<8x128xbf16, #tpu.memory_space<vmem>>, vector<8x128xbf16>
    %cst = arith.constant dense<0.000000e+00> : vector<64x128xf32>
    %2 = tpu.matmul %0, %1, %cst {dimension_numbers = #tpu.dot_dimension_numbers<[1], [0], [0], [1], [0, 0, 1, 1], [], []>} : vector<64x8xbf16>, vector<8x128xbf16>, vector<64x128xf32> -> vector<64x128xf32>
    %c0_3 = arith.constant 0 : index
    %c0_4 = arith.constant 0 : index
    %3 = vector.load %arg3[%c0_3, %c0_4] : memref<1x128xf32, #tpu.memory_space<vmem>>, vector<1x128xf32>
    %4 = vector.broadcast %3 : vector<1x128xf32> to vector<64x128xf32>
    %5 = arith.addf %2, %4 : vector<64x128xf32>
    %c0_5 = arith.constant 0 : index
    %c0_6 = arith.constant 0 : index
    %6 = vector.load %arg15[%c0_5, %c0_6] : memref<64x128xf32, #tpu.memory_space<vmem>>, vector<64x128xf32>
    tpu.vector_store %arg15[%c0_5, %c0_6], %5 {strides = array<i32>} : memref<64x128xf32, #tpu.memory_space<vmem>>, vector<64x128xf32>,
    %c0_7 = arith.constant 0 : index
    %c0_8 = arith.constant 0 : index
    %7 = vector.load %arg1[%c0_7, %c0_8] : memref<64x16xbf16, #tpu.memory_space<vmem>>, vector<64x16xbf16>
    %c0_9 = arith.constant 0 : index
    %c0_10 = arith.constant 0 : index
    %8 = vector.load %arg4[%c0_9, %c0_10] : memref<16x128xbf16, #tpu.memory_space<vmem>>, vector<16x128xbf16>
    %cst_11 = arith.constant dense<0.000000e+00> : vector<64x128xf32>
    %9 = tpu.matmul %7, %8, %cst_11 {dimension_numbers = #tpu.dot_dimension_numbers<[1], [0], [0], [1], [0, 0, 1, 1], [], []>} : vector<64x16xbf16>, vector<16x128xbf16>, vector<64x128xf32> -> vector<64x128xf32>
    %c0_12 = arith.constant 0 : index
    %c0_13 = arith.constant 0 : index
    %10 = vector.load %arg5[%c0_12, %c0_13] : memref<1x128xf32, #tpu.memory_space<vmem>>, vector<1x128xf32>
    %11 = vector.broadcast %10 : vector<1x128xf32> to vector<64x128xf32>
    %12 = arith.addf %9, %11 : vector<64x128xf32>
    %c0_14 = arith.constant 0 : index
    %c0_15 = arith.constant 0 : index
    %13 = vector.load %arg16[%c0_14, %c0_15] : memref<64x128xf32, #tpu.memory_space<vmem>>, vector<64x128xf32>
    tpu.vector_store %arg16[%c0_14, %c0_15], %12 {strides = array<i32>} : memref<64x128xf32, #tpu.memory_space<vmem>>, vector<64x128xf32>,
    %cst_16 = arith.constant 0.000000e+00 : f32
    %14 = vector.broadcast %cst_16 : f32 to vector<8x32xf32>
    %cst_17 = arith.constant 0.000000e+00 : f32
    %15 = vector.broadcast %cst_17 : f32 to vector<8x32xf32>
    %cst_18 = arith.constant 0.000000e+00 : f32
    %16 = vector.broadcast %cst_18 : f32 to vector<8x32xf32>
    %cst_19 = arith.constant 0.000000e+00 : f32
    %17 = vector.broadcast %cst_19 : f32 to vector<8x32xf32>
    %cst_20 = arith.constant 0.000000e+00 : f32
    %18 = vector.broadcast %cst_20 : f32 to vector<8x32xf32>
    %cst_21 = arith.constant 0.000000e+00 : f32
    %19 = vector.broadcast %cst_21 : f32 to vector<8x32xf32>
    %cst_22 = arith.constant 0.000000e+00 : f32
    %20 = vector.broadcast %cst_22 : f32 to vector<8x32xf32>
    %cst_23 = arith.constant 0.000000e+00 : f32
    %21 = vector.broadcast %cst_23 : f32 to vector<8x32xf32>
    %c0_24 = arith.constant 0 : index
    %c0_25 = arith.constant 0 : index
    %22 = vector.load %arg15[%c0_24, %c0_25] : memref<64x128xf32, #tpu.memory_space<vmem>>, vector<8x128xf32>
    %23 = arith.truncf %19 : vector<8x32xf32> to vector<8x32xbf16>
    %c0_26 = arith.constant 0 : index
    %c0_27 = arith.constant 0 : index
    %c0_28 = arith.constant 0 : index
    %24 = vector.load %arg6[%c0_26, %c0_27, %c0_28] : memref<8x32x128xbf16, #tpu.memory_space<vmem>>, vector<1x32x128xbf16>
    %25 = vector.shape_cast %24 : vector<1x32x128xbf16> to vector<32x128xbf16>
    %cst_29 = arith.constant dense<0.000000e+00> : vector<8x128xf32>
    %26 = tpu.matmul %23, %25, %cst_29 {dimension_numbers = #tpu.dot_dimension_numbers<[1], [0], [0], [1], [0, 0, 1, 1], [], []>} : vector<8x32xbf16>, vector<32x128xbf16>, vector<8x128xf32> -> vector<8x128xf32>
    %27 = arith.addf %22, %26 : vector<8x128xf32>
    %28 = arith.truncf %14 : vector<8x32xf32> to vector<8x32xbf16>
    %c1 = arith.constant 1 : index
    %c0_30 = arith.constant 0 : index
    %c0_31 = arith.constant 0 : index
    %29 = vector.load %arg6[%c1, %c0_30, %c0_31] : memref<8x32x128xbf16, #tpu.memory_space<vmem>>, vector<1x32x128xbf16>
    %30 = vector.shape_cast %29 : vector<1x32x128xbf16> to vector<32x128xbf16>
    %cst_32 = arith.constant dense<0.000000e+00> : vector<8x128xf32>
    %31 = tpu.matmul %28, %30, %cst_32 {dimension_numbers = #tpu.dot_dimension_numbers<[1], [0], [0], [1], [0, 0, 1, 1], [], []>} : vector<8x32xbf16>, vector<32x128xbf16>, vector<8x128xf32> -> vector<8x128xf32>
    %32 = arith.addf %27, %31 : vector<8x128xf32>
    %33 = arith.negf %32 : vector<8x128xf32>
    %34 = math.exp %33 : vector<8x128xf32>
    %cst_33 = arith.constant 1.000000e+00 : f32
    %35 = vector.broadcast %cst_33 : f32 to vector<8x128xf32>
    %36 = arith.addf %35, %34 : vector<8x128xf32>
    %37 = arith.divf %35, %36 : vector<8x128xf32>
    %38 = math.tanh %32 : vector<8x128xf32>
    %39 = vector.extract_strided_slice %37 {offsets = [0, 0], sizes = [8, 32], strides = [1, 1]} : vector<8x128xf32> to vector<8x32xf32>
    %40 = vector.extract_strided_slice %37 {offsets = [0, 32], sizes = [8, 32], strides = [1, 1]} : vector<8x128xf32> to vector<8x32xf32>
    %41 = vector.extract_strided_slice %38 {offsets = [0, 64], sizes = [8, 32], strides = [1, 1]} : vector<8x128xf32> to vector<8x32xf32>
    %42 = vector.extract_strided_slice %37 {offsets = [0, 96], sizes = [8, 32], strides = [1, 1]} : vector<8x128xf32> to vector<8x32xf32>
    %43 = arith.mulf %40, %16 : vector<8x32xf32>
    %44 = arith.mulf %39, %41 : vector<8x32xf32>
    %45 = arith.addf %43, %44 : vector<8x32xf32>
    %46 = math.tanh %45 : vector<8x32xf32>
    %47 = arith.mulf %42, %46 : vector<8x32xf32>
    %48 = arith.truncf %47 : vector<8x32xf32> to vector<8x32xbf16>
    %c2 = arith.constant 2 : index
    %c0_34 = arith.constant 0 : index
    %c0_35 = arith.constant 0 : index
    %49 = vector.load %arg6[%c2, %c0_34, %c0_35] : memref<8x32x128xbf16, #tpu.memory_space<vmem>>, vector<1x32x128xbf16>
    %50 = vector.shape_cast %49 : vector<1x32x128xbf16> to vector<32x128xbf16>
    %cst_36 = arith.constant dense<0.000000e+00> : vector<8x128xf32>
    %51 = tpu.matmul %48, %50, %cst_36 {dimension_numbers = #tpu.dot_dimension_numbers<[1], [0], [0], [1], [0, 0, 1, 1], [], []>} : vector<8x32xbf16>, vector<32x128xbf16>, vector<8x128xf32> -> vector<8x128xf32>
    %52 = arith.truncf %15 : vector<8x32xf32> to vector<8x32xbf16>
    %c3 = arith.constant 3 : index
    %c0_37 = arith.constant 0 : index
    %c0_38 = arith.constant 0 : index
    %53 = vector.load %arg6[%c3, %c0_37, %c0_38] : memref<8x32x128xbf16, #tpu.memory_space<vmem>>, vector<1x32x128xbf16>
    %54 = vector.shape_cast %53 : vector<1x32x128xbf16> to vector<32x128xbf16>
    %cst_39 = arith.constant dense<0.000000e+00> : vector<8x128xf32>
    %55 = tpu.matmul %52, %54, %cst_39 {dimension_numbers = #tpu.dot_dimension_numbers<[1], [0], [0], [1], [0, 0, 1, 1], [], []>} : vector<8x32xbf16>, vector<32x128xbf16>, vector<8x128xf32> -> vector<8x128xf32>
    %56 = arith.addf %51, %55 : vector<8x128xf32>
    %c0_40 = arith.constant 0 : index
    %c0_41 = arith.constant 0 : index
    %c0_42 = arith.constant 0 : index
    %57 = vector.load %arg7[%c0_40, %c0_41, %c0_42] : memref<2x8x128xf32, #tpu.memory_space<vmem>>, vector<1x8x128xf32>
    %58 = vector.shape_cast %57 : vector<1x8x128xf32> to vector<8x128xf32>
    %59 = arith.addf %56, %58 : vector<8x128xf32>
    %60 = arith.negf %59 : vector<8x128xf32>
    %61 = math.exp %60 : vector<8x128xf32>
    %cst_43 = arith.constant 1.000000e+00 : f32
    %62 = vector.broadcast %cst_43 : f32 to vector<8x128xf32>
    %63 = arith.addf %62, %61 : vector<8x128xf32>
    %64 = arith.divf %62, %63 : vector<8x128xf32>
    %65 = math.tanh %59 : vector<8x128xf32>
    %66 = vector.extract_strided_slice %64 {offsets = [0, 0], sizes = [8, 32], strides = [1, 1]} : vector<8x128xf32> to vector<8x32xf32>
    %67 = vector.extract_strided_slice %64 {offsets = [0, 32], sizes = [8, 32], strides = [1, 1]} : vector<8x128xf32> to vector<8x32xf32>
    %68 = vector.extract_strided_slice %65 {offsets = [0, 64], sizes = [8, 32], strides = [1, 1]} : vector<8x128xf32> to vector<8x32xf32>
    %69 = vector.extract_strided_slice %64 {offsets = [0, 96], sizes = [8, 32], strides = [1, 1]} : vector<8x128xf32> to vector<8x32xf32>
    %70 = arith.mulf %67, %17 : vector<8x32xf32>
    %71 = arith.mulf %66, %68 : vector<8x32xf32>
    %72 = arith.addf %70, %71 : vector<8x32xf32>
    %73 = math.tanh %72 : vector<8x32xf32>
    %74 = arith.mulf %69, %73 : vector<8x32xf32>
    %c0_44 = arith.constant 0 : index
    %c0_45 = arith.constant 0 : index
    %75 = vector.load %arg17[%c0_44, %c0_45] : memref<64x32xf32, #tpu.memory_space<vmem>>, vector<8x32xf32>
    tpu.vector_store %arg17[%c0_44, %c0_45], %74 {strides = array<i32>} : memref<64x32xf32, #tpu.memory_space<vmem>>, vector<8x32xf32>,
    %c0_46 = arith.constant 0 : index
    %c0_47 = arith.constant 0 : index
    %76 = vector.load %arg16[%c0_46, %c0_47] : memref<64x128xf32, #tpu.memory_space<vmem>>, vector<8x128xf32>
    %77 = arith.truncf %74 : vector<8x32xf32> to vector<8x32xbf16>
    %c4 = arith.constant 4 : index
    %c0_48 = arith.constant 0 : index
    %c0_49 = arith.constant 0 : index
    %78 = vector.load %arg6[%c4, %c0_48, %c0_49] : memref<8x32x128xbf16, #tpu.memory_space<vmem>>, vector<1x32x128xbf16>
    %79 = vector.shape_cast %78 : vector<1x32x128xbf16> to vector<32x128xbf16>
    %cst_50 = arith.constant dense<0.000000e+00> : vector<8x128xf32>
    %80 = tpu.matmul %77, %79, %cst_50 {dimension_numbers = #tpu.dot_dimension_numbers<[1], [0], [0], [1], [0, 0, 1, 1], [], []>} : vector<8x32xbf16>, vector<32x128xbf16>, vector<8x128xf32> -> vector<8x128xf32>
    %81 = arith.addf %76, %80 : vector<8x128xf32>
    %82 = arith.truncf %18 : vector<8x32xf32> to vector<8x32xbf16>
    %c5 = arith.constant 5 : index
    %c0_51 = arith.constant 0 : index
    %c0_52 = arith.constant 0 : index
    %83 = vector.load %arg6[%c5, %c0_51, %c0_52] : memref<8x32x128xbf16, #tpu.memory_space<vmem>>, vector<1x32x128xbf16>
    %84 = vector.shape_cast %83 : vector<1x32x128xbf16> to vector<32x128xbf16>
    %cst_53 = arith.constant dense<0.000000e+00> : vector<8x128xf32>
    %85 = tpu.matmul %82, %84, %cst_53 {dimension_numbers = #tpu.dot_dimension_numbers<[1], [0], [0], [1], [0, 0, 1, 1], [], []>} : vector<8x32xbf16>, vector<32x128xbf16>, vector<8x128xf32> -> vector<8x128xf32>
    %86 = arith.addf %81, %85 : vector<8x128xf32>
    %87 = arith.negf %86 : vector<8x128xf32>
    %88 = math.exp %87 : vector<8x128xf32>
    %cst_54 = arith.constant 1.000000e+00 : f32
    %89 = vector.broadcast %cst_54 : f32 to vector<8x128xf32>
    %90 = arith.addf %89, %88 : vector<8x128xf32>
    %91 = arith.divf %89, %90 : vector<8x128xf32>
    %92 = math.tanh %86 : vector<8x128xf32>
    %93 = vector.extract_strided_slice %91 {offsets = [0, 0], sizes = [8, 32], strides = [1, 1]} : vector<8x128xf32> to vector<8x32xf32>
    %94 = vector.extract_strided_slice %91 {offsets = [0, 32], sizes = [8, 32], strides = [1, 1]} : vector<8x128xf32> to vector<8x32xf32>
    %95 = vector.extract_strided_slice %92 {offsets = [0, 64], sizes = [8, 32], strides = [1, 1]} : vector<8x128xf32> to vector<8x32xf32>
    %96 = vector.extract_strided_slice %91 {offsets = [0, 96], sizes = [8, 32], strides = [1, 1]} : vector<8x128xf32> to vector<8x32xf32>
    %97 = arith.mulf %94, %20 : vector<8x32xf32>
    %98 = arith.mulf %93, %95 : vector<8x32xf32>
    %99 = arith.addf %97, %98 : vector<8x32xf32>
    %100 = math.tanh %99 : vector<8x32xf32>
    %101 = arith.mulf %96, %100 : vector<8x32xf32>
    %102 = arith.truncf %101 : vector<8x32xf32> to vector<8x32xbf16>
    %c6 = arith.constant 6 : index
    %c0_55 = arith.constant 0 : index
    %c0_56 = arith.constant 0 : index
    %103 = vector.load %arg6[%c6, %c0_55, %c0_56] : memref<8x32x128xbf16, #tpu.memory_space<vmem>>, vector<1x32x128xbf16>
    %104 = vector.shape_cast %103 : vector<1x32x128xbf16> to vector<32x128xbf16>
    %cst_57 = arith.constant dense<0.000000e+00> : vector<8x128xf32>
    %105 = tpu.matmul %102, %104, %cst_57 {dimension_numbers = #tpu.dot_dimension_numbers<[1], [0], [0], [1], [0, 0, 1, 1], [], []>} : vector<8x32xbf16>, vector<32x128xbf16>, vector<8x128xf32> -> vector<8x128xf32>
    %106 = arith.truncf %19 : vector<8x32xf32> to vector<8x32xbf16>
    %c7 = arith.constant 7 : index
    %c0_58 = arith.constant 0 : index
    %c0_59 = arith.constant 0 : index
    %107 = vector.load %arg6[%c7, %c0_58, %c0_59] : memref<8x32x128xbf16, #tpu.memory_space<vmem>>, vector<1x32x128xbf16>
    %108 = vector.shape_cast %107 : vector<1x32x128xbf16> to vector<32x128xbf16>
    %cst_60 = arith.constant dense<0.000000e+00> : vector<8x128xf32>
    %109 = tpu.matmul %106, %108, %cst_60 {dimension_numbers = #tpu.dot_dimension_numbers<[1], [0], [0], [1], [0, 0, 1, 1], [], []>} : vector<8x32xbf16>, vector<32x128xbf16>, vector<8x128xf32> -> vector<8x128xf32>
    %110 = arith.addf %105, %109 : vector<8x128xf32>
    %c1_61 = arith.constant 1 : index
    %c0_62 = arith.constant 0 : index
    %c0_63 = arith.constant 0 : index
    %111 = vector.load %arg7[%c1_61, %c0_62, %c0_63] : memref<2x8x128xf32, #tpu.memory_space<vmem>>, vector<1x8x128xf32>
    %112 = vector.shape_cast %111 : vector<1x8x128xf32> to vector<8x128xf32>
    %113 = arith.addf %110, %112 : vector<8x128xf32>
    %114 = arith.negf %113 : vector<8x128xf32>
    %115 = math.exp %114 : vector<8x128xf32>
    %cst_64 = arith.constant 1.000000e+00 : f32
    %116 = vector.broadcast %cst_64 : f32 to vector<8x128xf32>
    %117 = arith.addf %116, %115 : vector<8x128xf32>
    %118 = arith.divf %116, %117 : vector<8x128xf32>
    %119 = math.tanh %113 : vector<8x128xf32>
    %120 = vector.extract_strided_slice %118 {offsets = [0, 0], sizes = [8, 32], strides = [1, 1]} : vector<8x128xf32> to vector<8x32xf32>
    %121 = vector.extract_strided_slice %118 {offsets = [0, 32], sizes = [8, 32], strides = [1, 1]} : vector<8x128xf32> to vector<8x32xf32>
    %122 = vector.extract_strided_slice %119 {offsets = [0, 64], sizes = [8, 32], strides = [1, 1]} : vector<8x128xf32> to vector<8x32xf32>
    %123 = vector.extract_strided_slice %118 {offsets = [0, 96], sizes = [8, 32], strides = [1, 1]} : vector<8x128xf32> to vector<8x32xf32>
    %124 = arith.mulf %121, %21 : vector<8x32xf32>
    %125 = arith.mulf %120, %122 : vector<8x32xf32>
    %126 = arith.addf %124, %125 : vector<8x32xf32>
    %127 = math.tanh %126 : vector<8x32xf32>
    %128 = arith.mulf %123, %127 : vector<8x32xf32>
    %c0_65 = arith.constant 0 : index
    %c0_66 = arith.constant 0 : index
    %129 = vector.load %arg18[%c0_65, %c0_66] : memref<64x32xf32, #tpu.memory_space<vmem>>, vector<8x32xf32>
    tpu.vector_store %arg18[%c0_65, %c0_66], %128 {strides = array<i32>} : memref<64x32xf32, #tpu.memory_space<vmem>>, vector<8x32xf32>,
    %c8 = arith.constant 8 : index
    %c0_67 = arith.constant 0 : index
    %130 = vector.load %arg15[%c8, %c0_67] : memref<64x128xf32, #tpu.memory_space<vmem>>, vector<8x128xf32>
    %131 = arith.truncf %128 : vector<8x32xf32> to vector<8x32xbf16>
    %c0_68 = arith.constant 0 : index
    %c0_69 = arith.constant 0 : index
    %c0_70 = arith.constant 0 : index
    %132 = vector.load %arg6[%c0_68, %c0_69, %c0_70] : memref<8x32x128xbf16, #tpu.memory_space<vmem>>, vector<1x32x128xbf16>
    %133 = vector.shape_cast %132 : vector<1x32x128xbf16> to vector<32x128xbf16>
    %cst_71 = arith.constant dense<0.000000e+00> : vector<8x128xf32>
    %134 = tpu.matmul %131, %133, %cst_71 {dimension_numbers = #tpu.dot_dimension_numbers<[1], [0], [0], [1], [0, 0, 1, 1], [], []>} : vector<8x32xbf16>, vector<32x128xbf16>, vector<8x128xf32> -> vector<8x128xf32>
    %135 = arith.addf %130, %134 : vector<8x128xf32>
    %136 = arith.truncf %47 : vector<8x32xf32> to vector<8x32xbf16>
    %c1_72 = arith.constant 1 : index
    %c0_73 = arith.constant 0 : index
    %c0_74 = arith.constant 0 : index
    %137 = vector.load %arg6[%c1_72, %c0_73, %c0_74] : memref<8x32x128xbf16, #tpu.memory_space<vmem>>, vector<1x32x128xbf16>
    %138 = vector.shape_cast %137 : vector<1x32x128xbf16> to vector<32x128xbf16>
    %cst_75 = arith.constant dense<0.000000e+00> : vector<8x128xf32>
    %139 = tpu.matmul %136, %138, %cst_75 {dimension_numbers = #tpu.dot_dimension_numbers<[1], [0], [0], [1], [0, 0, 1, 1], [], []>} : vector<8x32xbf16>, vector<32x128xbf16>, vector<8x128xf32> -> vector<8x128xf32>
    %140 = arith.addf %135, %139 : vector<8x128xf32>
    %141 = arith.negf %140 : vector<8x128xf32>
    %142 = math.exp %141 : vector<8x128xf32>
    %cst_76 = arith.constant 1.000000e+00 : f32
    %143 = vector.broadcast %cst_76 : f32 to vector<8x128xf32>
    %144 = arith.addf %143, %142 : vector<8x128xf32>
    %145 = arith.divf %143, %144 : vector<8x128xf32>
    %146 = math.tanh %140 : vector<8x128xf32>
    %147 = vector.extract_strided_slice %145 {offsets = [0, 0], sizes = [8, 32], strides = [1, 1]} : vector<8x128xf32> to vector<8x32xf32>
    %148 = vector.extract_strided_slice %145 {offsets = [0, 32], sizes = [8, 32], strides = [1, 1]} : vector<8x128xf32> to vector<8x32xf32>
    %149 = vector.extract_strided_slice %146 {offsets = [0, 64], sizes = [8, 32], strides = [1, 1]} : vector<8x128xf32> to vector<8x32xf32>
    %150 = vector.extract_strided_slice %145 {offsets = [0, 96], sizes = [8, 32], strides = [1, 1]} : vector<8x128xf32> to vector<8x32xf32>
    %151 = arith.mulf %148, %45 : vector<8x32xf32>
    %152 = arith.mulf %147, %149 : vector<8x32xf32>
    %153 = arith.addf %151, %152 : vector<8x32xf32>
    %154 = math.tanh %153 : vector<8x32xf32>
    %155 = arith.mulf %150, %154 : vector<8x32xf32>
    %156 = arith.truncf %155 : vector<8x32xf32> to vector<8x32xbf16>
    %c2_77 = arith.constant 2 : index
    %c0_78 = arith.constant 0 : index
    %c0_79 = arith.constant 0 : index
    %157 = vector.load %arg6[%c2_77, %c0_78, %c0_79] : memref<8x32x128xbf16, #tpu.memory_space<vmem>>, vector<1x32x128xbf16>
    %158 = vector.shape_cast %157 : vector<1x32x128xbf16> to vector<32x128xbf16>
    %cst_80 = arith.constant dense<0.000000e+00> : vector<8x128xf32>
    %159 = tpu.matmul %156, %158, %cst_80 {dimension_numbers = #tpu.dot_dimension_numbers<[1], [0], [0], [1], [0, 0, 1, 1], [], []>} : vector<8x32xbf16>, vector<32x128xbf16>, vector<8x128xf32> -> vector<8x128xf32>
    %160 = arith.truncf %74 : vector<8x32xf32> to vector<8x32xbf16>
    %c3_81 = arith.constant 3 : index
    %c0_82 = arith.constant 0 : index
    %c0_83 = arith.constant 0 : index
    %161 = vector.load %arg6[%c3_81, %c0_82, %c0_83] : memref<8x32x128xbf16, #tpu.memory_space<vmem>>, vector<1x32x128xbf16>
    %162 = vector.shape_cast %161 : vector<1x32x128xbf16> to vector<32x128xbf16>
    %cst_84 = arith.constant dense<0.000000e+00> : vector<8x128xf32>
    %163 = tpu.matmul %160, %162, %cst_84 {dimension_numbers = #tpu.dot_dimension_numbers<[1], [0], [0], [1], [0, 0, 1, 1], [], []>} : vector<8x32xbf16>, vector<32x128xbf16>, vector<8x128xf32> -> vector<8x128xf32>
    %164 = arith.addf %159, %163 : vector<8x128xf32>
    %c0_85 = arith.constant 0 : index
    %c0_86 = arith.constant 0 : index
    %c0_87 = arith.constant 0 : index
    %165 = vector.load %arg7[%c0_85, %c0_86, %c0_87] : memref<2x8x128xf32, #tpu.memory_space<vmem>>, vector<1x8x128xf32>
    %166 = vector.shape_cast %165 : vector<1x8x128xf32> to vector<8x128xf32>
    %167 = arith.addf %164, %166 : vector<8x128xf32>
    %168 = arith.negf %167 : vector<8x128xf32>
    %169 = math.exp %168 : vector<8x128xf32>
    %cst_88 = arith.constant 1.000000e+00 : f32
    %170 = vector.broadcast %cst_88 : f32 to vector<8x128xf32>
    %171 = arith.addf %170, %169 : vector<8x128xf32>
    %172 = arith.divf %170, %171 : vector<8x128xf32>
    %173 = math.tanh %167 : vector<8x128xf32>
    %174 = vector.extract_strided_slice %172 {offsets = [0, 0], sizes = [8, 32], strides = [1, 1]} : vector<8x128xf32> to vector<8x32xf32>
    %175 = vector.extract_strided_slice %172 {offsets = [0, 32], sizes = [8, 32], strides = [1, 1]} : vector<8x128xf32> to vector<8x32xf32>
    %176 = vector.extract_strided_slice %173 {offsets = [0, 64], sizes = [8, 32], strides = [1, 1]} : vector<8x128xf32> to vector<8x32xf32>
    %177 = vector.extract_strided_slice %172 {offsets = [0, 96], sizes = [8, 32], strides = [1, 1]} : vector<8x128xf32> to vector<8x32xf32>
    %178 = arith.mulf %175, %72 : vector<8x32xf32>
    %179 = arith.mulf %174, %176 : vector<8x32xf32>
    %180 = arith.addf %178, %179 : vector<8x32xf32>
    %181 = math.tanh %180 : vector<8x32xf32>
    %182 = arith.mulf %177, %181 : vector<8x32xf32>
    %c8_89 = arith.constant 8 : index
    %c0_90 = arith.constant 0 : index
    %183 = vector.load %arg17[%c8_89, %c0_90] : memref<64x32xf32, #tpu.memory_space<vmem>>, vector<8x32xf32>
    tpu.vector_store %arg17[%c8_89, %c0_90], %182 {strides = array<i32>} : memref<64x32xf32, #tpu.memory_space<vmem>>, vector<8x32xf32>,
    %c8_91 = arith.constant 8 : index
    %c0_92 = arith.constant 0 : index
    %184 = vector.load %arg16[%c8_91, %c0_92] : memref<64x128xf32, #tpu.memory_space<vmem>>, vector<8x128xf32>
    %185 = arith.truncf %182 : vector<8x32xf32> to vector<8x32xbf16>
    %c4_93 = arith.constant 4 : index
    %c0_94 = arith.constant 0 : index
    %c0_95 = arith.constant 0 : index
    %186 = vector.load %arg6[%c4_93, %c0_94, %c0_95] : memref<8x32x128xbf16, #tpu.memory_space<vmem>>, vector<1x32x128xbf16>
    %187 = vector.shape_cast %186 : vector<1x32x128xbf16> to vector<32x128xbf16>
    %cst_96 = arith.constant dense<0.000000e+00> : vector<8x128xf32>
    %188 = tpu.matmul %185, %187, %cst_96 {dimension_numbers = #tpu.dot_dimension_numbers<[1], [0], [0], [1], [0, 0, 1, 1], [], []>} : vector<8x32xbf16>, vector<32x128xbf16>, vector<8x128xf32> -> vector<8x128xf32>
    %189 = arith.addf %184, %188 : vector<8x128xf32>
    %190 = arith.truncf %101 : vector<8x32xf32> to vector<8x32xbf16>
    %c5_97 = arith.constant 5 : index
    %c0_98 = arith.constant 0 : index
    %c0_99 = arith.constant 0 : index
    %191 = vector.load %arg6[%c5_97, %c0_98, %c0_99] : memref<8x32x128xbf16, #tpu.memory_space<vmem>>, vector<1x32x128xbf16>
    %192 = vector.shape_cast %191 : vector<1x32x128xbf16> to vector<32x128xbf16>
    %cst_100 = arith.constant dense<0.000000e+00> : vector<8x128xf32>
    %193 = tpu.matmul %190, %192, %cst_100 {dimension_numbers = #tpu.dot_dimension_numbers<[1], [0], [0], [1], [0, 0, 1, 1], [], []>} : vector<8x32xbf16>, vector<32x128xbf16>, vector<8x128xf32> -> vector<8x128xf32>
    %194 = arith.addf %189, %193 : vector<8x128xf32>
    %195 = arith.negf %194 : vector<8x128xf32>
    %196 = math.exp %195 : vector<8x128xf32>
    %cst_101 = arith.constant 1.000000e+00 : f32
    %197 = vector.broadcast %cst_101 : f32 to vector<8x128xf32>
    %198 = arith.addf %197, %196 : vector<8x128xf32>
    %199 = arith.divf %197, %198 : vector<8x128xf32>
    %200 = math.tanh %194 : vector<8x128xf32>
    %201 = vector.extract_strided_slice %199 {offsets = [0, 0], sizes = [8, 32], strides = [1, 1]} : vector<8x128xf32> to vector<8x32xf32>
    %202 = vector.extract_strided_slice %199 {offsets = [0, 32], sizes = [8, 32], strides = [1, 1]} : vector<8x128xf32> to vector<8x32xf32>
    %203 = vector.extract_strided_slice %200 {offsets = [0, 64], sizes = [8, 32], strides = [1, 1]} : vector<8x128xf32> to vector<8x32xf32>
    %204 = vector.extract_strided_slice %199 {offsets = [0, 96], sizes = [8, 32], strides = [1, 1]} : vector<8x128xf32> to vector<8x32xf32>
    %205 = arith.mulf %202, %99 : vector<8x32xf32>
    %206 = arith.mulf %201, %203 : vector<8x32xf32>
    %207 = arith.addf %205, %206 : vector<8x32xf32>
    %208 = math.tanh %207 : vector<8x32xf32>
    %209 = arith.mulf %204, %208 : vector<8x32xf32>
    %210 = arith.truncf %209 : vector<8x32xf32> to vector<8x32xbf16>
    %c6_102 = arith.constant 6 : index
    %c0_103 = arith.constant 0 : index
    %c0_104 = arith.constant 0 : index
    %211 = vector.load %arg6[%c6_102, %c0_103, %c0_104] : memref<8x32x128xbf16, #tpu.memory_space<vmem>>, vector<1x32x128xbf16>
    %212 = vector.shape_cast %211 : vector<1x32x128xbf16> to vector<32x128xbf16>
    %cst_105 = arith.constant dense<0.000000e+00> : vector<8x128xf32>
    %213 = tpu.matmul %210, %212, %cst_105 {dimension_numbers = #tpu.dot_dimension_numbers<[1], [0], [0], [1], [0, 0, 1, 1], [], []>} : vector<8x32xbf16>, vector<32x128xbf16>, vector<8x128xf32> -> vector<8x128xf32>
    %214 = arith.truncf %128 : vector<8x32xf32> to vector<8x32xbf16>
    %c7_106 = arith.constant 7 : index
    %c0_107 = arith.constant 0 : index
    %c0_108 = arith.constant 0 : index
    %215 = vector.load %arg6[%c7_106, %c0_107, %c0_108] : memref<8x32x128xbf16, #tpu.memory_space<vmem>>, vector<1x32x128xbf16>
    %216 = vector.shape_cast %215 : vector<1x32x128xbf16> to vector<32x128xbf16>
    %cst_109 = arith.constant dense<0.000000e+00> : vector<8x128xf32>
    %217 = tpu.matmul %214, %216, %cst_109 {dimension_numbers = #tpu.dot_dimension_numbers<[1], [0], [0], [1], [0, 0, 1, 1], [], []>} : vector<8x32xbf16>, vector<32x128xbf16>, vector<8x128xf32> -> vector<8x128xf32>
    %218 = arith.addf %213, %217 : vector<8x128xf32>
    %c1_110 = arith.constant 1 : index
    %c0_111 = arith.constant 0 : index
    %c0_112 = arith.constant 0 : index
    %219 = vector.load %arg7[%c1_110, %c0_111, %c0_112] : memref<2x8x128xf32, #tpu.memory_space<vmem>>, vector<1x8x128xf32>
    %220 = vector.shape_cast %219 : vector<1x8x128xf32> to vector<8x128xf32>
    %221 = arith.addf %218, %220 : vector<8x128xf32>
    %222 = arith.negf %221 : vector<8x128xf32>
    %223 = math.exp %222 : vector<8x128xf32>
    %cst_113 = arith.constant 1.000000e+00 : f32
    %224 = vector.broadcast %cst_113 : f32 to vector<8x128xf32>
    %225 = arith.addf %224, %223 : vector<8x128xf32>
    %226 = arith.divf %224, %225 : vector<8x128xf32>
    %227 = math.tanh %221 : vector<8x128xf32>
    %228 = vector.extract_strided_slice %226 {offsets = [0, 0], sizes = [8, 32], strides = [1, 1]} : vector<8x128xf32> to vector<8x32xf32>
    %229 = vector.extract_strided_slice %226 {offsets = [0, 32], sizes = [8, 32], strides = [1, 1]} : vector<8x128xf32> to vector<8x32xf32>
    %230 = vector.extract_strided_slice %227 {offsets = [0, 64], sizes = [8, 32], strides = [1, 1]} : vector<8x128xf32> to vector<8x32xf32>
    %231 = vector.extract_strided_slice %226 {offsets = [0, 96], sizes = [8, 32], strides = [1, 1]} : vector<8x128xf32> to vector<8x32xf32>
    %232 = arith.mulf %229, %126 : vector<8x32xf32>
    %233 = arith.mulf %228, %230 : vector<8x32xf32>
    %234 = arith.addf %232, %233 : vector<8x32xf32>
    %235 = math.tanh %234 : vector<8x32xf32>
    %236 = arith.mulf %231, %235 : vector<8x32xf32>
    %c8_114 = arith.constant 8 : index
    %c0_115 = arith.constant 0 : index
    %237 = vector.load %arg18[%c8_114, %c0_115] : memref<64x32xf32, #tpu.memory_space<vmem>>, vector<8x32xf32>
    tpu.vector_store %arg18[%c8_114, %c0_115], %236 {strides = array<i32>} : memref<64x32xf32, #tpu.memory_space<vmem>>, vector<8x32xf32>,
    %c16 = arith.constant 16 : index
    %c0_116 = arith.constant 0 : index
    %238 = vector.load %arg15[%c16, %c0_116] : memref<64x128xf32, #tpu.memory_space<vmem>>, vector<8x128xf32>
    %239 = arith.truncf %236 : vector<8x32xf32> to vector<8x32xbf16>
    %c0_117 = arith.constant 0 : index
    %c0_118 = arith.constant 0 : index
    %c0_119 = arith.constant 0 : index
    %240 = vector.load %arg6[%c0_117, %c0_118, %c0_119] : memref<8x32x128xbf16, #tpu.memory_space<vmem>>, vector<1x32x128xbf16>
    %241 = vector.shape_cast %240 : vector<1x32x128xbf16> to vector<32x128xbf16>
    %cst_120 = arith.constant dense<0.000000e+00> : vector<8x128xf32>
    %242 = tpu.matmul %239, %241, %cst_120 {dimension_numbers = #tpu.dot_dimension_numbers<[1], [0], [0], [1], [0, 0, 1, 1], [], []>} : vector<8x32xbf16>, vector<32x128xbf16>, vector<8x128xf32> -> vector<8x128xf32>
    %243 = arith.addf %238, %242 : vector<8x128xf32>
    %244 = arith.truncf %155 : vector<8x32xf32> to vector<8x32xbf16>
    %c1_121 = arith.constant 1 : index
    %c0_122 = arith.constant 0 : index
    %c0_123 = arith.constant 0 : index
    %245 = vector.load %arg6[%c1_121, %c0_122, %c0_123] : memref<8x32x128xbf16, #tpu.memory_space<vmem>>, vector<1x32x128xbf16>
    %246 = vector.shape_cast %245 : vector<1x32x128xbf16> to vector<32x128xbf16>
    %cst_124 = arith.constant dense<0.000000e+00> : vector<8x128xf32>
    %247 = tpu.matmul %244, %246, %cst_124 {dimension_numbers = #tpu.dot_dimension_numbers<[1], [0], [0], [1], [0, 0, 1, 1], [], []>} : vector<8x32xbf16>, vector<32x128xbf16>, vector<8x128xf32> -> vector<8x128xf32>
    %248 = arith.addf %243, %247 : vector<8x128xf32>
    %249 = arith.negf %248 : vector<8x128xf32>
    %250 = math.exp %249 : vector<8x128xf32>
    %cst_125 = arith.constant 1.000000e+00 : f32
    %251 = vector.broadcast %cst_125 : f32 to vector<8x128xf32>
    %252 = arith.addf %251, %250 : vector<8x128xf32>
    %253 = arith.divf %251, %252 : vector<8x128xf32>
    %254 = math.tanh %248 : vector<8x128xf32>
    %255 = vector.extract_strided_slice %253 {offsets = [0, 0], sizes = [8, 32], strides = [1, 1]} : vector<8x128xf32> to vector<8x32xf32>
    %256 = vector.extract_strided_slice %253 {offsets = [0, 32], sizes = [8, 32], strides = [1, 1]} : vector<8x128xf32> to vector<8x32xf32>
    %257 = vector.extract_strided_slice %254 {offsets = [0, 64], sizes = [8, 32], strides = [1, 1]} : vector<8x128xf32> to vector<8x32xf32>
    %258 = vector.extract_strided_slice %253 {offsets = [0, 96], sizes = [8, 32], strides = [1, 1]} : vector<8x128xf32> to vector<8x32xf32>
    %259 = arith.mulf %256, %153 : vector<8x32xf32>
    %260 = arith.mulf %255, %257 : vector<8x32xf32>
    %261 = arith.addf %259, %260 : vector<8x32xf32>
    %262 = math.tanh %261 : vector<8x32xf32>
    %263 = arith.mulf %258, %262 : vector<8x32xf32>
    %264 = arith.truncf %263 : vector<8x32xf32> to vector<8x32xbf16>
    %c2_126 = arith.constant 2 : index
    %c0_127 = arith.constant 0 : index
    %c0_128 = arith.constant 0 : index
    %265 = vector.load %arg6[%c2_126, %c0_127, %c0_128] : memref<8x32x128xbf16, #tpu.memory_space<vmem>>, vector<1x32x128xbf16>
    %266 = vector.shape_cast %265 : vector<1x32x128xbf16> to vector<32x128xbf16>
    %cst_129 = arith.constant dense<0.000000e+00> : vector<8x128xf32>
    %267 = tpu.matmul %264, %266, %cst_129 {dimension_numbers = #tpu.dot_dimension_numbers<[1], [0], [0], [1], [0, 0, 1, 1], [], []>} : vector<8x32xbf16>, vector<32x128xbf16>, vector<8x128xf32> -> vector<8x128xf32>
    %268 = arith.truncf %182 : vector<8x32xf32> to vector<8x32xbf16>
    %c3_130 = arith.constant 3 : index
    %c0_131 = arith.constant 0 : index
    %c0_132 = arith.constant 0 : index
    %269 = vector.load %arg6[%c3_130, %c0_131, %c0_132] : memref<8x32x128xbf16, #tpu.memory_space<vmem>>, vector<1x32x128xbf16>
    %270 = vector.shape_cast %269 : vector<1x32x128xbf16> to vector<32x128xbf16>
    %cst_133 = arith.constant dense<0.000000e+00> : vector<8x128xf32>
    %271 = tpu.matmul %268, %270, %cst_133 {dimension_numbers = #tpu.dot_dimension_numbers<[1], [0], [0], [1], [0, 0, 1, 1], [], []>} : vector<8x32xbf16>, vector<32x128xbf16>, vector<8x128xf32> -> vector<8x128xf32>
    %272 = arith.addf %267, %271 : vector<8x128xf32>
    %c0_134 = arith.constant 0 : index
    %c0_135 = arith.constant 0 : index
    %c0_136 = arith.constant 0 : index
    %273 = vector.load %arg7[%c0_134, %c0_135, %c0_136] : memref<2x8x128xf32, #tpu.memory_space<vmem>>, vector<1x8x128xf32>
    %274 = vector.shape_cast %273 : vector<1x8x128xf32> to vector<8x128xf32>
    %275 = arith.addf %272, %274 : vector<8x128xf32>
    %276 = arith.negf %275 : vector<8x128xf32>
    %277 = math.exp %276 : vector<8x128xf32>
    %cst_137 = arith.constant 1.000000e+00 : f32
    %278 = vector.broadcast %cst_137 : f32 to vector<8x128xf32>
    %279 = arith.addf %278, %277 : vector<8x128xf32>
    %280 = arith.divf %278, %279 : vector<8x128xf32>
    %281 = math.tanh %275 : vector<8x128xf32>
    %282 = vector.extract_strided_slice %280 {offsets = [0, 0], sizes = [8, 32], strides = [1, 1]} : vector<8x128xf32> to vector<8x32xf32>
    %283 = vector.extract_strided_slice %280 {offsets = [0, 32], sizes = [8, 32], strides = [1, 1]} : vector<8x128xf32> to vector<8x32xf32>
    %284 = vector.extract_strided_slice %281 {offsets = [0, 64], sizes = [8, 32], strides = [1, 1]} : vector<8x128xf32> to vector<8x32xf32>
    %285 = vector.extract_strided_slice %280 {offsets = [0, 96], sizes = [8, 32], strides = [1, 1]} : vector<8x128xf32> to vector<8x32xf32>
    %286 = arith.mulf %283, %180 : vector<8x32xf32>
    %287 = arith.mulf %282, %284 : vector<8x32xf32>
    %288 = arith.addf %286, %287 : vector<8x32xf32>
    %289 = math.tanh %288 : vector<8x32xf32>
    %290 = arith.mulf %285, %289 : vector<8x32xf32>
    %c16_138 = arith.constant 16 : index
    %c0_139 = arith.constant 0 : index
    %291 = vector.load %arg17[%c16_138, %c0_139] : memref<64x32xf32, #tpu.memory_space<vmem>>, vector<8x32xf32>
    tpu.vector_store %arg17[%c16_138, %c0_139], %290 {strides = array<i32>} : memref<64x32xf32, #tpu.memory_space<vmem>>, vector<8x32xf32>,
    %c16_140 = arith.constant 16 : index
    %c0_141 = arith.constant 0 : index
    %292 = vector.load %arg16[%c16_140, %c0_141] : memref<64x128xf32, #tpu.memory_space<vmem>>, vector<8x128xf32>
    %293 = arith.truncf %290 : vector<8x32xf32> to vector<8x32xbf16>
    %c4_142 = arith.constant 4 : index
    %c0_143 = arith.constant 0 : index
    %c0_144 = arith.constant 0 : index
    %294 = vector.load %arg6[%c4_142, %c0_143, %c0_144] : memref<8x32x128xbf16, #tpu.memory_space<vmem>>, vector<1x32x128xbf16>
    %295 = vector.shape_cast %294 : vector<1x32x128xbf16> to vector<32x128xbf16>
    %cst_145 = arith.constant dense<0.000000e+00> : vector<8x128xf32>
    %296 = tpu.matmul %293, %295, %cst_145 {dimension_numbers = #tpu.dot_dimension_numbers<[1], [0], [0], [1], [0, 0, 1, 1], [], []>} : vector<8x32xbf16>, vector<32x128xbf16>, vector<8x128xf32> -> vector<8x128xf32>
    %297 = arith.addf %292, %296 : vector<8x128xf32>
    %298 = arith.truncf %209 : vector<8x32xf32> to vector<8x32xbf16>
    %c5_146 = arith.constant 5 : index
    %c0_147 = arith.constant 0 : index
    %c0_148 = arith.constant 0 : index
    %299 = vector.load %arg6[%c5_146, %c0_147, %c0_148] : memref<8x32x128xbf16, #tpu.memory_space<vmem>>, vector<1x32x128xbf16>
    %300 = vector.shape_cast %299 : vector<1x32x128xbf16> to vector<32x128xbf16>
    %cst_149 = arith.constant dense<0.000000e+00> : vector<8x128xf32>
    %301 = tpu.matmul %298, %300, %cst_149 {dimension_numbers = #tpu.dot_dimension_numbers<[1], [0], [0], [1], [0, 0, 1, 1], [], []>} : vector<8x32xbf16>, vector<32x128xbf16>, vector<8x128xf32> -> vector<8x128xf32>
    %302 = arith.addf %297, %301 : vector<8x128xf32>
    %303 = arith.negf %302 : vector<8x128xf32>
    %304 = math.exp %303 : vector<8x128xf32>
    %cst_150 = arith.constant 1.000000e+00 : f32
    %305 = vector.broadcast %cst_150 : f32 to vector<8x128xf32>
    %306 = arith.addf %305, %304 : vector<8x128xf32>
    %307 = arith.divf %305, %306 : vector<8x128xf32>
    %308 = math.tanh %302 : vector<8x128xf32>
    %309 = vector.extract_strided_slice %307 {offsets = [0, 0], sizes = [8, 32], strides = [1, 1]} : vector<8x128xf32> to vector<8x32xf32>
    %310 = vector.extract_strided_slice %307 {offsets = [0, 32], sizes = [8, 32], strides = [1, 1]} : vector<8x128xf32> to vector<8x32xf32>
    %311 = vector.extract_strided_slice %308 {offsets = [0, 64], sizes = [8, 32], strides = [1, 1]} : vector<8x128xf32> to vector<8x32xf32>
    %312 = vector.extract_strided_slice %307 {offsets = [0, 96], sizes = [8, 32], strides = [1, 1]} : vector<8x128xf32> to vector<8x32xf32>
    %313 = arith.mulf %310, %207 : vector<8x32xf32>
    %314 = arith.mulf %309, %311 : vector<8x32xf32>
    %315 = arith.addf %313, %314 : vector<8x32xf32>
    %316 = math.tanh %315 : vector<8x32xf32>
    %317 = arith.mulf %312, %316 : vector<8x32xf32>
    %318 = arith.truncf %317 : vector<8x32xf32> to vector<8x32xbf16>
    %c6_151 = arith.constant 6 : index
    %c0_152 = arith.constant 0 : index
    %c0_153 = arith.constant 0 : index
    %319 = vector.load %arg6[%c6_151, %c0_152, %c0_153] : memref<8x32x128xbf16, #tpu.memory_space<vmem>>, vector<1x32x128xbf16>
    %320 = vector.shape_cast %319 : vector<1x32x128xbf16> to vector<32x128xbf16>
    %cst_154 = arith.constant dense<0.000000e+00> : vector<8x128xf32>
    %321 = tpu.matmul %318, %320, %cst_154 {dimension_numbers = #tpu.dot_dimension_numbers<[1], [0], [0], [1], [0, 0, 1, 1], [], []>} : vector<8x32xbf16>, vector<32x128xbf16>, vector<8x128xf32> -> vector<8x128xf32>
    %322 = arith.truncf %236 : vector<8x32xf32> to vector<8x32xbf16>
    %c7_155 = arith.constant 7 : index
    %c0_156 = arith.constant 0 : index
    %c0_157 = arith.constant 0 : index
    %323 = vector.load %arg6[%c7_155, %c0_156, %c0_157] : memref<8x32x128xbf16, #tpu.memory_space<vmem>>, vector<1x32x128xbf16>
    %324 = vector.shape_cast %323 : vector<1x32x128xbf16> to vector<32x128xbf16>
    %cst_158 = arith.constant dense<0.000000e+00> : vector<8x128xf32>
    %325 = tpu.matmul %322, %324, %cst_158 {dimension_numbers = #tpu.dot_dimension_numbers<[1], [0], [0], [1], [0, 0, 1, 1], [], []>} : vector<8x32xbf16>, vector<32x128xbf16>, vector<8x128xf32> -> vector<8x128xf32>
    %326 = arith.addf %321, %325 : vector<8x128xf32>
    %c1_159 = arith.constant 1 : index
    %c0_160 = arith.constant 0 : index
    %c0_161 = arith.constant 0 : index
    %327 = vector.load %arg7[%c1_159, %c0_160, %c0_161] : memref<2x8x128xf32, #tpu.memory_space<vmem>>, vector<1x8x128xf32>
    %328 = vector.shape_cast %327 : vector<1x8x128xf32> to vector<8x128xf32>
    %329 = arith.addf %326, %328 : vector<8x128xf32>
    %330 = arith.negf %329 : vector<8x128xf32>
    %331 = math.exp %330 : vector<8x128xf32>
    %cst_162 = arith.constant 1.000000e+00 : f32
    %332 = vector.broadcast %cst_162 : f32 to vector<8x128xf32>
    %333 = arith.addf %332, %331 : vector<8x128xf32>
    %334 = arith.divf %332, %333 : vector<8x128xf32>
    %335 = math.tanh %329 : vector<8x128xf32>
    %336 = vector.extract_strided_slice %334 {offsets = [0, 0], sizes = [8, 32], strides = [1, 1]} : vector<8x128xf32> to vector<8x32xf32>
    %337 = vector.extract_strided_slice %334 {offsets = [0, 32], sizes = [8, 32], strides = [1, 1]} : vector<8x128xf32> to vector<8x32xf32>
    %338 = vector.extract_strided_slice %335 {offsets = [0, 64], sizes = [8, 32], strides = [1, 1]} : vector<8x128xf32> to vector<8x32xf32>
    %339 = vector.extract_strided_slice %334 {offsets = [0, 96], sizes = [8, 32], strides = [1, 1]} : vector<8x128xf32> to vector<8x32xf32>
    %340 = arith.mulf %337, %234 : vector<8x32xf32>
    %341 = arith.mulf %336, %338 : vector<8x32xf32>
    %342 = arith.addf %340, %341 : vector<8x32xf32>
    %343 = math.tanh %342 : vector<8x32xf32>
    %344 = arith.mulf %339, %343 : vector<8x32xf32>
    %c16_163 = arith.constant 16 : index
    %c0_164 = arith.constant 0 : index
    %345 = vector.load %arg18[%c16_163, %c0_164] : memref<64x32xf32, #tpu.memory_space<vmem>>, vector<8x32xf32>
    tpu.vector_store %arg18[%c16_163, %c0_164], %344 {strides = array<i32>} : memref<64x32xf32, #tpu.memory_space<vmem>>, vector<8x32xf32>,
    %c24 = arith.constant 24 : index
    %c0_165 = arith.constant 0 : index
    %346 = vector.load %arg15[%c24, %c0_165] : memref<64x128xf32, #tpu.memory_space<vmem>>, vector<8x128xf32>
    %347 = arith.truncf %344 : vector<8x32xf32> to vector<8x32xbf16>
    %c0_166 = arith.constant 0 : index
    %c0_167 = arith.constant 0 : index
    %c0_168 = arith.constant 0 : index
    %348 = vector.load %arg6[%c0_166, %c0_167, %c0_168] : memref<8x32x128xbf16, #tpu.memory_space<vmem>>, vector<1x32x128xbf16>
    %349 = vector.shape_cast %348 : vector<1x32x128xbf16> to vector<32x128xbf16>
    %cst_169 = arith.constant dense<0.000000e+00> : vector<8x128xf32>
    %350 = tpu.matmul %347, %349, %cst_169 {dimension_numbers = #tpu.dot_dimension_numbers<[1], [0], [0], [1], [0, 0, 1, 1], [], []>} : vector<8x32xbf16>, vector<32x128xbf16>, vector<8x128xf32> -> vector<8x128xf32>
    %351 = arith.addf %346, %350 : vector<8x128xf32>
    %352 = arith.truncf %263 : vector<8x32xf32> to vector<8x32xbf16>
    %c1_170 = arith.constant 1 : index
    %c0_171 = arith.constant 0 : index
    %c0_172 = arith.constant 0 : index
    %353 = vector.load %arg6[%c1_170, %c0_171, %c0_172] : memref<8x32x128xbf16, #tpu.memory_space<vmem>>, vector<1x32x128xbf16>
    %354 = vector.shape_cast %353 : vector<1x32x128xbf16> to vector<32x128xbf16>
    %cst_173 = arith.constant dense<0.000000e+00> : vector<8x128xf32>
    %355 = tpu.matmul %352, %354, %cst_173 {dimension_numbers = #tpu.dot_dimension_numbers<[1], [0], [0], [1], [0, 0, 1, 1], [], []>} : vector<8x32xbf16>, vector<32x128xbf16>, vector<8x128xf32> -> vector<8x128xf32>
    %356 = arith.addf %351, %355 : vector<8x128xf32>
    %357 = arith.negf %356 : vector<8x128xf32>
    %358 = math.exp %357 : vector<8x128xf32>
    %cst_174 = arith.constant 1.000000e+00 : f32
    %359 = vector.broadcast %cst_174 : f32 to vector<8x128xf32>
    %360 = arith.addf %359, %358 : vector<8x128xf32>
    %361 = arith.divf %359, %360 : vector<8x128xf32>
    %362 = math.tanh %356 : vector<8x128xf32>
    %363 = vector.extract_strided_slice %361 {offsets = [0, 0], sizes = [8, 32], strides = [1, 1]} : vector<8x128xf32> to vector<8x32xf32>
    %364 = vector.extract_strided_slice %361 {offsets = [0, 32], sizes = [8, 32], strides = [1, 1]} : vector<8x128xf32> to vector<8x32xf32>
    %365 = vector.extract_strided_slice %362 {offsets = [0, 64], sizes = [8, 32], strides = [1, 1]} : vector<8x128xf32> to vector<8x32xf32>
    %366 = vector.extract_strided_slice %361 {offsets = [0, 96], sizes = [8, 32], strides = [1, 1]} : vector<8x128xf32> to vector<8x32xf32>
    %367 = arith.mulf %364, %261 : vector<8x32xf32>
    %368 = arith.mulf %363, %365 : vector<8x32xf32>
    %369 = arith.addf %367, %368 : vector<8x32xf32>
    %370 = math.tanh %369 : vector<8x32xf32>
    %371 = arith.mulf %366, %370 : vector<8x32xf32>
    %372 = arith.truncf %371 : vector<8x32xf32> to vector<8x32xbf16>
    %c2_175 = arith.constant 2 : index
    %c0_176 = arith.constant 0 : index
    %c0_177 = arith.constant 0 : index
    %373 = vector.load %arg6[%c2_175, %c0_176, %c0_177] : memref<8x32x128xbf16, #tpu.memory_space<vmem>>, vector<1x32x128xbf16>
    %374 = vector.shape_cast %373 : vector<1x32x128xbf16> to vector<32x128xbf16>
    %cst_178 = arith.constant dense<0.000000e+00> : vector<8x128xf32>
    %375 = tpu.matmul %372, %374, %cst_178 {dimension_numbers = #tpu.dot_dimension_numbers<[1], [0], [0], [1], [0, 0, 1, 1], [], []>} : vector<8x32xbf16>, vector<32x128xbf16>, vector<8x128xf32> -> vector<8x128xf32>
    %376 = arith.truncf %290 : vector<8x32xf32> to vector<8x32xbf16>
    %c3_179 = arith.constant 3 : index
    %c0_180 = arith.constant 0 : index
    %c0_181 = arith.constant 0 : index
    %377 = vector.load %arg6[%c3_179, %c0_180, %c0_181] : memref<8x32x128xbf16, #tpu.memory_space<vmem>>, vector<1x32x128xbf16>
    %378 = vector.shape_cast %377 : vector<1x32x128xbf16> to vector<32x128xbf16>
    %cst_182 = arith.constant dense<0.000000e+00> : vector<8x128xf32>
    %379 = tpu.matmul %376, %378, %cst_182 {dimension_numbers = #tpu.dot_dimension_numbers<[1], [0], [0], [1], [0, 0, 1, 1], [], []>} : vector<8x32xbf16>, vector<32x128xbf16>, vector<8x128xf32> -> vector<8x128xf32>
    %380 = arith.addf %375, %379 : vector<8x128xf32>
    %c0_183 = arith.constant 0 : index
    %c0_184 = arith.constant 0 : index
    %c0_185 = arith.constant 0 : index
    %381 = vector.load %arg7[%c0_183, %c0_184, %c0_185] : memref<2x8x128xf32, #tpu.memory_space<vmem>>, vector<1x8x128xf32>
    %382 = vector.shape_cast %381 : vector<1x8x128xf32> to vector<8x128xf32>
    %383 = arith.addf %380, %382 : vector<8x128xf32>
    %384 = arith.negf %383 : vector<8x128xf32>
    %385 = math.exp %384 : vector<8x128xf32>
    %cst_186 = arith.constant 1.000000e+00 : f32
    %386 = vector.broadcast %cst_186 : f32 to vector<8x128xf32>
    %387 = arith.addf %386, %385 : vector<8x128xf32>
    %388 = arith.divf %386, %387 : vector<8x128xf32>
    %389 = math.tanh %383 : vector<8x128xf32>
    %390 = vector.extract_strided_slice %388 {offsets = [0, 0], sizes = [8, 32], strides = [1, 1]} : vector<8x128xf32> to vector<8x32xf32>
    %391 = vector.extract_strided_slice %388 {offsets = [0, 32], sizes = [8, 32], strides = [1, 1]} : vector<8x128xf32> to vector<8x32xf32>
    %392 = vector.extract_strided_slice %389 {offsets = [0, 64], sizes = [8, 32], strides = [1, 1]} : vector<8x128xf32> to vector<8x32xf32>
    %393 = vector.extract_strided_slice %388 {offsets = [0, 96], sizes = [8, 32], strides = [1, 1]} : vector<8x128xf32> to vector<8x32xf32>
    %394 = arith.mulf %391, %288 : vector<8x32xf32>
    %395 = arith.mulf %390, %392 : vector<8x32xf32>
    %396 = arith.addf %394, %395 : vector<8x32xf32>
    %397 = math.tanh %396 : vector<8x32xf32>
    %398 = arith.mulf %393, %397 : vector<8x32xf32>
    %c24_187 = arith.constant 24 : index
    %c0_188 = arith.constant 0 : index
    %399 = vector.load %arg17[%c24_187, %c0_188] : memref<64x32xf32, #tpu.memory_space<vmem>>, vector<8x32xf32>
    tpu.vector_store %arg17[%c24_187, %c0_188], %398 {strides = array<i32>} : memref<64x32xf32, #tpu.memory_space<vmem>>, vector<8x32xf32>,
    %c24_189 = arith.constant 24 : index
    %c0_190 = arith.constant 0 : index
    %400 = vector.load %arg16[%c24_189, %c0_190] : memref<64x128xf32, #tpu.memory_space<vmem>>, vector<8x128xf32>
    %401 = arith.truncf %398 : vector<8x32xf32> to vector<8x32xbf16>
    %c4_191 = arith.constant 4 : index
    %c0_192 = arith.constant 0 : index
    %c0_193 = arith.constant 0 : index
    %402 = vector.load %arg6[%c4_191, %c0_192, %c0_193] : memref<8x32x128xbf16, #tpu.memory_space<vmem>>, vector<1x32x128xbf16>
    %403 = vector.shape_cast %402 : vector<1x32x128xbf16> to vector<32x128xbf16>
    %cst_194 = arith.constant dense<0.000000e+00> : vector<8x128xf32>
    %404 = tpu.matmul %401, %403, %cst_194 {dimension_numbers = #tpu.dot_dimension_numbers<[1], [0], [0], [1], [0, 0, 1, 1], [], []>} : vector<8x32xbf16>, vector<32x128xbf16>, vector<8x128xf32> -> vector<8x128xf32>
    %405 = arith.addf %400, %404 : vector<8x128xf32>
    %406 = arith.truncf %317 : vector<8x32xf32> to vector<8x32xbf16>
    %c5_195 = arith.constant 5 : index
    %c0_196 = arith.constant 0 : index
    %c0_197 = arith.constant 0 : index
    %407 = vector.load %arg6[%c5_195, %c0_196, %c0_197] : memref<8x32x128xbf16, #tpu.memory_space<vmem>>, vector<1x32x128xbf16>
    %408 = vector.shape_cast %407 : vector<1x32x128xbf16> to vector<32x128xbf16>
    %cst_198 = arith.constant dense<0.000000e+00> : vector<8x128xf32>
    %409 = tpu.matmul %406, %408, %cst_198 {dimension_numbers = #tpu.dot_dimension_numbers<[1], [0], [0], [1], [0, 0, 1, 1], [], []>} : vector<8x32xbf16>, vector<32x128xbf16>, vector<8x128xf32> -> vector<8x128xf32>
    %410 = arith.addf %405, %409 : vector<8x128xf32>
    %411 = arith.negf %410 : vector<8x128xf32>
    %412 = math.exp %411 : vector<8x128xf32>
    %cst_199 = arith.constant 1.000000e+00 : f32
    %413 = vector.broadcast %cst_199 : f32 to vector<8x128xf32>
    %414 = arith.addf %413, %412 : vector<8x128xf32>
    %415 = arith.divf %413, %414 : vector<8x128xf32>
    %416 = math.tanh %410 : vector<8x128xf32>
    %417 = vector.extract_strided_slice %415 {offsets = [0, 0], sizes = [8, 32], strides = [1, 1]} : vector<8x128xf32> to vector<8x32xf32>
    %418 = vector.extract_strided_slice %415 {offsets = [0, 32], sizes = [8, 32], strides = [1, 1]} : vector<8x128xf32> to vector<8x32xf32>
    %419 = vector.extract_strided_slice %416 {offsets = [0, 64], sizes = [8, 32], strides = [1, 1]} : vector<8x128xf32> to vector<8x32xf32>
    %420 = vector.extract_strided_slice %415 {offsets = [0, 96], sizes = [8, 32], strides = [1, 1]} : vector<8x128xf32> to vector<8x32xf32>
    %421 = arith.mulf %418, %315 : vector<8x32xf32>
    %422 = arith.mulf %417, %419 : vector<8x32xf32>
    %423 = arith.addf %421, %422 : vector<8x32xf32>
    %424 = math.tanh %423 : vector<8x32xf32>
    %425 = arith.mulf %420, %424 : vector<8x32xf32>
    %426 = arith.truncf %425 : vector<8x32xf32> to vector<8x32xbf16>
    %c6_200 = arith.constant 6 : index
    %c0_201 = arith.constant 0 : index
    %c0_202 = arith.constant 0 : index
    %427 = vector.load %arg6[%c6_200, %c0_201, %c0_202] : memref<8x32x128xbf16, #tpu.memory_space<vmem>>, vector<1x32x128xbf16>
    %428 = vector.shape_cast %427 : vector<1x32x128xbf16> to vector<32x128xbf16>
    %cst_203 = arith.constant dense<0.000000e+00> : vector<8x128xf32>
    %429 = tpu.matmul %426, %428, %cst_203 {dimension_numbers = #tpu.dot_dimension_numbers<[1], [0], [0], [1], [0, 0, 1, 1], [], []>} : vector<8x32xbf16>, vector<32x128xbf16>, vector<8x128xf32> -> vector<8x128xf32>
    %430 = arith.truncf %344 : vector<8x32xf32> to vector<8x32xbf16>
    %c7_204 = arith.constant 7 : index
    %c0_205 = arith.constant 0 : index
    %c0_206 = arith.constant 0 : index
    %431 = vector.load %arg6[%c7_204, %c0_205, %c0_206] : memref<8x32x128xbf16, #tpu.memory_space<vmem>>, vector<1x32x128xbf16>
    %432 = vector.shape_cast %431 : vector<1x32x128xbf16> to vector<32x128xbf16>
    %cst_207 = arith.constant dense<0.000000e+00> : vector<8x128xf32>
    %433 = tpu.matmul %430, %432, %cst_207 {dimension_numbers = #tpu.dot_dimension_numbers<[1], [0], [0], [1], [0, 0, 1, 1], [], []>} : vector<8x32xbf16>, vector<32x128xbf16>, vector<8x128xf32> -> vector<8x128xf32>
    %434 = arith.addf %429, %433 : vector<8x128xf32>
    %c1_208 = arith.constant 1 : index
    %c0_209 = arith.constant 0 : index
    %c0_210 = arith.constant 0 : index
    %435 = vector.load %arg7[%c1_208, %c0_209, %c0_210] : memref<2x8x128xf32, #tpu.memory_space<vmem>>, vector<1x8x128xf32>
    %436 = vector.shape_cast %435 : vector<1x8x128xf32> to vector<8x128xf32>
    %437 = arith.addf %434, %436 : vector<8x128xf32>
    %438 = arith.negf %437 : vector<8x128xf32>
    %439 = math.exp %438 : vector<8x128xf32>
    %cst_211 = arith.constant 1.000000e+00 : f32
    %440 = vector.broadcast %cst_211 : f32 to vector<8x128xf32>
    %441 = arith.addf %440, %439 : vector<8x128xf32>
    %442 = arith.divf %440, %441 : vector<8x128xf32>
    %443 = math.tanh %437 : vector<8x128xf32>
    %444 = vector.extract_strided_slice %442 {offsets = [0, 0], sizes = [8, 32], strides = [1, 1]} : vector<8x128xf32> to vector<8x32xf32>
    %445 = vector.extract_strided_slice %442 {offsets = [0, 32], sizes = [8, 32], strides = [1, 1]} : vector<8x128xf32> to vector<8x32xf32>
    %446 = vector.extract_strided_slice %443 {offsets = [0, 64], sizes = [8, 32], strides = [1, 1]} : vector<8x128xf32> to vector<8x32xf32>
    %447 = vector.extract_strided_slice %442 {offsets = [0, 96], sizes = [8, 32], strides = [1, 1]} : vector<8x128xf32> to vector<8x32xf32>
    %448 = arith.mulf %445, %342 : vector<8x32xf32>
    %449 = arith.mulf %444, %446 : vector<8x32xf32>
    %450 = arith.addf %448, %449 : vector<8x32xf32>
    %451 = math.tanh %450 : vector<8x32xf32>
    %452 = arith.mulf %447, %451 : vector<8x32xf32>
    %c24_212 = arith.constant 24 : index
    %c0_213 = arith.constant 0 : index
    %453 = vector.load %arg18[%c24_212, %c0_213] : memref<64x32xf32, #tpu.memory_space<vmem>>, vector<8x32xf32>
    tpu.vector_store %arg18[%c24_212, %c0_213], %452 {strides = array<i32>} : memref<64x32xf32, #tpu.memory_space<vmem>>, vector<8x32xf32>,
    %c32 = arith.constant 32 : index
    %c0_214 = arith.constant 0 : index
    %454 = vector.load %arg15[%c32, %c0_214] : memref<64x128xf32, #tpu.memory_space<vmem>>, vector<8x128xf32>
    %455 = arith.truncf %452 : vector<8x32xf32> to vector<8x32xbf16>
    %c0_215 = arith.constant 0 : index
    %c0_216 = arith.constant 0 : index
    %c0_217 = arith.constant 0 : index
    %456 = vector.load %arg6[%c0_215, %c0_216, %c0_217] : memref<8x32x128xbf16, #tpu.memory_space<vmem>>, vector<1x32x128xbf16>
    %457 = vector.shape_cast %456 : vector<1x32x128xbf16> to vector<32x128xbf16>
    %cst_218 = arith.constant dense<0.000000e+00> : vector<8x128xf32>
    %458 = tpu.matmul %455, %457, %cst_218 {dimension_numbers = #tpu.dot_dimension_numbers<[1], [0], [0], [1], [0, 0, 1, 1], [], []>} : vector<8x32xbf16>, vector<32x128xbf16>, vector<8x128xf32> -> vector<8x128xf32>
    %459 = arith.addf %454, %458 : vector<8x128xf32>
    %460 = arith.truncf %371 : vector<8x32xf32> to vector<8x32xbf16>
    %c1_219 = arith.constant 1 : index
    %c0_220 = arith.constant 0 : index
    %c0_221 = arith.constant 0 : index
    %461 = vector.load %arg6[%c1_219, %c0_220, %c0_221] : memref<8x32x128xbf16, #tpu.memory_space<vmem>>, vector<1x32x128xbf16>
    %462 = vector.shape_cast %461 : vector<1x32x128xbf16> to vector<32x128xbf16>
    %cst_222 = arith.constant dense<0.000000e+00> : vector<8x128xf32>
    %463 = tpu.matmul %460, %462, %cst_222 {dimension_numbers = #tpu.dot_dimension_numbers<[1], [0], [0], [1], [0, 0, 1, 1], [], []>} : vector<8x32xbf16>, vector<32x128xbf16>, vector<8x128xf32> -> vector<8x128xf32>
    %464 = arith.addf %459, %463 : vector<8x128xf32>
    %465 = arith.negf %464 : vector<8x128xf32>
    %466 = math.exp %465 : vector<8x128xf32>
    %cst_223 = arith.constant 1.000000e+00 : f32
    %467 = vector.broadcast %cst_223 : f32 to vector<8x128xf32>
    %468 = arith.addf %467, %466 : vector<8x128xf32>
    %469 = arith.divf %467, %468 : vector<8x128xf32>
    %470 = math.tanh %464 : vector<8x128xf32>
    %471 = vector.extract_strided_slice %469 {offsets = [0, 0], sizes = [8, 32], strides = [1, 1]} : vector<8x128xf32> to vector<8x32xf32>
    %472 = vector.extract_strided_slice %469 {offsets = [0, 32], sizes = [8, 32], strides = [1, 1]} : vector<8x128xf32> to vector<8x32xf32>
    %473 = vector.extract_strided_slice %470 {offsets = [0, 64], sizes = [8, 32], strides = [1, 1]} : vector<8x128xf32> to vector<8x32xf32>
    %474 = vector.extract_strided_slice %469 {offsets = [0, 96], sizes = [8, 32], strides = [1, 1]} : vector<8x128xf32> to vector<8x32xf32>
    %475 = arith.mulf %472, %369 : vector<8x32xf32>
    %476 = arith.mulf %471, %473 : vector<8x32xf32>
    %477 = arith.addf %475, %476 : vector<8x32xf32>
    %478 = math.tanh %477 : vector<8x32xf32>
    %479 = arith.mulf %474, %478 : vector<8x32xf32>
    %480 = arith.truncf %479 : vector<8x32xf32> to vector<8x32xbf16>
    %c2_224 = arith.constant 2 : index
    %c0_225 = arith.constant 0 : index
    %c0_226 = arith.constant 0 : index
    %481 = vector.load %arg6[%c2_224, %c0_225, %c0_226] : memref<8x32x128xbf16, #tpu.memory_space<vmem>>, vector<1x32x128xbf16>
    %482 = vector.shape_cast %481 : vector<1x32x128xbf16> to vector<32x128xbf16>
    %cst_227 = arith.constant dense<0.000000e+00> : vector<8x128xf32>
    %483 = tpu.matmul %480, %482, %cst_227 {dimension_numbers = #tpu.dot_dimension_numbers<[1], [0], [0], [1], [0, 0, 1, 1], [], []>} : vector<8x32xbf16>, vector<32x128xbf16>, vector<8x128xf32> -> vector<8x128xf32>
    %484 = arith.truncf %398 : vector<8x32xf32> to vector<8x32xbf16>
    %c3_228 = arith.constant 3 : index
    %c0_229 = arith.constant 0 : index
    %c0_230 = arith.constant 0 : index
    %485 = vector.load %arg6[%c3_228, %c0_229, %c0_230] : memref<8x32x128xbf16, #tpu.memory_space<vmem>>, vector<1x32x128xbf16>
    %486 = vector.shape_cast %485 : vector<1x32x128xbf16> to vector<32x128xbf16>
    %cst_231 = arith.constant dense<0.000000e+00> : vector<8x128xf32>
    %487 = tpu.matmul %484, %486, %cst_231 {dimension_numbers = #tpu.dot_dimension_numbers<[1], [0], [0], [1], [0, 0, 1, 1], [], []>} : vector<8x32xbf16>, vector<32x128xbf16>, vector<8x128xf32> -> vector<8x128xf32>
    %488 = arith.addf %483, %487 : vector<8x128xf32>
    %c0_232 = arith.constant 0 : index
    %c0_233 = arith.constant 0 : index
    %c0_234 = arith.constant 0 : index
    %489 = vector.load %arg7[%c0_232, %c0_233, %c0_234] : memref<2x8x128xf32, #tpu.memory_space<vmem>>, vector<1x8x128xf32>
    %490 = vector.shape_cast %489 : vector<1x8x128xf32> to vector<8x128xf32>
    %491 = arith.addf %488, %490 : vector<8x128xf32>
    %492 = arith.negf %491 : vector<8x128xf32>
    %493 = math.exp %492 : vector<8x128xf32>
    %cst_235 = arith.constant 1.000000e+00 : f32
    %494 = vector.broadcast %cst_235 : f32 to vector<8x128xf32>
    %495 = arith.addf %494, %493 : vector<8x128xf32>
    %496 = arith.divf %494, %495 : vector<8x128xf32>
    %497 = math.tanh %491 : vector<8x128xf32>
    %498 = vector.extract_strided_slice %496 {offsets = [0, 0], sizes = [8, 32], strides = [1, 1]} : vector<8x128xf32> to vector<8x32xf32>
    %499 = vector.extract_strided_slice %496 {offsets = [0, 32], sizes = [8, 32], strides = [1, 1]} : vector<8x128xf32> to vector<8x32xf32>
    %500 = vector.extract_strided_slice %497 {offsets = [0, 64], sizes = [8, 32], strides = [1, 1]} : vector<8x128xf32> to vector<8x32xf32>
    %501 = vector.extract_strided_slice %496 {offsets = [0, 96], sizes = [8, 32], strides = [1, 1]} : vector<8x128xf32> to vector<8x32xf32>
    %502 = arith.mulf %499, %396 : vector<8x32xf32>
    %503 = arith.mulf %498, %500 : vector<8x32xf32>
    %504 = arith.addf %502, %503 : vector<8x32xf32>
    %505 = math.tanh %504 : vector<8x32xf32>
    %506 = arith.mulf %501, %505 : vector<8x32xf32>
    %c32_236 = arith.constant 32 : index
    %c0_237 = arith.constant 0 : index
    %507 = vector.load %arg17[%c32_236, %c0_237] : memref<64x32xf32, #tpu.memory_space<vmem>>, vector<8x32xf32>
    tpu.vector_store %arg17[%c32_236, %c0_237], %506 {strides = array<i32>} : memref<64x32xf32, #tpu.memory_space<vmem>>, vector<8x32xf32>,
    %c32_238 = arith.constant 32 : index
    %c0_239 = arith.constant 0 : index
    %508 = vector.load %arg16[%c32_238, %c0_239] : memref<64x128xf32, #tpu.memory_space<vmem>>, vector<8x128xf32>
    %509 = arith.truncf %506 : vector<8x32xf32> to vector<8x32xbf16>
    %c4_240 = arith.constant 4 : index
    %c0_241 = arith.constant 0 : index
    %c0_242 = arith.constant 0 : index
    %510 = vector.load %arg6[%c4_240, %c0_241, %c0_242] : memref<8x32x128xbf16, #tpu.memory_space<vmem>>, vector<1x32x128xbf16>
    %511 = vector.shape_cast %510 : vector<1x32x128xbf16> to vector<32x128xbf16>
    %cst_243 = arith.constant dense<0.000000e+00> : vector<8x128xf32>
    %512 = tpu.matmul %509, %511, %cst_243 {dimension_numbers = #tpu.dot_dimension_numbers<[1], [0], [0], [1], [0, 0, 1, 1], [], []>} : vector<8x32xbf16>, vector<32x128xbf16>, vector<8x128xf32> -> vector<8x128xf32>
    %513 = arith.addf %508, %512 : vector<8x128xf32>
    %514 = arith.truncf %425 : vector<8x32xf32> to vector<8x32xbf16>
    %c5_244 = arith.constant 5 : index
    %c0_245 = arith.constant 0 : index
    %c0_246 = arith.constant 0 : index
    %515 = vector.load %arg6[%c5_244, %c0_245, %c0_246] : memref<8x32x128xbf16, #tpu.memory_space<vmem>>, vector<1x32x128xbf16>
    %516 = vector.shape_cast %515 : vector<1x32x128xbf16> to vector<32x128xbf16>
    %cst_247 = arith.constant dense<0.000000e+00> : vector<8x128xf32>
    %517 = tpu.matmul %514, %516, %cst_247 {dimension_numbers = #tpu.dot_dimension_numbers<[1], [0], [0], [1], [0, 0, 1, 1], [], []>} : vector<8x32xbf16>, vector<32x128xbf16>, vector<8x128xf32> -> vector<8x128xf32>
    %518 = arith.addf %513, %517 : vector<8x128xf32>
    %519 = arith.negf %518 : vector<8x128xf32>
    %520 = math.exp %519 : vector<8x128xf32>
    %cst_248 = arith.constant 1.000000e+00 : f32
    %521 = vector.broadcast %cst_248 : f32 to vector<8x128xf32>
    %522 = arith.addf %521, %520 : vector<8x128xf32>
    %523 = arith.divf %521, %522 : vector<8x128xf32>
    %524 = math.tanh %518 : vector<8x128xf32>
    %525 = vector.extract_strided_slice %523 {offsets = [0, 0], sizes = [8, 32], strides = [1, 1]} : vector<8x128xf32> to vector<8x32xf32>
    %526 = vector.extract_strided_slice %523 {offsets = [0, 32], sizes = [8, 32], strides = [1, 1]} : vector<8x128xf32> to vector<8x32xf32>
    %527 = vector.extract_strided_slice %524 {offsets = [0, 64], sizes = [8, 32], strides = [1, 1]} : vector<8x128xf32> to vector<8x32xf32>
    %528 = vector.extract_strided_slice %523 {offsets = [0, 96], sizes = [8, 32], strides = [1, 1]} : vector<8x128xf32> to vector<8x32xf32>
    %529 = arith.mulf %526, %423 : vector<8x32xf32>
    %530 = arith.mulf %525, %527 : vector<8x32xf32>
    %531 = arith.addf %529, %530 : vector<8x32xf32>
    %532 = math.tanh %531 : vector<8x32xf32>
    %533 = arith.mulf %528, %532 : vector<8x32xf32>
    %534 = arith.truncf %533 : vector<8x32xf32> to vector<8x32xbf16>
    %c6_249 = arith.constant 6 : index
    %c0_250 = arith.constant 0 : index
    %c0_251 = arith.constant 0 : index
    %535 = vector.load %arg6[%c6_249, %c0_250, %c0_251] : memref<8x32x128xbf16, #tpu.memory_space<vmem>>, vector<1x32x128xbf16>
    %536 = vector.shape_cast %535 : vector<1x32x128xbf16> to vector<32x128xbf16>
    %cst_252 = arith.constant dense<0.000000e+00> : vector<8x128xf32>
    %537 = tpu.matmul %534, %536, %cst_252 {dimension_numbers = #tpu.dot_dimension_numbers<[1], [0], [0], [1], [0, 0, 1, 1], [], []>} : vector<8x32xbf16>, vector<32x128xbf16>, vector<8x128xf32> -> vector<8x128xf32>
    %538 = arith.truncf %452 : vector<8x32xf32> to vector<8x32xbf16>
    %c7_253 = arith.constant 7 : index
    %c0_254 = arith.constant 0 : index
    %c0_255 = arith.constant 0 : index
    %539 = vector.load %arg6[%c7_253, %c0_254, %c0_255] : memref<8x32x128xbf16, #tpu.memory_space<vmem>>, vector<1x32x128xbf16>
    %540 = vector.shape_cast %539 : vector<1x32x128xbf16> to vector<32x128xbf16>
    %cst_256 = arith.constant dense<0.000000e+00> : vector<8x128xf32>
    %541 = tpu.matmul %538, %540, %cst_256 {dimension_numbers = #tpu.dot_dimension_numbers<[1], [0], [0], [1], [0, 0, 1, 1], [], []>} : vector<8x32xbf16>, vector<32x128xbf16>, vector<8x128xf32> -> vector<8x128xf32>
    %542 = arith.addf %537, %541 : vector<8x128xf32>
    %c1_257 = arith.constant 1 : index
    %c0_258 = arith.constant 0 : index
    %c0_259 = arith.constant 0 : index
    %543 = vector.load %arg7[%c1_257, %c0_258, %c0_259] : memref<2x8x128xf32, #tpu.memory_space<vmem>>, vector<1x8x128xf32>
    %544 = vector.shape_cast %543 : vector<1x8x128xf32> to vector<8x128xf32>
    %545 = arith.addf %542, %544 : vector<8x128xf32>
    %546 = arith.negf %545 : vector<8x128xf32>
    %547 = math.exp %546 : vector<8x128xf32>
    %cst_260 = arith.constant 1.000000e+00 : f32
    %548 = vector.broadcast %cst_260 : f32 to vector<8x128xf32>
    %549 = arith.addf %548, %547 : vector<8x128xf32>
    %550 = arith.divf %548, %549 : vector<8x128xf32>
    %551 = math.tanh %545 : vector<8x128xf32>
    %552 = vector.extract_strided_slice %550 {offsets = [0, 0], sizes = [8, 32], strides = [1, 1]} : vector<8x128xf32> to vector<8x32xf32>
    %553 = vector.extract_strided_slice %550 {offsets = [0, 32], sizes = [8, 32], strides = [1, 1]} : vector<8x128xf32> to vector<8x32xf32>
    %554 = vector.extract_strided_slice %551 {offsets = [0, 64], sizes = [8, 32], strides = [1, 1]} : vector<8x128xf32> to vector<8x32xf32>
    %555 = vector.extract_strided_slice %550 {offsets = [0, 96], sizes = [8, 32], strides = [1, 1]} : vector<8x128xf32> to vector<8x32xf32>
    %556 = arith.mulf %553, %450 : vector<8x32xf32>
    %557 = arith.mulf %552, %554 : vector<8x32xf32>
    %558 = arith.addf %556, %557 : vector<8x32xf32>
    %559 = math.tanh %558 : vector<8x32xf32>
    %560 = arith.mulf %555, %559 : vector<8x32xf32>
    %c32_261 = arith.constant 32 : index
    %c0_262 = arith.constant 0 : index
    %561 = vector.load %arg18[%c32_261, %c0_262] : memref<64x32xf32, #tpu.memory_space<vmem>>, vector<8x32xf32>
    tpu.vector_store %arg18[%c32_261, %c0_262], %560 {strides = array<i32>} : memref<64x32xf32, #tpu.memory_space<vmem>>, vector<8x32xf32>,
    %c40 = arith.constant 40 : index
    %c0_263 = arith.constant 0 : index
    %562 = vector.load %arg15[%c40, %c0_263] : memref<64x128xf32, #tpu.memory_space<vmem>>, vector<8x128xf32>
    %563 = arith.truncf %560 : vector<8x32xf32> to vector<8x32xbf16>
    %c0_264 = arith.constant 0 : index
    %c0_265 = arith.constant 0 : index
    %c0_266 = arith.constant 0 : index
    %564 = vector.load %arg6[%c0_264, %c0_265, %c0_266] : memref<8x32x128xbf16, #tpu.memory_space<vmem>>, vector<1x32x128xbf16>
    %565 = vector.shape_cast %564 : vector<1x32x128xbf16> to vector<32x128xbf16>
    %cst_267 = arith.constant dense<0.000000e+00> : vector<8x128xf32>
    %566 = tpu.matmul %563, %565, %cst_267 {dimension_numbers = #tpu.dot_dimension_numbers<[1], [0], [0], [1], [0, 0, 1, 1], [], []>} : vector<8x32xbf16>, vector<32x128xbf16>, vector<8x128xf32> -> vector<8x128xf32>
    %567 = arith.addf %562, %566 : vector<8x128xf32>
    %568 = arith.truncf %479 : vector<8x32xf32> to vector<8x32xbf16>
    %c1_268 = arith.constant 1 : index
    %c0_269 = arith.constant 0 : index
    %c0_270 = arith.constant 0 : index
    %569 = vector.load %arg6[%c1_268, %c0_269, %c0_270] : memref<8x32x128xbf16, #tpu.memory_space<vmem>>, vector<1x32x128xbf16>
    %570 = vector.shape_cast %569 : vector<1x32x128xbf16> to vector<32x128xbf16>
    %cst_271 = arith.constant dense<0.000000e+00> : vector<8x128xf32>
    %571 = tpu.matmul %568, %570, %cst_271 {dimension_numbers = #tpu.dot_dimension_numbers<[1], [0], [0], [1], [0, 0, 1, 1], [], []>} : vector<8x32xbf16>, vector<32x128xbf16>, vector<8x128xf32> -> vector<8x128xf32>
    %572 = arith.addf %567, %571 : vector<8x128xf32>
    %573 = arith.negf %572 : vector<8x128xf32>
    %574 = math.exp %573 : vector<8x128xf32>
    %cst_272 = arith.constant 1.000000e+00 : f32
    %575 = vector.broadcast %cst_272 : f32 to vector<8x128xf32>
    %576 = arith.addf %575, %574 : vector<8x128xf32>
    %577 = arith.divf %575, %576 : vector<8x128xf32>
    %578 = math.tanh %572 : vector<8x128xf32>
    %579 = vector.extract_strided_slice %577 {offsets = [0, 0], sizes = [8, 32], strides = [1, 1]} : vector<8x128xf32> to vector<8x32xf32>
    %580 = vector.extract_strided_slice %577 {offsets = [0, 32], sizes = [8, 32], strides = [1, 1]} : vector<8x128xf32> to vector<8x32xf32>
    %581 = vector.extract_strided_slice %578 {offsets = [0, 64], sizes = [8, 32], strides = [1, 1]} : vector<8x128xf32> to vector<8x32xf32>
    %582 = vector.extract_strided_slice %577 {offsets = [0, 96], sizes = [8, 32], strides = [1, 1]} : vector<8x128xf32> to vector<8x32xf32>
    %583 = arith.mulf %580, %477 : vector<8x32xf32>
    %584 = arith.mulf %579, %581 : vector<8x32xf32>
    %585 = arith.addf %583, %584 : vector<8x32xf32>
    %586 = math.tanh %585 : vector<8x32xf32>
    %587 = arith.mulf %582, %586 : vector<8x32xf32>
    %588 = arith.truncf %587 : vector<8x32xf32> to vector<8x32xbf16>
    %c2_273 = arith.constant 2 : index
    %c0_274 = arith.constant 0 : index
    %c0_275 = arith.constant 0 : index
    %589 = vector.load %arg6[%c2_273, %c0_274, %c0_275] : memref<8x32x128xbf16, #tpu.memory_space<vmem>>, vector<1x32x128xbf16>
    %590 = vector.shape_cast %589 : vector<1x32x128xbf16> to vector<32x128xbf16>
    %cst_276 = arith.constant dense<0.000000e+00> : vector<8x128xf32>
    %591 = tpu.matmul %588, %590, %cst_276 {dimension_numbers = #tpu.dot_dimension_numbers<[1], [0], [0], [1], [0, 0, 1, 1], [], []>} : vector<8x32xbf16>, vector<32x128xbf16>, vector<8x128xf32> -> vector<8x128xf32>
    %592 = arith.truncf %506 : vector<8x32xf32> to vector<8x32xbf16>
    %c3_277 = arith.constant 3 : index
    %c0_278 = arith.constant 0 : index
    %c0_279 = arith.constant 0 : index
    %593 = vector.load %arg6[%c3_277, %c0_278, %c0_279] : memref<8x32x128xbf16, #tpu.memory_space<vmem>>, vector<1x32x128xbf16>
    %594 = vector.shape_cast %593 : vector<1x32x128xbf16> to vector<32x128xbf16>
    %cst_280 = arith.constant dense<0.000000e+00> : vector<8x128xf32>
    %595 = tpu.matmul %592, %594, %cst_280 {dimension_numbers = #tpu.dot_dimension_numbers<[1], [0], [0], [1], [0, 0, 1, 1], [], []>} : vector<8x32xbf16>, vector<32x128xbf16>, vector<8x128xf32> -> vector<8x128xf32>
    %596 = arith.addf %591, %595 : vector<8x128xf32>
    %c0_281 = arith.constant 0 : index
    %c0_282 = arith.constant 0 : index
    %c0_283 = arith.constant 0 : index
    %597 = vector.load %arg7[%c0_281, %c0_282, %c0_283] : memref<2x8x128xf32, #tpu.memory_space<vmem>>, vector<1x8x128xf32>
    %598 = vector.shape_cast %597 : vector<1x8x128xf32> to vector<8x128xf32>
    %599 = arith.addf %596, %598 : vector<8x128xf32>
    %600 = arith.negf %599 : vector<8x128xf32>
    %601 = math.exp %600 : vector<8x128xf32>
    %cst_284 = arith.constant 1.000000e+00 : f32
    %602 = vector.broadcast %cst_284 : f32 to vector<8x128xf32>
    %603 = arith.addf %602, %601 : vector<8x128xf32>
    %604 = arith.divf %602, %603 : vector<8x128xf32>
    %605 = math.tanh %599 : vector<8x128xf32>
    %606 = vector.extract_strided_slice %604 {offsets = [0, 0], sizes = [8, 32], strides = [1, 1]} : vector<8x128xf32> to vector<8x32xf32>
    %607 = vector.extract_strided_slice %604 {offsets = [0, 32], sizes = [8, 32], strides = [1, 1]} : vector<8x128xf32> to vector<8x32xf32>
    %608 = vector.extract_strided_slice %605 {offsets = [0, 64], sizes = [8, 32], strides = [1, 1]} : vector<8x128xf32> to vector<8x32xf32>
    %609 = vector.extract_strided_slice %604 {offsets = [0, 96], sizes = [8, 32], strides = [1, 1]} : vector<8x128xf32> to vector<8x32xf32>
    %610 = arith.mulf %607, %504 : vector<8x32xf32>
    %611 = arith.mulf %606, %608 : vector<8x32xf32>
    %612 = arith.addf %610, %611 : vector<8x32xf32>
    %613 = math.tanh %612 : vector<8x32xf32>
    %614 = arith.mulf %609, %613 : vector<8x32xf32>
    %c40_285 = arith.constant 40 : index
    %c0_286 = arith.constant 0 : index
    %615 = vector.load %arg17[%c40_285, %c0_286] : memref<64x32xf32, #tpu.memory_space<vmem>>, vector<8x32xf32>
    tpu.vector_store %arg17[%c40_285, %c0_286], %614 {strides = array<i32>} : memref<64x32xf32, #tpu.memory_space<vmem>>, vector<8x32xf32>,
    %c40_287 = arith.constant 40 : index
    %c0_288 = arith.constant 0 : index
    %616 = vector.load %arg16[%c40_287, %c0_288] : memref<64x128xf32, #tpu.memory_space<vmem>>, vector<8x128xf32>
    %617 = arith.truncf %614 : vector<8x32xf32> to vector<8x32xbf16>
    %c4_289 = arith.constant 4 : index
    %c0_290 = arith.constant 0 : index
    %c0_291 = arith.constant 0 : index
    %618 = vector.load %arg6[%c4_289, %c0_290, %c0_291] : memref<8x32x128xbf16, #tpu.memory_space<vmem>>, vector<1x32x128xbf16>
    %619 = vector.shape_cast %618 : vector<1x32x128xbf16> to vector<32x128xbf16>
    %cst_292 = arith.constant dense<0.000000e+00> : vector<8x128xf32>
    %620 = tpu.matmul %617, %619, %cst_292 {dimension_numbers = #tpu.dot_dimension_numbers<[1], [0], [0], [1], [0, 0, 1, 1], [], []>} : vector<8x32xbf16>, vector<32x128xbf16>, vector<8x128xf32> -> vector<8x128xf32>
    %621 = arith.addf %616, %620 : vector<8x128xf32>
    %622 = arith.truncf %533 : vector<8x32xf32> to vector<8x32xbf16>
    %c5_293 = arith.constant 5 : index
    %c0_294 = arith.constant 0 : index
    %c0_295 = arith.constant 0 : index
    %623 = vector.load %arg6[%c5_293, %c0_294, %c0_295] : memref<8x32x128xbf16, #tpu.memory_space<vmem>>, vector<1x32x128xbf16>
    %624 = vector.shape_cast %623 : vector<1x32x128xbf16> to vector<32x128xbf16>
    %cst_296 = arith.constant dense<0.000000e+00> : vector<8x128xf32>
    %625 = tpu.matmul %622, %624, %cst_296 {dimension_numbers = #tpu.dot_dimension_numbers<[1], [0], [0], [1], [0, 0, 1, 1], [], []>} : vector<8x32xbf16>, vector<32x128xbf16>, vector<8x128xf32> -> vector<8x128xf32>
    %626 = arith.addf %621, %625 : vector<8x128xf32>
    %627 = arith.negf %626 : vector<8x128xf32>
    %628 = math.exp %627 : vector<8x128xf32>
    %cst_297 = arith.constant 1.000000e+00 : f32
    %629 = vector.broadcast %cst_297 : f32 to vector<8x128xf32>
    %630 = arith.addf %629, %628 : vector<8x128xf32>
    %631 = arith.divf %629, %630 : vector<8x128xf32>
    %632 = math.tanh %626 : vector<8x128xf32>
    %633 = vector.extract_strided_slice %631 {offsets = [0, 0], sizes = [8, 32], strides = [1, 1]} : vector<8x128xf32> to vector<8x32xf32>
    %634 = vector.extract_strided_slice %631 {offsets = [0, 32], sizes = [8, 32], strides = [1, 1]} : vector<8x128xf32> to vector<8x32xf32>
    %635 = vector.extract_strided_slice %632 {offsets = [0, 64], sizes = [8, 32], strides = [1, 1]} : vector<8x128xf32> to vector<8x32xf32>
    %636 = vector.extract_strided_slice %631 {offsets = [0, 96], sizes = [8, 32], strides = [1, 1]} : vector<8x128xf32> to vector<8x32xf32>
    %637 = arith.mulf %634, %531 : vector<8x32xf32>
    %638 = arith.mulf %633, %635 : vector<8x32xf32>
    %639 = arith.addf %637, %638 : vector<8x32xf32>
    %640 = math.tanh %639 : vector<8x32xf32>
    %641 = arith.mulf %636, %640 : vector<8x32xf32>
    %642 = arith.truncf %641 : vector<8x32xf32> to vector<8x32xbf16>
    %c6_298 = arith.constant 6 : index
    %c0_299 = arith.constant 0 : index
    %c0_300 = arith.constant 0 : index
    %643 = vector.load %arg6[%c6_298, %c0_299, %c0_300] : memref<8x32x128xbf16, #tpu.memory_space<vmem>>, vector<1x32x128xbf16>
    %644 = vector.shape_cast %643 : vector<1x32x128xbf16> to vector<32x128xbf16>
    %cst_301 = arith.constant dense<0.000000e+00> : vector<8x128xf32>
    %645 = tpu.matmul %642, %644, %cst_301 {dimension_numbers = #tpu.dot_dimension_numbers<[1], [0], [0], [1], [0, 0, 1, 1], [], []>} : vector<8x32xbf16>, vector<32x128xbf16>, vector<8x128xf32> -> vector<8x128xf32>
    %646 = arith.truncf %560 : vector<8x32xf32> to vector<8x32xbf16>
    %c7_302 = arith.constant 7 : index
    %c0_303 = arith.constant 0 : index
    %c0_304 = arith.constant 0 : index
    %647 = vector.load %arg6[%c7_302, %c0_303, %c0_304] : memref<8x32x128xbf16, #tpu.memory_space<vmem>>, vector<1x32x128xbf16>
    %648 = vector.shape_cast %647 : vector<1x32x128xbf16> to vector<32x128xbf16>
    %cst_305 = arith.constant dense<0.000000e+00> : vector<8x128xf32>
    %649 = tpu.matmul %646, %648, %cst_305 {dimension_numbers = #tpu.dot_dimension_numbers<[1], [0], [0], [1], [0, 0, 1, 1], [], []>} : vector<8x32xbf16>, vector<32x128xbf16>, vector<8x128xf32> -> vector<8x128xf32>
    %650 = arith.addf %645, %649 : vector<8x128xf32>
    %c1_306 = arith.constant 1 : index
    %c0_307 = arith.constant 0 : index
    %c0_308 = arith.constant 0 : index
    %651 = vector.load %arg7[%c1_306, %c0_307, %c0_308] : memref<2x8x128xf32, #tpu.memory_space<vmem>>, vector<1x8x128xf32>
    %652 = vector.shape_cast %651 : vector<1x8x128xf32> to vector<8x128xf32>
    %653 = arith.addf %650, %652 : vector<8x128xf32>
    %654 = arith.negf %653 : vector<8x128xf32>
    %655 = math.exp %654 : vector<8x128xf32>
    %cst_309 = arith.constant 1.000000e+00 : f32
    %656 = vector.broadcast %cst_309 : f32 to vector<8x128xf32>
    %657 = arith.addf %656, %655 : vector<8x128xf32>
    %658 = arith.divf %656, %657 : vector<8x128xf32>
    %659 = math.tanh %653 : vector<8x128xf32>
    %660 = vector.extract_strided_slice %658 {offsets = [0, 0], sizes = [8, 32], strides = [1, 1]} : vector<8x128xf32> to vector<8x32xf32>
    %661 = vector.extract_strided_slice %658 {offsets = [0, 32], sizes = [8, 32], strides = [1, 1]} : vector<8x128xf32> to vector<8x32xf32>
    %662 = vector.extract_strided_slice %659 {offsets = [0, 64], sizes = [8, 32], strides = [1, 1]} : vector<8x128xf32> to vector<8x32xf32>
    %663 = vector.extract_strided_slice %658 {offsets = [0, 96], sizes = [8, 32], strides = [1, 1]} : vector<8x128xf32> to vector<8x32xf32>
    %664 = arith.mulf %661, %558 : vector<8x32xf32>
    %665 = arith.mulf %660, %662 : vector<8x32xf32>
    %666 = arith.addf %664, %665 : vector<8x32xf32>
    %667 = math.tanh %666 : vector<8x32xf32>
    %668 = arith.mulf %663, %667 : vector<8x32xf32>
    %c40_310 = arith.constant 40 : index
    %c0_311 = arith.constant 0 : index
    %669 = vector.load %arg18[%c40_310, %c0_311] : memref<64x32xf32, #tpu.memory_space<vmem>>, vector<8x32xf32>
    tpu.vector_store %arg18[%c40_310, %c0_311], %668 {strides = array<i32>} : memref<64x32xf32, #tpu.memory_space<vmem>>, vector<8x32xf32>,
    %c48 = arith.constant 48 : index
    %c0_312 = arith.constant 0 : index
    %670 = vector.load %arg15[%c48, %c0_312] : memref<64x128xf32, #tpu.memory_space<vmem>>, vector<8x128xf32>
    %671 = arith.truncf %668 : vector<8x32xf32> to vector<8x32xbf16>
    %c0_313 = arith.constant 0 : index
    %c0_314 = arith.constant 0 : index
    %c0_315 = arith.constant 0 : index
    %672 = vector.load %arg6[%c0_313, %c0_314, %c0_315] : memref<8x32x128xbf16, #tpu.memory_space<vmem>>, vector<1x32x128xbf16>
    %673 = vector.shape_cast %672 : vector<1x32x128xbf16> to vector<32x128xbf16>
    %cst_316 = arith.constant dense<0.000000e+00> : vector<8x128xf32>
    %674 = tpu.matmul %671, %673, %cst_316 {dimension_numbers = #tpu.dot_dimension_numbers<[1], [0], [0], [1], [0, 0, 1, 1], [], []>} : vector<8x32xbf16>, vector<32x128xbf16>, vector<8x128xf32> -> vector<8x128xf32>
    %675 = arith.addf %670, %674 : vector<8x128xf32>
    %676 = arith.truncf %587 : vector<8x32xf32> to vector<8x32xbf16>
    %c1_317 = arith.constant 1 : index
    %c0_318 = arith.constant 0 : index
    %c0_319 = arith.constant 0 : index
    %677 = vector.load %arg6[%c1_317, %c0_318, %c0_319] : memref<8x32x128xbf16, #tpu.memory_space<vmem>>, vector<1x32x128xbf16>
    %678 = vector.shape_cast %677 : vector<1x32x128xbf16> to vector<32x128xbf16>
    %cst_320 = arith.constant dense<0.000000e+00> : vector<8x128xf32>
    %679 = tpu.matmul %676, %678, %cst_320 {dimension_numbers = #tpu.dot_dimension_numbers<[1], [0], [0], [1], [0, 0, 1, 1], [], []>} : vector<8x32xbf16>, vector<32x128xbf16>, vector<8x128xf32> -> vector<8x128xf32>
    %680 = arith.addf %675, %679 : vector<8x128xf32>
    %681 = arith.negf %680 : vector<8x128xf32>
    %682 = math.exp %681 : vector<8x128xf32>
    %cst_321 = arith.constant 1.000000e+00 : f32
    %683 = vector.broadcast %cst_321 : f32 to vector<8x128xf32>
    %684 = arith.addf %683, %682 : vector<8x128xf32>
    %685 = arith.divf %683, %684 : vector<8x128xf32>
    %686 = math.tanh %680 : vector<8x128xf32>
    %687 = vector.extract_strided_slice %685 {offsets = [0, 0], sizes = [8, 32], strides = [1, 1]} : vector<8x128xf32> to vector<8x32xf32>
    %688 = vector.extract_strided_slice %685 {offsets = [0, 32], sizes = [8, 32], strides = [1, 1]} : vector<8x128xf32> to vector<8x32xf32>
    %689 = vector.extract_strided_slice %686 {offsets = [0, 64], sizes = [8, 32], strides = [1, 1]} : vector<8x128xf32> to vector<8x32xf32>
    %690 = vector.extract_strided_slice %685 {offsets = [0, 96], sizes = [8, 32], strides = [1, 1]} : vector<8x128xf32> to vector<8x32xf32>
    %691 = arith.mulf %688, %585 : vector<8x32xf32>
    %692 = arith.mulf %687, %689 : vector<8x32xf32>
    %693 = arith.addf %691, %692 : vector<8x32xf32>
    %694 = math.tanh %693 : vector<8x32xf32>
    %695 = arith.mulf %690, %694 : vector<8x32xf32>
    %696 = arith.truncf %695 : vector<8x32xf32> to vector<8x32xbf16>
    %c2_322 = arith.constant 2 : index
    %c0_323 = arith.constant 0 : index
    %c0_324 = arith.constant 0 : index
    %697 = vector.load %arg6[%c2_322, %c0_323, %c0_324] : memref<8x32x128xbf16, #tpu.memory_space<vmem>>, vector<1x32x128xbf16>
    %698 = vector.shape_cast %697 : vector<1x32x128xbf16> to vector<32x128xbf16>
    %cst_325 = arith.constant dense<0.000000e+00> : vector<8x128xf32>
    %699 = tpu.matmul %696, %698, %cst_325 {dimension_numbers = #tpu.dot_dimension_numbers<[1], [0], [0], [1], [0, 0, 1, 1], [], []>} : vector<8x32xbf16>, vector<32x128xbf16>, vector<8x128xf32> -> vector<8x128xf32>
    %700 = arith.truncf %614 : vector<8x32xf32> to vector<8x32xbf16>
    %c3_326 = arith.constant 3 : index
    %c0_327 = arith.constant 0 : index
    %c0_328 = arith.constant 0 : index
    %701 = vector.load %arg6[%c3_326, %c0_327, %c0_328] : memref<8x32x128xbf16, #tpu.memory_space<vmem>>, vector<1x32x128xbf16>
    %702 = vector.shape_cast %701 : vector<1x32x128xbf16> to vector<32x128xbf16>
    %cst_329 = arith.constant dense<0.000000e+00> : vector<8x128xf32>
    %703 = tpu.matmul %700, %702, %cst_329 {dimension_numbers = #tpu.dot_dimension_numbers<[1], [0], [0], [1], [0, 0, 1, 1], [], []>} : vector<8x32xbf16>, vector<32x128xbf16>, vector<8x128xf32> -> vector<8x128xf32>
    %704 = arith.addf %699, %703 : vector<8x128xf32>
    %c0_330 = arith.constant 0 : index
    %c0_331 = arith.constant 0 : index
    %c0_332 = arith.constant 0 : index
    %705 = vector.load %arg7[%c0_330, %c0_331, %c0_332] : memref<2x8x128xf32, #tpu.memory_space<vmem>>, vector<1x8x128xf32>
    %706 = vector.shape_cast %705 : vector<1x8x128xf32> to vector<8x128xf32>
    %707 = arith.addf %704, %706 : vector<8x128xf32>
    %708 = arith.negf %707 : vector<8x128xf32>
    %709 = math.exp %708 : vector<8x128xf32>
    %cst_333 = arith.constant 1.000000e+00 : f32
    %710 = vector.broadcast %cst_333 : f32 to vector<8x128xf32>
    %711 = arith.addf %710, %709 : vector<8x128xf32>
    %712 = arith.divf %710, %711 : vector<8x128xf32>
    %713 = math.tanh %707 : vector<8x128xf32>
    %714 = vector.extract_strided_slice %712 {offsets = [0, 0], sizes = [8, 32], strides = [1, 1]} : vector<8x128xf32> to vector<8x32xf32>
    %715 = vector.extract_strided_slice %712 {offsets = [0, 32], sizes = [8, 32], strides = [1, 1]} : vector<8x128xf32> to vector<8x32xf32>
    %716 = vector.extract_strided_slice %713 {offsets = [0, 64], sizes = [8, 32], strides = [1, 1]} : vector<8x128xf32> to vector<8x32xf32>
    %717 = vector.extract_strided_slice %712 {offsets = [0, 96], sizes = [8, 32], strides = [1, 1]} : vector<8x128xf32> to vector<8x32xf32>
    %718 = arith.mulf %715, %612 : vector<8x32xf32>
    %719 = arith.mulf %714, %716 : vector<8x32xf32>
    %720 = arith.addf %718, %719 : vector<8x32xf32>
    %721 = math.tanh %720 : vector<8x32xf32>
    %722 = arith.mulf %717, %721 : vector<8x32xf32>
    %c48_334 = arith.constant 48 : index
    %c0_335 = arith.constant 0 : index
    %723 = vector.load %arg17[%c48_334, %c0_335] : memref<64x32xf32, #tpu.memory_space<vmem>>, vector<8x32xf32>
    tpu.vector_store %arg17[%c48_334, %c0_335], %722 {strides = array<i32>} : memref<64x32xf32, #tpu.memory_space<vmem>>, vector<8x32xf32>,
    %c48_336 = arith.constant 48 : index
    %c0_337 = arith.constant 0 : index
    %724 = vector.load %arg16[%c48_336, %c0_337] : memref<64x128xf32, #tpu.memory_space<vmem>>, vector<8x128xf32>
    %725 = arith.truncf %722 : vector<8x32xf32> to vector<8x32xbf16>
    %c4_338 = arith.constant 4 : index
    %c0_339 = arith.constant 0 : index
    %c0_340 = arith.constant 0 : index
    %726 = vector.load %arg6[%c4_338, %c0_339, %c0_340] : memref<8x32x128xbf16, #tpu.memory_space<vmem>>, vector<1x32x128xbf16>
    %727 = vector.shape_cast %726 : vector<1x32x128xbf16> to vector<32x128xbf16>
    %cst_341 = arith.constant dense<0.000000e+00> : vector<8x128xf32>
    %728 = tpu.matmul %725, %727, %cst_341 {dimension_numbers = #tpu.dot_dimension_numbers<[1], [0], [0], [1], [0, 0, 1, 1], [], []>} : vector<8x32xbf16>, vector<32x128xbf16>, vector<8x128xf32> -> vector<8x128xf32>
    %729 = arith.addf %724, %728 : vector<8x128xf32>
    %730 = arith.truncf %641 : vector<8x32xf32> to vector<8x32xbf16>
    %c5_342 = arith.constant 5 : index
    %c0_343 = arith.constant 0 : index
    %c0_344 = arith.constant 0 : index
    %731 = vector.load %arg6[%c5_342, %c0_343, %c0_344] : memref<8x32x128xbf16, #tpu.memory_space<vmem>>, vector<1x32x128xbf16>
    %732 = vector.shape_cast %731 : vector<1x32x128xbf16> to vector<32x128xbf16>
    %cst_345 = arith.constant dense<0.000000e+00> : vector<8x128xf32>
    %733 = tpu.matmul %730, %732, %cst_345 {dimension_numbers = #tpu.dot_dimension_numbers<[1], [0], [0], [1], [0, 0, 1, 1], [], []>} : vector<8x32xbf16>, vector<32x128xbf16>, vector<8x128xf32> -> vector<8x128xf32>
    %734 = arith.addf %729, %733 : vector<8x128xf32>
    %735 = arith.negf %734 : vector<8x128xf32>
    %736 = math.exp %735 : vector<8x128xf32>
    %cst_346 = arith.constant 1.000000e+00 : f32
    %737 = vector.broadcast %cst_346 : f32 to vector<8x128xf32>
    %738 = arith.addf %737, %736 : vector<8x128xf32>
    %739 = arith.divf %737, %738 : vector<8x128xf32>
    %740 = math.tanh %734 : vector<8x128xf32>
    %741 = vector.extract_strided_slice %739 {offsets = [0, 0], sizes = [8, 32], strides = [1, 1]} : vector<8x128xf32> to vector<8x32xf32>
    %742 = vector.extract_strided_slice %739 {offsets = [0, 32], sizes = [8, 32], strides = [1, 1]} : vector<8x128xf32> to vector<8x32xf32>
    %743 = vector.extract_strided_slice %740 {offsets = [0, 64], sizes = [8, 32], strides = [1, 1]} : vector<8x128xf32> to vector<8x32xf32>
    %744 = vector.extract_strided_slice %739 {offsets = [0, 96], sizes = [8, 32], strides = [1, 1]} : vector<8x128xf32> to vector<8x32xf32>
    %745 = arith.mulf %742, %639 : vector<8x32xf32>
    %746 = arith.mulf %741, %743 : vector<8x32xf32>
    %747 = arith.addf %745, %746 : vector<8x32xf32>
    %748 = math.tanh %747 : vector<8x32xf32>
    %749 = arith.mulf %744, %748 : vector<8x32xf32>
    %750 = arith.truncf %749 : vector<8x32xf32> to vector<8x32xbf16>
    %c6_347 = arith.constant 6 : index
    %c0_348 = arith.constant 0 : index
    %c0_349 = arith.constant 0 : index
    %751 = vector.load %arg6[%c6_347, %c0_348, %c0_349] : memref<8x32x128xbf16, #tpu.memory_space<vmem>>, vector<1x32x128xbf16>
    %752 = vector.shape_cast %751 : vector<1x32x128xbf16> to vector<32x128xbf16>
    %cst_350 = arith.constant dense<0.000000e+00> : vector<8x128xf32>
    %753 = tpu.matmul %750, %752, %cst_350 {dimension_numbers = #tpu.dot_dimension_numbers<[1], [0], [0], [1], [0, 0, 1, 1], [], []>} : vector<8x32xbf16>, vector<32x128xbf16>, vector<8x128xf32> -> vector<8x128xf32>
    %754 = arith.truncf %668 : vector<8x32xf32> to vector<8x32xbf16>
    %c7_351 = arith.constant 7 : index
    %c0_352 = arith.constant 0 : index
    %c0_353 = arith.constant 0 : index
    %755 = vector.load %arg6[%c7_351, %c0_352, %c0_353] : memref<8x32x128xbf16, #tpu.memory_space<vmem>>, vector<1x32x128xbf16>
    %756 = vector.shape_cast %755 : vector<1x32x128xbf16> to vector<32x128xbf16>
    %cst_354 = arith.constant dense<0.000000e+00> : vector<8x128xf32>
    %757 = tpu.matmul %754, %756, %cst_354 {dimension_numbers = #tpu.dot_dimension_numbers<[1], [0], [0], [1], [0, 0, 1, 1], [], []>} : vector<8x32xbf16>, vector<32x128xbf16>, vector<8x128xf32> -> vector<8x128xf32>
    %758 = arith.addf %753, %757 : vector<8x128xf32>
    %c1_355 = arith.constant 1 : index
    %c0_356 = arith.constant 0 : index
    %c0_357 = arith.constant 0 : index
    %759 = vector.load %arg7[%c1_355, %c0_356, %c0_357] : memref<2x8x128xf32, #tpu.memory_space<vmem>>, vector<1x8x128xf32>
    %760 = vector.shape_cast %759 : vector<1x8x128xf32> to vector<8x128xf32>
    %761 = arith.addf %758, %760 : vector<8x128xf32>
    %762 = arith.negf %761 : vector<8x128xf32>
    %763 = math.exp %762 : vector<8x128xf32>
    %cst_358 = arith.constant 1.000000e+00 : f32
    %764 = vector.broadcast %cst_358 : f32 to vector<8x128xf32>
    %765 = arith.addf %764, %763 : vector<8x128xf32>
    %766 = arith.divf %764, %765 : vector<8x128xf32>
    %767 = math.tanh %761 : vector<8x128xf32>
    %768 = vector.extract_strided_slice %766 {offsets = [0, 0], sizes = [8, 32], strides = [1, 1]} : vector<8x128xf32> to vector<8x32xf32>
    %769 = vector.extract_strided_slice %766 {offsets = [0, 32], sizes = [8, 32], strides = [1, 1]} : vector<8x128xf32> to vector<8x32xf32>
    %770 = vector.extract_strided_slice %767 {offsets = [0, 64], sizes = [8, 32], strides = [1, 1]} : vector<8x128xf32> to vector<8x32xf32>
    %771 = vector.extract_strided_slice %766 {offsets = [0, 96], sizes = [8, 32], strides = [1, 1]} : vector<8x128xf32> to vector<8x32xf32>
    %772 = arith.mulf %769, %666 : vector<8x32xf32>
    %773 = arith.mulf %768, %770 : vector<8x32xf32>
    %774 = arith.addf %772, %773 : vector<8x32xf32>
    %775 = math.tanh %774 : vector<8x32xf32>
    %776 = arith.mulf %771, %775 : vector<8x32xf32>
    %c48_359 = arith.constant 48 : index
    %c0_360 = arith.constant 0 : index
    %777 = vector.load %arg18[%c48_359, %c0_360] : memref<64x32xf32, #tpu.memory_space<vmem>>, vector<8x32xf32>
    tpu.vector_store %arg18[%c48_359, %c0_360], %776 {strides = array<i32>} : memref<64x32xf32, #tpu.memory_space<vmem>>, vector<8x32xf32>,
    %c56 = arith.constant 56 : index
    %c0_361 = arith.constant 0 : index
    %778 = vector.load %arg15[%c56, %c0_361] : memref<64x128xf32, #tpu.memory_space<vmem>>, vector<8x128xf32>
    %779 = arith.truncf %776 : vector<8x32xf32> to vector<8x32xbf16>
    %c0_362 = arith.constant 0 : index
    %c0_363 = arith.constant 0 : index
    %c0_364 = arith.constant 0 : index
    %780 = vector.load %arg6[%c0_362, %c0_363, %c0_364] : memref<8x32x128xbf16, #tpu.memory_space<vmem>>, vector<1x32x128xbf16>
    %781 = vector.shape_cast %780 : vector<1x32x128xbf16> to vector<32x128xbf16>
    %cst_365 = arith.constant dense<0.000000e+00> : vector<8x128xf32>
    %782 = tpu.matmul %779, %781, %cst_365 {dimension_numbers = #tpu.dot_dimension_numbers<[1], [0], [0], [1], [0, 0, 1, 1], [], []>} : vector<8x32xbf16>, vector<32x128xbf16>, vector<8x128xf32> -> vector<8x128xf32>
    %783 = arith.addf %778, %782 : vector<8x128xf32>
    %784 = arith.truncf %695 : vector<8x32xf32> to vector<8x32xbf16>
    %c1_366 = arith.constant 1 : index
    %c0_367 = arith.constant 0 : index
    %c0_368 = arith.constant 0 : index
    %785 = vector.load %arg6[%c1_366, %c0_367, %c0_368] : memref<8x32x128xbf16, #tpu.memory_space<vmem>>, vector<1x32x128xbf16>
    %786 = vector.shape_cast %785 : vector<1x32x128xbf16> to vector<32x128xbf16>
    %cst_369 = arith.constant dense<0.000000e+00> : vector<8x128xf32>
    %787 = tpu.matmul %784, %786, %cst_369 {dimension_numbers = #tpu.dot_dimension_numbers<[1], [0], [0], [1], [0, 0, 1, 1], [], []>} : vector<8x32xbf16>, vector<32x128xbf16>, vector<8x128xf32> -> vector<8x128xf32>
    %788 = arith.addf %783, %787 : vector<8x128xf32>
    %789 = arith.negf %788 : vector<8x128xf32>
    %790 = math.exp %789 : vector<8x128xf32>
    %cst_370 = arith.constant 1.000000e+00 : f32
    %791 = vector.broadcast %cst_370 : f32 to vector<8x128xf32>
    %792 = arith.addf %791, %790 : vector<8x128xf32>
    %793 = arith.divf %791, %792 : vector<8x128xf32>
    %794 = math.tanh %788 : vector<8x128xf32>
    %795 = vector.extract_strided_slice %793 {offsets = [0, 0], sizes = [8, 32], strides = [1, 1]} : vector<8x128xf32> to vector<8x32xf32>
    %796 = vector.extract_strided_slice %793 {offsets = [0, 32], sizes = [8, 32], strides = [1, 1]} : vector<8x128xf32> to vector<8x32xf32>
    %797 = vector.extract_strided_slice %794 {offsets = [0, 64], sizes = [8, 32], strides = [1, 1]} : vector<8x128xf32> to vector<8x32xf32>
    %798 = vector.extract_strided_slice %793 {offsets = [0, 96], sizes = [8, 32], strides = [1, 1]} : vector<8x128xf32> to vector<8x32xf32>
    %799 = arith.mulf %796, %693 : vector<8x32xf32>
    %800 = arith.mulf %795, %797 : vector<8x32xf32>
    %801 = arith.addf %799, %800 : vector<8x32xf32>
    %802 = math.tanh %801 : vector<8x32xf32>
    %803 = arith.mulf %798, %802 : vector<8x32xf32>
    %804 = arith.truncf %803 : vector<8x32xf32> to vector<8x32xbf16>
    %c2_371 = arith.constant 2 : index
    %c0_372 = arith.constant 0 : index
    %c0_373 = arith.constant 0 : index
    %805 = vector.load %arg6[%c2_371, %c0_372, %c0_373] : memref<8x32x128xbf16, #tpu.memory_space<vmem>>, vector<1x32x128xbf16>
    %806 = vector.shape_cast %805 : vector<1x32x128xbf16> to vector<32x128xbf16>
    %cst_374 = arith.constant dense<0.000000e+00> : vector<8x128xf32>
    %807 = tpu.matmul %804, %806, %cst_374 {dimension_numbers = #tpu.dot_dimension_numbers<[1], [0], [0], [1], [0, 0, 1, 1], [], []>} : vector<8x32xbf16>, vector<32x128xbf16>, vector<8x128xf32> -> vector<8x128xf32>
    %808 = arith.truncf %722 : vector<8x32xf32> to vector<8x32xbf16>
    %c3_375 = arith.constant 3 : index
    %c0_376 = arith.constant 0 : index
    %c0_377 = arith.constant 0 : index
    %809 = vector.load %arg6[%c3_375, %c0_376, %c0_377] : memref<8x32x128xbf16, #tpu.memory_space<vmem>>, vector<1x32x128xbf16>
    %810 = vector.shape_cast %809 : vector<1x32x128xbf16> to vector<32x128xbf16>
    %cst_378 = arith.constant dense<0.000000e+00> : vector<8x128xf32>
    %811 = tpu.matmul %808, %810, %cst_378 {dimension_numbers = #tpu.dot_dimension_numbers<[1], [0], [0], [1], [0, 0, 1, 1], [], []>} : vector<8x32xbf16>, vector<32x128xbf16>, vector<8x128xf32> -> vector<8x128xf32>
    %812 = arith.addf %807, %811 : vector<8x128xf32>
    %c0_379 = arith.constant 0 : index
    %c0_380 = arith.constant 0 : index
    %c0_381 = arith.constant 0 : index
    %813 = vector.load %arg7[%c0_379, %c0_380, %c0_381] : memref<2x8x128xf32, #tpu.memory_space<vmem>>, vector<1x8x128xf32>
    %814 = vector.shape_cast %813 : vector<1x8x128xf32> to vector<8x128xf32>
    %815 = arith.addf %812, %814 : vector<8x128xf32>
    %816 = arith.negf %815 : vector<8x128xf32>
    %817 = math.exp %816 : vector<8x128xf32>
    %cst_382 = arith.constant 1.000000e+00 : f32
    %818 = vector.broadcast %cst_382 : f32 to vector<8x128xf32>
    %819 = arith.addf %818, %817 : vector<8x128xf32>
    %820 = arith.divf %818, %819 : vector<8x128xf32>
    %821 = math.tanh %815 : vector<8x128xf32>
    %822 = vector.extract_strided_slice %820 {offsets = [0, 0], sizes = [8, 32], strides = [1, 1]} : vector<8x128xf32> to vector<8x32xf32>
    %823 = vector.extract_strided_slice %820 {offsets = [0, 32], sizes = [8, 32], strides = [1, 1]} : vector<8x128xf32> to vector<8x32xf32>
    %824 = vector.extract_strided_slice %821 {offsets = [0, 64], sizes = [8, 32], strides = [1, 1]} : vector<8x128xf32> to vector<8x32xf32>
    %825 = vector.extract_strided_slice %820 {offsets = [0, 96], sizes = [8, 32], strides = [1, 1]} : vector<8x128xf32> to vector<8x32xf32>
    %826 = arith.mulf %823, %720 : vector<8x32xf32>
    %827 = arith.mulf %822, %824 : vector<8x32xf32>
    %828 = arith.addf %826, %827 : vector<8x32xf32>
    %829 = math.tanh %828 : vector<8x32xf32>
    %830 = arith.mulf %825, %829 : vector<8x32xf32>
    %c56_383 = arith.constant 56 : index
    %c0_384 = arith.constant 0 : index
    %831 = vector.load %arg17[%c56_383, %c0_384] : memref<64x32xf32, #tpu.memory_space<vmem>>, vector<8x32xf32>
    tpu.vector_store %arg17[%c56_383, %c0_384], %830 {strides = array<i32>} : memref<64x32xf32, #tpu.memory_space<vmem>>, vector<8x32xf32>,
    %c56_385 = arith.constant 56 : index
    %c0_386 = arith.constant 0 : index
    %832 = vector.load %arg16[%c56_385, %c0_386] : memref<64x128xf32, #tpu.memory_space<vmem>>, vector<8x128xf32>
    %833 = arith.truncf %830 : vector<8x32xf32> to vector<8x32xbf16>
    %c4_387 = arith.constant 4 : index
    %c0_388 = arith.constant 0 : index
    %c0_389 = arith.constant 0 : index
    %834 = vector.load %arg6[%c4_387, %c0_388, %c0_389] : memref<8x32x128xbf16, #tpu.memory_space<vmem>>, vector<1x32x128xbf16>
    %835 = vector.shape_cast %834 : vector<1x32x128xbf16> to vector<32x128xbf16>
    %cst_390 = arith.constant dense<0.000000e+00> : vector<8x128xf32>
    %836 = tpu.matmul %833, %835, %cst_390 {dimension_numbers = #tpu.dot_dimension_numbers<[1], [0], [0], [1], [0, 0, 1, 1], [], []>} : vector<8x32xbf16>, vector<32x128xbf16>, vector<8x128xf32> -> vector<8x128xf32>
    %837 = arith.addf %832, %836 : vector<8x128xf32>
    %838 = arith.truncf %749 : vector<8x32xf32> to vector<8x32xbf16>
    %c5_391 = arith.constant 5 : index
    %c0_392 = arith.constant 0 : index
    %c0_393 = arith.constant 0 : index
    %839 = vector.load %arg6[%c5_391, %c0_392, %c0_393] : memref<8x32x128xbf16, #tpu.memory_space<vmem>>, vector<1x32x128xbf16>
    %840 = vector.shape_cast %839 : vector<1x32x128xbf16> to vector<32x128xbf16>
    %cst_394 = arith.constant dense<0.000000e+00> : vector<8x128xf32>
    %841 = tpu.matmul %838, %840, %cst_394 {dimension_numbers = #tpu.dot_dimension_numbers<[1], [0], [0], [1], [0, 0, 1, 1], [], []>} : vector<8x32xbf16>, vector<32x128xbf16>, vector<8x128xf32> -> vector<8x128xf32>
    %842 = arith.addf %837, %841 : vector<8x128xf32>
    %843 = arith.negf %842 : vector<8x128xf32>
    %844 = math.exp %843 : vector<8x128xf32>
    %cst_395 = arith.constant 1.000000e+00 : f32
    %845 = vector.broadcast %cst_395 : f32 to vector<8x128xf32>
    %846 = arith.addf %845, %844 : vector<8x128xf32>
    %847 = arith.divf %845, %846 : vector<8x128xf32>
    %848 = math.tanh %842 : vector<8x128xf32>
    %849 = vector.extract_strided_slice %847 {offsets = [0, 0], sizes = [8, 32], strides = [1, 1]} : vector<8x128xf32> to vector<8x32xf32>
    %850 = vector.extract_strided_slice %847 {offsets = [0, 32], sizes = [8, 32], strides = [1, 1]} : vector<8x128xf32> to vector<8x32xf32>
    %851 = vector.extract_strided_slice %848 {offsets = [0, 64], sizes = [8, 32], strides = [1, 1]} : vector<8x128xf32> to vector<8x32xf32>
    %852 = vector.extract_strided_slice %847 {offsets = [0, 96], sizes = [8, 32], strides = [1, 1]} : vector<8x128xf32> to vector<8x32xf32>
    %853 = arith.mulf %850, %747 : vector<8x32xf32>
    %854 = arith.mulf %849, %851 : vector<8x32xf32>
    %855 = arith.addf %853, %854 : vector<8x32xf32>
    %856 = math.tanh %855 : vector<8x32xf32>
    %857 = arith.mulf %852, %856 : vector<8x32xf32>
    %858 = arith.truncf %857 : vector<8x32xf32> to vector<8x32xbf16>
    %c6_396 = arith.constant 6 : index
    %c0_397 = arith.constant 0 : index
    %c0_398 = arith.constant 0 : index
    %859 = vector.load %arg6[%c6_396, %c0_397, %c0_398] : memref<8x32x128xbf16, #tpu.memory_space<vmem>>, vector<1x32x128xbf16>
    %860 = vector.shape_cast %859 : vector<1x32x128xbf16> to vector<32x128xbf16>
    %cst_399 = arith.constant dense<0.000000e+00> : vector<8x128xf32>
    %861 = tpu.matmul %858, %860, %cst_399 {dimension_numbers = #tpu.dot_dimension_numbers<[1], [0], [0], [1], [0, 0, 1, 1], [], []>} : vector<8x32xbf16>, vector<32x128xbf16>, vector<8x128xf32> -> vector<8x128xf32>
    %862 = arith.truncf %776 : vector<8x32xf32> to vector<8x32xbf16>
    %c7_400 = arith.constant 7 : index
    %c0_401 = arith.constant 0 : index
    %c0_402 = arith.constant 0 : index
    %863 = vector.load %arg6[%c7_400, %c0_401, %c0_402] : memref<8x32x128xbf16, #tpu.memory_space<vmem>>, vector<1x32x128xbf16>
    %864 = vector.shape_cast %863 : vector<1x32x128xbf16> to vector<32x128xbf16>
    %cst_403 = arith.constant dense<0.000000e+00> : vector<8x128xf32>
    %865 = tpu.matmul %862, %864, %cst_403 {dimension_numbers = #tpu.dot_dimension_numbers<[1], [0], [0], [1], [0, 0, 1, 1], [], []>} : vector<8x32xbf16>, vector<32x128xbf16>, vector<8x128xf32> -> vector<8x128xf32>
    %866 = arith.addf %861, %865 : vector<8x128xf32>
    %c1_404 = arith.constant 1 : index
    %c0_405 = arith.constant 0 : index
    %c0_406 = arith.constant 0 : index
    %867 = vector.load %arg7[%c1_404, %c0_405, %c0_406] : memref<2x8x128xf32, #tpu.memory_space<vmem>>, vector<1x8x128xf32>
    %868 = vector.shape_cast %867 : vector<1x8x128xf32> to vector<8x128xf32>
    %869 = arith.addf %866, %868 : vector<8x128xf32>
    %870 = arith.negf %869 : vector<8x128xf32>
    %871 = math.exp %870 : vector<8x128xf32>
    %cst_407 = arith.constant 1.000000e+00 : f32
    %872 = vector.broadcast %cst_407 : f32 to vector<8x128xf32>
    %873 = arith.addf %872, %871 : vector<8x128xf32>
    %874 = arith.divf %872, %873 : vector<8x128xf32>
    %875 = math.tanh %869 : vector<8x128xf32>
    %876 = vector.extract_strided_slice %874 {offsets = [0, 0], sizes = [8, 32], strides = [1, 1]} : vector<8x128xf32> to vector<8x32xf32>
    %877 = vector.extract_strided_slice %874 {offsets = [0, 32], sizes = [8, 32], strides = [1, 1]} : vector<8x128xf32> to vector<8x32xf32>
    %878 = vector.extract_strided_slice %875 {offsets = [0, 64], sizes = [8, 32], strides = [1, 1]} : vector<8x128xf32> to vector<8x32xf32>
    %879 = vector.extract_strided_slice %874 {offsets = [0, 96], sizes = [8, 32], strides = [1, 1]} : vector<8x128xf32> to vector<8x32xf32>
    %880 = arith.mulf %877, %774 : vector<8x32xf32>
    %881 = arith.mulf %876, %878 : vector<8x32xf32>
    %882 = arith.addf %880, %881 : vector<8x32xf32>
    %883 = math.tanh %882 : vector<8x32xf32>
    %884 = arith.mulf %879, %883 : vector<8x32xf32>
    %c56_408 = arith.constant 56 : index
    %c0_409 = arith.constant 0 : index
    %885 = vector.load %arg18[%c56_408, %c0_409] : memref<64x32xf32, #tpu.memory_space<vmem>>, vector<8x32xf32>
    tpu.vector_store %arg18[%c56_408, %c0_409], %884 {strides = array<i32>} : memref<64x32xf32, #tpu.memory_space<vmem>>, vector<8x32xf32>,
    %c0_410 = arith.constant 0 : index
    %c0_411 = arith.constant 0 : index
    %886 = vector.load %arg17[%c0_410, %c0_411] : memref<64x32xf32, #tpu.memory_space<vmem>>, vector<64x32xf32>
    %c0_412 = arith.constant 0 : index
    %c0_413 = arith.constant 0 : index
    %887 = vector.load %arg8[%c0_412, %c0_413] : memref<32x16xf32, #tpu.memory_space<vmem>>, vector<32x16xf32>
    %cst_414 = arith.constant dense<0.000000e+00> : vector<64x16xf32>
    %888 = tpu.matmul %886, %887, %cst_414 {dimension_numbers = #tpu.dot_dimension_numbers<[1], [0], [0], [1], [0, 0, 1, 1], [], []>} : vector<64x32xf32>, vector<32x16xf32>, vector<64x16xf32> -> vector<64x16xf32>
    %c0_415 = arith.constant 0 : index
    %c0_416 = arith.constant 0 : index
    %889 = vector.load %arg9[%c0_415, %c0_416] : memref<1x16xf32, #tpu.memory_space<vmem>>, vector<1x16xf32>
    %890 = vector.broadcast %889 : vector<1x16xf32> to vector<64x16xf32>
    %891 = arith.addf %888, %890 : vector<64x16xf32>
    %c0_417 = arith.constant 0 : index
    %c0_418 = arith.constant 0 : index
    %892 = vector.load %arg18[%c0_417, %c0_418] : memref<64x32xf32, #tpu.memory_space<vmem>>, vector<64x32xf32>
    %c0_419 = arith.constant 0 : index
    %c0_420 = arith.constant 0 : index
    %893 = vector.load %arg10[%c0_419, %c0_420] : memref<32x64xf32, #tpu.memory_space<vmem>>, vector<32x64xf32>
    %cst_421 = arith.constant dense<0.000000e+00> : vector<64x64xf32>
    %894 = tpu.matmul %892, %893, %cst_421 {dimension_numbers = #tpu.dot_dimension_numbers<[1], [0], [0], [1], [0, 0, 1, 1], [], []>} : vector<64x32xf32>, vector<32x64xf32>, vector<64x64xf32> -> vector<64x64xf32>
    %c0_422 = arith.constant 0 : index
    %c0_423 = arith.constant 0 : index
    %895 = vector.load %arg11[%c0_422, %c0_423] : memref<1x64xf32, #tpu.memory_space<vmem>>, vector<1x64xf32>
    %896 = vector.broadcast %895 : vector<1x64xf32> to vector<64x64xf32>
    %897 = arith.addf %894, %896 : vector<64x64xf32>
    %cst_424 = arith.constant dense<0xFF800000> : vector<64xf32>
    %898 = vector.multi_reduction <maximumf>, %891, %cst_424 [1] : vector<64x16xf32> to vector<64xf32>
    %899 = vector.shape_cast %898 : vector<64xf32> to vector<64x1xf32>
    %900 = vector.broadcast %899 : vector<64x1xf32> to vector<64x16xf32>
    %901 = arith.subf %891, %900 : vector<64x16xf32>
    %902 = vector.broadcast %899 : vector<64x1xf32> to vector<64x16xf32>
    %903 = arith.subf %891, %902 : vector<64x16xf32>
    %904 = math.exp %903 : vector<64x16xf32>
    %cst_425 = arith.constant dense<0.000000e+00> : vector<64xf32>
    %905 = vector.multi_reduction <add>, %904, %cst_425 [1] : vector<64x16xf32> to vector<64xf32>
    %906 = vector.shape_cast %905 : vector<64xf32> to vector<64x1xf32>
    %907 = math.log %906 : vector<64x1xf32>
    %908 = vector.broadcast %907 : vector<64x1xf32> to vector<64x16xf32>
    %909 = arith.subf %901, %908 : vector<64x16xf32>
    %c0_426 = arith.constant 0 : index
    %c0_427 = arith.constant 0 : index
    %910 = vector.load %arg12[%c0_426, %c0_427] : memref<64x16xf32, #tpu.memory_space<vmem>>, vector<64x16xf32>
    tpu.vector_store %arg12[%c0_426, %c0_427], %909 {strides = array<i32>} : memref<64x16xf32, #tpu.memory_space<vmem>>, vector<64x16xf32>,
    %cst_428 = arith.constant dense<0xFF800000> : vector<64xf32>
    %911 = vector.multi_reduction <maximumf>, %897, %cst_428 [1] : vector<64x64xf32> to vector<64xf32>
    %912 = vector.shape_cast %911 : vector<64xf32> to vector<64x1xf32>
    %913 = vector.broadcast %912 : vector<64x1xf32> to vector<64x64xf32>
    %914 = arith.subf %897, %913 : vector<64x64xf32>
    %915 = vector.broadcast %912 : vector<64x1xf32> to vector<64x64xf32>
    %916 = arith.subf %897, %915 : vector<64x64xf32>
    %917 = math.exp %916 : vector<64x64xf32>
    %cst_429 = arith.constant dense<0.000000e+00> : vector<64xf32>
    %918 = vector.multi_reduction <add>, %917, %cst_429 [1] : vector<64x64xf32> to vector<64xf32>
    %919 = vector.shape_cast %918 : vector<64xf32> to vector<64x1xf32>
    %920 = math.log %919 : vector<64x1xf32>
    %921 = vector.broadcast %920 : vector<64x1xf32> to vector<64x64xf32>
    %922 = arith.subf %914, %921 : vector<64x64xf32>
    %c0_430 = arith.constant 0 : index
    %c0_431 = arith.constant 0 : index
    %923 = vector.load %arg13[%c0_430, %c0_431] : memref<64x64xf32, #tpu.memory_space<vmem>>, vector<64x64xf32>
    tpu.vector_store %arg13[%c0_430, %c0_431], %922 {strides = array<i32>} : memref<64x64xf32, #tpu.memory_space<vmem>>, vector<64x64xf32>,
    %924 = tpu.concatenate %803, %830, %801, %828, %857, %884, %855, %882 in 1 : vector<8x32xf32>, vector<8x32xf32>, vector<8x32xf32>, vector<8x32xf32>, vector<8x32xf32>, vector<8x32xf32>, vector<8x32xf32>, vector<8x32xf32> -> vector<8x256xf32>
    %c0_432 = arith.constant 0 : index
    %c0_433 = arith.constant 0 : index
    %925 = vector.load %arg14[%c0_432, %c0_433] : memref<8x256xf32, #tpu.memory_space<vmem>>, vector<8x256xf32>
    tpu.vector_store %arg14[%c0_432, %c0_433], %924 {strides = array<i32>} : memref<8x256xf32, #tpu.memory_space<vmem>>, vector<8x256xf32>,
    return
  }
}

</mosaic_0001>

<llo_original>
// kernel: tpu_custom_call.1
$region0: #{tpu_custom_call.1}
  #allocation0 [shape = 'u32[]', space=smem, size = 0x4, offset = 0x4, fixed_abs, tag = 'smem constant byte address 0x4 - core index']
  #allocation1 [shape = 'u32[144,128]{1,0:T(1,128)}', space=vmem, size = 0x12000, scoped, tag = 'internal scratch']
  #allocation2 [shape = 'f32[64,128]{1,0:T(8,128)}', space=vmem, size = 0x8000, scoped, tag = 'scratch operand']
  #allocation3 [shape = 'f32[64,128]{1,0:T(8,128)}', space=vmem, size = 0x8000, scoped, tag = 'scratch operand']
  #allocation4 [shape = 'f32[64,32]{1,0:T(8,128)}', space=vmem, size = 0x8000, scoped, tag = 'scratch operand']
  #allocation5 [shape = 'f32[64,32]{1,0:T(8,128)}', space=vmem, size = 0x8000, scoped, tag = 'scratch operand']
  %s0 = inlined_call_operand.vmem [shape: bf16[64,8], index: 0, kind: input, shape index: {}]
  %s1 = inlined_call_operand.vmem [shape: bf16[64,16], index: 1, kind: input, shape index: {}]
  %s2 = inlined_call_operand.hbm [shape: bf16[8,128], index: 2, kind: input, shape index: {}]
  %s3 = inlined_call_operand.vmem [shape: f32[1,128], index: 3, kind: input, shape index: {}]
  %s4 = inlined_call_operand.hbm [shape: bf16[16,128], index: 4, kind: input, shape index: {}]
  %s5 = inlined_call_operand.hbm [shape: f32[1,128], index: 5, kind: input, shape index: {}]
  %s6 = inlined_call_operand.vmem [shape: bf16[8,32,128], index: 6, kind: input, shape index: {}]
  %s7 = inlined_call_operand.hbm [shape: f32[2,8,128], index: 7, kind: input, shape index: {}]
  %s8 = inlined_call_operand.vmem [shape: f32[32,16], index: 8, kind: input, shape index: {}]
  %s9 = inlined_call_operand.hbm [shape: f32[1,16], index: 9, kind: input, shape index: {}]
  %s10 = inlined_call_operand.vmem [shape: f32[32,64], index: 10, kind: input, shape index: {}]
  %s11 = inlined_call_operand.vmem [shape: f32[1,64], index: 11, kind: input, shape index: {}]
  %s12 = inlined_call_operand.vmem [shape: f32[64,16], index: 12, kind: output, shape index: {0}]
  %s13 = inlined_call_operand.hbm [shape: f32[64,64], index: 13, kind: output, shape index: {1}]
  %s14 = inlined_call_operand.hbm [shape: f32[8,256], index: 14, kind: output, shape index: {2}]
  %15 = xla_tuple %s12, %s13, %s14
  %s16 = sld [smem:[#allocation0]]
  $region94: #{tpu_custom_call.1} parent=0
    _
  %s18 = ssub.s32 1, %s16
  %s19 = scalar_select 0, %s18, %s16
  $region1: #{tpu_custom_call.1} parent=0
    #allocation6 [shape = 'u8[2048]{0}', space=vmem, size = 0x800, scoped, tag = 'input window, operand 2, single buffered']
    #allocation7 [shape = 's32[1]{0}', space=sflag, size = 0x4, scoped, tag = 'scoped memory for tpu_custom_call.1']
    #allocation8 [shape = 's32[1]{0}', space=sflag, size = 0x4, scoped, tag = 'scoped memory for tpu_custom_call.1']
    #allocation9 [shape = 'u8[4096]{0}', space=vmem, size = 0x1000, scoped, tag = 'input window, operand 4, single buffered']
    #allocation10 [shape = 's32[1]{0}', space=sflag, size = 0x4, scoped, tag = 'scoped memory for tpu_custom_call.1']
    #allocation11 [shape = 'u8[512]{0}', space=vmem, size = 0x400, scoped, tag = 'input window, operand 5, single buffered']
    #allocation12 [shape = 'u8[8192]{0}', space=vmem, size = 0x2000, scoped, tag = 'input window, operand 7, single buffered']
    #allocation13 [shape = 's32[1]{0}', space=sflag, size = 0x4, scoped, tag = 'scoped memory for tpu_custom_call.1']
    #allocation14 [shape = 'u8[512]{0}', space=vmem, size = 0x400, scoped, tag = 'input window, operand 9, single buffered']
    #allocation15 [shape = 'u8[32768]{0}', space=vmem, size = 0x8000, scoped, tag = 'output window, operand 1, single buffered']
    #allocation16 [shape = 'u8[8192]{0}', space=vmem, size = 0x2000, scoped, tag = 'output window, operand 2, single buffered']
    #allocation17 [shape = 's32[1]{0}', space=sflag, size = 0x4, scoped, tag = 'scoped memory for tpu_custom_call.1']
    %20 = vsyncpa [#allocation7], 0
    %21 = vsyncpa [#allocation10], 0
    %22 = vsyncpa [#allocation13], 0
    %23 = vsyncpa [#allocation8], 0
    %24 = vsyncpa [#allocation17], 0
    // Predicated region
    $region2: #{tpu_custom_call.1} parent=1 // pred_check
      _
    $region3: #{tpu_custom_call.1} parent=1 // pred_check_branch
      %26 = sbr.rel (0) target = $region5
    $region4: #{tpu_custom_call.1} parent=1 // pred_region
      _
    $region5: #{tpu_custom_call.1} parent=1 // pred_fallthru
      _
    // Predicated region
    $region6: #{tpu_custom_call.1} parent=1 // pred_check
      _
    $region7: #{tpu_custom_call.1} parent=1 // pred_check_branch
      %28 = sbr.rel (0) target = $region9
    $region8: #{tpu_custom_call.1} parent=1 // pred_region
      _
    $region9: #{tpu_custom_call.1} parent=1 // pred_fallthru
      _
    // Predicated region
    $region10: #{tpu_custom_call.1} parent=1 // pred_check
      _
    $region11: #{tpu_custom_call.1} parent=1 // pred_check_branch
      %30 = sbr.rel (0) target = $region13
    $region12: #{tpu_custom_call.1} parent=1 // pred_region
      %s32 = ssub.s32 64, 64
      %33 = vsyncadd [#allocation7], %s32
      %s35 = sshll.u32 [#allocation6], 4
      %s36 = int_to_ptr.vmem [resolvable:$true] %s35
      %38 = dma.hbm_to_vmem [thread:$0]  %s2, 64, %s36, [#allocation7]
    $region13: #{tpu_custom_call.1} parent=1 // pred_fallthru
      _
    // Predicated region
    $region14: #{tpu_custom_call.1} parent=1 // pred_check
      _
    $region15: #{tpu_custom_call.1} parent=1 // pred_check_branch
      %40 = sbr.rel (0) target = $region17
    $region16: #{tpu_custom_call.1} parent=1 // pred_region
      _
    $region17: #{tpu_custom_call.1} parent=1 // pred_fallthru
      _
    // Predicated region
    $region18: #{tpu_custom_call.1} parent=1 // pred_check
      _
    $region19: #{tpu_custom_call.1} parent=1 // pred_check_branch
      %42 = sbr.rel (0) target = $region21
    $region20: #{tpu_custom_call.1} parent=1 // pred_region
      %s44 = ssub.s32 128, 128
      %45 = vsyncadd [#allocation10], %s44
      %s46 = sshll.u32 [#allocation9], 4
      %s47 = int_to_ptr.vmem [resolvable:$true] %s46
      %52 = dma.hbm_to_vmem [thread:$0]  %s4, 128, %s47, [#allocation10], 64, 64, 4
    $region21: #{tpu_custom_call.1} parent=1 // pred_fallthru
      _
    // Predicated region
    $region22: #{tpu_custom_call.1} parent=1 // pred_check
      _
    $region23: #{tpu_custom_call.1} parent=1 // pred_check_branch
      %54 = sbr.rel (0) target = $region25
    $region24: #{tpu_custom_call.1} parent=1 // pred_region
      %s56 = ssub.s32 16, 16
      %57 = vsyncadd [#allocation10], %s56
      %s59 = sshll.u32 [#allocation11], 4
      %s60 = int_to_ptr.vmem [resolvable:$true] %s59
      %62 = dma.hbm_to_vmem [thread:$0]  %s5, 16, %s60, [#allocation10]
    $region25: #{tpu_custom_call.1} parent=1 // pred_fallthru
      _
    // Predicated region
    $region26: #{tpu_custom_call.1} parent=1 // pred_check
      _
    $region27: #{tpu_custom_call.1} parent=1 // pred_check_branch
      %64 = sbr.rel (0) target = $region29
    $region28: #{tpu_custom_call.1} parent=1 // pred_region
      _
    $region29: #{tpu_custom_call.1} parent=1 // pred_fallthru
      _
    // Predicated region
    $region30: #{tpu_custom_call.1} parent=1 // pred_check
      _
    $region31: #{tpu_custom_call.1} parent=1 // pred_check_branch
      %66 = sbr.rel (0) target = $region33
    $region32: #{tpu_custom_call.1} parent=1 // pred_region
      %s68 = ssub.s32 256, 256
      %69 = vsyncadd [#allocation13], %s68
      %s70 = sshll.u32 [#allocation12], 4
      %s71 = int_to_ptr.vmem [resolvable:$true] %s70
      %76 = dma.hbm_to_vmem [thread:$0]  %s7, 256, %s71, [#allocation13], 128, 128, 8
    $region33: #{tpu_custom_call.1} parent=1 // pred_fallthru
      _
    // Predicated region
    $region34: #{tpu_custom_call.1} parent=1 // pred_check
      _
    $region35: #{tpu_custom_call.1} parent=1 // pred_check_branch
      %78 = sbr.rel (0) target = $region37
    $region36: #{tpu_custom_call.1} parent=1 // pred_region
      _
    $region37: #{tpu_custom_call.1} parent=1 // pred_fallthru
      _
    // Predicated region
    $region38: #{tpu_custom_call.1} parent=1 // pred_check
      _
    $region39: #{tpu_custom_call.1} parent=1 // pred_check_branch
      %80 = sbr.rel (0) target = $region41
    $region40: #{tpu_custom_call.1} parent=1 // pred_region
      %s82 = ssub.s32 16, 16
      %83 = vsyncadd [#allocation13], %s82
      %s85 = sshll.u32 [#allocation14], 4
      %s86 = int_to_ptr.vmem [resolvable:$true] %s85
      %88 = dma.hbm_to_vmem [thread:$0]  %s9, 16, %s86, [#allocation13]
    $region41: #{tpu_custom_call.1} parent=1 // pred_fallthru
      _
    // Predicated region
    $region42: #{tpu_custom_call.1} parent=1 // pred_check
      _
    $region43: #{tpu_custom_call.1} parent=1 // pred_check_branch
      %90 = sbr.rel (0) target = $region45
    $region44: #{tpu_custom_call.1} parent=1 // pred_region
      _
    $region45: #{tpu_custom_call.1} parent=1 // pred_fallthru
      _
    // Predicated region
    $region46: #{tpu_custom_call.1} parent=1 // pred_check
      _
    $region47: #{tpu_custom_call.1} parent=1 // pred_check_branch
      %92 = sbr.rel (0) target = $region49
    $region48: #{tpu_custom_call.1} parent=1 // pred_region
      _
    $region49: #{tpu_custom_call.1} parent=1 // pred_fallthru
      _
    // Predicated region
    $region50: #{tpu_custom_call.1} parent=1 // pred_check
      _
    $region51: #{tpu_custom_call.1} parent=1 // pred_check_branch
      %94 = sbr.rel (0) target = $region53
    $region52: #{tpu_custom_call.1} parent=1 // pred_region
      %95 = dma.done [#allocation7], 64
    $region53: #{tpu_custom_call.1} parent=1 // pred_fallthru
      _
    // Predicated region
    $region54: #{tpu_custom_call.1} parent=1 // pred_check
      _
    $region55: #{tpu_custom_call.1} parent=1 // pred_check_branch
      %97 = sbr.rel (0) target = $region57
    $region56: #{tpu_custom_call.1} parent=1 // pred_region
      %98 = dma.done [#allocation10], 128
    $region57: #{tpu_custom_call.1} parent=1 // pred_fallthru
      _
    // Predicated region
    $region58: #{tpu_custom_call.1} parent=1 // pred_check
      _
    $region59: #{tpu_custom_call.1} parent=1 // pred_check_branch
      %100 = sbr.rel (0) target = $region61
    $region60: #{tpu_custom_call.1} parent=1 // pred_region
      %101 = dma.done [#allocation10], 16
    $region61: #{tpu_custom_call.1} parent=1 // pred_fallthru
      _
    // Predicated region
    $region62: #{tpu_custom_call.1} parent=1 // pred_check
      _
    $region63: #{tpu_custom_call.1} parent=1 // pred_check_branch
      %103 = sbr.rel (0) target = $region65
    $region64: #{tpu_custom_call.1} parent=1 // pred_region
      %104 = dma.done [#allocation13], 256
    $region65: #{tpu_custom_call.1} parent=1 // pred_fallthru
      _
    // Predicated region
    $region66: #{tpu_custom_call.1} parent=1 // pred_check
      _
    $region67: #{tpu_custom_call.1} parent=1 // pred_check_branch
      %106 = sbr.rel (0) target = $region69
    $region68: #{tpu_custom_call.1} parent=1 // pred_region
      %107 = dma.done [#allocation13], 16
    $region69: #{tpu_custom_call.1} parent=1 // pred_fallthru
      _
    %v109 = vld [vmem:[%s0] sm:$0xf]
    %v110 = vld [vmem:[%s0 + $0x4] sm:$0xf]
    %v111 = vld [vmem:[%s0 + $0x8] sm:$0xf]
    %v112 = vld [vmem:[%s0 + $0xc] sm:$0xf]
    %v113 = vld [vmem:[%s0 + $0x10] sm:$0xf]
    %v114 = vld [vmem:[%s0 + $0x14] sm:$0xf]
    %v115 = vld [vmem:[%s0 + $0x18] sm:$0xf]
    %v116 = vld [vmem:[%s0 + $0x1c] sm:$0xf]
    %v117 = vld [vmem:[#allocation6] sm:$0xf]
    %v118 = vld [vmem:[%s3] sm:$0x1]
    %v120 = vlaneseq
    %v121 = vshrl.u32 %v120, 7
    %v122 = vsub.s32 0, %v121
    %v123 = vrot.slane %v118, %v122
    %v133 = vunpack.c.l.b16 %v109
    %v134 = vunpack.c.l.b16 %v110
    %v135 = vunpack.c.l.b16 %v111
    %v136 = vunpack.c.l.b16 %v112
    %v137 = vunpack.c.l.b16 %v113
    %v138 = vunpack.c.l.b16 %v114
    %v139 = vunpack.c.l.b16 %v115
    %v140 = vunpack.c.l.b16 %v116
    %v141 = vpack.c.b16 %v134, %v133
    %v142 = vpack.c.b16 %v136, %v135
    %v143 = vpack.c.b16 %v138, %v137
    %v144 = vpack.c.b16 %v140, %v139
    %vm145 = vcmask 64512
    %v147 = vsel %vm145, %v141, 0
    %v150 = vsel %vm145, %v142, 0
    %v153 = vsel %vm145, %v143, 0
    %v156 = vsel %vm145, %v144, 0
    %vm158 = vcmask 1043456
    %v160 = vsel %vm158, %v117, 0
    %162 = vmatprep.subr.bf16.mxu0 0
    %163 = vmatpush1.bf16.msra.mxu0 %v160
    %164 = vmatprep.subr.bf16.mxu0 0
    %165 = vmatpush1.bf16.msra.mxu0 0
    %166 = vmatprep.subr.bf16.mxu0 0
    %167 = vmatpush1.bf16.msra.mxu0 0
    %168 = vmatprep.subr.bf16.mxu0 0
    %169 = vmatpush1.bf16.msra.mxu0 0
    %170 = vmatprep.subr.bf16.mxu0 0
    %171 = vmatpush1.bf16.msra.mxu0 0
    %172 = vmatprep.subr.bf16.mxu0 0
    %173 = vmatpush1.bf16.msra.mxu0 0
    %174 = vmatprep.subr.bf16.mxu0 0
    %175 = vmatpush1.bf16.msra.mxu0 0
    %176 = vmatprep.subr.bf16.mxu0 0
    %177 = vmatpush1.bf16.msra.mxu0 0
    %178 = vmatprep.subr.bf16.mxu0 0
    %179 = vmatpush1.bf16.msra.mxu0 0
    %180 = vmatprep.subr.bf16.mxu0 0
    %181 = vmatpush1.bf16.msra.mxu0 0
    %182 = vmatprep.subr.bf16.mxu0 0
    %183 = vmatpush1.bf16.msra.mxu0 0
    %184 = vmatprep.subr.bf16.mxu0 0
    %185 = vmatpush1.bf16.msra.mxu0 0
    %186 = vmatprep.subr.bf16.mxu0 0
    %187 = vmatpush1.bf16.msra.mxu0 0
    %188 = vmatprep.subr.bf16.mxu0 0
    %189 = vmatpush1.bf16.msra.mxu0 0
    %190 = vmatprep.subr.bf16.mxu0 0
    %191 = vmatpush1.bf16.msra.mxu0 0
    %192 = vmatprep.subr.bf16.mxu0 0
    %193 = vmatpush1.bf16.msra.mxu0 0
    %194 = vmatprep.mubr.bf16.mxu0 0
    %195 = vmatmul.mubr.bf16.gmra.mrb[0].mxu0 %v147
    %v196 = vpop.f32.mrb[0].mxu0
    %v197 = vadd.f32 %v123, %v196
    %v198 = vpop.f32.mrb[0].mxu0
    %v199 = vpop.f32.mrb[0].mxu0
    %v200 = vadd.f32 %v123, %v199
    %v201 = vpop.f32.mrb[0].mxu0
    %202 = vmatprep.mubr.bf16.mxu0 0
    %203 = vmatmul.mubr.bf16.gmra.mrb[0].mxu0 %v150
    %v204 = vpop.f32.mrb[0].mxu0
    %v205 = vadd.f32 %v123, %v204
    %v206 = vpop.f32.mrb[0].mxu0
    %v207 = vpop.f32.mrb[0].mxu0
    %v208 = vadd.f32 %v123, %v207
    %v209 = vpop.f32.mrb[0].mxu0
    %210 = vmatprep.mubr.bf16.mxu0 0
    %211 = vmatmul.mubr.bf16.gmra.mrb[0].mxu0 %v153
    %v212 = vpop.f32.mrb[0].mxu0
    %v213 = vadd.f32 %v123, %v212
    %v214 = vpop.f32.mrb[0].mxu0
    %v215 = vpop.f32.mrb[0].mxu0
    %v216 = vadd.f32 %v123, %v215
    %v217 = vpop.f32.mrb[0].mxu0
    %218 = vmatprep.mubr.bf16.mxu0 0
    %219 = vmatmul.mubr.bf16.gmra.mrb[0].mxu0 %v156
    %v220 = vpop.f32.mrb[0].mxu0
    %v221 = vadd.f32 %v123, %v220
    %v222 = vpop.f32.mrb[0].mxu0
    %v223 = vpop.f32.mrb[0].mxu0
    %v224 = vadd.f32 %v123, %v223
    %v225 = vpop.f32.mrb[0].mxu0
    %226 = vdwg.mxu0
    %227 = vst [vmem:[#allocation2] sm:$0xff] %v197
    %228 = vst [vmem:[#allocation2 + $0x8] sm:$0xff] %v200
    %229 = vst [vmem:[#allocation2 + $0x10] sm:$0xff] %v205
    %230 = vst [vmem:[#allocation2 + $0x18] sm:$0xff] %v208
    %231 = vst [vmem:[#allocation2 + $0x20] sm:$0xff] %v213
    %232 = vst [vmem:[#allocation2 + $0x28] sm:$0xff] %v216
    %233 = vst [vmem:[#allocation2 + $0x30] sm:$0xff] %v221
    %234 = vst [vmem:[#allocation2 + $0x38] sm:$0xff] %v224
    %v235 = vld [vmem:[%s1] sm:$0xf]
    %v236 = vld [vmem:[%s1 + $0x4] sm:$0xf]
    %v237 = vld [vmem:[%s1 + $0x8] sm:$0xf]
    %v238 = vld [vmem:[%s1 + $0xc] sm:$0xf]
    %v239 = vld [vmem:[%s1 + $0x10] sm:$0xf]
    %v240 = vld [vmem:[%s1 + $0x14] sm:$0xf]
    %v241 = vld [vmem:[%s1 + $0x18] sm:$0xf]
    %v242 = vld [vmem:[%s1 + $0x1c] sm:$0xf]
    %v243 = vld [vmem:[#allocation9] sm:$0xf]
    %v244 = vld [vmem:[#allocation9 + $0x4] sm:$0xf]
    %v245 = vld [vmem:[#allocation11] sm:$0x1]
    %v247 = vlaneseq
    %v248 = vshrl.u32 %v247, 7
    %v249 = vsub.s32 0, %v248
    %v250 = vrot.slane %v245, %v249
    %v260 = vunpack.c.l.b16 %v235
    %v261 = vunpack.c.l.b16 %v236
    %v262 = vunpack.c.l.b16 %v237
    %v263 = vunpack.c.l.b16 %v238
    %v264 = vunpack.c.l.b16 %v239
    %v265 = vunpack.c.l.b16 %v240
    %v266 = vunpack.c.l.b16 %v241
    %v267 = vunpack.c.l.b16 %v242
    %v268 = vpack.c.b16 %v261, %v260
    %v269 = vpack.c.b16 %v263, %v262
    %v270 = vpack.c.b16 %v265, %v264
    %v271 = vpack.c.b16 %v267, %v266
    %v274 = vunpack.c.l.b16 %v243
    %v275 = vunpack.c.l.b16 %v244
    %v276 = vpack.c.b16 %v275, %v274
    %vm278 = vcmask 130048
    %v280 = vsel %vm278, %v268, 0
    %v283 = vsel %vm278, %v269, 0
    %v286 = vsel %vm278, %v270, 0
    %v289 = vsel %vm278, %v271, 0
    %291 = vmatprep.subr.bf16.mxu0 0
    %292 = vmatpush1.bf16.msra.mxu0 %v276
    %293 = vmatprep.subr.bf16.mxu0 0
    %294 = vmatpush1.bf16.msra.mxu0 0
    %295 = vmatprep.subr.bf16.mxu0 0
    %296 = vmatpush1.bf16.msra.mxu0 0
    %297 = vmatprep.subr.bf16.mxu0 0
    %298 = vmatpush1.bf16.msra.mxu0 0
    %299 = vmatprep.subr.bf16.mxu0 0
    %300 = vmatpush1.bf16.msra.mxu0 0
    %301 = vmatprep.subr.bf16.mxu0 0
    %302 = vmatpush1.bf16.msra.mxu0 0
    %303 = vmatprep.subr.bf16.mxu0 0
    %304 = vmatpush1.bf16.msra.mxu0 0
    %305 = vmatprep.subr.bf16.mxu0 0
    %306 = vmatpush1.bf16.msra.mxu0 0
    %307 = vmatprep.subr.bf16.mxu0 0
    %308 = vmatpush1.bf16.msra.mxu0 0
    %309 = vmatprep.subr.bf16.mxu0 0
    %310 = vmatpush1.bf16.msra.mxu0 0
    %311 = vmatprep.subr.bf16.mxu0 0
    %312 = vmatpush1.bf16.msra.mxu0 0
    %313 = vmatprep.subr.bf16.mxu0 0
    %314 = vmatpush1.bf16.msra.mxu0 0
    %315 = vmatprep.subr.bf16.mxu0 0
    %316 = vmatpush1.bf16.msra.mxu0 0
    %317 = vmatprep.subr.bf16.mxu0 0
    %318 = vmatpush1.bf16.msra.mxu0 0
    %319 = vmatprep.subr.bf16.mxu0 0
    %320 = vmatpush1.bf16.msra.mxu0 0
    %321 = vmatprep.subr.bf16.mxu0 0
    %322 = vmatpush1.bf16.msra.mxu0 0
    %323 = vmatprep.mubr.bf16.mxu0 0
    %324 = vmatmul.mubr.bf16.gmra.mrb[0].mxu0 %v280
    %v325 = vpop.f32.mrb[0].mxu0
    %v326 = vadd.f32 %v250, %v325
    %v327 = vpop.f32.mrb[0].mxu0
    %v328 = vpop.f32.mrb[0].mxu0
    %v329 = vadd.f32 %v250, %v328
    %v330 = vpop.f32.mrb[0].mxu0
    %331 = vmatprep.mubr.bf16.mxu0 0
    %332 = vmatmul.mubr.bf16.gmra.mrb[0].mxu0 %v283
    %v333 = vpop.f32.mrb[0].mxu0
    %v334 = vadd.f32 %v250, %v333
    %v335 = vpop.f32.mrb[0].mxu0
    %v336 = vpop.f32.mrb[0].mxu0
    %v337 = vadd.f32 %v250, %v336
    %v338 = vpop.f32.mrb[0].mxu0
    %339 = vmatprep.mubr.bf16.mxu0 0
    %340 = vmatmul.mubr.bf16.gmra.mrb[0].mxu0 %v286
    %v341 = vpop.f32.mrb[0].mxu0
    %v342 = vadd.f32 %v250, %v341
    %v343 = vpop.f32.mrb[0].mxu0
    %v344 = vpop.f32.mrb[0].mxu0
    %v345 = vadd.f32 %v250, %v344
    %v346 = vpop.f32.mrb[0].mxu0
    %347 = vmatprep.mubr.bf16.mxu0 0
    %348 = vmatmul.mubr.bf16.gmra.mrb[0].mxu0 %v289
    %v349 = vpop.f32.mrb[0].mxu0
    %v350 = vadd.f32 %v250, %v349
    %v351 = vpop.f32.mrb[0].mxu0
    %v352 = vpop.f32.mrb[0].mxu0
    %v353 = vadd.f32 %v250, %v352
    %v354 = vpop.f32.mrb[0].mxu0
    %355 = vdwg.mxu0
    %356 = vst [vmem:[#allocation3] sm:$0xff] %v326
    %357 = vst [vmem:[#allocation3 + $0x8] sm:$0xff] %v329
    %358 = vst [vmem:[#allocation3 + $0x10] sm:$0xff] %v334
    %359 = vst [vmem:[#allocation3 + $0x18] sm:$0xff] %v337
    %360 = vst [vmem:[#allocation3 + $0x20] sm:$0xff] %v342
    %361 = vst [vmem:[#allocation3 + $0x28] sm:$0xff] %v345
    %362 = vst [vmem:[#allocation3 + $0x30] sm:$0xff] %v350
    %363 = vst [vmem:[#allocation3 + $0x38] sm:$0xff] %v353
    %v364 = vld [vmem:[#allocation2] sm:$0xff]
    %v365 = vld [vmem:[%s6] sm:$0xf]
    %v366 = vld [vmem:[%s6 + $0x4] sm:$0xf]
    %v367 = vld [vmem:[%s6 + $0x8] sm:$0xf]
    %v368 = vld [vmem:[%s6 + $0xc] sm:$0xf]
    %v373 = vunpack.c.l.b16 %v365
    %v374 = vunpack.c.l.b16 %v366
    %v375 = vunpack.c.l.b16 %v367
    %v376 = vunpack.c.l.b16 %v368
    %v377 = vpack.c.b16 %v374, %v373
    %v378 = vpack.c.b16 %v376, %v375
    %vm381 = vcmask 261120
    %v383 = vsel %vm381, 0, 0
    %385 = vmatprep.subr.bf16.mxu0 0
    %386 = vmatpush1.bf16.msra.mxu0 %v377
    %387 = vmatprep.subr.bf16.mxu0 0
    %388 = vmatpush1.bf16.msra.mxu0 %v378
    %389 = vmatprep.subr.bf16.mxu0 0
    %390 = vmatpush1.bf16.msra.mxu0 0
    %391 = vmatprep.subr.bf16.mxu0 0
    %392 = vmatpush1.bf16.msra.mxu0 0
    %393 = vmatprep.subr.bf16.mxu0 0
    %394 = vmatpush1.bf16.msra.mxu0 0
    %395 = vmatprep.subr.bf16.mxu0 0
    %396 = vmatpush1.bf16.msra.mxu0 0
    %397 = vmatprep.subr.bf16.mxu0 0
    %398 = vmatpush1.bf16.msra.mxu0 0
    %399 = vmatprep.subr.bf16.mxu0 0
    %400 = vmatpush1.bf16.msra.mxu0 0
    %401 = vmatprep.subr.bf16.mxu0 0
    %402 = vmatpush1.bf16.msra.mxu0 0
    %403 = vmatprep.subr.bf16.mxu0 0
    %404 = vmatpush1.bf16.msra.mxu0 0
    %405 = vmatprep.subr.bf16.mxu0 0
    %406 = vmatpush1.bf16.msra.mxu0 0
    %407 = vmatprep.subr.bf16.mxu0 0
    %408 = vmatpush1.bf16.msra.mxu0 0
    %409 = vmatprep.subr.bf16.mxu0 0
    %410 = vmatpush1.bf16.msra.mxu0 0
    %411 = vmatprep.subr.bf16.mxu0 0
    %412 = vmatpush1.bf16.msra.mxu0 0
    %413 = vmatprep.subr.bf16.mxu0 0
    %414 = vmatpush1.bf16.msra.mxu0 0
    %415 = vmatprep.subr.bf16.mxu0 0
    %416 = vmatpush1.bf16.msra.mxu0 0
    %417 = vmatprep.mubr.bf16.mxu0 0
    %418 = vmatmul.mubr.bf16.gmra.mrb[0].mxu0 %v383
    %v419 = vpop.f32.mrb[0].mxu0
    %v420 = vadd.f32 0.0, %v419
    %v421 = vpop.f32.mrb[0].mxu0
    %v422 = vpop.f32.mrb[0].mxu0
    %v423 = vpop.f32.mrb[0].mxu0
    %424 = vdwg.mxu0
    %v425 = vadd.f32 %v364, %v420
    %s426 = scalar_lea.vmem %s6, 16
    %v427 = vld [vmem:[%s426] sm:$0xf]
    %v428 = vld [vmem:[%s426 + $0x4] sm:$0xf]
    %v429 = vld [vmem:[%s426 + $0x8] sm:$0xf]
    %v430 = vld [vmem:[%s426 + $0xc] sm:$0xf]
    %v435 = vunpack.c.l.b16 %v427
    %v436 = vunpack.c.l.b16 %v428
    %v437 = vunpack.c.l.b16 %v429
    %v438 = vunpack.c.l.b16 %v430
    %v439 = vpack.c.b16 %v436, %v435
    %v440 = vpack.c.b16 %v438, %v437
    %443 = vmatprep.subr.bf16.mxu0 0
    %444 = vmatpush1.bf16.msra.mxu0 %v439
    %445 = vmatprep.subr.bf16.mxu0 0
    %446 = vmatpush1.bf16.msra.mxu0 %v440
    %447 = vmatprep.subr.bf16.mxu0 0
    %448 = vmatpush1.bf16.msra.mxu0 0
    %449 = vmatprep.subr.bf16.mxu0 0
    %450 = vmatpush1.bf16.msra.mxu0 0
    %451 = vmatprep.subr.bf16.mxu0 0
    %452 = vmatpush1.bf16.msra.mxu0 0
    %453 = vmatprep.subr.bf16.mxu0 0
    %454 = vmatpush1.bf16.msra.mxu0 0
    %455 = vmatprep.subr.bf16.mxu0 0
    %456 = vmatpush1.bf16.msra.mxu0 0
    %457 = vmatprep.subr.bf16.mxu0 0
    %458 = vmatpush1.bf16.msra.mxu0 0
    %459 = vmatprep.subr.bf16.mxu0 0
    %460 = vmatpush1.bf16.msra.mxu0 0
    %461 = vmatprep.subr.bf16.mxu0 0
    %462 = vmatpush1.bf16.msra.mxu0 0
    %463 = vmatprep.subr.bf16.mxu0 0
    %464 = vmatpush1.bf16.msra.mxu0 0
    %465 = vmatprep.subr.bf16.mxu0 0
    %466 = vmatpush1.bf16.msra.mxu0 0
    %467 = vmatprep.subr.bf16.mxu0 0
    %468 = vmatpush1.bf16.msra.mxu0 0
    %469 = vmatprep.subr.bf16.mxu0 0
    %470 = vmatpush1.bf16.msra.mxu0 0
    %471 = vmatprep.subr.bf16.mxu0 0
    %472 = vmatpush1.bf16.msra.mxu0 0
    %473 = vmatprep.subr.bf16.mxu0 0
    %474 = vmatpush1.bf16.msra.mxu0 0
    %475 = vmatprep.mubr.bf16.mxu0 0
    %476 = vmatmul.mubr.bf16.gmra.mrb[0].mxu0 %v383
    %v477 = vpop.f32.mrb[0].mxu0
    %v478 = vadd.f32 0.0, %v477
    %v479 = vpop.f32.mrb[0].mxu0
    %v480 = vpop.f32.mrb[0].mxu0
    %v481 = vpop.f32.mrb[0].mxu0
    %482 = vdwg.mxu0
    %v483 = vadd.f32 %v425, %v478
    %v484 = vxor.u32 %v483, 2147483648
    %v485 = vmul.f32 %v484, 1.442695
    %v486 = vpow.pop %v485
    %v487 = vadd.f32 %v486, 1.0
    %v488 = vrcp.pop %v487
    %v489 = vmul.f32 1.0, %v488
    %v490 = vtanh.pop %v483
    %v491 = vmul.f32 %v489, 0.0
    %493 = vrot.lane.b32.xlu0 %v490, 64
    %v494 = vpop.permute.xlu0 %493
    %v496 = vmul.f32 %v489, %v494
    %498 = vrot.lane.b32.xlu0 %v496, 32
    %v499 = vpop.permute.xlu0 %498
    %v501 = vadd.f32 %v491, %v499
    %v502 = vtanh.pop %v501
    %504 = vrot.lane.b32.xlu0 %v502, 64
    %v505 = vpop.permute.xlu0 %504
    %v507 = vmul.f32 %v489, %v505
    %v508 = vpack.c.bf16 %v507, %v507
    %s509 = scalar_lea.vmem %s6, 32
    %v510 = vld [vmem:[%s509] sm:$0xf]
    %v511 = vld [vmem:[%s509 + $0x4] sm:$0xf]
    %v512 = vld [vmem:[%s509 + $0x8] sm:$0xf]
    %v513 = vld [vmem:[%s509 + $0xc] sm:$0xf]
    %s514 = scalar_lea.vmem %s6, 48
    %v515 = vld [vmem:[%s514] sm:$0xf]
    %v516 = vld [vmem:[%s514 + $0x4] sm:$0xf]
    %v517 = vld [vmem:[%s514 + $0x8] sm:$0xf]
    %v518 = vld [vmem:[%s514 + $0xc] sm:$0xf]
    %v523 = vunpack.c.l.b16 %v515
    %v524 = vunpack.c.l.b16 %v516
    %v525 = vunpack.c.l.b16 %v517
    %v526 = vunpack.c.l.b16 %v518
    %v527 = vpack.c.b16 %v524, %v523
    %v528 = vpack.c.b16 %v526, %v525
    %531 = vmatprep.subr.bf16.mxu0 0
    %532 = vmatpush1.bf16.msra.mxu0 %v527
    %533 = vmatprep.subr.bf16.mxu0 0
    %534 = vmatpush1.bf16.msra.mxu0 %v528
    %535 = vmatprep.subr.bf16.mxu0 0
    %536 = vmatpush1.bf16.msra.mxu0 0
    %537 = vmatprep.subr.bf16.mxu0 0
    %538 = vmatpush1.bf16.msra.mxu0 0
    %539 = vmatprep.subr.bf16.mxu0 0
    %540 = vmatpush1.bf16.msra.mxu0 0
    %541 = vmatprep.subr.bf16.mxu0 0
    %542 = vmatpush1.bf16.msra.mxu0 0
    %543 = vmatprep.subr.bf16.mxu0 0
    %544 = vmatpush1.bf16.msra.mxu0 0
    %545 = vmatprep.subr.bf16.mxu0 0
    %546 = vmatpush1.bf16.msra.mxu0 0
    %547 = vmatprep.subr.bf16.mxu0 0
    %548 = vmatpush1.bf16.msra.mxu0 0
    %549 = vmatprep.subr.bf16.mxu0 0
    %550 = vmatpush1.bf16.msra.mxu0 0
    %551 = vmatprep.subr.bf16.mxu0 0
    %552 = vmatpush1.bf16.msra.mxu0 0
    %553 = vmatprep.subr.bf16.mxu0 0
    %554 = vmatpush1.bf16.msra.mxu0 0
    %555 = vmatprep.subr.bf16.mxu0 0
    %556 = vmatpush1.bf16.msra.mxu0 0
    %557 = vmatprep.subr.bf16.mxu0 0
    %558 = vmatpush1.bf16.msra.mxu0 0
    %559 = vmatprep.subr.bf16.mxu0 0
    %560 = vmatpush1.bf16.msra.mxu0 0
    %561 = vmatprep.subr.bf16.mxu0 0
    %562 = vmatpush1.bf16.msra.mxu0 0
    %563 = vmatprep.mubr.bf16.mxu0 0
    %564 = vmatmul.mubr.bf16.gmra.mrb[0].mxu0 %v383
    %v565 = vpop.f32.mrb[0].mxu0
    %v566 = vadd.f32 0.0, %v565
    %v567 = vpop.f32.mrb[0].mxu0
    %v568 = vpop.f32.mrb[0].mxu0
    %v569 = vpop.f32.mrb[0].mxu0
    %570 = vdwg.mxu0
    %572 = vrot.lane.b32.xlu0 %v508, 32
    %v573 = vpop.permute.xlu0 %572
    %v578 = vunpack.c.l.b16 %v510
    %v579 = vunpack.c.l.b16 %v511
    %v580 = vunpack.c.l.b16 %v512
    %v581 = vunpack.c.l.b16 %v513
    %v582 = vpack.c.b16 %v579, %v578
    %v583 = vpack.c.b16 %v581, %v580
    %v587 = vsel %vm381, %v573, 0
    %589 = vmatprep.subr.bf16.mxu0 0
    %590 = vmatpush1.bf16.msra.mxu0 %v582
    %591 = vmatprep.subr.bf16.mxu0 0
    %592 = vmatpush1.bf16.msra.mxu0 %v583
    %593 = vmatprep.subr.bf16.mxu0 0
    %594 = vmatpush1.bf16.msra.mxu0 0
    %595 = vmatprep.subr.bf16.mxu0 0
    %596 = vmatpush1.bf16.msra.mxu0 0
    %597 = vmatprep.subr.bf16.mxu0 0
    %598 = vmatpush1.bf16.msra.mxu0 0
    %599 = vmatprep.subr.bf16.mxu0 0
    %600 = vmatpush1.bf16.msra.mxu0 0
    %601 = vmatprep.subr.bf16.mxu0 0
    %602 = vmatpush1.bf16.msra.mxu0 0
    %603 = vmatprep.subr.bf16.mxu0 0
    %604 = vmatpush1.bf16.msra.mxu0 0
    %605 = vmatprep.subr.bf16.mxu0 0
    %606 = vmatpush1.bf16.msra.mxu0 0
    %607 = vmatprep.subr.bf16.mxu0 0
    %608 = vmatpush1.bf16.msra.mxu0 0
    %609 = vmatprep.subr.bf16.mxu0 0
    %610 = vmatpush1.bf16.msra.mxu0 0
    %611 = vmatprep.subr.bf16.mxu0 0
    %612 = vmatpush1.bf16.msra.mxu0 0
    %613 = vmatprep.subr.bf16.mxu0 0
    %614 = vmatpush1.bf16.msra.mxu0 0
    %615 = vmatprep.subr.bf16.mxu0 0
    %616 = vmatpush1.bf16.msra.mxu0 0
    %617 = vmatprep.subr.bf16.mxu0 0
    %618 = vmatpush1.bf16.msra.mxu0 0
    %619 = vmatprep.subr.bf16.mxu0 0
    %620 = vmatpush1.bf16.msra.mxu0 0
    %621 = vmatprep.mubr.bf16.mxu0 0
    %622 = vmatmul.mubr.bf16.gmra.mrb[0].mxu0 %v587
    %v623 = vpop.f32.mrb[0].mxu0
    %v624 = vadd.f32 %v566, %v623
    %v625 = vpop.f32.mrb[0].mxu0
    %v626 = vpop.f32.mrb[0].mxu0
    %v627 = vpop.f32.mrb[0].mxu0
    %628 = vdwg.mxu0
    %v629 = vld [vmem:[#allocation12] sm:$0xff]
    %v630 = vadd.f32 %v624, %v629
    %v631 = vxor.u32 %v630, 2147483648
    %v632 = vmul.f32 %v631, 1.442695
    %v633 = vpow.pop %v632
    %v634 = vadd.f32 %v633, 1.0
    %v635 = vrcp.pop %v634
    %v636 = vmul.f32 1.0, %v635
    %v637 = vtanh.pop %v630
    %v638 = vmul.f32 %v636, 0.0
    %640 = vrot.lane.b32.xlu0 %v637, 64
    %v641 = vpop.permute.xlu0 %640
    %v643 = vmul.f32 %v636, %v641
    %645 = vrot.lane.b32.xlu0 %v643, 32
    %v646 = vpop.permute.xlu0 %645
    %v648 = vadd.f32 %v638, %v646
    %v649 = vtanh.pop %v648
    %651 = vrot.lane.b32.xlu0 %v649, 64
    %v652 = vpop.permute.xlu0 %651
    %v654 = vmul.f32 %v636, %v652
    %656 = vrot.lane.b32.xlu0 %v654, 32
    %v657 = vpop.permute.xlu0 %656
    %659 = vst.msk [vmem:[#allocation4] sm:$0xff] %vm381, %v657
    %v660 = vld [vmem:[#allocation3] sm:$0xff]
    %v661 = vpack.c.bf16 %v654, %v654
    %s662 = scalar_lea.vmem %s6, 64
    %v663 = vld [vmem:[%s662] sm:$0xf]
    %v664 = vld [vmem:[%s662 + $0x4] sm:$0xf]
    %v665 = vld [vmem:[%s662 + $0x8] sm:$0xf]
    %v666 = vld [vmem:[%s662 + $0xc] sm:$0xf]
    %668 = vrot.lane.b32.xlu0 %v661, 32
    %v669 = vpop.permute.xlu0 %668
    %v674 = vunpack.c.l.b16 %v663
    %v675 = vunpack.c.l.b16 %v664
    %v676 = vunpack.c.l.b16 %v665
    %v677 = vunpack.c.l.b16 %v666
    %v678 = vpack.c.b16 %v675, %v674
    %v679 = vpack.c.b16 %v677, %v676
    %v683 = vsel %vm381, %v669, 0
    %685 = vmatprep.subr.bf16.mxu0 0
    %686 = vmatpush1.bf16.msra.mxu0 %v678
    %687 = vmatprep.subr.bf16.mxu0 0
    %688 = vmatpush1.bf16.msra.mxu0 %v679
    %689 = vmatprep.subr.bf16.mxu0 0
    %690 = vmatpush1.bf16.msra.mxu0 0
    %691 = vmatprep.subr.bf16.mxu0 0
    %692 = vmatpush1.bf16.msra.mxu0 0
    %693 = vmatprep.subr.bf16.mxu0 0
    %694 = vmatpush1.bf16.msra.mxu0 0
    %695 = vmatprep.subr.bf16.mxu0 0
    %696 = vmatpush1.bf16.msra.mxu0 0
    %697 = vmatprep.subr.bf16.mxu0 0
    %698 = vmatpush1.bf16.msra.mxu0 0
    %699 = vmatprep.subr.bf16.mxu0 0
    %700 = vmatpush1.bf16.msra.mxu0 0
    %701 = vmatprep.subr.bf16.mxu0 0
    %702 = vmatpush1.bf16.msra.mxu0 0
    %703 = vmatprep.subr.bf16.mxu0 0
    %704 = vmatpush1.bf16.msra.mxu0 0
    %705 = vmatprep.subr.bf16.mxu0 0
    %706 = vmatpush1.bf16.msra.mxu0 0
    %707 = vmatprep.subr.bf16.mxu0 0
    %708 = vmatpush1.bf16.msra.mxu0 0
    %709 = vmatprep.subr.bf16.mxu0 0
    %710 = vmatpush1.bf16.msra.mxu0 0
    %711 = vmatprep.subr.bf16.mxu0 0
    %712 = vmatpush1.bf16.msra.mxu0 0
    %713 = vmatprep.subr.bf16.mxu0 0
    %714 = vmatpush1.bf16.msra.mxu0 0
    %715 = vmatprep.subr.bf16.mxu0 0
    %716 = vmatpush1.bf16.msra.mxu0 0
    %717 = vmatprep.mubr.bf16.mxu0 0
    %718 = vmatmul.mubr.bf16.gmra.mrb[0].mxu0 %v683
    %v719 = vpop.f32.mrb[0].mxu0
    %v720 = vadd.f32 0.0, %v719
    %v721 = vpop.f32.mrb[0].mxu0
    %v722 = vpop.f32.mrb[0].mxu0
    %v723 = vpop.f32.mrb[0].mxu0
    %724 = vdwg.mxu0
    %v725 = vadd.f32 %v660, %v720
    %s726 = scalar_lea.vmem %s6, 80
    %v727 = vld [vmem:[%s726] sm:$0xf]
    %v728 = vld [vmem:[%s726 + $0x4] sm:$0xf]
    %v729 = vld [vmem:[%s726 + $0x8] sm:$0xf]
    %v730 = vld [vmem:[%s726 + $0xc] sm:$0xf]
    %v735 = vunpack.c.l.b16 %v727
    %v736 = vunpack.c.l.b16 %v728
    %v737 = vunpack.c.l.b16 %v729
    %v738 = vunpack.c.l.b16 %v730
    %v739 = vpack.c.b16 %v736, %v735
    %v740 = vpack.c.b16 %v738, %v737
    %743 = vmatprep.subr.bf16.mxu0 0
    %744 = vmatpush1.bf16.msra.mxu0 %v739
    %745 = vmatprep.subr.bf16.mxu0 0
    %746 = vmatpush1.bf16.msra.mxu0 %v740
    %747 = vmatprep.subr.bf16.mxu0 0
    %748 = vmatpush1.bf16.msra.mxu0 0
    %749 = vmatprep.subr.bf16.mxu0 0
    %750 = vmatpush1.bf16.msra.mxu0 0
    %751 = vmatprep.subr.bf16.mxu0 0
    %752 = vmatpush1.bf16.msra.mxu0 0
    %753 = vmatprep.subr.bf16.mxu0 0
    %754 = vmatpush1.bf16.msra.mxu0 0
    %755 = vmatprep.subr.bf16.mxu0 0
    %756 = vmatpush1.bf16.msra.mxu0 0
    %757 = vmatprep.subr.bf16.mxu0 0
    %758 = vmatpush1.bf16.msra.mxu0 0
    %759 = vmatprep.subr.bf16.mxu0 0
    %760 = vmatpush1.bf16.msra.mxu0 0
    %761 = vmatprep.subr.bf16.mxu0 0
    %762 = vmatpush1.bf16.msra.mxu0 0
    %763 = vmatprep.subr.bf16.mxu0 0
    %764 = vmatpush1.bf16.msra.mxu0 0
    %765 = vmatprep.subr.bf16.mxu0 0
    %766 = vmatpush1.bf16.msra.mxu0 0
    %767 = vmatprep.subr.bf16.mxu0 0
    %768 = vmatpush1.bf16.msra.mxu0 0
    %769 = vmatprep.subr.bf16.mxu0 0
    %770 = vmatpush1.bf16.msra.mxu0 0
    %771 = vmatprep.subr.bf16.mxu0 0
    %772 = vmatpush1.bf16.msra.mxu0 0
    %773 = vmatprep.subr.bf16.mxu0 0
    %774 = vmatpush1.bf16.msra.mxu0 0
    %775 = vmatprep.mubr.bf16.mxu0 0
    %776 = vmatmul.mubr.bf16.gmra.mrb[0].mxu0 %v383
    %v777 = vpop.f32.mrb[0].mxu0
    %v778 = vadd.f32 0.0, %v777
    %v779 = vpop.f32.mrb[0].mxu0
    %v780 = vpop.f32.mrb[0].mxu0
    %v781 = vpop.f32.mrb[0].mxu0
    %782 = vdwg.mxu0
    %v783 = vadd.f32 %v725, %v778
    %v784 = vxor.u32 %v783, 2147483648
    %v785 = vmul.f32 %v784, 1.442695
    %v786 = vpow.pop %v785
    %v787 = vadd.f32 %v786, 1.0
    %v788 = vrcp.pop %v787
    %v789 = vmul.f32 1.0, %v788
    %v790 = vtanh.pop %v783
    %v791 = vmul.f32 %v789, 0.0
    %793 = vrot.lane.b32.xlu0 %v790, 64
    %v794 = vpop.permute.xlu0 %793
    %v796 = vmul.f32 %v789, %v794
    %798 = vrot.lane.b32.xlu0 %v796, 32
    %v799 = vpop.permute.xlu0 %798
    %v801 = vadd.f32 %v791, %v799
    %v802 = vtanh.pop %v801
    %804 = vrot.lane.b32.xlu0 %v802, 64
    %v805 = vpop.permute.xlu0 %804
    %v807 = vmul.f32 %v789, %v805
    %v808 = vpack.c.bf16 %v807, %v807
    %s809 = scalar_lea.vmem %s6, 96
    %v810 = vld [vmem:[%s809] sm:$0xf]
    %v811 = vld [vmem:[%s809 + $0x4] sm:$0xf]
    %v812 = vld [vmem:[%s809 + $0x8] sm:$0xf]
    %v813 = vld [vmem:[%s809 + $0xc] sm:$0xf]
    %s814 = scalar_lea.vmem %s6, 112
    %v815 = vld [vmem:[%s814] sm:$0xf]
    %v816 = vld [vmem:[%s814 + $0x4] sm:$0xf]
    %v817 = vld [vmem:[%s814 + $0x8] sm:$0xf]
    %v818 = vld [vmem:[%s814 + $0xc] sm:$0xf]
    %v823 = vunpack.c.l.b16 %v815
    %v824 = vunpack.c.l.b16 %v816
    %v825 = vunpack.c.l.b16 %v817
    %v826 = vunpack.c.l.b16 %v818
    %v827 = vpack.c.b16 %v824, %v823
    %v828 = vpack.c.b16 %v826, %v825
    %831 = vmatprep.subr.bf16.mxu0 0
    %832 = vmatpush1.bf16.msra.mxu0 %v827
    %833 = vmatprep.subr.bf16.mxu0 0
    %834 = vmatpush1.bf16.msra.mxu0 %v828
    %835 = vmatprep.subr.bf16.mxu0 0
    %836 = vmatpush1.bf16.msra.mxu0 0
    %837 = vmatprep.subr.bf16.mxu0 0
    %838 = vmatpush1.bf16.msra.mxu0 0
    %839 = vmatprep.subr.bf16.mxu0 0
    %840 = vmatpush1.bf16.msra.mxu0 0
    %841 = vmatprep.subr.bf16.mxu0 0
    %842 = vmatpush1.bf16.msra.mxu0 0
    %843 = vmatprep.subr.bf16.mxu0 0
    %844 = vmatpush1.bf16.msra.mxu0 0
    %845 = vmatprep.subr.bf16.mxu0 0
    %846 = vmatpush1.bf16.msra.mxu0 0
    %847 = vmatprep.subr.bf16.mxu0 0
    %848 = vmatpush1.bf16.msra.mxu0 0
    %849 = vmatprep.subr.bf16.mxu0 0
    %850 = vmatpush1.bf16.msra.mxu0 0
    %851 = vmatprep.subr.bf16.mxu0 0
    %852 = vmatpush1.bf16.msra.mxu0 0
    %853 = vmatprep.subr.bf16.mxu0 0
    %854 = vmatpush1.bf16.msra.mxu0 0
    %855 = vmatprep.subr.bf16.mxu0 0
    %856 = vmatpush1.bf16.msra.mxu0 0
    %857 = vmatprep.subr.bf16.mxu0 0
    %858 = vmatpush1.bf16.msra.mxu0 0
    %859 = vmatprep.subr.bf16.mxu0 0
    %860 = vmatpush1.bf16.msra.mxu0 0
    %861 = vmatprep.subr.bf16.mxu0 0
    %862 = vmatpush1.bf16.msra.mxu0 0
    %863 = vmatprep.mubr.bf16.mxu0 0
    %864 = vmatmul.mubr.bf16.gmra.mrb[0].mxu0 %v383
    %v865 = vpop.f32.mrb[0].mxu0
    %v866 = vadd.f32 0.0, %v865
    %v867 = vpop.f32.mrb[0].mxu0
    %v868 = vpop.f32.mrb[0].mxu0
    %v869 = vpop.f32.mrb[0].mxu0
    %870 = vdwg.mxu0
    %872 = vrot.lane.b32.xlu0 %v808, 32
    %v873 = vpop.permute.xlu0 %872
    %v878 = vunpack.c.l.b16 %v810
    %v879 = vunpack.c.l.b16 %v811
    %v880 = vunpack.c.l.b16 %v812
    %v881 = vunpack.c.l.b16 %v813
    %v882 = vpack.c.b16 %v879, %v878
    %v883 = vpack.c.b16 %v881, %v880
    %v887 = vsel %vm381, %v873, 0
    %889 = vmatprep.subr.bf16.mxu0 0
    %890 = vmatpush1.bf16.msra.mxu0 %v882
    %891 = vmatprep.subr.bf16.mxu0 0
    %892 = vmatpush1.bf16.msra.mxu0 %v883
    %893 = vmatprep.subr.bf16.mxu0 0
    %894 = vmatpush1.bf16.msra.mxu0 0
    %895 = vmatprep.subr.bf16.mxu0 0
    %896 = vmatpush1.bf16.msra.mxu0 0
    %897 = vmatprep.subr.bf16.mxu0 0
    %898 = vmatpush1.bf16.msra.mxu0 0
    %899 = vmatprep.subr.bf16.mxu0 0
    %900 = vmatpush1.bf16.msra.mxu0 0
    %901 = vmatprep.subr.bf16.mxu0 0
    %902 = vmatpush1.bf16.msra.mxu0 0
    %903 = vmatprep.subr.bf16.mxu0 0
    %904 = vmatpush1.bf16.msra.mxu0 0
    %905 = vmatprep.subr.bf16.mxu0 0
    %906 = vmatpush1.bf16.msra.mxu0 0
    %907 = vmatprep.subr.bf16.mxu0 0
    %908 = vmatpush1.bf16.msra.mxu0 0
    %909 = vmatprep.subr.bf16.mxu0 0
    %910 = vmatpush1.bf16.msra.mxu0 0
    %911 = vmatprep.subr.bf16.mxu0 0
    %912 = vmatpush1.bf16.msra.mxu0 0
    %913 = vmatprep.subr.bf16.mxu0 0
    %914 = vmatpush1.bf16.msra.mxu0 0
    %915 = vmatprep.subr.bf16.mxu0 0
    %916 = vmatpush1.bf16.msra.mxu0 0
    %917 = vmatprep.subr.bf16.mxu0 0
    %918 = vmatpush1.bf16.msra.mxu0 0
    %919 = vmatprep.subr.bf16.mxu0 0
    %920 = vmatpush1.bf16.msra.mxu0 0
    %921 = vmatprep.mubr.bf16.mxu0 0
    %922 = vmatmul.mubr.bf16.gmra.mrb[0].mxu0 %v887
    %v923 = vpop.f32.mrb[0].mxu0
    %v924 = vadd.f32 %v866, %v923
    %v925 = vpop.f32.mrb[0].mxu0
    %v926 = vpop.f32.mrb[0].mxu0
    %v927 = vpop.f32.mrb[0].mxu0
    %928 = vdwg.mxu0
    %s929 = scalar_lea.vmem [#allocation12], 8
    %v930 = vld [vmem:[%s929] sm:$0xff]
    %v931 = vadd.f32 %v924, %v930
    %v932 = vxor.u32 %v931, 2147483648
    %v933 = vmul.f32 %v932, 1.442695
    %v934 = vpow.pop %v933
    %v935 = vadd.f32 %v934, 1.0
    %v936 = vrcp.pop %v935
    %v937 = vmul.f32 1.0, %v936
    %v938 = vtanh.pop %v931
    %v939 = vmul.f32 %v937, 0.0
    %941 = vrot.lane.b32.xlu0 %v938, 64
    %v942 = vpop.permute.xlu0 %941
    %v944 = vmul.f32 %v937, %v942
    %946 = vrot.lane.b32.xlu0 %v944, 32
    %v947 = vpop.permute.xlu0 %946
    %v949 = vadd.f32 %v939, %v947
    %v950 = vtanh.pop %v949
    %952 = vrot.lane.b32.xlu0 %v950, 64
    %v953 = vpop.permute.xlu0 %952
    %v955 = vmul.f32 %v937, %v953
    %957 = vrot.lane.b32.xlu0 %v955, 32
    %v958 = vpop.permute.xlu0 %957
    %960 = vst.msk [vmem:[#allocation5] sm:$0xff] %vm381, %v958
    %v961 = vld [vmem:[#allocation2 + $0x8] sm:$0xff]
    %v962 = vpack.c.bf16 %v955, %v955
    %v963 = vld [vmem:[%s6] sm:$0xf]
    %v964 = vld [vmem:[%s6 + $0x4] sm:$0xf]
    %v965 = vld [vmem:[%s6 + $0x8] sm:$0xf]
    %v966 = vld [vmem:[%s6 + $0xc] sm:$0xf]
    %968 = vrot.lane.b32.xlu0 %v962, 32
    %v969 = vpop.permute.xlu0 %968
    %v974 = vunpack.c.l.b16 %v963
    %v975 = vunpack.c.l.b16 %v964
    %v976 = vunpack.c.l.b16 %v965
    %v977 = vunpack.c.l.b16 %v966
    %v978 = vpack.c.b16 %v975, %v974
    %v979 = vpack.c.b16 %v977, %v976
    %v983 = vsel %vm381, %v969, 0
    %985 = vmatprep.subr.bf16.mxu0 0
    %986 = vmatpush1.bf16.msra.mxu0 %v978
    %987 = vmatprep.subr.bf16.mxu0 0
    %988 = vmatpush1.bf16.msra.mxu0 %v979
    %989 = vmatprep.subr.bf16.mxu0 0
    %990 = vmatpush1.bf16.msra.mxu0 0
    %991 = vmatprep.subr.bf16.mxu0 0
    %992 = vmatpush1.bf16.msra.mxu0 0
    %993 = vmatprep.subr.bf16.mxu0 0
    %994 = vmatpush1.bf16.msra.mxu0 0
    %995 = vmatprep.subr.bf16.mxu0 0
    %996 = vmatpush1.bf16.msra.mxu0 0
    %997 = vmatprep.subr.bf16.mxu0 0
    %998 = vmatpush1.bf16.msra.mxu0 0
    %999 = vmatprep.subr.bf16.mxu0 0
    %1000 = vmatpush1.bf16.msra.mxu0 0
    %1001 = vmatprep.subr.bf16.mxu0 0
    %1002 = vmatpush1.bf16.msra.mxu0 0
    %1003 = vmatprep.subr.bf16.mxu0 0
    %1004 = vmatpush1.bf16.msra.mxu0 0
    %1005 = vmatprep.subr.bf16.mxu0 0
    %1006 = vmatpush1.bf16.msra.mxu0 0
    %1007 = vmatprep.subr.bf16.mxu0 0
    %1008 = vmatpush1.bf16.msra.mxu0 0
    %1009 = vmatprep.subr.bf16.mxu0 0
    %1010 = vmatpush1.bf16.msra.mxu0 0
    %1011 = vmatprep.subr.bf16.mxu0 0
    %1012 = vmatpush1.bf16.msra.mxu0 0
    %1013 = vmatprep.subr.bf16.mxu0 0
    %1014 = vmatpush1.bf16.msra.mxu0 0
    %1015 = vmatprep.subr.bf16.mxu0 0
    %1016 = vmatpush1.bf16.msra.mxu0 0
    %1017 = vmatprep.mubr.bf16.mxu0 0
    %1018 = vmatmul.mubr.bf16.gmra.mrb[0].mxu0 %v983
    %v1019 = vpop.f32.mrb[0].mxu0
    %v1020 = vadd.f32 0.0, %v1019
    %v1021 = vpop.f32.mrb[0].mxu0
    %v1022 = vpop.f32.mrb[0].mxu0
    %v1023 = vpop.f32.mrb[0].mxu0
    %1024 = vdwg.mxu0
    %v1025 = vadd.f32 %v961, %v1020
    %v1026 = vld [vmem:[%s426] sm:$0xf]
    %v1027 = vld [vmem:[%s426 + $0x4] sm:$0xf]
    %v1028 = vld [vmem:[%s426 + $0x8] sm:$0xf]
    %v1029 = vld [vmem:[%s426 + $0xc] sm:$0xf]
    %v1034 = vunpack.c.l.b16 %v1026
    %v1035 = vunpack.c.l.b16 %v1027
    %v1036 = vunpack.c.l.b16 %v1028
    %v1037 = vunpack.c.l.b16 %v1029
    %v1038 = vpack.c.b16 %v1035, %v1034
    %v1039 = vpack.c.b16 %v1037, %v1036
    %1042 = vmatprep.subr.bf16.mxu0 0
    %1043 = vmatpush1.bf16.msra.mxu0 %v1038
    %1044 = vmatprep.subr.bf16.mxu0 0
    %1045 = vmatpush1.bf16.msra.mxu0 %v1039
    %1046 = vmatprep.subr.bf16.mxu0 0
    %1047 = vmatpush1.bf16.msra.mxu0 0
    %1048 = vmatprep.subr.bf16.mxu0 0
    %1049 = vmatpush1.bf16.msra.mxu0 0
    %1050 = vmatprep.subr.bf16.mxu0 0
    %1051 = vmatpush1.bf16.msra.mxu0 0
    %1052 = vmatprep.subr.bf16.mxu0 0
    %1053 = vmatpush1.bf16.msra.mxu0 0
    %1054 = vmatprep.subr.bf16.mxu0 0
    %1055 = vmatpush1.bf16.msra.mxu0 0
    %1056 = vmatprep.subr.bf16.mxu0 0
    %1057 = vmatpush1.bf16.msra.mxu0 0
    %1058 = vmatprep.subr.bf16.mxu0 0
    %1059 = vmatpush1.bf16.msra.mxu0 0
    %1060 = vmatprep.subr.bf16.mxu0 0
    %1061 = vmatpush1.bf16.msra.mxu0 0
    %1062 = vmatprep.subr.bf16.mxu0 0
    %1063 = vmatpush1.bf16.msra.mxu0 0
    %1064 = vmatprep.subr.bf16.mxu0 0
    %1065 = vmatpush1.bf16.msra.mxu0 0
    %1066 = vmatprep.subr.bf16.mxu0 0
    %1067 = vmatpush1.bf16.msra.mxu0 0
    %1068 = vmatprep.subr.bf16.mxu0 0
    %1069 = vmatpush1.bf16.msra.mxu0 0
    %1070 = vmatprep.subr.bf16.mxu0 0
    %1071 = vmatpush1.bf16.msra.mxu0 0
    %1072 = vmatprep.subr.bf16.mxu0 0
    %1073 = vmatpush1.bf16.msra.mxu0 0
    %1074 = vmatprep.mubr.bf16.mxu0 0
    %1075 = vmatmul.mubr.bf16.gmra.mrb[0].mxu0 %v587
    %v1076 = vpop.f32.mrb[0].mxu0
    %v1077 = vadd.f32 0.0, %v1076
    %v1078 = vpop.f32.mrb[0].mxu0
    %v1079 = vpop.f32.mrb[0].mxu0
    %v1080 = vpop.f32.mrb[0].mxu0
    %1081 = vdwg.mxu0
    %v1082 = vadd.f32 %v1025, %v1077
    %v1083 = vxor.u32 %v1082, 2147483648
    %v1084 = vmul.f32 %v1083, 1.442695
    %v1085 = vpow.pop %v1084
    %v1086 = vadd.f32 %v1085, 1.0
    %v1087 = vrcp.pop %v1086
    %v1088 = vmul.f32 1.0, %v1087
    %v1089 = vtanh.pop %v1082
    %v1090 = vmul.f32 %v1088, %v501
    %1092 = vrot.lane.b32.xlu0 %v1089, 64
    %v1093 = vpop.permute.xlu0 %1092
    %v1095 = vmul.f32 %v1088, %v1093
    %1097 = vrot.lane.b32.xlu0 %v1095, 32
    %v1098 = vpop.permute.xlu0 %1097
    %v1100 = vadd.f32 %v1090, %v1098
    %v1101 = vtanh.pop %v1100
    %1103 = vrot.lane.b32.xlu0 %v1101, 64
    %v1104 = vpop.permute.xlu0 %1103
    %v1106 = vmul.f32 %v1088, %v1104
    %v1107 = vpack.c.bf16 %v1106, %v1106
    %v1108 = vld [vmem:[%s509] sm:$0xf]
    %v1109 = vld [vmem:[%s509 + $0x4] sm:$0xf]
    %v1110 = vld [vmem:[%s509 + $0x8] sm:$0xf]
    %v1111 = vld [vmem:[%s509 + $0xc] sm:$0xf]
    %v1112 = vld [vmem:[%s514] sm:$0xf]
    %v1113 = vld [vmem:[%s514 + $0x4] sm:$0xf]
    %v1114 = vld [vmem:[%s514 + $0x8] sm:$0xf]
    %v1115 = vld [vmem:[%s514 + $0xc] sm:$0xf]
    %v1120 = vunpack.c.l.b16 %v1112
    %v1121 = vunpack.c.l.b16 %v1113
    %v1122 = vunpack.c.l.b16 %v1114
    %v1123 = vunpack.c.l.b16 %v1115
    %v1124 = vpack.c.b16 %v1121, %v1120
    %v1125 = vpack.c.b16 %v1123, %v1122
    %1128 = vmatprep.subr.bf16.mxu0 0
    %1129 = vmatpush1.bf16.msra.mxu0 %v1124
    %1130 = vmatprep.subr.bf16.mxu0 0
    %1131 = vmatpush1.bf16.msra.mxu0 %v1125
    %1132 = vmatprep.subr.bf16.mxu0 0
    %1133 = vmatpush1.bf16.msra.mxu0 0
    %1134 = vmatprep.subr.bf16.mxu0 0
    %1135 = vmatpush1.bf16.msra.mxu0 0
    %1136 = vmatprep.subr.bf16.mxu0 0
    %1137 = vmatpush1.bf16.msra.mxu0 0
    %1138 = vmatprep.subr.bf16.mxu0 0
    %1139 = vmatpush1.bf16.msra.mxu0 0
    %1140 = vmatprep.subr.bf16.mxu0 0
    %1141 = vmatpush1.bf16.msra.mxu0 0
    %1142 = vmatprep.subr.bf16.mxu0 0
    %1143 = vmatpush1.bf16.msra.mxu0 0
    %1144 = vmatprep.subr.bf16.mxu0 0
    %1145 = vmatpush1.bf16.msra.mxu0 0
    %1146 = vmatprep.subr.bf16.mxu0 0
    %1147 = vmatpush1.bf16.msra.mxu0 0
    %1148 = vmatprep.subr.bf16.mxu0 0
    %1149 = vmatpush1.bf16.msra.mxu0 0
    %1150 = vmatprep.subr.bf16.mxu0 0
    %1151 = vmatpush1.bf16.msra.mxu0 0
    %1152 = vmatprep.subr.bf16.mxu0 0
    %1153 = vmatpush1.bf16.msra.mxu0 0
    %1154 = vmatprep.subr.bf16.mxu0 0
    %1155 = vmatpush1.bf16.msra.mxu0 0
    %1156 = vmatprep.subr.bf16.mxu0 0
    %1157 = vmatpush1.bf16.msra.mxu0 0
    %1158 = vmatprep.subr.bf16.mxu0 0
    %1159 = vmatpush1.bf16.msra.mxu0 0
    %1160 = vmatprep.mubr.bf16.mxu0 0
    %1161 = vmatmul.mubr.bf16.gmra.mrb[0].mxu0 %v683
    %v1162 = vpop.f32.mrb[0].mxu0
    %v1163 = vadd.f32 0.0, %v1162
    %v1164 = vpop.f32.mrb[0].mxu0
    %v1165 = vpop.f32.mrb[0].mxu0
    %v1166 = vpop.f32.mrb[0].mxu0
    %1167 = vdwg.mxu0
    %1169 = vrot.lane.b32.xlu0 %v1107, 32
    %v1170 = vpop.permute.xlu0 %1169
    %v1175 = vunpack.c.l.b16 %v1108
    %v1176 = vunpack.c.l.b16 %v1109
    %v1177 = vunpack.c.l.b16 %v1110
    %v1178 = vunpack.c.l.b16 %v1111
    %v1179 = vpack.c.b16 %v1176, %v1175
    %v1180 = vpack.c.b16 %v1178, %v1177
    %v1184 = vsel %vm381, %v1170, 0
    %1186 = vmatprep.subr.bf16.mxu0 0
    %1187 = vmatpush1.bf16.msra.mxu0 %v1179
    %1188 = vmatprep.subr.bf16.mxu0 0
    %1189 = vmatpush1.bf16.msra.mxu0 %v1180
    %1190 = vmatprep.subr.bf16.mxu0 0
    %1191 = vmatpush1.bf16.msra.mxu0 0
    %1192 = vmatprep.subr.bf16.mxu0 0
    %1193 = vmatpush1.bf16.msra.mxu0 0
    %1194 = vmatprep.subr.bf16.mxu0 0
    %1195 = vmatpush1.bf16.msra.mxu0 0
    %1196 = vmatprep.subr.bf16.mxu0 0
    %1197 = vmatpush1.bf16.msra.mxu0 0
    %1198 = vmatprep.subr.bf16.mxu0 0
    %1199 = vmatpush1.bf16.msra.mxu0 0
    %1200 = vmatprep.subr.bf16.mxu0 0
    %1201 = vmatpush1.bf16.msra.mxu0 0
    %1202 = vmatprep.subr.bf16.mxu0 0
    %1203 = vmatpush1.bf16.msra.mxu0 0
    %1204 = vmatprep.subr.bf16.mxu0 0
    %1205 = vmatpush1.bf16.msra.mxu0 0
    %1206 = vmatprep.subr.bf16.mxu0 0
    %1207 = vmatpush1.bf16.msra.mxu0 0
    %1208 = vmatprep.subr.bf16.mxu0 0
    %1209 = vmatpush1.bf16.msra.mxu0 0
    %1210 = vmatprep.subr.bf16.mxu0 0
    %1211 = vmatpush1.bf16.msra.mxu0 0
    %1212 = vmatprep.subr.bf16.mxu0 0
    %1213 = vmatpush1.bf16.msra.mxu0 0
    %1214 = vmatprep.subr.bf16.mxu0 0
    %1215 = vmatpush1.bf16.msra.mxu0 0
    %1216 = vmatprep.subr.bf16.mxu0 0
    %1217 = vmatpush1.bf16.msra.mxu0 0
    %1218 = vmatprep.mubr.bf16.mxu0 0
    %1219 = vmatmul.mubr.bf16.gmra.mrb[0].mxu0 %v1184
    %v1220 = vpop.f32.mrb[0].mxu0
    %v1221 = vadd.f32 %v1163, %v1220
    %v1222 = vpop.f32.mrb[0].mxu0
    %v1223 = vpop.f32.mrb[0].mxu0
    %v1224 = vpop.f32.mrb[0].mxu0
    %1225 = vdwg.mxu0
    %v1226 = vld [vmem:[#allocation12] sm:$0xff]
    %v1227 = vadd.f32 %v1221, %v1226
    %v1228 = vxor.u32 %v1227, 2147483648
    %v1229 = vmul.f32 %v1228, 1.442695
    %v1230 = vpow.pop %v1229
    %v1231 = vadd.f32 %v1230, 1.0
    %v1232 = vrcp.pop %v1231
    %v1233 = vmul.f32 1.0, %v1232
    %v1234 = vtanh.pop %v1227
    %v1235 = vmul.f32 %v1233, %v648
    %1237 = vrot.lane.b32.xlu0 %v1234, 64
    %v1238 = vpop.permute.xlu0 %1237
    %v1240 = vmul.f32 %v1233, %v1238
    %1242 = vrot.lane.b32.xlu0 %v1240, 32
    %v1243 = vpop.permute.xlu0 %1242
    %v1245 = vadd.f32 %v1235, %v1243
    %v1246 = vtanh.pop %v1245
    %1248 = vrot.lane.b32.xlu0 %v1246, 64
    %v1249 = vpop.permute.xlu0 %1248
    %v1251 = vmul.f32 %v1233, %v1249
    %1253 = vrot.lane.b32.xlu0 %v1251, 32
    %v1254 = vpop.permute.xlu0 %1253
    %1256 = vst.msk [vmem:[#allocation4 + $0x8] sm:$0xff] %vm381, %v1254
    %v1257 = vld [vmem:[#allocation3 + $0x8] sm:$0xff]
    %v1258 = vpack.c.bf16 %v1251, %v1251
    %v1259 = vld [vmem:[%s662] sm:$0xf]
    %v1260 = vld [vmem:[%s662 + $0x4] sm:$0xf]
    %v1261 = vld [vmem:[%s662 + $0x8] sm:$0xf]
    %v1262 = vld [vmem:[%s662 + $0xc] sm:$0xf]
    %1264 = vrot.lane.b32.xlu0 %v1258, 32
    %v1265 = vpop.permute.xlu0 %1264
    %v1270 = vunpack.c.l.b16 %v1259
    %v1271 = vunpack.c.l.b16 %v1260
    %v1272 = vunpack.c.l.b16 %v1261
    %v1273 = vunpack.c.l.b16 %v1262
    %v1274 = vpack.c.b16 %v1271, %v1270
    %v1275 = vpack.c.b16 %v1273, %v1272
    %v1279 = vsel %vm381, %v1265, 0
    %1281 = vmatprep.subr.bf16.mxu0 0
    %1282 = vmatpush1.bf16.msra.mxu0 %v1274
    %1283 = vmatprep.subr.bf16.mxu0 0
    %1284 = vmatpush1.bf16.msra.mxu0 %v1275
    %1285 = vmatprep.subr.bf16.mxu0 0
    %1286 = vmatpush1.bf16.msra.mxu0 0
    %1287 = vmatprep.subr.bf16.mxu0 0
    %1288 = vmatpush1.bf16.msra.mxu0 0
    %1289 = vmatprep.subr.bf16.mxu0 0
    %1290 = vmatpush1.bf16.msra.mxu0 0
    %1291 = vmatprep.subr.bf16.mxu0 0
    %1292 = vmatpush1.bf16.msra.mxu0 0
    %1293 = vmatprep.subr.bf16.mxu0 0
    %1294 = vmatpush1.bf16.msra.mxu0 0
    %1295 = vmatprep.subr.bf16.mxu0 0
    %1296 = vmatpush1.bf16.msra.mxu0 0
    %1297 = vmatprep.subr.bf16.mxu0 0
    %1298 = vmatpush1.bf16.msra.mxu0 0
    %1299 = vmatprep.subr.bf16.mxu0 0
    %1300 = vmatpush1.bf16.msra.mxu0 0
    %1301 = vmatprep.subr.bf16.mxu0 0
    %1302 = vmatpush1.bf16.msra.mxu0 0
    %1303 = vmatprep.subr.bf16.mxu0 0
    %1304 = vmatpush1.bf16.msra.mxu0 0
    %1305 = vmatprep.subr.bf16.mxu0 0
    %1306 = vmatpush1.bf16.msra.mxu0 0
    %1307 = vmatprep.subr.bf16.mxu0 0
    %1308 = vmatpush1.bf16.msra.mxu0 0
    %1309 = vmatprep.subr.bf16.mxu0 0
    %1310 = vmatpush1.bf16.msra.mxu0 0
    %1311 = vmatprep.subr.bf16.mxu0 0
    %1312 = vmatpush1.bf16.msra.mxu0 0
    %1313 = vmatprep.mubr.bf16.mxu0 0
    %1314 = vmatmul.mubr.bf16.gmra.mrb[0].mxu0 %v1279
    %v1315 = vpop.f32.mrb[0].mxu0
    %v1316 = vadd.f32 0.0, %v1315
    %v1317 = vpop.f32.mrb[0].mxu0
    %v1318 = vpop.f32.mrb[0].mxu0
    %v1319 = vpop.f32.mrb[0].mxu0
    %1320 = vdwg.mxu0
    %v1321 = vadd.f32 %v1257, %v1316
    %v1322 = vld [vmem:[%s726] sm:$0xf]
    %v1323 = vld [vmem:[%s726 + $0x4] sm:$0xf]
    %v1324 = vld [vmem:[%s726 + $0x8] sm:$0xf]
    %v1325 = vld [vmem:[%s726 + $0xc] sm:$0xf]
    %v1330 = vunpack.c.l.b16 %v1322
    %v1331 = vunpack.c.l.b16 %v1323
    %v1332 = vunpack.c.l.b16 %v1324
    %v1333 = vunpack.c.l.b16 %v1325
    %v1334 = vpack.c.b16 %v1331, %v1330
    %v1335 = vpack.c.b16 %v1333, %v1332
    %1338 = vmatprep.subr.bf16.mxu0 0
    %1339 = vmatpush1.bf16.msra.mxu0 %v1334
    %1340 = vmatprep.subr.bf16.mxu0 0
    %1341 = vmatpush1.bf16.msra.mxu0 %v1335
    %1342 = vmatprep.subr.bf16.mxu0 0
    %1343 = vmatpush1.bf16.msra.mxu0 0
    %1344 = vmatprep.subr.bf16.mxu0 0
    %1345 = vmatpush1.bf16.msra.mxu0 0
    %1346 = vmatprep.subr.bf16.mxu0 0
    %1347 = vmatpush1.bf16.msra.mxu0 0
    %1348 = vmatprep.subr.bf16.mxu0 0
    %1349 = vmatpush1.bf16.msra.mxu0 0
    %1350 = vmatprep.subr.bf16.mxu0 0
    %1351 = vmatpush1.bf16.msra.mxu0 0
    %1352 = vmatprep.subr.bf16.mxu0 0
    %1353 = vmatpush1.bf16.msra.mxu0 0
    %1354 = vmatprep.subr.bf16.mxu0 0
    %1355 = vmatpush1.bf16.msra.mxu0 0
    %1356 = vmatprep.subr.bf16.mxu0 0
    %1357 = vmatpush1.bf16.msra.mxu0 0
    %1358 = vmatprep.subr.bf16.mxu0 0
    %1359 = vmatpush1.bf16.msra.mxu0 0
    %1360 = vmatprep.subr.bf16.mxu0 0
    %1361 = vmatpush1.bf16.msra.mxu0 0
    %1362 = vmatprep.subr.bf16.mxu0 0
    %1363 = vmatpush1.bf16.msra.mxu0 0
    %1364 = vmatprep.subr.bf16.mxu0 0
    %1365 = vmatpush1.bf16.msra.mxu0 0
    %1366 = vmatprep.subr.bf16.mxu0 0
    %1367 = vmatpush1.bf16.msra.mxu0 0
    %1368 = vmatprep.subr.bf16.mxu0 0
    %1369 = vmatpush1.bf16.msra.mxu0 0
    %1370 = vmatprep.mubr.bf16.mxu0 0
    %1371 = vmatmul.mubr.bf16.gmra.mrb[0].mxu0 %v887
    %v1372 = vpop.f32.mrb[0].mxu0
    %v1373 = vadd.f32 0.0, %v1372
    %v1374 = vpop.f32.mrb[0].mxu0
    %v1375 = vpop.f32.mrb[0].mxu0
    %v1376 = vpop.f32.mrb[0].mxu0
    %1377 = vdwg.mxu0
    %v1378 = vadd.f32 %v1321, %v1373
    %v1379 = vxor.u32 %v1378, 2147483648
    %v1380 = vmul.f32 %v1379, 1.442695
    %v1381 = vpow.pop %v1380
    %v1382 = vadd.f32 %v1381, 1.0
    %v1383 = vrcp.pop %v1382
    %v1384 = vmul.f32 1.0, %v1383
    %v1385 = vtanh.pop %v1378
    %v1386 = vmul.f32 %v1384, %v801
    %1388 = vrot.lane.b32.xlu0 %v1385, 64
    %v1389 = vpop.permute.xlu0 %1388
    %v1391 = vmul.f32 %v1384, %v1389
    %1393 = vrot.lane.b32.xlu0 %v1391, 32
    %v1394 = vpop.permute.xlu0 %1393
    %v1396 = vadd.f32 %v1386, %v1394
    %v1397 = vtanh.pop %v1396
    %1399 = vrot.lane.b32.xlu0 %v1397, 64
    %v1400 = vpop.permute.xlu0 %1399
    %v1402 = vmul.f32 %v1384, %v1400
    %v1403 = vpack.c.bf16 %v1402, %v1402
    %v1404 = vld [vmem:[%s809] sm:$0xf]
    %v1405 = vld [vmem:[%s809 + $0x4] sm:$0xf]
    %v1406 = vld [vmem:[%s809 + $0x8] sm:$0xf]
    %v1407 = vld [vmem:[%s809 + $0xc] sm:$0xf]
    %v1408 = vld [vmem:[%s814] sm:$0xf]
    %v1409 = vld [vmem:[%s814 + $0x4] sm:$0xf]
    %v1410 = vld [vmem:[%s814 + $0x8] sm:$0xf]
    %v1411 = vld [vmem:[%s814 + $0xc] sm:$0xf]
    %v1416 = vunpack.c.l.b16 %v1408
    %v1417 = vunpack.c.l.b16 %v1409
    %v1418 = vunpack.c.l.b16 %v1410
    %v1419 = vunpack.c.l.b16 %v1411
    %v1420 = vpack.c.b16 %v1417, %v1416
    %v1421 = vpack.c.b16 %v1419, %v1418
    %1424 = vmatprep.subr.bf16.mxu0 0
    %1425 = vmatpush1.bf16.msra.mxu0 %v1420
    %1426 = vmatprep.subr.bf16.mxu0 0
    %1427 = vmatpush1.bf16.msra.mxu0 %v1421
    %1428 = vmatprep.subr.bf16.mxu0 0
    %1429 = vmatpush1.bf16.msra.mxu0 0
    %1430 = vmatprep.subr.bf16.mxu0 0
    %1431 = vmatpush1.bf16.msra.mxu0 0
    %1432 = vmatprep.subr.bf16.mxu0 0
    %1433 = vmatpush1.bf16.msra.mxu0 0
    %1434 = vmatprep.subr.bf16.mxu0 0
    %1435 = vmatpush1.bf16.msra.mxu0 0
    %1436 = vmatprep.subr.bf16.mxu0 0
    %1437 = vmatpush1.bf16.msra.mxu0 0
    %1438 = vmatprep.subr.bf16.mxu0 0
    %1439 = vmatpush1.bf16.msra.mxu0 0
    %1440 = vmatprep.subr.bf16.mxu0 0
    %1441 = vmatpush1.bf16.msra.mxu0 0
    %1442 = vmatprep.subr.bf16.mxu0 0
    %1443 = vmatpush1.bf16.msra.mxu0 0
    %1444 = vmatprep.subr.bf16.mxu0 0
    %1445 = vmatpush1.bf16.msra.mxu0 0
    %1446 = vmatprep.subr.bf16.mxu0 0
    %1447 = vmatpush1.bf16.msra.mxu0 0
    %1448 = vmatprep.subr.bf16.mxu0 0
    %1449 = vmatpush1.bf16.msra.mxu0 0
    %1450 = vmatprep.subr.bf16.mxu0 0
    %1451 = vmatpush1.bf16.msra.mxu0 0
    %1452 = vmatprep.subr.bf16.mxu0 0
    %1453 = vmatpush1.bf16.msra.mxu0 0
    %1454 = vmatprep.subr.bf16.mxu0 0
    %1455 = vmatpush1.bf16.msra.mxu0 0
    %1456 = vmatprep.mubr.bf16.mxu0 0
    %1457 = vmatmul.mubr.bf16.gmra.mrb[0].mxu0 %v983
    %v1458 = vpop.f32.mrb[0].mxu0
    %v1459 = vadd.f32 0.0, %v1458
    %v1460 = vpop.f32.mrb[0].mxu0
    %v1461 = vpop.f32.mrb[0].mxu0
    %v1462 = vpop.f32.mrb[0].mxu0
    %1463 = vdwg.mxu0
    %1465 = vrot.lane.b32.xlu0 %v1403, 32
    %v1466 = vpop.permute.xlu0 %1465
    %v1471 = vunpack.c.l.b16 %v1404
    %v1472 = vunpack.c.l.b16 %v1405
    %v1473 = vunpack.c.l.b16 %v1406
    %v1474 = vunpack.c.l.b16 %v1407
    %v1475 = vpack.c.b16 %v1472, %v1471
    %v1476 = vpack.c.b16 %v1474, %v1473
    %v1480 = vsel %vm381, %v1466, 0
    %1482 = vmatprep.subr.bf16.mxu0 0
    %1483 = vmatpush1.bf16.msra.mxu0 %v1475
    %1484 = vmatprep.subr.bf16.mxu0 0
    %1485 = vmatpush1.bf16.msra.mxu0 %v1476
    %1486 = vmatprep.subr.bf16.mxu0 0
    %1487 = vmatpush1.bf16.msra.mxu0 0
    %1488 = vmatprep.subr.bf16.mxu0 0
    %1489 = vmatpush1.bf16.msra.mxu0 0
    %1490 = vmatprep.subr.bf16.mxu0 0
    %1491 = vmatpush1.bf16.msra.mxu0 0
    %1492 = vmatprep.subr.bf16.mxu0 0
    %1493 = vmatpush1.bf16.msra.mxu0 0
    %1494 = vmatprep.subr.bf16.mxu0 0
    %1495 = vmatpush1.bf16.msra.mxu0 0
    %1496 = vmatprep.subr.bf16.mxu0 0
    %1497 = vmatpush1.bf16.msra.mxu0 0
    %1498 = vmatprep.subr.bf16.mxu0 0
    %1499 = vmatpush1.bf16.msra.mxu0 0
    %1500 = vmatprep.subr.bf16.mxu0 0
    %1501 = vmatpush1.bf16.msra.mxu0 0
    %1502 = vmatprep.subr.bf16.mxu0 0
    %1503 = vmatpush1.bf16.msra.mxu0 0
    %1504 = vmatprep.subr.bf16.mxu0 0
    %1505 = vmatpush1.bf16.msra.mxu0 0
    %1506 = vmatprep.subr.bf16.mxu0 0
    %1507 = vmatpush1.bf16.msra.mxu0 0
    %1508 = vmatprep.subr.bf16.mxu0 0
    %1509 = vmatpush1.bf16.msra.mxu0 0
    %1510 = vmatprep.subr.bf16.mxu0 0
    %1511 = vmatpush1.bf16.msra.mxu0 0
    %1512 = vmatprep.subr.bf16.mxu0 0
    %1513 = vmatpush1.bf16.msra.mxu0 0
    %1514 = vmatprep.mubr.bf16.mxu0 0
    %1515 = vmatmul.mubr.bf16.gmra.mrb[0].mxu0 %v1480
    %v1516 = vpop.f32.mrb[0].mxu0
    %v1517 = vadd.f32 %v1459, %v1516
    %v1518 = vpop.f32.mrb[0].mxu0
    %v1519 = vpop.f32.mrb[0].mxu0
    %v1520 = vpop.f32.mrb[0].mxu0
    %1521 = vdwg.mxu0
    %v1522 = vld [vmem:[%s929] sm:$0xff]
    %v1523 = vadd.f32 %v1517, %v1522
    %v1524 = vxor.u32 %v1523, 2147483648
    %v1525 = vmul.f32 %v1524, 1.442695
    %v1526 = vpow.pop %v1525
    %v1527 = vadd.f32 %v1526, 1.0
    %v1528 = vrcp.pop %v1527
    %v1529 = vmul.f32 1.0, %v1528
    %v1530 = vtanh.pop %v1523
    %v1531 = vmul.f32 %v1529, %v949
    %1533 = vrot.lane.b32.xlu0 %v1530, 64
    %v1534 = vpop.permute.xlu0 %1533
    %v1536 = vmul.f32 %v1529, %v1534
    %1538 = vrot.lane.b32.xlu0 %v1536, 32
    %v1539 = vpop.permute.xlu0 %1538
    %v1541 = vadd.f32 %v1531, %v1539
    %v1542 = vtanh.pop %v1541
    %1544 = vrot.lane.b32.xlu0 %v1542, 64
    %v1545 = vpop.permute.xlu0 %1544
    %v1547 = vmul.f32 %v1529, %v1545
    %1549 = vrot.lane.b32.xlu0 %v1547, 32
    %v1550 = vpop.permute.xlu0 %1549
    %1552 = vst.msk [vmem:[#allocation5 + $0x8] sm:$0xff] %vm381, %v1550
    %v1553 = vld [vmem:[#allocation2 + $0x10] sm:$0xff]
    %v1554 = vpack.c.bf16 %v1547, %v1547
    %v1555 = vld [vmem:[%s6] sm:$0xf]
    %v1556 = vld [vmem:[%s6 + $0x4] sm:$0xf]
    %v1557 = vld [vmem:[%s6 + $0x8] sm:$0xf]
    %v1558 = vld [vmem:[%s6 + $0xc] sm:$0xf]
    %1560 = vrot.lane.b32.xlu0 %v1554, 32
    %v1561 = vpop.permute.xlu0 %1560
    %v1566 = vunpack.c.l.b16 %v1555
    %v1567 = vunpack.c.l.b16 %v1556
    %v1568 = vunpack.c.l.b16 %v1557
    %v1569 = vunpack.c.l.b16 %v1558
    %v1570 = vpack.c.b16 %v1567, %v1566
    %v1571 = vpack.c.b16 %v1569, %v1568
    %v1575 = vsel %vm381, %v1561, 0
    %1577 = vmatprep.subr.bf16.mxu0 0
    %1578 = vmatpush1.bf16.msra.mxu0 %v1570
    %1579 = vmatprep.subr.bf16.mxu0 0
    %1580 = vmatpush1.bf16.msra.mxu0 %v1571
    %1581 = vmatprep.subr.bf16.mxu0 0
    %1582 = vmatpush1.bf16.msra.mxu0 0
    %1583 = vmatprep.subr.bf16.mxu0 0
    %1584 = vmatpush1.bf16.msra.mxu0 0
    %1585 = vmatprep.subr.bf16.mxu0 0
    %1586 = vmatpush1.bf16.msra.mxu0 0
    %1587 = vmatprep.subr.bf16.mxu0 0
    %1588 = vmatpush1.bf16.msra.mxu0 0
    %1589 = vmatprep.subr.bf16.mxu0 0
    %1590 = vmatpush1.bf16.msra.mxu0 0
    %1591 = vmatprep.subr.bf16.mxu0 0
    %1592 = vmatpush1.bf16.msra.mxu0 0
    %1593 = vmatprep.subr.bf16.mxu0 0
    %1594 = vmatpush1.bf16.msra.mxu0 0
    %1595 = vmatprep.subr.bf16.mxu0 0
    %1596 = vmatpush1.bf16.msra.mxu0 0
    %1597 = vmatprep.subr.bf16.mxu0 0
    %1598 = vmatpush1.bf16.msra.mxu0 0
    %1599 = vmatprep.subr.bf16.mxu0 0
    %1600 = vmatpush1.bf16.msra.mxu0 0
    %1601 = vmatprep.subr.bf16.mxu0 0
    %1602 = vmatpush1.bf16.msra.mxu0 0
    %1603 = vmatprep.subr.bf16.mxu0 0
    %1604 = vmatpush1.bf16.msra.mxu0 0
    %1605 = vmatprep.subr.bf16.mxu0 0
    %1606 = vmatpush1.bf16.msra.mxu0 0
    %1607 = vmatprep.subr.bf16.mxu0 0
    %1608 = vmatpush1.bf16.msra.mxu0 0
    %1609 = vmatprep.mubr.bf16.mxu0 0
    %1610 = vmatmul.mubr.bf16.gmra.mrb[0].mxu0 %v1575
    %v1611 = vpop.f32.mrb[0].mxu0
    %v1612 = vadd.f32 0.0, %v1611
    %v1613 = vpop.f32.mrb[0].mxu0
    %v1614 = vpop.f32.mrb[0].mxu0
    %v1615 = vpop.f32.mrb[0].mxu0
    %1616 = vdwg.mxu0
    %v1617 = vadd.f32 %v1553, %v1612
    %v1618 = vld [vmem:[%s426] sm:$0xf]
    %v1619 = vld [vmem:[%s426 + $0x4] sm:$0xf]
    %v1620 = vld [vmem:[%s426 + $0x8] sm:$0xf]
    %v1621 = vld [vmem:[%s426 + $0xc] sm:$0xf]
    %v1626 = vunpack.c.l.b16 %v1618
    %v1627 = vunpack.c.l.b16 %v1619
    %v1628 = vunpack.c.l.b16 %v1620
    %v1629 = vunpack.c.l.b16 %v1621
    %v1630 = vpack.c.b16 %v1627, %v1626
    %v1631 = vpack.c.b16 %v1629, %v1628
    %1634 = vmatprep.subr.bf16.mxu0 0
    %1635 = vmatpush1.bf16.msra.mxu0 %v1630
    %1636 = vmatprep.subr.bf16.mxu0 0
    %1637 = vmatpush1.bf16.msra.mxu0 %v1631
    %1638 = vmatprep.subr.bf16.mxu0 0
    %1639 = vmatpush1.bf16.msra.mxu0 0
    %1640 = vmatprep.subr.bf16.mxu0 0
    %1641 = vmatpush1.bf16.msra.mxu0 0
    %1642 = vmatprep.subr.bf16.mxu0 0
    %1643 = vmatpush1.bf16.msra.mxu0 0
    %1644 = vmatprep.subr.bf16.mxu0 0
    %1645 = vmatpush1.bf16.msra.mxu0 0
    %1646 = vmatprep.subr.bf16.mxu0 0
    %1647 = vmatpush1.bf16.msra.mxu0 0
    %1648 = vmatprep.subr.bf16.mxu0 0
    %1649 = vmatpush1.bf16.msra.mxu0 0
    %1650 = vmatprep.subr.bf16.mxu0 0
    %1651 = vmatpush1.bf16.msra.mxu0 0
    %1652 = vmatprep.subr.bf16.mxu0 0
    %1653 = vmatpush1.bf16.msra.mxu0 0
    %1654 = vmatprep.subr.bf16.mxu0 0
    %1655 = vmatpush1.bf16.msra.mxu0 0
    %1656 = vmatprep.subr.bf16.mxu0 0
    %1657 = vmatpush1.bf16.msra.mxu0 0
    %1658 = vmatprep.subr.bf16.mxu0 0
    %1659 = vmatpush1.bf16.msra.mxu0 0
    %1660 = vmatprep.subr.bf16.mxu0 0
    %1661 = vmatpush1.bf16.msra.mxu0 0
    %1662 = vmatprep.subr.bf16.mxu0 0
    %1663 = vmatpush1.bf16.msra.mxu0 0
    %1664 = vmatprep.subr.bf16.mxu0 0
    %1665 = vmatpush1.bf16.msra.mxu0 0
    %1666 = vmatprep.mubr.bf16.mxu0 0
    %1667 = vmatmul.mubr.bf16.gmra.mrb[0].mxu0 %v1184
    %v1668 = vpop.f32.mrb[0].mxu0
    %v1669 = vadd.f32 0.0, %v1668
    %v1670 = vpop.f32.mrb[0].mxu0
    %v1671 = vpop.f32.mrb[0].mxu0
    %v1672 = vpop.f32.mrb[0].mxu0
    %1673 = vdwg.mxu0
    %v1674 = vadd.f32 %v1617, %v1669
    %v1675 = vxor.u32 %v1674, 2147483648
    %v1676 = vmul.f32 %v1675, 1.442695
    %v1677 = vpow.pop %v1676
    %v1678 = vadd.f32 %v1677, 1.0
    %v1679 = vrcp.pop %v1678
    %v1680 = vmul.f32 1.0, %v1679
    %v1681 = vtanh.pop %v1674
    %v1682 = vmul.f32 %v1680, %v1100
    %1684 = vrot.lane.b32.xlu0 %v1681, 64
    %v1685 = vpop.permute.xlu0 %1684
    %v1687 = vmul.f32 %v1680, %v1685
    %1689 = vrot.lane.b32.xlu0 %v1687, 32
    %v1690 = vpop.permute.xlu0 %1689
    %v1692 = vadd.f32 %v1682, %v1690
    %v1693 = vtanh.pop %v1692
    %1695 = vrot.lane.b32.xlu0 %v1693, 64
    %v1696 = vpop.permute.xlu0 %1695
    %v1698 = vmul.f32 %v1680, %v1696
    %v1699 = vpack.c.bf16 %v1698, %v1698
    %v1700 = vld [vmem:[%s509] sm:$0xf]
    %v1701 = vld [vmem:[%s509 + $0x4] sm:$0xf]
    %v1702 = vld [vmem:[%s509 + $0x8] sm:$0xf]
    %v1703 = vld [vmem:[%s509 + $0xc] sm:$0xf]
    %v1704 = vld [vmem:[%s514] sm:$0xf]
    %v1705 = vld [vmem:[%s514 + $0x4] sm:$0xf]
    %v1706 = vld [vmem:[%s514 + $0x8] sm:$0xf]
    %v1707 = vld [vmem:[%s514 + $0xc] sm:$0xf]
    %v1712 = vunpack.c.l.b16 %v1704
    %v1713 = vunpack.c.l.b16 %v1705
    %v1714 = vunpack.c.l.b16 %v1706
    %v1715 = vunpack.c.l.b16 %v1707
    %v1716 = vpack.c.b16 %v1713, %v1712
    %v1717 = vpack.c.b16 %v1715, %v1714
    %1720 = vmatprep.subr.bf16.mxu0 0
    %1721 = vmatpush1.bf16.msra.mxu0 %v1716
    %1722 = vmatprep.subr.bf16.mxu0 0
    %1723 = vmatpush1.bf16.msra.mxu0 %v1717
    %1724 = vmatprep.subr.bf16.mxu0 0
    %1725 = vmatpush1.bf16.msra.mxu0 0
    %1726 = vmatprep.subr.bf16.mxu0 0
    %1727 = vmatpush1.bf16.msra.mxu0 0
    %1728 = vmatprep.subr.bf16.mxu0 0
    %1729 = vmatpush1.bf16.msra.mxu0 0
    %1730 = vmatprep.subr.bf16.mxu0 0
    %1731 = vmatpush1.bf16.msra.mxu0 0
    %1732 = vmatprep.subr.bf16.mxu0 0
    %1733 = vmatpush1.bf16.msra.mxu0 0
    %1734 = vmatprep.subr.bf16.mxu0 0
    %1735 = vmatpush1.bf16.msra.mxu0 0
    %1736 = vmatprep.subr.bf16.mxu0 0
    %1737 = vmatpush1.bf16.msra.mxu0 0
    %1738 = vmatprep.subr.bf16.mxu0 0
    %1739 = vmatpush1.bf16.msra.mxu0 0
    %1740 = vmatprep.subr.bf16.mxu0 0
    %1741 = vmatpush1.bf16.msra.mxu0 0
    %1742 = vmatprep.subr.bf16.mxu0 0
    %1743 = vmatpush1.bf16.msra.mxu0 0
    %1744 = vmatprep.subr.bf16.mxu0 0
    %1745 = vmatpush1.bf16.msra.mxu0 0
    %1746 = vmatprep.subr.bf16.mxu0 0
    %1747 = vmatpush1.bf16.msra.mxu0 0
    %1748 = vmatprep.subr.bf16.mxu0 0
    %1749 = vmatpush1.bf16.msra.mxu0 0
    %1750 = vmatprep.subr.bf16.mxu0 0
    %1751 = vmatpush1.bf16.msra.mxu0 0
    %1752 = vmatprep.mubr.bf16.mxu0 0
    %1753 = vmatmul.mubr.bf16.gmra.mrb[0].mxu0 %v1279
    %v1754 = vpop.f32.mrb[0].mxu0
    %v1755 = vadd.f32 0.0, %v1754
    %v1756 = vpop.f32.mrb[0].mxu0
    %v1757 = vpop.f32.mrb[0].mxu0
    %v1758 = vpop.f32.mrb[0].mxu0
    %1759 = vdwg.mxu0
    %1761 = vrot.lane.b32.xlu0 %v1699, 32
    %v1762 = vpop.permute.xlu0 %1761
    %v1767 = vunpack.c.l.b16 %v1700
    %v1768 = vunpack.c.l.b16 %v1701
    %v1769 = vunpack.c.l.b16 %v1702
    %v1770 = vunpack.c.l.b16 %v1703
    %v1771 = vpack.c.b16 %v1768, %v1767
    %v1772 = vpack.c.b16 %v1770, %v1769
    %v1776 = vsel %vm381, %v1762, 0
    %1778 = vmatprep.subr.bf16.mxu0 0
    %1779 = vmatpush1.bf16.msra.mxu0 %v1771
    %1780 = vmatprep.subr.bf16.mxu0 0
    %1781 = vmatpush1.bf16.msra.mxu0 %v1772
    %1782 = vmatprep.subr.bf16.mxu0 0
    %1783 = vmatpush1.bf16.msra.mxu0 0
    %1784 = vmatprep.subr.bf16.mxu0 0
    %1785 = vmatpush1.bf16.msra.mxu0 0
    %1786 = vmatprep.subr.bf16.mxu0 0
    %1787 = vmatpush1.bf16.msra.mxu0 0
    %1788 = vmatprep.subr.bf16.mxu0 0
    %1789 = vmatpush1.bf16.msra.mxu0 0
    %1790 = vmatprep.subr.bf16.mxu0 0
    %1791 = vmatpush1.bf16.msra.mxu0 0
    %1792 = vmatprep.subr.bf16.mxu0 0
    %1793 = vmatpush1.bf16.msra.mxu0 0
    %1794 = vmatprep.subr.bf16.mxu0 0
    %1795 = vmatpush1.bf16.msra.mxu0 0
    %1796 = vmatprep.subr.bf16.mxu0 0
    %1797 = vmatpush1.bf16.msra.mxu0 0
    %1798 = vmatprep.subr.bf16.mxu0 0
    %1799 = vmatpush1.bf16.msra.mxu0 0
    %1800 = vmatprep.subr.bf16.mxu0 0
    %1801 = vmatpush1.bf16.msra.mxu0 0
    %1802 = vmatprep.subr.bf16.mxu0 0
    %1803 = vmatpush1.bf16.msra.mxu0 0
    %1804 = vmatprep.subr.bf16.mxu0 0
    %1805 = vmatpush1.bf16.msra.mxu0 0
    %1806 = vmatprep.subr.bf16.mxu0 0
    %1807 = vmatpush1.bf16.msra.mxu0 0
    %1808 = vmatprep.subr.bf16.mxu0 0
    %1809 = vmatpush1.bf16.msra.mxu0 0
    %1810 = vmatprep.mubr.bf16.mxu0 0
    %1811 = vmatmul.mubr.bf16.gmra.mrb[0].mxu0 %v1776
    %v1812 = vpop.f32.mrb[0].mxu0
    %v1813 = vadd.f32 %v1755, %v1812
    %v1814 = vpop.f32.mrb[0].mxu0
    %v1815 = vpop.f32.mrb[0].mxu0
    %v1816 = vpop.f32.mrb[0].mxu0
    %1817 = vdwg.mxu0
    %v1818 = vld [vmem:[#allocation12] sm:$0xff]
    %v1819 = vadd.f32 %v1813, %v1818
    %v1820 = vxor.u32 %v1819, 2147483648
    %v1821 = vmul.f32 %v1820, 1.442695
    %v1822 = vpow.pop %v1821
    %v1823 = vadd.f32 %v1822, 1.0
    %v1824 = vrcp.pop %v1823
    %v1825 = vmul.f32 1.0, %v1824
    %v1826 = vtanh.pop %v1819
    %v1827 = vmul.f32 %v1825, %v1245
    %1829 = vrot.lane.b32.xlu0 %v1826, 64
    %v1830 = vpop.permute.xlu0 %1829
    %v1832 = vmul.f32 %v1825, %v1830
    %1834 = vrot.lane.b32.xlu0 %v1832, 32
    %v1835 = vpop.permute.xlu0 %1834
    %v1837 = vadd.f32 %v1827, %v1835
    %v1838 = vtanh.pop %v1837
    %1840 = vrot.lane.b32.xlu0 %v1838, 64
    %v1841 = vpop.permute.xlu0 %1840
    %v1843 = vmul.f32 %v1825, %v1841
    %1845 = vrot.lane.b32.xlu0 %v1843, 32
    %v1846 = vpop.permute.xlu0 %1845
    %1848 = vst.msk [vmem:[#allocation4 + $0x10] sm:$0xff] %vm381, %v1846
    %v1849 = vld [vmem:[#allocation3 + $0x10] sm:$0xff]
    %v1850 = vpack.c.bf16 %v1843, %v1843
    %v1851 = vld [vmem:[%s662] sm:$0xf]
    %v1852 = vld [vmem:[%s662 + $0x4] sm:$0xf]
    %v1853 = vld [vmem:[%s662 + $0x8] sm:$0xf]
    %v1854 = vld [vmem:[%s662 + $0xc] sm:$0xf]
    %1856 = vrot.lane.b32.xlu0 %v1850, 32
    %v1857 = vpop.permute.xlu0 %1856
    %v1862 = vunpack.c.l.b16 %v1851
    %v1863 = vunpack.c.l.b16 %v1852
    %v1864 = vunpack.c.l.b16 %v1853
    %v1865 = vunpack.c.l.b16 %v1854
    %v1866 = vpack.c.b16 %v1863, %v1862
    %v1867 = vpack.c.b16 %v1865, %v1864
    %v1871 = vsel %vm381, %v1857, 0
    %1873 = vmatprep.subr.bf16.mxu0 0
    %1874 = vmatpush1.bf16.msra.mxu0 %v1866
    %1875 = vmatprep.subr.bf16.mxu0 0
    %1876 = vmatpush1.bf16.msra.mxu0 %v1867
    %1877 = vmatprep.subr.bf16.mxu0 0
    %1878 = vmatpush1.bf16.msra.mxu0 0
    %1879 = vmatprep.subr.bf16.mxu0 0
    %1880 = vmatpush1.bf16.msra.mxu0 0
    %1881 = vmatprep.subr.bf16.mxu0 0
    %1882 = vmatpush1.bf16.msra.mxu0 0
    %1883 = vmatprep.subr.bf16.mxu0 0
    %1884 = vmatpush1.bf16.msra.mxu0 0
    %1885 = vmatprep.subr.bf16.mxu0 0
    %1886 = vmatpush1.bf16.msra.mxu0 0
    %1887 = vmatprep.subr.bf16.mxu0 0
    %1888 = vmatpush1.bf16.msra.mxu0 0
    %1889 = vmatprep.subr.bf16.mxu0 0
    %1890 = vmatpush1.bf16.msra.mxu0 0
    %1891 = vmatprep.subr.bf16.mxu0 0
    %1892 = vmatpush1.bf16.msra.mxu0 0
    %1893 = vmatprep.subr.bf16.mxu0 0
    %1894 = vmatpush1.bf16.msra.mxu0 0
    %1895 = vmatprep.subr.bf16.mxu0 0
    %1896 = vmatpush1.bf16.msra.mxu0 0
    %1897 = vmatprep.subr.bf16.mxu0 0
    %1898 = vmatpush1.bf16.msra.mxu0 0
    %1899 = vmatprep.subr.bf16.mxu0 0
    %1900 = vmatpush1.bf16.msra.mxu0 0
    %1901 = vmatprep.subr.bf16.mxu0 0
    %1902 = vmatpush1.bf16.msra.mxu0 0
    %1903 = vmatprep.subr.bf16.mxu0 0
    %1904 = vmatpush1.bf16.msra.mxu0 0
    %1905 = vmatprep.mubr.bf16.mxu0 0
    %1906 = vmatmul.mubr.bf16.gmra.mrb[0].mxu0 %v1871
    %v1907 = vpop.f32.mrb[0].mxu0
    %v1908 = vadd.f32 0.0, %v1907
    %v1909 = vpop.f32.mrb[0].mxu0
    %v1910 = vpop.f32.mrb[0].mxu0
    %v1911 = vpop.f32.mrb[0].mxu0
    %1912 = vdwg.mxu0
    %v1913 = vadd.f32 %v1849, %v1908
    %v1914 = vld [vmem:[%s726] sm:$0xf]
    %v1915 = vld [vmem:[%s726 + $0x4] sm:$0xf]
    %v1916 = vld [vmem:[%s726 + $0x8] sm:$0xf]
    %v1917 = vld [vmem:[%s726 + $0xc] sm:$0xf]
    %v1922 = vunpack.c.l.b16 %v1914
    %v1923 = vunpack.c.l.b16 %v1915
    %v1924 = vunpack.c.l.b16 %v1916
    %v1925 = vunpack.c.l.b16 %v1917
    %v1926 = vpack.c.b16 %v1923, %v1922
    %v1927 = vpack.c.b16 %v1925, %v1924
    %1930 = vmatprep.subr.bf16.mxu0 0
    %1931 = vmatpush1.bf16.msra.mxu0 %v1926
    %1932 = vmatprep.subr.bf16.mxu0 0
    %1933 = vmatpush1.bf16.msra.mxu0 %v1927
    %1934 = vmatprep.subr.bf16.mxu0 0
    %1935 = vmatpush1.bf16.msra.mxu0 0
    %1936 = vmatprep.subr.bf16.mxu0 0
    %1937 = vmatpush1.bf16.msra.mxu0 0
    %1938 = vmatprep.subr.bf16.mxu0 0
    %1939 = vmatpush1.bf16.msra.mxu0 0
    %1940 = vmatprep.subr.bf16.mxu0 0
    %1941 = vmatpush1.bf16.msra.mxu0 0
    %1942 = vmatprep.subr.bf16.mxu0 0
    %1943 = vmatpush1.bf16.msra.mxu0 0
    %1944 = vmatprep.subr.bf16.mxu0 0
    %1945 = vmatpush1.bf16.msra.mxu0 0
    %1946 = vmatprep.subr.bf16.mxu0 0
    %1947 = vmatpush1.bf16.msra.mxu0 0
    %1948 = vmatprep.subr.bf16.mxu0 0
    %1949 = vmatpush1.bf16.msra.mxu0 0
    %1950 = vmatprep.subr.bf16.mxu0 0
    %1951 = vmatpush1.bf16.msra.mxu0 0
    %1952 = vmatprep.subr.bf16.mxu0 0
    %1953 = vmatpush1.bf16.msra.mxu0 0
    %1954 = vmatprep.subr.bf16.mxu0 0
    %1955 = vmatpush1.bf16.msra.mxu0 0
    %1956 = vmatprep.subr.bf16.mxu0 0
    %1957 = vmatpush1.bf16.msra.mxu0 0
    %1958 = vmatprep.subr.bf16.mxu0 0
    %1959 = vmatpush1.bf16.msra.mxu0 0
    %1960 = vmatprep.subr.bf16.mxu0 0
    %1961 = vmatpush1.bf16.msra.mxu0 0
    %1962 = vmatprep.mubr.bf16.mxu0 0
    %1963 = vmatmul.mubr.bf16.gmra.mrb[0].mxu0 %v1480
    %v1964 = vpop.f32.mrb[0].mxu0
    %v1965 = vadd.f32 0.0, %v1964
    %v1966 = vpop.f32.mrb[0].mxu0
    %v1967 = vpop.f32.mrb[0].mxu0
    %v1968 = vpop.f32.mrb[0].mxu0
    %1969 = vdwg.mxu0
    %v1970 = vadd.f32 %v1913, %v1965
    %v1971 = vxor.u32 %v1970, 2147483648
    %v1972 = vmul.f32 %v1971, 1.442695
    %v1973 = vpow.pop %v1972
    %v1974 = vadd.f32 %v1973, 1.0
    %v1975 = vrcp.pop %v1974
    %v1976 = vmul.f32 1.0, %v1975
    %v1977 = vtanh.pop %v1970
    %v1978 = vmul.f32 %v1976, %v1396
    %1980 = vrot.lane.b32.xlu0 %v1977, 64
    %v1981 = vpop.permute.xlu0 %1980
    %v1983 = vmul.f32 %v1976, %v1981
    %1985 = vrot.lane.b32.xlu0 %v1983, 32
    %v1986 = vpop.permute.xlu0 %1985
    %v1988 = vadd.f32 %v1978, %v1986
    %v1989 = vtanh.pop %v1988
    %1991 = vrot.lane.b32.xlu0 %v1989, 64
    %v1992 = vpop.permute.xlu0 %1991
    %v1994 = vmul.f32 %v1976, %v1992
    %v1995 = vpack.c.bf16 %v1994, %v1994
    %v1996 = vld [vmem:[%s809] sm:$0xf]
    %v1997 = vld [vmem:[%s809 + $0x4] sm:$0xf]
    %v1998 = vld [vmem:[%s809 + $0x8] sm:$0xf]
    %v1999 = vld [vmem:[%s809 + $0xc] sm:$0xf]
    %v2000 = vld [vmem:[%s814] sm:$0xf]
    %v2001 = vld [vmem:[%s814 + $0x4] sm:$0xf]
    %v2002 = vld [vmem:[%s814 + $0x8] sm:$0xf]
    %v2003 = vld [vmem:[%s814 + $0xc] sm:$0xf]
    %v2008 = vunpack.c.l.b16 %v2000
    %v2009 = vunpack.c.l.b16 %v2001
    %v2010 = vunpack.c.l.b16 %v2002
    %v2011 = vunpack.c.l.b16 %v2003
    %v2012 = vpack.c.b16 %v2009, %v2008
    %v2013 = vpack.c.b16 %v2011, %v2010
    %2016 = vmatprep.subr.bf16.mxu0 0
    %2017 = vmatpush1.bf16.msra.mxu0 %v2012
    %2018 = vmatprep.subr.bf16.mxu0 0
    %2019 = vmatpush1.bf16.msra.mxu0 %v2013
    %2020 = vmatprep.subr.bf16.mxu0 0
    %2021 = vmatpush1.bf16.msra.mxu0 0
    %2022 = vmatprep.subr.bf16.mxu0 0
    %2023 = vmatpush1.bf16.msra.mxu0 0
    %2024 = vmatprep.subr.bf16.mxu0 0
    %2025 = vmatpush1.bf16.msra.mxu0 0
    %2026 = vmatprep.subr.bf16.mxu0 0
    %2027 = vmatpush1.bf16.msra.mxu0 0
    %2028 = vmatprep.subr.bf16.mxu0 0
    %2029 = vmatpush1.bf16.msra.mxu0 0
    %2030 = vmatprep.subr.bf16.mxu0 0
    %2031 = vmatpush1.bf16.msra.mxu0 0
    %2032 = vmatprep.subr.bf16.mxu0 0
    %2033 = vmatpush1.bf16.msra.mxu0 0
    %2034 = vmatprep.subr.bf16.mxu0 0
    %2035 = vmatpush1.bf16.msra.mxu0 0
    %2036 = vmatprep.subr.bf16.mxu0 0
    %2037 = vmatpush1.bf16.msra.mxu0 0
    %2038 = vmatprep.subr.bf16.mxu0 0
    %2039 = vmatpush1.bf16.msra.mxu0 0
    %2040 = vmatprep.subr.bf16.mxu0 0
    %2041 = vmatpush1.bf16.msra.mxu0 0
    %2042 = vmatprep.subr.bf16.mxu0 0
    %2043 = vmatpush1.bf16.msra.mxu0 0
    %2044 = vmatprep.subr.bf16.mxu0 0
    %2045 = vmatpush1.bf16.msra.mxu0 0
    %2046 = vmatprep.subr.bf16.mxu0 0
    %2047 = vmatpush1.bf16.msra.mxu0 0
    %2048 = vmatprep.mubr.bf16.mxu0 0
    %2049 = vmatmul.mubr.bf16.gmra.mrb[0].mxu0 %v1575
    %v2050 = vpop.f32.mrb[0].mxu0
    %v2051 = vadd.f32 0.0, %v2050
    %v2052 = vpop.f32.mrb[0].mxu0
    %v2053 = vpop.f32.mrb[0].mxu0
    %v2054 = vpop.f32.mrb[0].mxu0
    %2055 = vdwg.mxu0
    %2057 = vrot.lane.b32.xlu0 %v1995, 32
    %v2058 = vpop.permute.xlu0 %2057
    %v2063 = vunpack.c.l.b16 %v1996
    %v2064 = vunpack.c.l.b16 %v1997
    %v2065 = vunpack.c.l.b16 %v1998
    %v2066 = vunpack.c.l.b16 %v1999
    %v2067 = vpack.c.b16 %v2064, %v2063
    %v2068 = vpack.c.b16 %v2066, %v2065
    %v2072 = vsel %vm381, %v2058, 0
    %2074 = vmatprep.subr.bf16.mxu0 0
    %2075 = vmatpush1.bf16.msra.mxu0 %v2067
    %2076 = vmatprep.subr.bf16.mxu0 0
    %2077 = vmatpush1.bf16.msra.mxu0 %v2068
    %2078 = vmatprep.subr.bf16.mxu0 0
    %2079 = vmatpush1.bf16.msra.mxu0 0
    %2080 = vmatprep.subr.bf16.mxu0 0
    %2081 = vmatpush1.bf16.msra.mxu0 0
    %2082 = vmatprep.subr.bf16.mxu0 0
    %2083 = vmatpush1.bf16.msra.mxu0 0
    %2084 = vmatprep.subr.bf16.mxu0 0
    %2085 = vmatpush1.bf16.msra.mxu0 0
    %2086 = vmatprep.subr.bf16.mxu0 0
    %2087 = vmatpush1.bf16.msra.mxu0 0
    %2088 = vmatprep.subr.bf16.mxu0 0
    %2089 = vmatpush1.bf16.msra.mxu0 0
    %2090 = vmatprep.subr.bf16.mxu0 0
    %2091 = vmatpush1.bf16.msra.mxu0 0
    %2092 = vmatprep.subr.bf16.mxu0 0
    %2093 = vmatpush1.bf16.msra.mxu0 0
    %2094 = vmatprep.subr.bf16.mxu0 0
    %2095 = vmatpush1.bf16.msra.mxu0 0
    %2096 = vmatprep.subr.bf16.mxu0 0
    %2097 = vmatpush1.bf16.msra.mxu0 0
    %2098 = vmatprep.subr.bf16.mxu0 0
    %2099 = vmatpush1.bf16.msra.mxu0 0
    %2100 = vmatprep.subr.bf16.mxu0 0
    %2101 = vmatpush1.bf16.msra.mxu0 0
    %2102 = vmatprep.subr.bf16.mxu0 0
    %2103 = vmatpush1.bf16.msra.mxu0 0
    %2104 = vmatprep.subr.bf16.mxu0 0
    %2105 = vmatpush1.bf16.msra.mxu0 0
    %2106 = vmatprep.mubr.bf16.mxu0 0
    %2107 = vmatmul.mubr.bf16.gmra.mrb[0].mxu0 %v2072
    %v2108 = vpop.f32.mrb[0].mxu0
    %v2109 = vadd.f32 %v2051, %v2108
    %v2110 = vpop.f32.mrb[0].mxu0
    %v2111 = vpop.f32.mrb[0].mxu0
    %v2112 = vpop.f32.mrb[0].mxu0
    %2113 = vdwg.mxu0
    %v2114 = vld [vmem:[%s929] sm:$0xff]
    %v2115 = vadd.f32 %v2109, %v2114
    %v2116 = vxor.u32 %v2115, 2147483648
    %v2117 = vmul.f32 %v2116, 1.442695
    %v2118 = vpow.pop %v2117
    %v2119 = vadd.f32 %v2118, 1.0
    %v2120 = vrcp.pop %v2119
    %v2121 = vmul.f32 1.0, %v2120
    %v2122 = vtanh.pop %v2115
    %v2123 = vmul.f32 %v2121, %v1541
    %2125 = vrot.lane.b32.xlu0 %v2122, 64
    %v2126 = vpop.permute.xlu0 %2125
    %v2128 = vmul.f32 %v2121, %v2126
    %2130 = vrot.lane.b32.xlu0 %v2128, 32
    %v2131 = vpop.permute.xlu0 %2130
    %v2133 = vadd.f32 %v2123, %v2131
    %v2134 = vtanh.pop %v2133
    %2136 = vrot.lane.b32.xlu0 %v2134, 64
    %v2137 = vpop.permute.xlu0 %2136
    %v2139 = vmul.f32 %v2121, %v2137
    %2141 = vrot.lane.b32.xlu0 %v2139, 32
    %v2142 = vpop.permute.xlu0 %2141
    %2144 = vst.msk [vmem:[#allocation5 + $0x10] sm:$0xff] %vm381, %v2142
    %v2145 = vld [vmem:[#allocation2 + $0x18] sm:$0xff]
    %v2146 = vpack.c.bf16 %v2139, %v2139
    %v2147 = vld [vmem:[%s6] sm:$0xf]
    %v2148 = vld [vmem:[%s6 + $0x4] sm:$0xf]
    %v2149 = vld [vmem:[%s6 + $0x8] sm:$0xf]
    %v2150 = vld [vmem:[%s6 + $0xc] sm:$0xf]
    %2152 = vrot.lane.b32.xlu0 %v2146, 32
    %v2153 = vpop.permute.xlu0 %2152
    %v2158 = vunpack.c.l.b16 %v2147
    %v2159 = vunpack.c.l.b16 %v2148
    %v2160 = vunpack.c.l.b16 %v2149
    %v2161 = vunpack.c.l.b16 %v2150
    %v2162 = vpack.c.b16 %v2159, %v2158
    %v2163 = vpack.c.b16 %v2161, %v2160
    %v2167 = vsel %vm381, %v2153, 0
    %2169 = vmatprep.subr.bf16.mxu0 0
    %2170 = vmatpush1.bf16.msra.mxu0 %v2162
    %2171 = vmatprep.subr.bf16.mxu0 0
    %2172 = vmatpush1.bf16.msra.mxu0 %v2163
    %2173 = vmatprep.subr.bf16.mxu0 0
    %2174 = vmatpush1.bf16.msra.mxu0 0
    %2175 = vmatprep.subr.bf16.mxu0 0
    %2176 = vmatpush1.bf16.msra.mxu0 0
    %2177 = vmatprep.subr.bf16.mxu0 0
    %2178 = vmatpush1.bf16.msra.mxu0 0
    %2179 = vmatprep.subr.bf16.mxu0 0
    %2180 = vmatpush1.bf16.msra.mxu0 0
    %2181 = vmatprep.subr.bf16.mxu0 0
    %2182 = vmatpush1.bf16.msra.mxu0 0
    %2183 = vmatprep.subr.bf16.mxu0 0
    %2184 = vmatpush1.bf16.msra.mxu0 0
    %2185 = vmatprep.subr.bf16.mxu0 0
    %2186 = vmatpush1.bf16.msra.mxu0 0
    %2187 = vmatprep.subr.bf16.mxu0 0
    %2188 = vmatpush1.bf16.msra.mxu0 0
    %2189 = vmatprep.subr.bf16.mxu0 0
    %2190 = vmatpush1.bf16.msra.mxu0 0
    %2191 = vmatprep.subr.bf16.mxu0 0
    %2192 = vmatpush1.bf16.msra.mxu0 0
    %2193 = vmatprep.subr.bf16.mxu0 0
    %2194 = vmatpush1.bf16.msra.mxu0 0
    %2195 = vmatprep.subr.bf16.mxu0 0
    %2196 = vmatpush1.bf16.msra.mxu0 0
    %2197 = vmatprep.subr.bf16.mxu0 0
    %2198 = vmatpush1.bf16.msra.mxu0 0
    %2199 = vmatprep.subr.bf16.mxu0 0
    %2200 = vmatpush1.bf16.msra.mxu0 0
    %2201 = vmatprep.mubr.bf16.mxu0 0
    %2202 = vmatmul.mubr.bf16.gmra.mrb[0].mxu0 %v2167
    %v2203 = vpop.f32.mrb[0].mxu0
    %v2204 = vadd.f32 0.0, %v2203
    %v2205 = vpop.f32.mrb[0].mxu0
    %v2206 = vpop.f32.mrb[0].mxu0
    %v2207 = vpop.f32.mrb[0].mxu0
    %2208 = vdwg.mxu0
    %v2209 = vadd.f32 %v2145, %v2204
    %v2210 = vld [vmem:[%s426] sm:$0xf]
    %v2211 = vld [vmem:[%s426 + $0x4] sm:$0xf]
    %v2212 = vld [vmem:[%s426 + $0x8] sm:$0xf]
    %v2213 = vld [vmem:[%s426 + $0xc] sm:$0xf]
    %v2218 = vunpack.c.l.b16 %v2210
    %v2219 = vunpack.c.l.b16 %v2211
    %v2220 = vunpack.c.l.b16 %v2212
    %v2221 = vunpack.c.l.b16 %v2213
    %v2222 = vpack.c.b16 %v2219, %v2218
    %v2223 = vpack.c.b16 %v2221, %v2220
    %2226 = vmatprep.subr.bf16.mxu0 0
    %2227 = vmatpush1.bf16.msra.mxu0 %v2222
    %2228 = vmatprep.subr.bf16.mxu0 0
    %2229 = vmatpush1.bf16.msra.mxu0 %v2223
    %2230 = vmatprep.subr.bf16.mxu0 0
    %2231 = vmatpush1.bf16.msra.mxu0 0
    %2232 = vmatprep.subr.bf16.mxu0 0
    %2233 = vmatpush1.bf16.msra.mxu0 0
    %2234 = vmatprep.subr.bf16.mxu0 0
    %2235 = vmatpush1.bf16.msra.mxu0 0
    %2236 = vmatprep.subr.bf16.mxu0 0
    %2237 = vmatpush1.bf16.msra.mxu0 0
    %2238 = vmatprep.subr.bf16.mxu0 0
    %2239 = vmatpush1.bf16.msra.mxu0 0
    %2240 = vmatprep.subr.bf16.mxu0 0
    %2241 = vmatpush1.bf16.msra.mxu0 0
    %2242 = vmatprep.subr.bf16.mxu0 0
    %2243 = vmatpush1.bf16.msra.mxu0 0
    %2244 = vmatprep.subr.bf16.mxu0 0
    %2245 = vmatpush1.bf16.msra.mxu0 0
    %2246 = vmatprep.subr.bf16.mxu0 0
    %2247 = vmatpush1.bf16.msra.mxu0 0
    %2248 = vmatprep.subr.bf16.mxu0 0
    %2249 = vmatpush1.bf16.msra.mxu0 0
    %2250 = vmatprep.subr.bf16.mxu0 0
    %2251 = vmatpush1.bf16.msra.mxu0 0
    %2252 = vmatprep.subr.bf16.mxu0 0
    %2253 = vmatpush1.bf16.msra.mxu0 0
    %2254 = vmatprep.subr.bf16.mxu0 0
    %2255 = vmatpush1.bf16.msra.mxu0 0
    %2256 = vmatprep.subr.bf16.mxu0 0
    %2257 = vmatpush1.bf16.msra.mxu0 0
    %2258 = vmatprep.mubr.bf16.mxu0 0
    %2259 = vmatmul.mubr.bf16.gmra.mrb[0].mxu0 %v1776
    %v2260 = vpop.f32.mrb[0].mxu0
    %v2261 = vadd.f32 0.0, %v2260
    %v2262 = vpop.f32.mrb[0].mxu0
    %v2263 = vpop.f32.mrb[0].mxu0
    %v2264 = vpop.f32.mrb[0].mxu0
    %2265 = vdwg.mxu0
    %v2266 = vadd.f32 %v2209, %v2261
    %v2267 = vxor.u32 %v2266, 2147483648
    %v2268 = vmul.f32 %v2267, 1.442695
    %v2269 = vpow.pop %v2268
    %v2270 = vadd.f32 %v2269, 1.0
    %v2271 = vrcp.pop %v2270
    %v2272 = vmul.f32 1.0, %v2271
    %v2273 = vtanh.pop %v2266
    %v2274 = vmul.f32 %v2272, %v1692
    %2276 = vrot.lane.b32.xlu0 %v2273, 64
    %v2277 = vpop.permute.xlu0 %2276
    %v2279 = vmul.f32 %v2272, %v2277
    %2281 = vrot.lane.b32.xlu0 %v2279, 32
    %v2282 = vpop.permute.xlu0 %2281
    %v2284 = vadd.f32 %v2274, %v2282
    %v2285 = vtanh.pop %v2284
    %2287 = vrot.lane.b32.xlu0 %v2285, 64
    %v2288 = vpop.permute.xlu0 %2287
    %v2290 = vmul.f32 %v2272, %v2288
    %v2291 = vpack.c.bf16 %v2290, %v2290
    %v2292 = vld [vmem:[%s509] sm:$0xf]
    %v2293 = vld [vmem:[%s509 + $0x4] sm:$0xf]
    %v2294 = vld [vmem:[%s509 + $0x8] sm:$0xf]
    %v2295 = vld [vmem:[%s509 + $0xc] sm:$0xf]
    %v2296 = vld [vmem:[%s514] sm:$0xf]
    %v2297 = vld [vmem:[%s514 + $0x4] sm:$0xf]
    %v2298 = vld [vmem:[%s514 + $0x8] sm:$0xf]
    %v2299 = vld [vmem:[%s514 + $0xc] sm:$0xf]
    %v2304 = vunpack.c.l.b16 %v2296
    %v2305 = vunpack.c.l.b16 %v2297
    %v2306 = vunpack.c.l.b16 %v2298
    %v2307 = vunpack.c.l.b16 %v2299
    %v2308 = vpack.c.b16 %v2305, %v2304
    %v2309 = vpack.c.b16 %v2307, %v2306
    %2312 = vmatprep.subr.bf16.mxu0 0
    %2313 = vmatpush1.bf16.msra.mxu0 %v2308
    %2314 = vmatprep.subr.bf16.mxu0 0
    %2315 = vmatpush1.bf16.msra.mxu0 %v2309
    %2316 = vmatprep.subr.bf16.mxu0 0
    %2317 = vmatpush1.bf16.msra.mxu0 0
    %2318 = vmatprep.subr.bf16.mxu0 0
    %2319 = vmatpush1.bf16.msra.mxu0 0
    %2320 = vmatprep.subr.bf16.mxu0 0
    %2321 = vmatpush1.bf16.msra.mxu0 0
    %2322 = vmatprep.subr.bf16.mxu0 0
    %2323 = vmatpush1.bf16.msra.mxu0 0
    %2324 = vmatprep.subr.bf16.mxu0 0
    %2325 = vmatpush1.bf16.msra.mxu0 0
    %2326 = vmatprep.subr.bf16.mxu0 0
    %2327 = vmatpush1.bf16.msra.mxu0 0
    %2328 = vmatprep.subr.bf16.mxu0 0
    %2329 = vmatpush1.bf16.msra.mxu0 0
    %2330 = vmatprep.subr.bf16.mxu0 0
    %2331 = vmatpush1.bf16.msra.mxu0 0
    %2332 = vmatprep.subr.bf16.mxu0 0
    %2333 = vmatpush1.bf16.msra.mxu0 0
    %2334 = vmatprep.subr.bf16.mxu0 0
    %2335 = vmatpush1.bf16.msra.mxu0 0
    %2336 = vmatprep.subr.bf16.mxu0 0
    %2337 = vmatpush1.bf16.msra.mxu0 0
    %2338 = vmatprep.subr.bf16.mxu0 0
    %2339 = vmatpush1.bf16.msra.mxu0 0
    %2340 = vmatprep.subr.bf16.mxu0 0
    %2341 = vmatpush1.bf16.msra.mxu0 0
    %2342 = vmatprep.subr.bf16.mxu0 0
    %2343 = vmatpush1.bf16.msra.mxu0 0
    %2344 = vmatprep.mubr.bf16.mxu0 0
    %2345 = vmatmul.mubr.bf16.gmra.mrb[0].mxu0 %v1871
    %v2346 = vpop.f32.mrb[0].mxu0
    %v2347 = vadd.f32 0.0, %v2346
    %v2348 = vpop.f32.mrb[0].mxu0
    %v2349 = vpop.f32.mrb[0].mxu0
    %v2350 = vpop.f32.mrb[0].mxu0
    %2351 = vdwg.mxu0
    %2353 = vrot.lane.b32.xlu0 %v2291, 32
    %v2354 = vpop.permute.xlu0 %2353
    %v2359 = vunpack.c.l.b16 %v2292
    %v2360 = vunpack.c.l.b16 %v2293
    %v2361 = vunpack.c.l.b16 %v2294
    %v2362 = vunpack.c.l.b16 %v2295
    %v2363 = vpack.c.b16 %v2360, %v2359
    %v2364 = vpack.c.b16 %v2362, %v2361
    %v2368 = vsel %vm381, %v2354, 0
    %2370 = vmatprep.subr.bf16.mxu0 0
    %2371 = vmatpush1.bf16.msra.mxu0 %v2363
    %2372 = vmatprep.subr.bf16.mxu0 0
    %2373 = vmatpush1.bf16.msra.mxu0 %v2364
    %2374 = vmatprep.subr.bf16.mxu0 0
    %2375 = vmatpush1.bf16.msra.mxu0 0
    %2376 = vmatprep.subr.bf16.mxu0 0
    %2377 = vmatpush1.bf16.msra.mxu0 0
    %2378 = vmatprep.subr.bf16.mxu0 0
    %2379 = vmatpush1.bf16.msra.mxu0 0
    %2380 = vmatprep.subr.bf16.mxu0 0
    %2381 = vmatpush1.bf16.msra.mxu0 0
    %2382 = vmatprep.subr.bf16.mxu0 0
    %2383 = vmatpush1.bf16.msra.mxu0 0
    %2384 = vmatprep.subr.bf16.mxu0 0
    %2385 = vmatpush1.bf16.msra.mxu0 0
    %2386 = vmatprep.subr.bf16.mxu0 0
    %2387 = vmatpush1.bf16.msra.mxu0 0
    %2388 = vmatprep.subr.bf16.mxu0 0
    %2389 = vmatpush1.bf16.msra.mxu0 0
    %2390 = vmatprep.subr.bf16.mxu0 0
    %2391 = vmatpush1.bf16.msra.mxu0 0
    %2392 = vmatprep.subr.bf16.mxu0 0
    %2393 = vmatpush1.bf16.msra.mxu0 0
    %2394 = vmatprep.subr.bf16.mxu0 0
    %2395 = vmatpush1.bf16.msra.mxu0 0
    %2396 = vmatprep.subr.bf16.mxu0 0
    %2397 = vmatpush1.bf16.msra.mxu0 0
    %2398 = vmatprep.subr.bf16.mxu0 0
    %2399 = vmatpush1.bf16.msra.mxu0 0
    %2400 = vmatprep.subr.bf16.mxu0 0
    %2401 = vmatpush1.bf16.msra.mxu0 0
    %2402 = vmatprep.mubr.bf16.mxu0 0
    %2403 = vmatmul.mubr.bf16.gmra.mrb[0].mxu0 %v2368
    %v2404 = vpop.f32.mrb[0].mxu0
    %v2405 = vadd.f32 %v2347, %v2404
    %v2406 = vpop.f32.mrb[0].mxu0
    %v2407 = vpop.f32.mrb[0].mxu0
    %v2408 = vpop.f32.mrb[0].mxu0
    %2409 = vdwg.mxu0
    %v2410 = vld [vmem:[#allocation12] sm:$0xff]
    %v2411 = vadd.f32 %v2405, %v2410
    %v2412 = vxor.u32 %v2411, 2147483648
    %v2413 = vmul.f32 %v2412, 1.442695
    %v2414 = vpow.pop %v2413
    %v2415 = vadd.f32 %v2414, 1.0
    %v2416 = vrcp.pop %v2415
    %v2417 = vmul.f32 1.0, %v2416
    %v2418 = vtanh.pop %v2411
    %v2419 = vmul.f32 %v2417, %v1837
    %2421 = vrot.lane.b32.xlu0 %v2418, 64
    %v2422 = vpop.permute.xlu0 %2421
    %v2424 = vmul.f32 %v2417, %v2422
    %2426 = vrot.lane.b32.xlu0 %v2424, 32
    %v2427 = vpop.permute.xlu0 %2426
    %v2429 = vadd.f32 %v2419, %v2427
    %v2430 = vtanh.pop %v2429
    %2432 = vrot.lane.b32.xlu0 %v2430, 64
    %v2433 = vpop.permute.xlu0 %2432
    %v2435 = vmul.f32 %v2417, %v2433
    %2437 = vrot.lane.b32.xlu0 %v2435, 32
    %v2438 = vpop.permute.xlu0 %2437
    %2440 = vst.msk [vmem:[#allocation4 + $0x18] sm:$0xff] %vm381, %v2438
    %v2441 = vld [vmem:[#allocation3 + $0x18] sm:$0xff]
    %v2442 = vpack.c.bf16 %v2435, %v2435
    %v2443 = vld [vmem:[%s662] sm:$0xf]
    %v2444 = vld [vmem:[%s662 + $0x4] sm:$0xf]
    %v2445 = vld [vmem:[%s662 + $0x8] sm:$0xf]
    %v2446 = vld [vmem:[%s662 + $0xc] sm:$0xf]
    %2448 = vrot.lane.b32.xlu0 %v2442, 32
    %v2449 = vpop.permute.xlu0 %2448
    %v2454 = vunpack.c.l.b16 %v2443
    %v2455 = vunpack.c.l.b16 %v2444
    %v2456 = vunpack.c.l.b16 %v2445
    %v2457 = vunpack.c.l.b16 %v2446
    %v2458 = vpack.c.b16 %v2455, %v2454
    %v2459 = vpack.c.b16 %v2457, %v2456
    %v2463 = vsel %vm381, %v2449, 0
    %2465 = vmatprep.subr.bf16.mxu0 0
    %2466 = vmatpush1.bf16.msra.mxu0 %v2458
    %2467 = vmatprep.subr.bf16.mxu0 0
    %2468 = vmatpush1.bf16.msra.mxu0 %v2459
    %2469 = vmatprep.subr.bf16.mxu0 0
    %2470 = vmatpush1.bf16.msra.mxu0 0
    %2471 = vmatprep.subr.bf16.mxu0 0
    %2472 = vmatpush1.bf16.msra.mxu0 0
    %2473 = vmatprep.subr.bf16.mxu0 0
    %2474 = vmatpush1.bf16.msra.mxu0 0
    %2475 = vmatprep.subr.bf16.mxu0 0
    %2476 = vmatpush1.bf16.msra.mxu0 0
    %2477 = vmatprep.subr.bf16.mxu0 0
    %2478 = vmatpush1.bf16.msra.mxu0 0
    %2479 = vmatprep.subr.bf16.mxu0 0
    %2480 = vmatpush1.bf16.msra.mxu0 0
    %2481 = vmatprep.subr.bf16.mxu0 0
    %2482 = vmatpush1.bf16.msra.mxu0 0
    %2483 = vmatprep.subr.bf16.mxu0 0
    %2484 = vmatpush1.bf16.msra.mxu0 0
    %2485 = vmatprep.subr.bf16.mxu0 0
    %2486 = vmatpush1.bf16.msra.mxu0 0
    %2487 = vmatprep.subr.bf16.mxu0 0
    %2488 = vmatpush1.bf16.msra.mxu0 0
    %2489 = vmatprep.subr.bf16.mxu0 0
    %2490 = vmatpush1.bf16.msra.mxu0 0
    %2491 = vmatprep.subr.bf16.mxu0 0
    %2492 = vmatpush1.bf16.msra.mxu0 0
    %2493 = vmatprep.subr.bf16.mxu0 0
    %2494 = vmatpush1.bf16.msra.mxu0 0
    %2495 = vmatprep.subr.bf16.mxu0 0
    %2496 = vmatpush1.bf16.msra.mxu0 0
    %2497 = vmatprep.mubr.bf16.mxu0 0
    %2498 = vmatmul.mubr.bf16.gmra.mrb[0].mxu0 %v2463
    %v2499 = vpop.f32.mrb[0].mxu0
    %v2500 = vadd.f32 0.0, %v2499
    %v2501 = vpop.f32.mrb[0].mxu0
    %v2502 = vpop.f32.mrb[0].mxu0
    %v2503 = vpop.f32.mrb[0].mxu0
    %2504 = vdwg.mxu0
    %v2505 = vadd.f32 %v2441, %v2500
    %v2506 = vld [vmem:[%s726] sm:$0xf]
    %v2507 = vld [vmem:[%s726 + $0x4] sm:$0xf]
    %v2508 = vld [vmem:[%s726 + $0x8] sm:$0xf]
    %v2509 = vld [vmem:[%s726 + $0xc] sm:$0xf]
    %v2514 = vunpack.c.l.b16 %v2506
    %v2515 = vunpack.c.l.b16 %v2507
    %v2516 = vunpack.c.l.b16 %v2508
    %v2517 = vunpack.c.l.b16 %v2509
    %v2518 = vpack.c.b16 %v2515, %v2514
    %v2519 = vpack.c.b16 %v2517, %v2516
    %2522 = vmatprep.subr.bf16.mxu0 0
    %2523 = vmatpush1.bf16.msra.mxu0 %v2518
    %2524 = vmatprep.subr.bf16.mxu0 0
    %2525 = vmatpush1.bf16.msra.mxu0 %v2519
    %2526 = vmatprep.subr.bf16.mxu0 0
    %2527 = vmatpush1.bf16.msra.mxu0 0
    %2528 = vmatprep.subr.bf16.mxu0 0
    %2529 = vmatpush1.bf16.msra.mxu0 0
    %2530 = vmatprep.subr.bf16.mxu0 0
    %2531 = vmatpush1.bf16.msra.mxu0 0
    %2532 = vmatprep.subr.bf16.mxu0 0
    %2533 = vmatpush1.bf16.msra.mxu0 0
    %2534 = vmatprep.subr.bf16.mxu0 0
    %2535 = vmatpush1.bf16.msra.mxu0 0
    %2536 = vmatprep.subr.bf16.mxu0 0
    %2537 = vmatpush1.bf16.msra.mxu0 0
    %2538 = vmatprep.subr.bf16.mxu0 0
    %2539 = vmatpush1.bf16.msra.mxu0 0
    %2540 = vmatprep.subr.bf16.mxu0 0
    %2541 = vmatpush1.bf16.msra.mxu0 0
    %2542 = vmatprep.subr.bf16.mxu0 0
    %2543 = vmatpush1.bf16.msra.mxu0 0
    %2544 = vmatprep.subr.bf16.mxu0 0
    %2545 = vmatpush1.bf16.msra.mxu0 0
    %2546 = vmatprep.subr.bf16.mxu0 0
    %2547 = vmatpush1.bf16.msra.mxu0 0
    %2548 = vmatprep.subr.bf16.mxu0 0
    %2549 = vmatpush1.bf16.msra.mxu0 0
    %2550 = vmatprep.subr.bf16.mxu0 0
    %2551 = vmatpush1.bf16.msra.mxu0 0
    %2552 = vmatprep.subr.bf16.mxu0 0
    %2553 = vmatpush1.bf16.msra.mxu0 0
    %2554 = vmatprep.mubr.bf16.mxu0 0
    %2555 = vmatmul.mubr.bf16.gmra.mrb[0].mxu0 %v2072
    %v2556 = vpop.f32.mrb[0].mxu0
    %v2557 = vadd.f32 0.0, %v2556
    %v2558 = vpop.f32.mrb[0].mxu0
    %v2559 = vpop.f32.mrb[0].mxu0
    %v2560 = vpop.f32.mrb[0].mxu0
    %2561 = vdwg.mxu0
    %v2562 = vadd.f32 %v2505, %v2557
    %v2563 = vxor.u32 %v2562, 2147483648
    %v2564 = vmul.f32 %v2563, 1.442695
    %v2565 = vpow.pop %v2564
    %v2566 = vadd.f32 %v2565, 1.0
    %v2567 = vrcp.pop %v2566
    %v2568 = vmul.f32 1.0, %v2567
    %v2569 = vtanh.pop %v2562
    %v2570 = vmul.f32 %v2568, %v1988
    %2572 = vrot.lane.b32.xlu0 %v2569, 64
    %v2573 = vpop.permute.xlu0 %2572
    %v2575 = vmul.f32 %v2568, %v2573
    %2577 = vrot.lane.b32.xlu0 %v2575, 32
    %v2578 = vpop.permute.xlu0 %2577
    %v2580 = vadd.f32 %v2570, %v2578
    %v2581 = vtanh.pop %v2580
    %2583 = vrot.lane.b32.xlu0 %v2581, 64
    %v2584 = vpop.permute.xlu0 %2583
    %v2586 = vmul.f32 %v2568, %v2584
    %v2587 = vpack.c.bf16 %v2586, %v2586
    %v2588 = vld [vmem:[%s809] sm:$0xf]
    %v2589 = vld [vmem:[%s809 + $0x4] sm:$0xf]
    %v2590 = vld [vmem:[%s809 + $0x8] sm:$0xf]
    %v2591 = vld [vmem:[%s809 + $0xc] sm:$0xf]
    %v2592 = vld [vmem:[%s814] sm:$0xf]
    %v2593 = vld [vmem:[%s814 + $0x4] sm:$0xf]
    %v2594 = vld [vmem:[%s814 + $0x8] sm:$0xf]
    %v2595 = vld [vmem:[%s814 + $0xc] sm:$0xf]
    %v2600 = vunpack.c.l.b16 %v2592
    %v2601 = vunpack.c.l.b16 %v2593
    %v2602 = vunpack.c.l.b16 %v2594
    %v2603 = vunpack.c.l.b16 %v2595
    %v2604 = vpack.c.b16 %v2601, %v2600
    %v2605 = vpack.c.b16 %v2603, %v2602
    %2608 = vmatprep.subr.bf16.mxu0 0
    %2609 = vmatpush1.bf16.msra.mxu0 %v2604
    %2610 = vmatprep.subr.bf16.mxu0 0
    %2611 = vmatpush1.bf16.msra.mxu0 %v2605
    %2612 = vmatprep.subr.bf16.mxu0 0
    %2613 = vmatpush1.bf16.msra.mxu0 0
    %2614 = vmatprep.subr.bf16.mxu0 0
    %2615 = vmatpush1.bf16.msra.mxu0 0
    %2616 = vmatprep.subr.bf16.mxu0 0
    %2617 = vmatpush1.bf16.msra.mxu0 0
    %2618 = vmatprep.subr.bf16.mxu0 0
    %2619 = vmatpush1.bf16.msra.mxu0 0
    %2620 = vmatprep.subr.bf16.mxu0 0
    %2621 = vmatpush1.bf16.msra.mxu0 0
    %2622 = vmatprep.subr.bf16.mxu0 0
    %2623 = vmatpush1.bf16.msra.mxu0 0
    %2624 = vmatprep.subr.bf16.mxu0 0
    %2625 = vmatpush1.bf16.msra.mxu0 0
    %2626 = vmatprep.subr.bf16.mxu0 0
    %2627 = vmatpush1.bf16.msra.mxu0 0
    %2628 = vmatprep.subr.bf16.mxu0 0
    %2629 = vmatpush1.bf16.msra.mxu0 0
    %2630 = vmatprep.subr.bf16.mxu0 0
    %2631 = vmatpush1.bf16.msra.mxu0 0
    %2632 = vmatprep.subr.bf16.mxu0 0
    %2633 = vmatpush1.bf16.msra.mxu0 0
    %2634 = vmatprep.subr.bf16.mxu0 0
    %2635 = vmatpush1.bf16.msra.mxu0 0
    %2636 = vmatprep.subr.bf16.mxu0 0
    %2637 = vmatpush1.bf16.msra.mxu0 0
    %2638 = vmatprep.subr.bf16.mxu0 0
    %2639 = vmatpush1.bf16.msra.mxu0 0
    %2640 = vmatprep.mubr.bf16.mxu0 0
    %2641 = vmatmul.mubr.bf16.gmra.mrb[0].mxu0 %v2167
    %v2642 = vpop.f32.mrb[0].mxu0
    %v2643 = vadd.f32 0.0, %v2642
    %v2644 = vpop.f32.mrb[0].mxu0
    %v2645 = vpop.f32.mrb[0].mxu0
    %v2646 = vpop.f32.mrb[0].mxu0
    %2647 = vdwg.mxu0
    %2649 = vrot.lane.b32.xlu0 %v2587, 32
    %v2650 = vpop.permute.xlu0 %2649
    %v2655 = vunpack.c.l.b16 %v2588
    %v2656 = vunpack.c.l.b16 %v2589
    %v2657 = vunpack.c.l.b16 %v2590
    %v2658 = vunpack.c.l.b16 %v2591
    %v2659 = vpack.c.b16 %v2656, %v2655
    %v2660 = vpack.c.b16 %v2658, %v2657
    %v2664 = vsel %vm381, %v2650, 0
    %2666 = vmatprep.subr.bf16.mxu0 0
    %2667 = vmatpush1.bf16.msra.mxu0 %v2659
    %2668 = vmatprep.subr.bf16.mxu0 0
    %2669 = vmatpush1.bf16.msra.mxu0 %v2660
    %2670 = vmatprep.subr.bf16.mxu0 0
    %2671 = vmatpush1.bf16.msra.mxu0 0
    %2672 = vmatprep.subr.bf16.mxu0 0
    %2673 = vmatpush1.bf16.msra.mxu0 0
    %2674 = vmatprep.subr.bf16.mxu0 0
    %2675 = vmatpush1.bf16.msra.mxu0 0
    %2676 = vmatprep.subr.bf16.mxu0 0
    %2677 = vmatpush1.bf16.msra.mxu0 0
    %2678 = vmatprep.subr.bf16.mxu0 0
    %2679 = vmatpush1.bf16.msra.mxu0 0
    %2680 = vmatprep.subr.bf16.mxu0 0
    %2681 = vmatpush1.bf16.msra.mxu0 0
    %2682 = vmatprep.subr.bf16.mxu0 0
    %2683 = vmatpush1.bf16.msra.mxu0 0
    %2684 = vmatprep.subr.bf16.mxu0 0
    %2685 = vmatpush1.bf16.msra.mxu0 0
    %2686 = vmatprep.subr.bf16.mxu0 0
    %2687 = vmatpush1.bf16.msra.mxu0 0
    %2688 = vmatprep.subr.bf16.mxu0 0
    %2689 = vmatpush1.bf16.msra.mxu0 0
    %2690 = vmatprep.subr.bf16.mxu0 0
    %2691 = vmatpush1.bf16.msra.mxu0 0
    %2692 = vmatprep.subr.bf16.mxu0 0
    %2693 = vmatpush1.bf16.msra.mxu0 0
    %2694 = vmatprep.subr.bf16.mxu0 0
    %2695 = vmatpush1.bf16.msra.mxu0 0
    %2696 = vmatprep.subr.bf16.mxu0 0
    %2697 = vmatpush1.bf16.msra.mxu0 0
    %2698 = vmatprep.mubr.bf16.mxu0 0
    %2699 = vmatmul.mubr.bf16.gmra.mrb[0].mxu0 %v2664
    %v2700 = vpop.f32.mrb[0].mxu0
    %v2701 = vadd.f32 %v2643, %v2700
    %v2702 = vpop.f32.mrb[0].mxu0
    %v2703 = vpop.f32.mrb[0].mxu0
    %v2704 = vpop.f32.mrb[0].mxu0
    %2705 = vdwg.mxu0
    %v2706 = vld [vmem:[%s929] sm:$0xff]
    %v2707 = vadd.f32 %v2701, %v2706
    %v2708 = vxor.u32 %v2707, 2147483648
    %v2709 = vmul.f32 %v2708, 1.442695
    %v2710 = vpow.pop %v2709
    %v2711 = vadd.f32 %v2710, 1.0
    %v2712 = vrcp.pop %v2711
    %v2713 = vmul.f32 1.0, %v2712
    %v2714 = vtanh.pop %v2707
    %v2715 = vmul.f32 %v2713, %v2133
    %2717 = vrot.lane.b32.xlu0 %v2714, 64
    %v2718 = vpop.permute.xlu0 %2717
    %v2720 = vmul.f32 %v2713, %v2718
    %2722 = vrot.lane.b32.xlu0 %v2720, 32
    %v2723 = vpop.permute.xlu0 %2722
    %v2725 = vadd.f32 %v2715, %v2723
    %v2726 = vtanh.pop %v2725
    %2728 = vrot.lane.b32.xlu0 %v2726, 64
    %v2729 = vpop.permute.xlu0 %2728
    %v2731 = vmul.f32 %v2713, %v2729
    %2733 = vrot.lane.b32.xlu0 %v2731, 32
    %v2734 = vpop.permute.xlu0 %2733
    %2736 = vst.msk [vmem:[#allocation5 + $0x18] sm:$0xff] %vm381, %v2734
    %v2737 = vld [vmem:[#allocation2 + $0x20] sm:$0xff]
    %v2738 = vpack.c.bf16 %v2731, %v2731
    %v2739 = vld [vmem:[%s6] sm:$0xf]
    %v2740 = vld [vmem:[%s6 + $0x4] sm:$0xf]
    %v2741 = vld [vmem:[%s6 + $0x8] sm:$0xf]
    %v2742 = vld [vmem:[%s6 + $0xc] sm:$0xf]
    %2744 = vrot.lane.b32.xlu0 %v2738, 32
    %v2745 = vpop.permute.xlu0 %2744
    %v2750 = vunpack.c.l.b16 %v2739
    %v2751 = vunpack.c.l.b16 %v2740
    %v2752 = vunpack.c.l.b16 %v2741
    %v2753 = vunpack.c.l.b16 %v2742
    %v2754 = vpack.c.b16 %v2751, %v2750
    %v2755 = vpack.c.b16 %v2753, %v2752
    %v2759 = vsel %vm381, %v2745, 0
    %2761 = vmatprep.subr.bf16.mxu0 0
    %2762 = vmatpush1.bf16.msra.mxu0 %v2754
    %2763 = vmatprep.subr.bf16.mxu0 0
    %2764 = vmatpush1.bf16.msra.mxu0 %v2755
    %2765 = vmatprep.subr.bf16.mxu0 0
    %2766 = vmatpush1.bf16.msra.mxu0 0
    %2767 = vmatprep.subr.bf16.mxu0 0
    %2768 = vmatpush1.bf16.msra.mxu0 0
    %2769 = vmatprep.subr.bf16.mxu0 0
    %2770 = vmatpush1.bf16.msra.mxu0 0
    %2771 = vmatprep.subr.bf16.mxu0 0
    %2772 = vmatpush1.bf16.msra.mxu0 0
    %2773 = vmatprep.subr.bf16.mxu0 0
    %2774 = vmatpush1.bf16.msra.mxu0 0
    %2775 = vmatprep.subr.bf16.mxu0 0
    %2776 = vmatpush1.bf16.msra.mxu0 0
    %2777 = vmatprep.subr.bf16.mxu0 0
    %2778 = vmatpush1.bf16.msra.mxu0 0
    %2779 = vmatprep.subr.bf16.mxu0 0
    %2780 = vmatpush1.bf16.msra.mxu0 0
    %2781 = vmatprep.subr.bf16.mxu0 0
    %2782 = vmatpush1.bf16.msra.mxu0 0
    %2783 = vmatprep.subr.bf16.mxu0 0
    %2784 = vmatpush1.bf16.msra.mxu0 0
    %2785 = vmatprep.subr.bf16.mxu0 0
    %2786 = vmatpush1.bf16.msra.mxu0 0
    %2787 = vmatprep.subr.bf16.mxu0 0
    %2788 = vmatpush1.bf16.msra.mxu0 0
    %2789 = vmatprep.subr.bf16.mxu0 0
    %2790 = vmatpush1.bf16.msra.mxu0 0
    %2791 = vmatprep.subr.bf16.mxu0 0
    %2792 = vmatpush1.bf16.msra.mxu0 0
    %2793 = vmatprep.mubr.bf16.mxu0 0
    %2794 = vmatmul.mubr.bf16.gmra.mrb[0].mxu0 %v2759
    %v2795 = vpop.f32.mrb[0].mxu0
    %v2796 = vadd.f32 0.0, %v2795
    %v2797 = vpop.f32.mrb[0].mxu0
    %v2798 = vpop.f32.mrb[0].mxu0
    %v2799 = vpop.f32.mrb[0].mxu0
    %2800 = vdwg.mxu0
    %v2801 = vadd.f32 %v2737, %v2796
    %v2802 = vld [vmem:[%s426] sm:$0xf]
    %v2803 = vld [vmem:[%s426 + $0x4] sm:$0xf]
    %v2804 = vld [vmem:[%s426 + $0x8] sm:$0xf]
    %v2805 = vld [vmem:[%s426 + $0xc] sm:$0xf]
    %v2810 = vunpack.c.l.b16 %v2802
    %v2811 = vunpack.c.l.b16 %v2803
    %v2812 = vunpack.c.l.b16 %v2804
    %v2813 = vunpack.c.l.b16 %v2805
    %v2814 = vpack.c.b16 %v2811, %v2810
    %v2815 = vpack.c.b16 %v2813, %v2812
    %2818 = vmatprep.subr.bf16.mxu0 0
    %2819 = vmatpush1.bf16.msra.mxu0 %v2814
    %2820 = vmatprep.subr.bf16.mxu0 0
    %2821 = vmatpush1.bf16.msra.mxu0 %v2815
    %2822 = vmatprep.subr.bf16.mxu0 0
    %2823 = vmatpush1.bf16.msra.mxu0 0
    %2824 = vmatprep.subr.bf16.mxu0 0
    %2825 = vmatpush1.bf16.msra.mxu0 0
    %2826 = vmatprep.subr.bf16.mxu0 0
    %2827 = vmatpush1.bf16.msra.mxu0 0
    %2828 = vmatprep.subr.bf16.mxu0 0
    %2829 = vmatpush1.bf16.msra.mxu0 0
    %2830 = vmatprep.subr.bf16.mxu0 0
    %2831 = vmatpush1.bf16.msra.mxu0 0
    %2832 = vmatprep.subr.bf16.mxu0 0
    %2833 = vmatpush1.bf16.msra.mxu0 0
    %2834 = vmatprep.subr.bf16.mxu0 0
    %2835 = vmatpush1.bf16.msra.mxu0 0
    %2836 = vmatprep.subr.bf16.mxu0 0
    %2837 = vmatpush1.bf16.msra.mxu0 0
    %2838 = vmatprep.subr.bf16.mxu0 0
    %2839 = vmatpush1.bf16.msra.mxu0 0
    %2840 = vmatprep.subr.bf16.mxu0 0
    %2841 = vmatpush1.bf16.msra.mxu0 0
    %2842 = vmatprep.subr.bf16.mxu0 0
    %2843 = vmatpush1.bf16.msra.mxu0 0
    %2844 = vmatprep.subr.bf16.mxu0 0
    %2845 = vmatpush1.bf16.msra.mxu0 0
    %2846 = vmatprep.subr.bf16.mxu0 0
    %2847 = vmatpush1.bf16.msra.mxu0 0
    %2848 = vmatprep.subr.bf16.mxu0 0
    %2849 = vmatpush1.bf16.msra.mxu0 0
    %2850 = vmatprep.mubr.bf16.mxu0 0
    %2851 = vmatmul.mubr.bf16.gmra.mrb[0].mxu0 %v2368
    %v2852 = vpop.f32.mrb[0].mxu0
    %v2853 = vadd.f32 0.0, %v2852
    %v2854 = vpop.f32.mrb[0].mxu0
    %v2855 = vpop.f32.mrb[0].mxu0
    %v2856 = vpop.f32.mrb[0].mxu0
    %2857 = vdwg.mxu0
    %v2858 = vadd.f32 %v2801, %v2853
    %v2859 = vxor.u32 %v2858, 2147483648
    %v2860 = vmul.f32 %v2859, 1.442695
    %v2861 = vpow.pop %v2860
    %v2862 = vadd.f32 %v2861, 1.0
    %v2863 = vrcp.pop %v2862
    %v2864 = vmul.f32 1.0, %v2863
    %v2865 = vtanh.pop %v2858
    %v2866 = vmul.f32 %v2864, %v2284
    %2868 = vrot.lane.b32.xlu0 %v2865, 64
    %v2869 = vpop.permute.xlu0 %2868
    %v2871 = vmul.f32 %v2864, %v2869
    %2873 = vrot.lane.b32.xlu0 %v2871, 32
    %v2874 = vpop.permute.xlu0 %2873
    %v2876 = vadd.f32 %v2866, %v2874
    %v2877 = vtanh.pop %v2876
    %2879 = vrot.lane.b32.xlu0 %v2877, 64
    %v2880 = vpop.permute.xlu0 %2879
    %v2882 = vmul.f32 %v2864, %v2880
    %v2883 = vpack.c.bf16 %v2882, %v2882
    %v2884 = vld [vmem:[%s509] sm:$0xf]
    %v2885 = vld [vmem:[%s509 + $0x4] sm:$0xf]
    %v2886 = vld [vmem:[%s509 + $0x8] sm:$0xf]
    %v2887 = vld [vmem:[%s509 + $0xc] sm:$0xf]
    %v2888 = vld [vmem:[%s514] sm:$0xf]
    %v2889 = vld [vmem:[%s514 + $0x4] sm:$0xf]
    %v2890 = vld [vmem:[%s514 + $0x8] sm:$0xf]
    %v2891 = vld [vmem:[%s514 + $0xc] sm:$0xf]
    %v2896 = vunpack.c.l.b16 %v2888
    %v2897 = vunpack.c.l.b16 %v2889
    %v2898 = vunpack.c.l.b16 %v2890
    %v2899 = vunpack.c.l.b16 %v2891
    %v2900 = vpack.c.b16 %v2897, %v2896
    %v2901 = vpack.c.b16 %v2899, %v2898
    %2904 = vmatprep.subr.bf16.mxu0 0
    %2905 = vmatpush1.bf16.msra.mxu0 %v2900
    %2906 = vmatprep.subr.bf16.mxu0 0
    %2907 = vmatpush1.bf16.msra.mxu0 %v2901
    %2908 = vmatprep.subr.bf16.mxu0 0
    %2909 = vmatpush1.bf16.msra.mxu0 0
    %2910 = vmatprep.subr.bf16.mxu0 0
    %2911 = vmatpush1.bf16.msra.mxu0 0
    %2912 = vmatprep.subr.bf16.mxu0 0
    %2913 = vmatpush1.bf16.msra.mxu0 0
    %2914 = vmatprep.subr.bf16.mxu0 0
    %2915 = vmatpush1.bf16.msra.mxu0 0
    %2916 = vmatprep.subr.bf16.mxu0 0
    %2917 = vmatpush1.bf16.msra.mxu0 0
    %2918 = vmatprep.subr.bf16.mxu0 0
    %2919 = vmatpush1.bf16.msra.mxu0 0
    %2920 = vmatprep.subr.bf16.mxu0 0
    %2921 = vmatpush1.bf16.msra.mxu0 0
    %2922 = vmatprep.subr.bf16.mxu0 0
    %2923 = vmatpush1.bf16.msra.mxu0 0
    %2924 = vmatprep.subr.bf16.mxu0 0
    %2925 = vmatpush1.bf16.msra.mxu0 0
    %2926 = vmatprep.subr.bf16.mxu0 0
    %2927 = vmatpush1.bf16.msra.mxu0 0
    %2928 = vmatprep.subr.bf16.mxu0 0
    %2929 = vmatpush1.bf16.msra.mxu0 0
    %2930 = vmatprep.subr.bf16.mxu0 0
    %2931 = vmatpush1.bf16.msra.mxu0 0
    %2932 = vmatprep.subr.bf16.mxu0 0
    %2933 = vmatpush1.bf16.msra.mxu0 0
    %2934 = vmatprep.subr.bf16.mxu0 0
    %2935 = vmatpush1.bf16.msra.mxu0 0
    %2936 = vmatprep.mubr.bf16.mxu0 0
    %2937 = vmatmul.mubr.bf16.gmra.mrb[0].mxu0 %v2463
    %v2938 = vpop.f32.mrb[0].mxu0
    %v2939 = vadd.f32 0.0, %v2938
    %v2940 = vpop.f32.mrb[0].mxu0
    %v2941 = vpop.f32.mrb[0].mxu0
    %v2942 = vpop.f32.mrb[0].mxu0
    %2943 = vdwg.mxu0
    %2945 = vrot.lane.b32.xlu0 %v2883, 32
    %v2946 = vpop.permute.xlu0 %2945
    %v2951 = vunpack.c.l.b16 %v2884
    %v2952 = vunpack.c.l.b16 %v2885
    %v2953 = vunpack.c.l.b16 %v2886
    %v2954 = vunpack.c.l.b16 %v2887
    %v2955 = vpack.c.b16 %v2952, %v2951
    %v2956 = vpack.c.b16 %v2954, %v2953
    %v2960 = vsel %vm381, %v2946, 0
    %2962 = vmatprep.subr.bf16.mxu0 0
    %2963 = vmatpush1.bf16.msra.mxu0 %v2955
    %2964 = vmatprep.subr.bf16.mxu0 0
    %2965 = vmatpush1.bf16.msra.mxu0 %v2956
    %2966 = vmatprep.subr.bf16.mxu0 0
    %2967 = vmatpush1.bf16.msra.mxu0 0
    %2968 = vmatprep.subr.bf16.mxu0 0
    %2969 = vmatpush1.bf16.msra.mxu0 0
    %2970 = vmatprep.subr.bf16.mxu0 0
    %2971 = vmatpush1.bf16.msra.mxu0 0
    %2972 = vmatprep.subr.bf16.mxu0 0
    %2973 = vmatpush1.bf16.msra.mxu0 0
    %2974 = vmatprep.subr.bf16.mxu0 0
    %2975 = vmatpush1.bf16.msra.mxu0 0
    %2976 = vmatprep.subr.bf16.mxu0 0
    %2977 = vmatpush1.bf16.msra.mxu0 0
    %2978 = vmatprep.subr.bf16.mxu0 0
    %2979 = vmatpush1.bf16.msra.mxu0 0
    %2980 = vmatprep.subr.bf16.mxu0 0
    %2981 = vmatpush1.bf16.msra.mxu0 0
    %2982 = vmatprep.subr.bf16.mxu0 0
    %2983 = vmatpush1.bf16.msra.mxu0 0
    %2984 = vmatprep.subr.bf16.mxu0 0
    %2985 = vmatpush1.bf16.msra.mxu0 0
    %2986 = vmatprep.subr.bf16.mxu0 0
    %2987 = vmatpush1.bf16.msra.mxu0 0
    %2988 = vmatprep.subr.bf16.mxu0 0
    %2989 = vmatpush1.bf16.msra.mxu0 0
    %2990 = vmatprep.subr.bf16.mxu0 0
    %2991 = vmatpush1.bf16.msra.mxu0 0
    %2992 = vmatprep.subr.bf16.mxu0 0
    %2993 = vmatpush1.bf16.msra.mxu0 0
    %2994 = vmatprep.mubr.bf16.mxu0 0
    %2995 = vmatmul.mubr.bf16.gmra.mrb[0].mxu0 %v2960
    %v2996 = vpop.f32.mrb[0].mxu0
    %v2997 = vadd.f32 %v2939, %v2996
    %v2998 = vpop.f32.mrb[0].mxu0
    %v2999 = vpop.f32.mrb[0].mxu0
    %v3000 = vpop.f32.mrb[0].mxu0
    %3001 = vdwg.mxu0
    %v3002 = vld [vmem:[#allocation12] sm:$0xff]
    %v3003 = vadd.f32 %v2997, %v3002
    %v3004 = vxor.u32 %v3003, 2147483648
    %v3005 = vmul.f32 %v3004, 1.442695
    %v3006 = vpow.pop %v3005
    %v3007 = vadd.f32 %v3006, 1.0
    %v3008 = vrcp.pop %v3007
    %v3009 = vmul.f32 1.0, %v3008
    %v3010 = vtanh.pop %v3003
    %v3011 = vmul.f32 %v3009, %v2429
    %3013 = vrot.lane.b32.xlu0 %v3010, 64
    %v3014 = vpop.permute.xlu0 %3013
    %v3016 = vmul.f32 %v3009, %v3014
    %3018 = vrot.lane.b32.xlu0 %v3016, 32
    %v3019 = vpop.permute.xlu0 %3018
    %v3021 = vadd.f32 %v3011, %v3019
    %v3022 = vtanh.pop %v3021
    %3024 = vrot.lane.b32.xlu0 %v3022, 64
    %v3025 = vpop.permute.xlu0 %3024
    %v3027 = vmul.f32 %v3009, %v3025
    %3029 = vrot.lane.b32.xlu0 %v3027, 32
    %v3030 = vpop.permute.xlu0 %3029
    %3032 = vst.msk [vmem:[#allocation4 + $0x20] sm:$0xff] %vm381, %v3030
    %v3033 = vld [vmem:[#allocation3 + $0x20] sm:$0xff]
    %v3034 = vpack.c.bf16 %v3027, %v3027
    %v3035 = vld [vmem:[%s662] sm:$0xf]
    %v3036 = vld [vmem:[%s662 + $0x4] sm:$0xf]
    %v3037 = vld [vmem:[%s662 + $0x8] sm:$0xf]
    %v3038 = vld [vmem:[%s662 + $0xc] sm:$0xf]
    %3040 = vrot.lane.b32.xlu0 %v3034, 32
    %v3041 = vpop.permute.xlu0 %3040
    %v3046 = vunpack.c.l.b16 %v3035
    %v3047 = vunpack.c.l.b16 %v3036
    %v3048 = vunpack.c.l.b16 %v3037
    %v3049 = vunpack.c.l.b16 %v3038
    %v3050 = vpack.c.b16 %v3047, %v3046
    %v3051 = vpack.c.b16 %v3049, %v3048
    %v3055 = vsel %vm381, %v3041, 0
    %3057 = vmatprep.subr.bf16.mxu0 0
    %3058 = vmatpush1.bf16.msra.mxu0 %v3050
    %3059 = vmatprep.subr.bf16.mxu0 0
    %3060 = vmatpush1.bf16.msra.mxu0 %v3051
    %3061 = vmatprep.subr.bf16.mxu0 0
    %3062 = vmatpush1.bf16.msra.mxu0 0
    %3063 = vmatprep.subr.bf16.mxu0 0
    %3064 = vmatpush1.bf16.msra.mxu0 0
    %3065 = vmatprep.subr.bf16.mxu0 0
    %3066 = vmatpush1.bf16.msra.mxu0 0
    %3067 = vmatprep.subr.bf16.mxu0 0
    %3068 = vmatpush1.bf16.msra.mxu0 0
    %3069 = vmatprep.subr.bf16.mxu0 0
    %3070 = vmatpush1.bf16.msra.mxu0 0
    %3071 = vmatprep.subr.bf16.mxu0 0
    %3072 = vmatpush1.bf16.msra.mxu0 0
    %3073 = vmatprep.subr.bf16.mxu0 0
    %3074 = vmatpush1.bf16.msra.mxu0 0
    %3075 = vmatprep.subr.bf16.mxu0 0
    %3076 = vmatpush1.bf16.msra.mxu0 0
    %3077 = vmatprep.subr.bf16.mxu0 0
    %3078 = vmatpush1.bf16.msra.mxu0 0
    %3079 = vmatprep.subr.bf16.mxu0 0
    %3080 = vmatpush1.bf16.msra.mxu0 0
    %3081 = vmatprep.subr.bf16.mxu0 0
    %3082 = vmatpush1.bf16.msra.mxu0 0
    %3083 = vmatprep.subr.bf16.mxu0 0
    %3084 = vmatpush1.bf16.msra.mxu0 0
    %3085 = vmatprep.subr.bf16.mxu0 0
    %3086 = vmatpush1.bf16.msra.mxu0 0
    %3087 = vmatprep.subr.bf16.mxu0 0
    %3088 = vmatpush1.bf16.msra.mxu0 0
    %3089 = vmatprep.mubr.bf16.mxu0 0
    %3090 = vmatmul.mubr.bf16.gmra.mrb[0].mxu0 %v3055
    %v3091 = vpop.f32.mrb[0].mxu0
    %v3092 = vadd.f32 0.0, %v3091
    %v3093 = vpop.f32.mrb[0].mxu0
    %v3094 = vpop.f32.mrb[0].mxu0
    %v3095 = vpop.f32.mrb[0].mxu0
    %3096 = vdwg.mxu0
    %v3097 = vadd.f32 %v3033, %v3092
    %v3098 = vld [vmem:[%s726] sm:$0xf]
    %v3099 = vld [vmem:[%s726 + $0x4] sm:$0xf]
    %v3100 = vld [vmem:[%s726 + $0x8] sm:$0xf]
    %v3101 = vld [vmem:[%s726 + $0xc] sm:$0xf]
    %v3106 = vunpack.c.l.b16 %v3098
    %v3107 = vunpack.c.l.b16 %v3099
    %v3108 = vunpack.c.l.b16 %v3100
    %v3109 = vunpack.c.l.b16 %v3101
    %v3110 = vpack.c.b16 %v3107, %v3106
    %v3111 = vpack.c.b16 %v3109, %v3108
    %3114 = vmatprep.subr.bf16.mxu0 0
    %3115 = vmatpush1.bf16.msra.mxu0 %v3110
    %3116 = vmatprep.subr.bf16.mxu0 0
    %3117 = vmatpush1.bf16.msra.mxu0 %v3111
    %3118 = vmatprep.subr.bf16.mxu0 0
    %3119 = vmatpush1.bf16.msra.mxu0 0
    %3120 = vmatprep.subr.bf16.mxu0 0
    %3121 = vmatpush1.bf16.msra.mxu0 0
    %3122 = vmatprep.subr.bf16.mxu0 0
    %3123 = vmatpush1.bf16.msra.mxu0 0
    %3124 = vmatprep.subr.bf16.mxu0 0
    %3125 = vmatpush1.bf16.msra.mxu0 0
    %3126 = vmatprep.subr.bf16.mxu0 0
    %3127 = vmatpush1.bf16.msra.mxu0 0
    %3128 = vmatprep.subr.bf16.mxu0 0
    %3129 = vmatpush1.bf16.msra.mxu0 0
    %3130 = vmatprep.subr.bf16.mxu0 0
    %3131 = vmatpush1.bf16.msra.mxu0 0
    %3132 = vmatprep.subr.bf16.mxu0 0
    %3133 = vmatpush1.bf16.msra.mxu0 0
    %3134 = vmatprep.subr.bf16.mxu0 0
    %3135 = vmatpush1.bf16.msra.mxu0 0
    %3136 = vmatprep.subr.bf16.mxu0 0
    %3137 = vmatpush1.bf16.msra.mxu0 0
    %3138 = vmatprep.subr.bf16.mxu0 0
    %3139 = vmatpush1.bf16.msra.mxu0 0
    %3140 = vmatprep.subr.bf16.mxu0 0
    %3141 = vmatpush1.bf16.msra.mxu0 0
    %3142 = vmatprep.subr.bf16.mxu0 0
    %3143 = vmatpush1.bf16.msra.mxu0 0
    %3144 = vmatprep.subr.bf16.mxu0 0
    %3145 = vmatpush1.bf16.msra.mxu0 0
    %3146 = vmatprep.mubr.bf16.mxu0 0
    %3147 = vmatmul.mubr.bf16.gmra.mrb[0].mxu0 %v2664
    %v3148 = vpop.f32.mrb[0].mxu0
    %v3149 = vadd.f32 0.0, %v3148
    %v3150 = vpop.f32.mrb[0].mxu0
    %v3151 = vpop.f32.mrb[0].mxu0
    %v3152 = vpop.f32.mrb[0].mxu0
    %3153 = vdwg.mxu0
    %v3154 = vadd.f32 %v3097, %v3149
    %v3155 = vxor.u32 %v3154, 2147483648
    %v3156 = vmul.f32 %v3155, 1.442695
    %v3157 = vpow.pop %v3156
    %v3158 = vadd.f32 %v3157, 1.0
    %v3159 = vrcp.pop %v3158
    %v3160 = vmul.f32 1.0, %v3159
    %v3161 = vtanh.pop %v3154
    %v3162 = vmul.f32 %v3160, %v2580
    %3164 = vrot.lane.b32.xlu0 %v3161, 64
    %v3165 = vpop.permute.xlu0 %3164
    %v3167 = vmul.f32 %v3160, %v3165
    %3169 = vrot.lane.b32.xlu0 %v3167, 32
    %v3170 = vpop.permute.xlu0 %3169
    %v3172 = vadd.f32 %v3162, %v3170
    %v3173 = vtanh.pop %v3172
    %3175 = vrot.lane.b32.xlu0 %v3173, 64
    %v3176 = vpop.permute.xlu0 %3175
    %v3178 = vmul.f32 %v3160, %v3176
    %v3179 = vpack.c.bf16 %v3178, %v3178
    %v3180 = vld [vmem:[%s809] sm:$0xf]
    %v3181 = vld [vmem:[%s809 + $0x4] sm:$0xf]
    %v3182 = vld [vmem:[%s809 + $0x8] sm:$0xf]
    %v3183 = vld [vmem:[%s809 + $0xc] sm:$0xf]
    %v3184 = vld [vmem:[%s814] sm:$0xf]
    %v3185 = vld [vmem:[%s814 + $0x4] sm:$0xf]
    %v3186 = vld [vmem:[%s814 + $0x8] sm:$0xf]
    %v3187 = vld [vmem:[%s814 + $0xc] sm:$0xf]
    %v3192 = vunpack.c.l.b16 %v3184
    %v3193 = vunpack.c.l.b16 %v3185
    %v3194 = vunpack.c.l.b16 %v3186
    %v3195 = vunpack.c.l.b16 %v3187
    %v3196 = vpack.c.b16 %v3193, %v3192
    %v3197 = vpack.c.b16 %v3195, %v3194
    %3200 = vmatprep.subr.bf16.mxu0 0
    %3201 = vmatpush1.bf16.msra.mxu0 %v3196
    %3202 = vmatprep.subr.bf16.mxu0 0
    %3203 = vmatpush1.bf16.msra.mxu0 %v3197
    %3204 = vmatprep.subr.bf16.mxu0 0
    %3205 = vmatpush1.bf16.msra.mxu0 0
    %3206 = vmatprep.subr.bf16.mxu0 0
    %3207 = vmatpush1.bf16.msra.mxu0 0
    %3208 = vmatprep.subr.bf16.mxu0 0
    %3209 = vmatpush1.bf16.msra.mxu0 0
    %3210 = vmatprep.subr.bf16.mxu0 0
    %3211 = vmatpush1.bf16.msra.mxu0 0
    %3212 = vmatprep.subr.bf16.mxu0 0
    %3213 = vmatpush1.bf16.msra.mxu0 0
    %3214 = vmatprep.subr.bf16.mxu0 0
    %3215 = vmatpush1.bf16.msra.mxu0 0
    %3216 = vmatprep.subr.bf16.mxu0 0
    %3217 = vmatpush1.bf16.msra.mxu0 0
    %3218 = vmatprep.subr.bf16.mxu0 0
    %3219 = vmatpush1.bf16.msra.mxu0 0
    %3220 = vmatprep.subr.bf16.mxu0 0
    %3221 = vmatpush1.bf16.msra.mxu0 0
    %3222 = vmatprep.subr.bf16.mxu0 0
    %3223 = vmatpush1.bf16.msra.mxu0 0
    %3224 = vmatprep.subr.bf16.mxu0 0
    %3225 = vmatpush1.bf16.msra.mxu0 0
    %3226 = vmatprep.subr.bf16.mxu0 0
    %3227 = vmatpush1.bf16.msra.mxu0 0
    %3228 = vmatprep.subr.bf16.mxu0 0
    %3229 = vmatpush1.bf16.msra.mxu0 0
    %3230 = vmatprep.subr.bf16.mxu0 0
    %3231 = vmatpush1.bf16.msra.mxu0 0
    %3232 = vmatprep.mubr.bf16.mxu0 0
    %3233 = vmatmul.mubr.bf16.gmra.mrb[0].mxu0 %v2759
    %v3234 = vpop.f32.mrb[0].mxu0
    %v3235 = vadd.f32 0.0, %v3234
    %v3236 = vpop.f32.mrb[0].mxu0
    %v3237 = vpop.f32.mrb[0].mxu0
    %v3238 = vpop.f32.mrb[0].mxu0
    %3239 = vdwg.mxu0
    %3241 = vrot.lane.b32.xlu0 %v3179, 32
    %v3242 = vpop.permute.xlu0 %3241
    %v3247 = vunpack.c.l.b16 %v3180
    %v3248 = vunpack.c.l.b16 %v3181
    %v3249 = vunpack.c.l.b16 %v3182
    %v3250 = vunpack.c.l.b16 %v3183
    %v3251 = vpack.c.b16 %v3248, %v3247
    %v3252 = vpack.c.b16 %v3250, %v3249
    %v3256 = vsel %vm381, %v3242, 0
    %3258 = vmatprep.subr.bf16.mxu0 0
    %3259 = vmatpush1.bf16.msra.mxu0 %v3251
    %3260 = vmatprep.subr.bf16.mxu0 0
    %3261 = vmatpush1.bf16.msra.mxu0 %v3252
    %3262 = vmatprep.subr.bf16.mxu0 0
    %3263 = vmatpush1.bf16.msra.mxu0 0
    %3264 = vmatprep.subr.bf16.mxu0 0
    %3265 = vmatpush1.bf16.msra.mxu0 0
    %3266 = vmatprep.subr.bf16.mxu0 0
    %3267 = vmatpush1.bf16.msra.mxu0 0
    %3268 = vmatprep.subr.bf16.mxu0 0
    %3269 = vmatpush1.bf16.msra.mxu0 0
    %3270 = vmatprep.subr.bf16.mxu0 0
    %3271 = vmatpush1.bf16.msra.mxu0 0
    %3272 = vmatprep.subr.bf16.mxu0 0
    %3273 = vmatpush1.bf16.msra.mxu0 0
    %3274 = vmatprep.subr.bf16.mxu0 0
    %3275 = vmatpush1.bf16.msra.mxu0 0
    %3276 = vmatprep.subr.bf16.mxu0 0
    %3277 = vmatpush1.bf16.msra.mxu0 0
    %3278 = vmatprep.subr.bf16.mxu0 0
    %3279 = vmatpush1.bf16.msra.mxu0 0
    %3280 = vmatprep.subr.bf16.mxu0 0
    %3281 = vmatpush1.bf16.msra.mxu0 0
    %3282 = vmatprep.subr.bf16.mxu0 0
    %3283 = vmatpush1.bf16.msra.mxu0 0
    %3284 = vmatprep.subr.bf16.mxu0 0
    %3285 = vmatpush1.bf16.msra.mxu0 0
    %3286 = vmatprep.subr.bf16.mxu0 0
    %3287 = vmatpush1.bf16.msra.mxu0 0
    %3288 = vmatprep.subr.bf16.mxu0 0
    %3289 = vmatpush1.bf16.msra.mxu0 0
    %3290 = vmatprep.mubr.bf16.mxu0 0
    %3291 = vmatmul.mubr.bf16.gmra.mrb[0].mxu0 %v3256
    %v3292 = vpop.f32.mrb[0].mxu0
    %v3293 = vadd.f32 %v3235, %v3292
    %v3294 = vpop.f32.mrb[0].mxu0
    %v3295 = vpop.f32.mrb[0].mxu0
    %v3296 = vpop.f32.mrb[0].mxu0
    %3297 = vdwg.mxu0
    %v3298 = vld [vmem:[%s929] sm:$0xff]
    %v3299 = vadd.f32 %v3293, %v3298
    %v3300 = vxor.u32 %v3299, 2147483648
    %v3301 = vmul.f32 %v3300, 1.442695
    %v3302 = vpow.pop %v3301
    %v3303 = vadd.f32 %v3302, 1.0
    %v3304 = vrcp.pop %v3303
    %v3305 = vmul.f32 1.0, %v3304
    %v3306 = vtanh.pop %v3299
    %v3307 = vmul.f32 %v3305, %v2725
    %3309 = vrot.lane.b32.xlu0 %v3306, 64
    %v3310 = vpop.permute.xlu0 %3309
    %v3312 = vmul.f32 %v3305, %v3310
    %3314 = vrot.lane.b32.xlu0 %v3312, 32
    %v3315 = vpop.permute.xlu0 %3314
    %v3317 = vadd.f32 %v3307, %v3315
    %v3318 = vtanh.pop %v3317
    %3320 = vrot.lane.b32.xlu0 %v3318, 64
    %v3321 = vpop.permute.xlu0 %3320
    %v3323 = vmul.f32 %v3305, %v3321
    %3325 = vrot.lane.b32.xlu0 %v3323, 32
    %v3326 = vpop.permute.xlu0 %3325
    %3328 = vst.msk [vmem:[#allocation5 + $0x20] sm:$0xff] %vm381, %v3326
    %v3329 = vld [vmem:[#allocation2 + $0x28] sm:$0xff]
    %v3330 = vpack.c.bf16 %v3323, %v3323
    %v3331 = vld [vmem:[%s6] sm:$0xf]
    %v3332 = vld [vmem:[%s6 + $0x4] sm:$0xf]
    %v3333 = vld [vmem:[%s6 + $0x8] sm:$0xf]
    %v3334 = vld [vmem:[%s6 + $0xc] sm:$0xf]
    %3336 = vrot.lane.b32.xlu0 %v3330, 32
    %v3337 = vpop.permute.xlu0 %3336
    %v3342 = vunpack.c.l.b16 %v3331
    %v3343 = vunpack.c.l.b16 %v3332
    %v3344 = vunpack.c.l.b16 %v3333
    %v3345 = vunpack.c.l.b16 %v3334
    %v3346 = vpack.c.b16 %v3343, %v3342
    %v3347 = vpack.c.b16 %v3345, %v3344
    %v3351 = vsel %vm381, %v3337, 0
    %3353 = vmatprep.subr.bf16.mxu0 0
    %3354 = vmatpush1.bf16.msra.mxu0 %v3346
    %3355 = vmatprep.subr.bf16.mxu0 0
    %3356 = vmatpush1.bf16.msra.mxu0 %v3347
    %3357 = vmatprep.subr.bf16.mxu0 0
    %3358 = vmatpush1.bf16.msra.mxu0 0
    %3359 = vmatprep.subr.bf16.mxu0 0
    %3360 = vmatpush1.bf16.msra.mxu0 0
    %3361 = vmatprep.subr.bf16.mxu0 0
    %3362 = vmatpush1.bf16.msra.mxu0 0
    %3363 = vmatprep.subr.bf16.mxu0 0
    %3364 = vmatpush1.bf16.msra.mxu0 0
    %3365 = vmatprep.subr.bf16.mxu0 0
    %3366 = vmatpush1.bf16.msra.mxu0 0
    %3367 = vmatprep.subr.bf16.mxu0 0
    %3368 = vmatpush1.bf16.msra.mxu0 0
    %3369 = vmatprep.subr.bf16.mxu0 0
    %3370 = vmatpush1.bf16.msra.mxu0 0
    %3371 = vmatprep.subr.bf16.mxu0 0
    %3372 = vmatpush1.bf16.msra.mxu0 0
    %3373 = vmatprep.subr.bf16.mxu0 0
    %3374 = vmatpush1.bf16.msra.mxu0 0
    %3375 = vmatprep.subr.bf16.mxu0 0
    %3376 = vmatpush1.bf16.msra.mxu0 0
    %3377 = vmatprep.subr.bf16.mxu0 0
    %3378 = vmatpush1.bf16.msra.mxu0 0
    %3379 = vmatprep.subr.bf16.mxu0 0
    %3380 = vmatpush1.bf16.msra.mxu0 0
    %3381 = vmatprep.subr.bf16.mxu0 0
    %3382 = vmatpush1.bf16.msra.mxu0 0
    %3383 = vmatprep.subr.bf16.mxu0 0
    %3384 = vmatpush1.bf16.msra.mxu0 0
    %3385 = vmatprep.mubr.bf16.mxu0 0
    %3386 = vmatmul.mubr.bf16.gmra.mrb[0].mxu0 %v3351
    %v3387 = vpop.f32.mrb[0].mxu0
    %v3388 = vadd.f32 0.0, %v3387
    %v3389 = vpop.f32.mrb[0].mxu0
    %v3390 = vpop.f32.mrb[0].mxu0
    %v3391 = vpop.f32.mrb[0].mxu0
    %3392 = vdwg.mxu0
    %v3393 = vadd.f32 %v3329, %v3388
    %v3394 = vld [vmem:[%s426] sm:$0xf]
    %v3395 = vld [vmem:[%s426 + $0x4] sm:$0xf]
    %v3396 = vld [vmem:[%s426 + $0x8] sm:$0xf]
    %v3397 = vld [vmem:[%s426 + $0xc] sm:$0xf]
    %v3402 = vunpack.c.l.b16 %v3394
    %v3403 = vunpack.c.l.b16 %v3395
    %v3404 = vunpack.c.l.b16 %v3396
    %v3405 = vunpack.c.l.b16 %v3397
    %v3406 = vpack.c.b16 %v3403, %v3402
    %v3407 = vpack.c.b16 %v3405, %v3404
    %3410 = vmatprep.subr.bf16.mxu0 0
    %3411 = vmatpush1.bf16.msra.mxu0 %v3406
    %3412 = vmatprep.subr.bf16.mxu0 0
    %3413 = vmatpush1.bf16.msra.mxu0 %v3407
    %3414 = vmatprep.subr.bf16.mxu0 0
    %3415 = vmatpush1.bf16.msra.mxu0 0
    %3416 = vmatprep.subr.bf16.mxu0 0
    %3417 = vmatpush1.bf16.msra.mxu0 0
    %3418 = vmatprep.subr.bf16.mxu0 0
    %3419 = vmatpush1.bf16.msra.mxu0 0
    %3420 = vmatprep.subr.bf16.mxu0 0
    %3421 = vmatpush1.bf16.msra.mxu0 0
    %3422 = vmatprep.subr.bf16.mxu0 0
    %3423 = vmatpush1.bf16.msra.mxu0 0
    %3424 = vmatprep.subr.bf16.mxu0 0
    %3425 = vmatpush1.bf16.msra.mxu0 0
    %3426 = vmatprep.subr.bf16.mxu0 0
    %3427 = vmatpush1.bf16.msra.mxu0 0
    %3428 = vmatprep.subr.bf16.mxu0 0
    %3429 = vmatpush1.bf16.msra.mxu0 0
    %3430 = vmatprep.subr.bf16.mxu0 0
    %3431 = vmatpush1.bf16.msra.mxu0 0
    %3432 = vmatprep.subr.bf16.mxu0 0
    %3433 = vmatpush1.bf16.msra.mxu0 0
    %3434 = vmatprep.subr.bf16.mxu0 0
    %3435 = vmatpush1.bf16.msra.mxu0 0
    %3436 = vmatprep.subr.bf16.mxu0 0
    %3437 = vmatpush1.bf16.msra.mxu0 0
    %3438 = vmatprep.subr.bf16.mxu0 0
    %3439 = vmatpush1.bf16.msra.mxu0 0
    %3440 = vmatprep.subr.bf16.mxu0 0
    %3441 = vmatpush1.bf16.msra.mxu0 0
    %3442 = vmatprep.mubr.bf16.mxu0 0
    %3443 = vmatmul.mubr.bf16.gmra.mrb[0].mxu0 %v2960
    %v3444 = vpop.f32.mrb[0].mxu0
    %v3445 = vadd.f32 0.0, %v3444
    %v3446 = vpop.f32.mrb[0].mxu0
    %v3447 = vpop.f32.mrb[0].mxu0
    %v3448 = vpop.f32.mrb[0].mxu0
    %3449 = vdwg.mxu0
    %v3450 = vadd.f32 %v3393, %v3445
    %v3451 = vxor.u32 %v3450, 2147483648
    %v3452 = vmul.f32 %v3451, 1.442695
    %v3453 = vpow.pop %v3452
    %v3454 = vadd.f32 %v3453, 1.0
    %v3455 = vrcp.pop %v3454
    %v3456 = vmul.f32 1.0, %v3455
    %v3457 = vtanh.pop %v3450
    %v3458 = vmul.f32 %v3456, %v2876
    %3460 = vrot.lane.b32.xlu0 %v3457, 64
    %v3461 = vpop.permute.xlu0 %3460
    %v3463 = vmul.f32 %v3456, %v3461
    %3465 = vrot.lane.b32.xlu0 %v3463, 32
    %v3466 = vpop.permute.xlu0 %3465
    %v3468 = vadd.f32 %v3458, %v3466
    %v3469 = vtanh.pop %v3468
    %3471 = vrot.lane.b32.xlu0 %v3469, 64
    %v3472 = vpop.permute.xlu0 %3471
    %v3474 = vmul.f32 %v3456, %v3472
    %v3475 = vpack.c.bf16 %v3474, %v3474
    %v3476 = vld [vmem:[%s509] sm:$0xf]
    %v3477 = vld [vmem:[%s509 + $0x4] sm:$0xf]
    %v3478 = vld [vmem:[%s509 + $0x8] sm:$0xf]
    %v3479 = vld [vmem:[%s509 + $0xc] sm:$0xf]
    %v3480 = vld [vmem:[%s514] sm:$0xf]
    %v3481 = vld [vmem:[%s514 + $0x4] sm:$0xf]
    %v3482 = vld [vmem:[%s514 + $0x8] sm:$0xf]
    %v3483 = vld [vmem:[%s514 + $0xc] sm:$0xf]
    %v3488 = vunpack.c.l.b16 %v3480
    %v3489 = vunpack.c.l.b16 %v3481
    %v3490 = vunpack.c.l.b16 %v3482
    %v3491 = vunpack.c.l.b16 %v3483
    %v3492 = vpack.c.b16 %v3489, %v3488
    %v3493 = vpack.c.b16 %v3491, %v3490
    %3496 = vmatprep.subr.bf16.mxu0 0
    %3497 = vmatpush1.bf16.msra.mxu0 %v3492
    %3498 = vmatprep.subr.bf16.mxu0 0
    %3499 = vmatpush1.bf16.msra.mxu0 %v3493
    %3500 = vmatprep.subr.bf16.mxu0 0
    %3501 = vmatpush1.bf16.msra.mxu0 0
    %3502 = vmatprep.subr.bf16.mxu0 0
    %3503 = vmatpush1.bf16.msra.mxu0 0
    %3504 = vmatprep.subr.bf16.mxu0 0
    %3505 = vmatpush1.bf16.msra.mxu0 0
    %3506 = vmatprep.subr.bf16.mxu0 0
    %3507 = vmatpush1.bf16.msra.mxu0 0
    %3508 = vmatprep.subr.bf16.mxu0 0
    %3509 = vmatpush1.bf16.msra.mxu0 0
    %3510 = vmatprep.subr.bf16.mxu0 0
    %3511 = vmatpush1.bf16.msra.mxu0 0
    %3512 = vmatprep.subr.bf16.mxu0 0
    %3513 = vmatpush1.bf16.msra.mxu0 0
    %3514 = vmatprep.subr.bf16.mxu0 0
    %3515 = vmatpush1.bf16.msra.mxu0 0
    %3516 = vmatprep.subr.bf16.mxu0 0
    %3517 = vmatpush1.bf16.msra.mxu0 0
    %3518 = vmatprep.subr.bf16.mxu0 0
    %3519 = vmatpush1.bf16.msra.mxu0 0
    %3520 = vmatprep.subr.bf16.mxu0 0
    %3521 = vmatpush1.bf16.msra.mxu0 0
    %3522 = vmatprep.subr.bf16.mxu0 0
    %3523 = vmatpush1.bf16.msra.mxu0 0
    %3524 = vmatprep.subr.bf16.mxu0 0
    %3525 = vmatpush1.bf16.msra.mxu0 0
    %3526 = vmatprep.subr.bf16.mxu0 0
    %3527 = vmatpush1.bf16.msra.mxu0 0
    %3528 = vmatprep.mubr.bf16.mxu0 0
    %3529 = vmatmul.mubr.bf16.gmra.mrb[0].mxu0 %v3055
    %v3530 = vpop.f32.mrb[0].mxu0
    %v3531 = vadd.f32 0.0, %v3530
    %v3532 = vpop.f32.mrb[0].mxu0
    %v3533 = vpop.f32.mrb[0].mxu0
    %v3534 = vpop.f32.mrb[0].mxu0
    %3535 = vdwg.mxu0
    %3537 = vrot.lane.b32.xlu0 %v3475, 32
    %v3538 = vpop.permute.xlu0 %3537
    %v3543 = vunpack.c.l.b16 %v3476
    %v3544 = vunpack.c.l.b16 %v3477
    %v3545 = vunpack.c.l.b16 %v3478
    %v3546 = vunpack.c.l.b16 %v3479
    %v3547 = vpack.c.b16 %v3544, %v3543
    %v3548 = vpack.c.b16 %v3546, %v3545
    %v3552 = vsel %vm381, %v3538, 0
    %3554 = vmatprep.subr.bf16.mxu0 0
    %3555 = vmatpush1.bf16.msra.mxu0 %v3547
    %3556 = vmatprep.subr.bf16.mxu0 0
    %3557 = vmatpush1.bf16.msra.mxu0 %v3548
    %3558 = vmatprep.subr.bf16.mxu0 0
    %3559 = vmatpush1.bf16.msra.mxu0 0
    %3560 = vmatprep.subr.bf16.mxu0 0
    %3561 = vmatpush1.bf16.msra.mxu0 0
    %3562 = vmatprep.subr.bf16.mxu0 0
    %3563 = vmatpush1.bf16.msra.mxu0 0
    %3564 = vmatprep.subr.bf16.mxu0 0
    %3565 = vmatpush1.bf16.msra.mxu0 0
    %3566 = vmatprep.subr.bf16.mxu0 0
    %3567 = vmatpush1.bf16.msra.mxu0 0
    %3568 = vmatprep.subr.bf16.mxu0 0
    %3569 = vmatpush1.bf16.msra.mxu0 0
    %3570 = vmatprep.subr.bf16.mxu0 0
    %3571 = vmatpush1.bf16.msra.mxu0 0
    %3572 = vmatprep.subr.bf16.mxu0 0
    %3573 = vmatpush1.bf16.msra.mxu0 0
    %3574 = vmatprep.subr.bf16.mxu0 0
    %3575 = vmatpush1.bf16.msra.mxu0 0
    %3576 = vmatprep.subr.bf16.mxu0 0
    %3577 = vmatpush1.bf16.msra.mxu0 0
    %3578 = vmatprep.subr.bf16.mxu0 0
    %3579 = vmatpush1.bf16.msra.mxu0 0
    %3580 = vmatprep.subr.bf16.mxu0 0
    %3581 = vmatpush1.bf16.msra.mxu0 0
    %3582 = vmatprep.subr.bf16.mxu0 0
    %3583 = vmatpush1.bf16.msra.mxu0 0
    %3584 = vmatprep.subr.bf16.mxu0 0
    %3585 = vmatpush1.bf16.msra.mxu0 0
    %3586 = vmatprep.mubr.bf16.mxu0 0
    %3587 = vmatmul.mubr.bf16.gmra.mrb[0].mxu0 %v3552
    %v3588 = vpop.f32.mrb[0].mxu0
    %v3589 = vadd.f32 %v3531, %v3588
    %v3590 = vpop.f32.mrb[0].mxu0
    %v3591 = vpop.f32.mrb[0].mxu0
    %v3592 = vpop.f32.mrb[0].mxu0
    %3593 = vdwg.mxu0
    %v3594 = vld [vmem:[#allocation12] sm:$0xff]
    %v3595 = vadd.f32 %v3589, %v3594
    %v3596 = vxor.u32 %v3595, 2147483648
    %v3597 = vmul.f32 %v3596, 1.442695
    %v3598 = vpow.pop %v3597
    %v3599 = vadd.f32 %v3598, 1.0
    %v3600 = vrcp.pop %v3599
    %v3601 = vmul.f32 1.0, %v3600
    %v3602 = vtanh.pop %v3595
    %v3603 = vmul.f32 %v3601, %v3021
    %3605 = vrot.lane.b32.xlu0 %v3602, 64
    %v3606 = vpop.permute.xlu0 %3605
    %v3608 = vmul.f32 %v3601, %v3606
    %3610 = vrot.lane.b32.xlu0 %v3608, 32
    %v3611 = vpop.permute.xlu0 %3610
    %v3613 = vadd.f32 %v3603, %v3611
    %v3614 = vtanh.pop %v3613
    %3616 = vrot.lane.b32.xlu0 %v3614, 64
    %v3617 = vpop.permute.xlu0 %3616
    %v3619 = vmul.f32 %v3601, %v3617
    %3621 = vrot.lane.b32.xlu0 %v3619, 32
    %v3622 = vpop.permute.xlu0 %3621
    %3624 = vst.msk [vmem:[#allocation4 + $0x28] sm:$0xff] %vm381, %v3622
    %v3625 = vld [vmem:[#allocation3 + $0x28] sm:$0xff]
    %v3626 = vpack.c.bf16 %v3619, %v3619
    %v3627 = vld [vmem:[%s662] sm:$0xf]
    %v3628 = vld [vmem:[%s662 + $0x4] sm:$0xf]
    %v3629 = vld [vmem:[%s662 + $0x8] sm:$0xf]
    %v3630 = vld [vmem:[%s662 + $0xc] sm:$0xf]
    %3632 = vrot.lane.b32.xlu0 %v3626, 32
    %v3633 = vpop.permute.xlu0 %3632
    %v3638 = vunpack.c.l.b16 %v3627
    %v3639 = vunpack.c.l.b16 %v3628
    %v3640 = vunpack.c.l.b16 %v3629
    %v3641 = vunpack.c.l.b16 %v3630
    %v3642 = vpack.c.b16 %v3639, %v3638
    %v3643 = vpack.c.b16 %v3641, %v3640
    %v3647 = vsel %vm381, %v3633, 0
    %3649 = vmatprep.subr.bf16.mxu0 0
    %3650 = vmatpush1.bf16.msra.mxu0 %v3642
    %3651 = vmatprep.subr.bf16.mxu0 0
    %3652 = vmatpush1.bf16.msra.mxu0 %v3643
    %3653 = vmatprep.subr.bf16.mxu0 0
    %3654 = vmatpush1.bf16.msra.mxu0 0
    %3655 = vmatprep.subr.bf16.mxu0 0
    %3656 = vmatpush1.bf16.msra.mxu0 0
    %3657 = vmatprep.subr.bf16.mxu0 0
    %3658 = vmatpush1.bf16.msra.mxu0 0
    %3659 = vmatprep.subr.bf16.mxu0 0
    %3660 = vmatpush1.bf16.msra.mxu0 0
    %3661 = vmatprep.subr.bf16.mxu0 0
    %3662 = vmatpush1.bf16.msra.mxu0 0
    %3663 = vmatprep.subr.bf16.mxu0 0
    %3664 = vmatpush1.bf16.msra.mxu0 0
    %3665 = vmatprep.subr.bf16.mxu0 0
    %3666 = vmatpush1.bf16.msra.mxu0 0
    %3667 = vmatprep.subr.bf16.mxu0 0
    %3668 = vmatpush1.bf16.msra.mxu0 0
    %3669 = vmatprep.subr.bf16.mxu0 0
    %3670 = vmatpush1.bf16.msra.mxu0 0
    %3671 = vmatprep.subr.bf16.mxu0 0
    %3672 = vmatpush1.bf16.msra.mxu0 0
    %3673 = vmatprep.subr.bf16.mxu0 0
    %3674 = vmatpush1.bf16.msra.mxu0 0
    %3675 = vmatprep.subr.bf16.mxu0 0
    %3676 = vmatpush1.bf16.msra.mxu0 0
    %3677 = vmatprep.subr.bf16.mxu0 0
    %3678 = vmatpush1.bf16.msra.mxu0 0
    %3679 = vmatprep.subr.bf16.mxu0 0
    %3680 = vmatpush1.bf16.msra.mxu0 0
    %3681 = vmatprep.mubr.bf16.mxu0 0
    %3682 = vmatmul.mubr.bf16.gmra.mrb[0].mxu0 %v3647
    %v3683 = vpop.f32.mrb[0].mxu0
    %v3684 = vadd.f32 0.0, %v3683
    %v3685 = vpop.f32.mrb[0].mxu0
    %v3686 = vpop.f32.mrb[0].mxu0
    %v3687 = vpop.f32.mrb[0].mxu0
    %3688 = vdwg.mxu0
    %v3689 = vadd.f32 %v3625, %v3684
    %v3690 = vld [vmem:[%s726] sm:$0xf]
    %v3691 = vld [vmem:[%s726 + $0x4] sm:$0xf]
    %v3692 = vld [vmem:[%s726 + $0x8] sm:$0xf]
    %v3693 = vld [vmem:[%s726 + $0xc] sm:$0xf]
    %v3698 = vunpack.c.l.b16 %v3690
    %v3699 = vunpack.c.l.b16 %v3691
    %v3700 = vunpack.c.l.b16 %v3692
    %v3701 = vunpack.c.l.b16 %v3693
    %v3702 = vpack.c.b16 %v3699, %v3698
    %v3703 = vpack.c.b16 %v3701, %v3700
    %3706 = vmatprep.subr.bf16.mxu0 0
    %3707 = vmatpush1.bf16.msra.mxu0 %v3702
    %3708 = vmatprep.subr.bf16.mxu0 0
    %3709 = vmatpush1.bf16.msra.mxu0 %v3703
    %3710 = vmatprep.subr.bf16.mxu0 0
    %3711 = vmatpush1.bf16.msra.mxu0 0
    %3712 = vmatprep.subr.bf16.mxu0 0
    %3713 = vmatpush1.bf16.msra.mxu0 0
    %3714 = vmatprep.subr.bf16.mxu0 0
    %3715 = vmatpush1.bf16.msra.mxu0 0
    %3716 = vmatprep.subr.bf16.mxu0 0
    %3717 = vmatpush1.bf16.msra.mxu0 0
    %3718 = vmatprep.subr.bf16.mxu0 0
    %3719 = vmatpush1.bf16.msra.mxu0 0
    %3720 = vmatprep.subr.bf16.mxu0 0
    %3721 = vmatpush1.bf16.msra.mxu0 0
    %3722 = vmatprep.subr.bf16.mxu0 0
    %3723 = vmatpush1.bf16.msra.mxu0 0
    %3724 = vmatprep.subr.bf16.mxu0 0
    %3725 = vmatpush1.bf16.msra.mxu0 0
    %3726 = vmatprep.subr.bf16.mxu0 0
    %3727 = vmatpush1.bf16.msra.mxu0 0
    %3728 = vmatprep.subr.bf16.mxu0 0
    %3729 = vmatpush1.bf16.msra.mxu0 0
    %3730 = vmatprep.subr.bf16.mxu0 0
    %3731 = vmatpush1.bf16.msra.mxu0 0
    %3732 = vmatprep.subr.bf16.mxu0 0
    %3733 = vmatpush1.bf16.msra.mxu0 0
    %3734 = vmatprep.subr.bf16.mxu0 0
    %3735 = vmatpush1.bf16.msra.mxu0 0
    %3736 = vmatprep.subr.bf16.mxu0 0
    %3737 = vmatpush1.bf16.msra.mxu0 0
    %3738 = vmatprep.mubr.bf16.mxu0 0
    %3739 = vmatmul.mubr.bf16.gmra.mrb[0].mxu0 %v3256
    %v3740 = vpop.f32.mrb[0].mxu0
    %v3741 = vadd.f32 0.0, %v3740
    %v3742 = vpop.f32.mrb[0].mxu0
    %v3743 = vpop.f32.mrb[0].mxu0
    %v3744 = vpop.f32.mrb[0].mxu0
    %3745 = vdwg.mxu0
    %v3746 = vadd.f32 %v3689, %v3741
    %v3747 = vxor.u32 %v3746, 2147483648
    %v3748 = vmul.f32 %v3747, 1.442695
    %v3749 = vpow.pop %v3748
    %v3750 = vadd.f32 %v3749, 1.0
    %v3751 = vrcp.pop %v3750
    %v3752 = vmul.f32 1.0, %v3751
    %v3753 = vtanh.pop %v3746
    %v3754 = vmul.f32 %v3752, %v3172
    %3756 = vrot.lane.b32.xlu0 %v3753, 64
    %v3757 = vpop.permute.xlu0 %3756
    %v3759 = vmul.f32 %v3752, %v3757
    %3761 = vrot.lane.b32.xlu0 %v3759, 32
    %v3762 = vpop.permute.xlu0 %3761
    %v3764 = vadd.f32 %v3754, %v3762
    %v3765 = vtanh.pop %v3764
    %3767 = vrot.lane.b32.xlu0 %v3765, 64
    %v3768 = vpop.permute.xlu0 %3767
    %v3770 = vmul.f32 %v3752, %v3768
    %v3771 = vpack.c.bf16 %v3770, %v3770
    %v3772 = vld [vmem:[%s809] sm:$0xf]
    %v3773 = vld [vmem:[%s809 + $0x4] sm:$0xf]
    %v3774 = vld [vmem:[%s809 + $0x8] sm:$0xf]
    %v3775 = vld [vmem:[%s809 + $0xc] sm:$0xf]
    %v3776 = vld [vmem:[%s814] sm:$0xf]
    %v3777 = vld [vmem:[%s814 + $0x4] sm:$0xf]
    %v3778 = vld [vmem:[%s814 + $0x8] sm:$0xf]
    %v3779 = vld [vmem:[%s814 + $0xc] sm:$0xf]
    %v3784 = vunpack.c.l.b16 %v3776
    %v3785 = vunpack.c.l.b16 %v3777
    %v3786 = vunpack.c.l.b16 %v3778
    %v3787 = vunpack.c.l.b16 %v3779
    %v3788 = vpack.c.b16 %v3785, %v3784
    %v3789 = vpack.c.b16 %v3787, %v3786
    %3792 = vmatprep.subr.bf16.mxu0 0
    %3793 = vmatpush1.bf16.msra.mxu0 %v3788
    %3794 = vmatprep.subr.bf16.mxu0 0
    %3795 = vmatpush1.bf16.msra.mxu0 %v3789
    %3796 = vmatprep.subr.bf16.mxu0 0
    %3797 = vmatpush1.bf16.msra.mxu0 0
    %3798 = vmatprep.subr.bf16.mxu0 0
    %3799 = vmatpush1.bf16.msra.mxu0 0
    %3800 = vmatprep.subr.bf16.mxu0 0
    %3801 = vmatpush1.bf16.msra.mxu0 0
    %3802 = vmatprep.subr.bf16.mxu0 0
    %3803 = vmatpush1.bf16.msra.mxu0 0
    %3804 = vmatprep.subr.bf16.mxu0 0
    %3805 = vmatpush1.bf16.msra.mxu0 0
    %3806 = vmatprep.subr.bf16.mxu0 0
    %3807 = vmatpush1.bf16.msra.mxu0 0
    %3808 = vmatprep.subr.bf16.mxu0 0
    %3809 = vmatpush1.bf16.msra.mxu0 0
    %3810 = vmatprep.subr.bf16.mxu0 0
    %3811 = vmatpush1.bf16.msra.mxu0 0
    %3812 = vmatprep.subr.bf16.mxu0 0
    %3813 = vmatpush1.bf16.msra.mxu0 0
    %3814 = vmatprep.subr.bf16.mxu0 0
    %3815 = vmatpush1.bf16.msra.mxu0 0
    %3816 = vmatprep.subr.bf16.mxu0 0
    %3817 = vmatpush1.bf16.msra.mxu0 0
    %3818 = vmatprep.subr.bf16.mxu0 0
    %3819 = vmatpush1.bf16.msra.mxu0 0
    %3820 = vmatprep.subr.bf16.mxu0 0
    %3821 = vmatpush1.bf16.msra.mxu0 0
    %3822 = vmatprep.subr.bf16.mxu0 0
    %3823 = vmatpush1.bf16.msra.mxu0 0
    %3824 = vmatprep.mubr.bf16.mxu0 0
    %3825 = vmatmul.mubr.bf16.gmra.mrb[0].mxu0 %v3351
    %v3826 = vpop.f32.mrb[0].mxu0
    %v3827 = vadd.f32 0.0, %v3826
    %v3828 = vpop.f32.mrb[0].mxu0
    %v3829 = vpop.f32.mrb[0].mxu0
    %v3830 = vpop.f32.mrb[0].mxu0
    %3831 = vdwg.mxu0
    %3833 = vrot.lane.b32.xlu0 %v3771, 32
    %v3834 = vpop.permute.xlu0 %3833
    %v3839 = vunpack.c.l.b16 %v3772
    %v3840 = vunpack.c.l.b16 %v3773
    %v3841 = vunpack.c.l.b16 %v3774
    %v3842 = vunpack.c.l.b16 %v3775
    %v3843 = vpack.c.b16 %v3840, %v3839
    %v3844 = vpack.c.b16 %v3842, %v3841
    %v3848 = vsel %vm381, %v3834, 0
    %3850 = vmatprep.subr.bf16.mxu0 0
    %3851 = vmatpush1.bf16.msra.mxu0 %v3843
    %3852 = vmatprep.subr.bf16.mxu0 0
    %3853 = vmatpush1.bf16.msra.mxu0 %v3844
    %3854 = vmatprep.subr.bf16.mxu0 0
    %3855 = vmatpush1.bf16.msra.mxu0 0
    %3856 = vmatprep.subr.bf16.mxu0 0
    %3857 = vmatpush1.bf16.msra.mxu0 0
    %3858 = vmatprep.subr.bf16.mxu0 0
    %3859 = vmatpush1.bf16.msra.mxu0 0
    %3860 = vmatprep.subr.bf16.mxu0 0
    %3861 = vmatpush1.bf16.msra.mxu0 0
    %3862 = vmatprep.subr.bf16.mxu0 0
    %3863 = vmatpush1.bf16.msra.mxu0 0
    %3864 = vmatprep.subr.bf16.mxu0 0
    %3865 = vmatpush1.bf16.msra.mxu0 0
    %3866 = vmatprep.subr.bf16.mxu0 0
    %3867 = vmatpush1.bf16.msra.mxu0 0
    %3868 = vmatprep.subr.bf16.mxu0 0
    %3869 = vmatpush1.bf16.msra.mxu0 0
    %3870 = vmatprep.subr.bf16.mxu0 0
    %3871 = vmatpush1.bf16.msra.mxu0 0
    %3872 = vmatprep.subr.bf16.mxu0 0
    %3873 = vmatpush1.bf16.msra.mxu0 0
    %3874 = vmatprep.subr.bf16.mxu0 0
    %3875 = vmatpush1.bf16.msra.mxu0 0
    %3876 = vmatprep.subr.bf16.mxu0 0
    %3877 = vmatpush1.bf16.msra.mxu0 0
    %3878 = vmatprep.subr.bf16.mxu0 0
    %3879 = vmatpush1.bf16.msra.mxu0 0
    %3880 = vmatprep.subr.bf16.mxu0 0
    %3881 = vmatpush1.bf16.msra.mxu0 0
    %3882 = vmatprep.mubr.bf16.mxu0 0
    %3883 = vmatmul.mubr.bf16.gmra.mrb[0].mxu0 %v3848
    %v3884 = vpop.f32.mrb[0].mxu0
    %v3885 = vadd.f32 %v3827, %v3884
    %v3886 = vpop.f32.mrb[0].mxu0
    %v3887 = vpop.f32.mrb[0].mxu0
    %v3888 = vpop.f32.mrb[0].mxu0
    %3889 = vdwg.mxu0
    %v3890 = vld [vmem:[%s929] sm:$0xff]
    %v3891 = vadd.f32 %v3885, %v3890
    %v3892 = vxor.u32 %v3891, 2147483648
    %v3893 = vmul.f32 %v3892, 1.442695
    %v3894 = vpow.pop %v3893
    %v3895 = vadd.f32 %v3894, 1.0
    %v3896 = vrcp.pop %v3895
    %v3897 = vmul.f32 1.0, %v3896
    %v3898 = vtanh.pop %v3891
    %v3899 = vmul.f32 %v3897, %v3317
    %3901 = vrot.lane.b32.xlu0 %v3898, 64
    %v3902 = vpop.permute.xlu0 %3901
    %v3904 = vmul.f32 %v3897, %v3902
    %3906 = vrot.lane.b32.xlu0 %v3904, 32
    %v3907 = vpop.permute.xlu0 %3906
    %v3909 = vadd.f32 %v3899, %v3907
    %v3910 = vtanh.pop %v3909
    %3912 = vrot.lane.b32.xlu0 %v3910, 64
    %v3913 = vpop.permute.xlu0 %3912
    %v3915 = vmul.f32 %v3897, %v3913
    %3917 = vrot.lane.b32.xlu0 %v3915, 32
    %v3918 = vpop.permute.xlu0 %3917
    %3920 = vst.msk [vmem:[#allocation5 + $0x28] sm:$0xff] %vm381, %v3918
    %v3921 = vld [vmem:[#allocation2 + $0x30] sm:$0xff]
    %v3922 = vpack.c.bf16 %v3915, %v3915
    %v3923 = vld [vmem:[%s6] sm:$0xf]
    %v3924 = vld [vmem:[%s6 + $0x4] sm:$0xf]
    %v3925 = vld [vmem:[%s6 + $0x8] sm:$0xf]
    %v3926 = vld [vmem:[%s6 + $0xc] sm:$0xf]
    %3928 = vrot.lane.b32.xlu0 %v3922, 32
    %v3929 = vpop.permute.xlu0 %3928
    %v3934 = vunpack.c.l.b16 %v3923
    %v3935 = vunpack.c.l.b16 %v3924
    %v3936 = vunpack.c.l.b16 %v3925
    %v3937 = vunpack.c.l.b16 %v3926
    %v3938 = vpack.c.b16 %v3935, %v3934
    %v3939 = vpack.c.b16 %v3937, %v3936
    %v3943 = vsel %vm381, %v3929, 0
    %3945 = vmatprep.subr.bf16.mxu0 0
    %3946 = vmatpush1.bf16.msra.mxu0 %v3938
    %3947 = vmatprep.subr.bf16.mxu0 0
    %3948 = vmatpush1.bf16.msra.mxu0 %v3939
    %3949 = vmatprep.subr.bf16.mxu0 0
    %3950 = vmatpush1.bf16.msra.mxu0 0
    %3951 = vmatprep.subr.bf16.mxu0 0
    %3952 = vmatpush1.bf16.msra.mxu0 0
    %3953 = vmatprep.subr.bf16.mxu0 0
    %3954 = vmatpush1.bf16.msra.mxu0 0
    %3955 = vmatprep.subr.bf16.mxu0 0
    %3956 = vmatpush1.bf16.msra.mxu0 0
    %3957 = vmatprep.subr.bf16.mxu0 0
    %3958 = vmatpush1.bf16.msra.mxu0 0
    %3959 = vmatprep.subr.bf16.mxu0 0
    %3960 = vmatpush1.bf16.msra.mxu0 0
    %3961 = vmatprep.subr.bf16.mxu0 0
    %3962 = vmatpush1.bf16.msra.mxu0 0
    %3963 = vmatprep.subr.bf16.mxu0 0
    %3964 = vmatpush1.bf16.msra.mxu0 0
    %3965 = vmatprep.subr.bf16.mxu0 0
    %3966 = vmatpush1.bf16.msra.mxu0 0
    %3967 = vmatprep.subr.bf16.mxu0 0
    %3968 = vmatpush1.bf16.msra.mxu0 0
    %3969 = vmatprep.subr.bf16.mxu0 0
    %3970 = vmatpush1.bf16.msra.mxu0 0
    %3971 = vmatprep.subr.bf16.mxu0 0
    %3972 = vmatpush1.bf16.msra.mxu0 0
    %3973 = vmatprep.subr.bf16.mxu0 0
    %3974 = vmatpush1.bf16.msra.mxu0 0
    %3975 = vmatprep.subr.bf16.mxu0 0
    %3976 = vmatpush1.bf16.msra.mxu0 0
    %3977 = vmatprep.mubr.bf16.mxu0 0
    %3978 = vmatmul.mubr.bf16.gmra.mrb[0].mxu0 %v3943
    %v3979 = vpop.f32.mrb[0].mxu0
    %v3980 = vadd.f32 0.0, %v3979
    %v3981 = vpop.f32.mrb[0].mxu0
    %v3982 = vpop.f32.mrb[0].mxu0
    %v3983 = vpop.f32.mrb[0].mxu0
    %3984 = vdwg.mxu0
    %v3985 = vadd.f32 %v3921, %v3980
    %v3986 = vld [vmem:[%s426] sm:$0xf]
    %v3987 = vld [vmem:[%s426 + $0x4] sm:$0xf]
    %v3988 = vld [vmem:[%s426 + $0x8] sm:$0xf]
    %v3989 = vld [vmem:[%s426 + $0xc] sm:$0xf]
    %v3994 = vunpack.c.l.b16 %v3986
    %v3995 = vunpack.c.l.b16 %v3987
    %v3996 = vunpack.c.l.b16 %v3988
    %v3997 = vunpack.c.l.b16 %v3989
    %v3998 = vpack.c.b16 %v3995, %v3994
    %v3999 = vpack.c.b16 %v3997, %v3996
    %4002 = vmatprep.subr.bf16.mxu0 0
    %4003 = vmatpush1.bf16.msra.mxu0 %v3998
    %4004 = vmatprep.subr.bf16.mxu0 0
    %4005 = vmatpush1.bf16.msra.mxu0 %v3999
    %4006 = vmatprep.subr.bf16.mxu0 0
    %4007 = vmatpush1.bf16.msra.mxu0 0
    %4008 = vmatprep.subr.bf16.mxu0 0
    %4009 = vmatpush1.bf16.msra.mxu0 0
    %4010 = vmatprep.subr.bf16.mxu0 0
    %4011 = vmatpush1.bf16.msra.mxu0 0
    %4012 = vmatprep.subr.bf16.mxu0 0
    %4013 = vmatpush1.bf16.msra.mxu0 0
    %4014 = vmatprep.subr.bf16.mxu0 0
    %4015 = vmatpush1.bf16.msra.mxu0 0
    %4016 = vmatprep.subr.bf16.mxu0 0
    %4017 = vmatpush1.bf16.msra.mxu0 0
    %4018 = vmatprep.subr.bf16.mxu0 0
    %4019 = vmatpush1.bf16.msra.mxu0 0
    %4020 = vmatprep.subr.bf16.mxu0 0
    %4021 = vmatpush1.bf16.msra.mxu0 0
    %4022 = vmatprep.subr.bf16.mxu0 0
    %4023 = vmatpush1.bf16.msra.mxu0 0
    %4024 = vmatprep.subr.bf16.mxu0 0
    %4025 = vmatpush1.bf16.msra.mxu0 0
    %4026 = vmatprep.subr.bf16.mxu0 0
    %4027 = vmatpush1.bf16.msra.mxu0 0
    %4028 = vmatprep.subr.bf16.mxu0 0
    %4029 = vmatpush1.bf16.msra.mxu0 0
    %4030 = vmatprep.subr.bf16.mxu0 0
    %4031 = vmatpush1.bf16.msra.mxu0 0
    %4032 = vmatprep.subr.bf16.mxu0 0
    %4033 = vmatpush1.bf16.msra.mxu0 0
    %4034 = vmatprep.mubr.bf16.mxu0 0
    %4035 = vmatmul.mubr.bf16.gmra.mrb[0].mxu0 %v3552
    %v4036 = vpop.f32.mrb[0].mxu0
    %v4037 = vadd.f32 0.0, %v4036
    %v4038 = vpop.f32.mrb[0].mxu0
    %v4039 = vpop.f32.mrb[0].mxu0
    %v4040 = vpop.f32.mrb[0].mxu0
    %4041 = vdwg.mxu0
    %v4042 = vadd.f32 %v3985, %v4037
    %v4043 = vxor.u32 %v4042, 2147483648
    %v4044 = vmul.f32 %v4043, 1.442695
    %v4045 = vpow.pop %v4044
    %v4046 = vadd.f32 %v4045, 1.0
    %v4047 = vrcp.pop %v4046
    %v4048 = vmul.f32 1.0, %v4047
    %v4049 = vtanh.pop %v4042
    %v4050 = vmul.f32 %v4048, %v3468
    %4052 = vrot.lane.b32.xlu0 %v4049, 64
    %v4053 = vpop.permute.xlu0 %4052
    %v4055 = vmul.f32 %v4048, %v4053
    %4057 = vrot.lane.b32.xlu0 %v4055, 32
    %v4058 = vpop.permute.xlu0 %4057
    %v4060 = vadd.f32 %v4050, %v4058
    %v4061 = vtanh.pop %v4060
    %4063 = vrot.lane.b32.xlu0 %v4061, 64
    %v4064 = vpop.permute.xlu0 %4063
    %v4066 = vmul.f32 %v4048, %v4064
    %v4067 = vpack.c.bf16 %v4066, %v4066
    %v4068 = vld [vmem:[%s509] sm:$0xf]
    %v4069 = vld [vmem:[%s509 + $0x4] sm:$0xf]
    %v4070 = vld [vmem:[%s509 + $0x8] sm:$0xf]
    %v4071 = vld [vmem:[%s509 + $0xc] sm:$0xf]
    %v4072 = vld [vmem:[%s514] sm:$0xf]
    %v4073 = vld [vmem:[%s514 + $0x4] sm:$0xf]
    %v4074 = vld [vmem:[%s514 + $0x8] sm:$0xf]
    %v4075 = vld [vmem:[%s514 + $0xc] sm:$0xf]
    %v4080 = vunpack.c.l.b16 %v4072
    %v4081 = vunpack.c.l.b16 %v4073
    %v4082 = vunpack.c.l.b16 %v4074
    %v4083 = vunpack.c.l.b16 %v4075
    %v4084 = vpack.c.b16 %v4081, %v4080
    %v4085 = vpack.c.b16 %v4083, %v4082
    %4088 = vmatprep.subr.bf16.mxu0 0
    %4089 = vmatpush1.bf16.msra.mxu0 %v4084
    %4090 = vmatprep.subr.bf16.mxu0 0
    %4091 = vmatpush1.bf16.msra.mxu0 %v4085
    %4092 = vmatprep.subr.bf16.mxu0 0
    %4093 = vmatpush1.bf16.msra.mxu0 0
    %4094 = vmatprep.subr.bf16.mxu0 0
    %4095 = vmatpush1.bf16.msra.mxu0 0
    %4096 = vmatprep.subr.bf16.mxu0 0
    %4097 = vmatpush1.bf16.msra.mxu0 0
    %4098 = vmatprep.subr.bf16.mxu0 0
    %4099 = vmatpush1.bf16.msra.mxu0 0
    %4100 = vmatprep.subr.bf16.mxu0 0
    %4101 = vmatpush1.bf16.msra.mxu0 0
    %4102 = vmatprep.subr.bf16.mxu0 0
    %4103 = vmatpush1.bf16.msra.mxu0 0
    %4104 = vmatprep.subr.bf16.mxu0 0
    %4105 = vmatpush1.bf16.msra.mxu0 0
    %4106 = vmatprep.subr.bf16.mxu0 0
    %4107 = vmatpush1.bf16.msra.mxu0 0
    %4108 = vmatprep.subr.bf16.mxu0 0
    %4109 = vmatpush1.bf16.msra.mxu0 0
    %4110 = vmatprep.subr.bf16.mxu0 0
    %4111 = vmatpush1.bf16.msra.mxu0 0
    %4112 = vmatprep.subr.bf16.mxu0 0
    %4113 = vmatpush1.bf16.msra.mxu0 0
    %4114 = vmatprep.subr.bf16.mxu0 0
    %4115 = vmatpush1.bf16.msra.mxu0 0
    %4116 = vmatprep.subr.bf16.mxu0 0
    %4117 = vmatpush1.bf16.msra.mxu0 0
    %4118 = vmatprep.subr.bf16.mxu0 0
    %4119 = vmatpush1.bf16.msra.mxu0 0
    %4120 = vmatprep.mubr.bf16.mxu0 0
    %4121 = vmatmul.mubr.bf16.gmra.mrb[0].mxu0 %v3647
    %v4122 = vpop.f32.mrb[0].mxu0
    %v4123 = vadd.f32 0.0, %v4122
    %v4124 = vpop.f32.mrb[0].mxu0
    %v4125 = vpop.f32.mrb[0].mxu0
    %v4126 = vpop.f32.mrb[0].mxu0
    %4127 = vdwg.mxu0
    %4129 = vrot.lane.b32.xlu0 %v4067, 32
    %v4130 = vpop.permute.xlu0 %4129
    %v4135 = vunpack.c.l.b16 %v4068
    %v4136 = vunpack.c.l.b16 %v4069
    %v4137 = vunpack.c.l.b16 %v4070
    %v4138 = vunpack.c.l.b16 %v4071
    %v4139 = vpack.c.b16 %v4136, %v4135
    %v4140 = vpack.c.b16 %v4138, %v4137
    %v4144 = vsel %vm381, %v4130, 0
    %4146 = vmatprep.subr.bf16.mxu0 0
    %4147 = vmatpush1.bf16.msra.mxu0 %v4139
    %4148 = vmatprep.subr.bf16.mxu0 0
    %4149 = vmatpush1.bf16.msra.mxu0 %v4140
    %4150 = vmatprep.subr.bf16.mxu0 0
    %4151 = vmatpush1.bf16.msra.mxu0 0
    %4152 = vmatprep.subr.bf16.mxu0 0
    %4153 = vmatpush1.bf16.msra.mxu0 0
    %4154 = vmatprep.subr.bf16.mxu0 0
    %4155 = vmatpush1.bf16.msra.mxu0 0
    %4156 = vmatprep.subr.bf16.mxu0 0
    %4157 = vmatpush1.bf16.msra.mxu0 0
    %4158 = vmatprep.subr.bf16.mxu0 0
    %4159 = vmatpush1.bf16.msra.mxu0 0
    %4160 = vmatprep.subr.bf16.mxu0 0
    %4161 = vmatpush1.bf16.msra.mxu0 0
    %4162 = vmatprep.subr.bf16.mxu0 0
    %4163 = vmatpush1.bf16.msra.mxu0 0
    %4164 = vmatprep.subr.bf16.mxu0 0
    %4165 = vmatpush1.bf16.msra.mxu0 0
    %4166 = vmatprep.subr.bf16.mxu0 0
    %4167 = vmatpush1.bf16.msra.mxu0 0
    %4168 = vmatprep.subr.bf16.mxu0 0
    %4169 = vmatpush1.bf16.msra.mxu0 0
    %4170 = vmatprep.subr.bf16.mxu0 0
    %4171 = vmatpush1.bf16.msra.mxu0 0
    %4172 = vmatprep.subr.bf16.mxu0 0
    %4173 = vmatpush1.bf16.msra.mxu0 0
    %4174 = vmatprep.subr.bf16.mxu0 0
    %4175 = vmatpush1.bf16.msra.mxu0 0
    %4176 = vmatprep.subr.bf16.mxu0 0
    %4177 = vmatpush1.bf16.msra.mxu0 0
    %4178 = vmatprep.mubr.bf16.mxu0 0
    %4179 = vmatmul.mubr.bf16.gmra.mrb[0].mxu0 %v4144
    %v4180 = vpop.f32.mrb[0].mxu0
    %v4181 = vadd.f32 %v4123, %v4180
    %v4182 = vpop.f32.mrb[0].mxu0
    %v4183 = vpop.f32.mrb[0].mxu0
    %v4184 = vpop.f32.mrb[0].mxu0
    %4185 = vdwg.mxu0
    %v4186 = vld [vmem:[#allocation12] sm:$0xff]
    %v4187 = vadd.f32 %v4181, %v4186
    %v4188 = vxor.u32 %v4187, 2147483648
    %v4189 = vmul.f32 %v4188, 1.442695
    %v4190 = vpow.pop %v4189
    %v4191 = vadd.f32 %v4190, 1.0
    %v4192 = vrcp.pop %v4191
    %v4193 = vmul.f32 1.0, %v4192
    %v4194 = vtanh.pop %v4187
    %v4195 = vmul.f32 %v4193, %v3613
    %4197 = vrot.lane.b32.xlu0 %v4194, 64
    %v4198 = vpop.permute.xlu0 %4197
    %v4200 = vmul.f32 %v4193, %v4198
    %4202 = vrot.lane.b32.xlu0 %v4200, 32
    %v4203 = vpop.permute.xlu0 %4202
    %v4205 = vadd.f32 %v4195, %v4203
    %v4206 = vtanh.pop %v4205
    %4208 = vrot.lane.b32.xlu0 %v4206, 64
    %v4209 = vpop.permute.xlu0 %4208
    %v4211 = vmul.f32 %v4193, %v4209
    %4213 = vrot.lane.b32.xlu0 %v4211, 32
    %v4214 = vpop.permute.xlu0 %4213
    %4216 = vst.msk [vmem:[#allocation4 + $0x30] sm:$0xff] %vm381, %v4214
    %v4217 = vld [vmem:[#allocation3 + $0x30] sm:$0xff]
    %v4218 = vpack.c.bf16 %v4211, %v4211
    %v4219 = vld [vmem:[%s662] sm:$0xf]
    %v4220 = vld [vmem:[%s662 + $0x4] sm:$0xf]
    %v4221 = vld [vmem:[%s662 + $0x8] sm:$0xf]
    %v4222 = vld [vmem:[%s662 + $0xc] sm:$0xf]
    %4224 = vrot.lane.b32.xlu0 %v4218, 32
    %v4225 = vpop.permute.xlu0 %4224
    %v4230 = vunpack.c.l.b16 %v4219
    %v4231 = vunpack.c.l.b16 %v4220
    %v4232 = vunpack.c.l.b16 %v4221
    %v4233 = vunpack.c.l.b16 %v4222
    %v4234 = vpack.c.b16 %v4231, %v4230
    %v4235 = vpack.c.b16 %v4233, %v4232
    %v4239 = vsel %vm381, %v4225, 0
    %4241 = vmatprep.subr.bf16.mxu0 0
    %4242 = vmatpush1.bf16.msra.mxu0 %v4234
    %4243 = vmatprep.subr.bf16.mxu0 0
    %4244 = vmatpush1.bf16.msra.mxu0 %v4235
    %4245 = vmatprep.subr.bf16.mxu0 0
    %4246 = vmatpush1.bf16.msra.mxu0 0
    %4247 = vmatprep.subr.bf16.mxu0 0
    %4248 = vmatpush1.bf16.msra.mxu0 0
    %4249 = vmatprep.subr.bf16.mxu0 0
    %4250 = vmatpush1.bf16.msra.mxu0 0
    %4251 = vmatprep.subr.bf16.mxu0 0
    %4252 = vmatpush1.bf16.msra.mxu0 0
    %4253 = vmatprep.subr.bf16.mxu0 0
    %4254 = vmatpush1.bf16.msra.mxu0 0
    %4255 = vmatprep.subr.bf16.mxu0 0
    %4256 = vmatpush1.bf16.msra.mxu0 0
    %4257 = vmatprep.subr.bf16.mxu0 0
    %4258 = vmatpush1.bf16.msra.mxu0 0
    %4259 = vmatprep.subr.bf16.mxu0 0
    %4260 = vmatpush1.bf16.msra.mxu0 0
    %4261 = vmatprep.subr.bf16.mxu0 0
    %4262 = vmatpush1.bf16.msra.mxu0 0
    %4263 = vmatprep.subr.bf16.mxu0 0
    %4264 = vmatpush1.bf16.msra.mxu0 0
    %4265 = vmatprep.subr.bf16.mxu0 0
    %4266 = vmatpush1.bf16.msra.mxu0 0
    %4267 = vmatprep.subr.bf16.mxu0 0
    %4268 = vmatpush1.bf16.msra.mxu0 0
    %4269 = vmatprep.subr.bf16.mxu0 0
    %4270 = vmatpush1.bf16.msra.mxu0 0
    %4271 = vmatprep.subr.bf16.mxu0 0
    %4272 = vmatpush1.bf16.msra.mxu0 0
    %4273 = vmatprep.mubr.bf16.mxu0 0
    %4274 = vmatmul.mubr.bf16.gmra.mrb[0].mxu0 %v4239
    %v4275 = vpop.f32.mrb[0].mxu0
    %v4276 = vadd.f32 0.0, %v4275
    %v4277 = vpop.f32.mrb[0].mxu0
    %v4278 = vpop.f32.mrb[0].mxu0
    %v4279 = vpop.f32.mrb[0].mxu0
    %4280 = vdwg.mxu0
    %v4281 = vadd.f32 %v4217, %v4276
    %v4282 = vld [vmem:[%s726] sm:$0xf]
    %v4283 = vld [vmem:[%s726 + $0x4] sm:$0xf]
    %v4284 = vld [vmem:[%s726 + $0x8] sm:$0xf]
    %v4285 = vld [vmem:[%s726 + $0xc] sm:$0xf]
    %v4290 = vunpack.c.l.b16 %v4282
    %v4291 = vunpack.c.l.b16 %v4283
    %v4292 = vunpack.c.l.b16 %v4284
    %v4293 = vunpack.c.l.b16 %v4285
    %v4294 = vpack.c.b16 %v4291, %v4290
    %v4295 = vpack.c.b16 %v4293, %v4292
    %4298 = vmatprep.subr.bf16.mxu0 0
    %4299 = vmatpush1.bf16.msra.mxu0 %v4294
    %4300 = vmatprep.subr.bf16.mxu0 0
    %4301 = vmatpush1.bf16.msra.mxu0 %v4295
    %4302 = vmatprep.subr.bf16.mxu0 0
    %4303 = vmatpush1.bf16.msra.mxu0 0
    %4304 = vmatprep.subr.bf16.mxu0 0
    %4305 = vmatpush1.bf16.msra.mxu0 0
    %4306 = vmatprep.subr.bf16.mxu0 0
    %4307 = vmatpush1.bf16.msra.mxu0 0
    %4308 = vmatprep.subr.bf16.mxu0 0
    %4309 = vmatpush1.bf16.msra.mxu0 0
    %4310 = vmatprep.subr.bf16.mxu0 0
    %4311 = vmatpush1.bf16.msra.mxu0 0
    %4312 = vmatprep.subr.bf16.mxu0 0
    %4313 = vmatpush1.bf16.msra.mxu0 0
    %4314 = vmatprep.subr.bf16.mxu0 0
    %4315 = vmatpush1.bf16.msra.mxu0 0
    %4316 = vmatprep.subr.bf16.mxu0 0
    %4317 = vmatpush1.bf16.msra.mxu0 0
    %4318 = vmatprep.subr.bf16.mxu0 0
    %4319 = vmatpush1.bf16.msra.mxu0 0
    %4320 = vmatprep.subr.bf16.mxu0 0
    %4321 = vmatpush1.bf16.msra.mxu0 0
    %4322 = vmatprep.subr.bf16.mxu0 0
    %4323 = vmatpush1.bf16.msra.mxu0 0
    %4324 = vmatprep.subr.bf16.mxu0 0
    %4325 = vmatpush1.bf16.msra.mxu0 0
    %4326 = vmatprep.subr.bf16.mxu0 0
    %4327 = vmatpush1.bf16.msra.mxu0 0
    %4328 = vmatprep.subr.bf16.mxu0 0
    %4329 = vmatpush1.bf16.msra.mxu0 0
    %4330 = vmatprep.mubr.bf16.mxu0 0
    %4331 = vmatmul.mubr.bf16.gmra.mrb[0].mxu0 %v3848
    %v4332 = vpop.f32.mrb[0].mxu0
    %v4333 = vadd.f32 0.0, %v4332
    %v4334 = vpop.f32.mrb[0].mxu0
    %v4335 = vpop.f32.mrb[0].mxu0
    %v4336 = vpop.f32.mrb[0].mxu0
    %4337 = vdwg.mxu0
    %v4338 = vadd.f32 %v4281, %v4333
    %v4339 = vxor.u32 %v4338, 2147483648
    %v4340 = vmul.f32 %v4339, 1.442695
    %v4341 = vpow.pop %v4340
    %v4342 = vadd.f32 %v4341, 1.0
    %v4343 = vrcp.pop %v4342
    %v4344 = vmul.f32 1.0, %v4343
    %v4345 = vtanh.pop %v4338
    %v4346 = vmul.f32 %v4344, %v3764
    %4348 = vrot.lane.b32.xlu0 %v4345, 64
    %v4349 = vpop.permute.xlu0 %4348
    %v4351 = vmul.f32 %v4344, %v4349
    %4353 = vrot.lane.b32.xlu0 %v4351, 32
    %v4354 = vpop.permute.xlu0 %4353
    %v4356 = vadd.f32 %v4346, %v4354
    %v4357 = vtanh.pop %v4356
    %4359 = vrot.lane.b32.xlu0 %v4357, 64
    %v4360 = vpop.permute.xlu0 %4359
    %v4362 = vmul.f32 %v4344, %v4360
    %v4363 = vpack.c.bf16 %v4362, %v4362
    %v4364 = vld [vmem:[%s809] sm:$0xf]
    %v4365 = vld [vmem:[%s809 + $0x4] sm:$0xf]
    %v4366 = vld [vmem:[%s809 + $0x8] sm:$0xf]
    %v4367 = vld [vmem:[%s809 + $0xc] sm:$0xf]
    %v4368 = vld [vmem:[%s814] sm:$0xf]
    %v4369 = vld [vmem:[%s814 + $0x4] sm:$0xf]
    %v4370 = vld [vmem:[%s814 + $0x8] sm:$0xf]
    %v4371 = vld [vmem:[%s814 + $0xc] sm:$0xf]
    %v4376 = vunpack.c.l.b16 %v4368
    %v4377 = vunpack.c.l.b16 %v4369
    %v4378 = vunpack.c.l.b16 %v4370
    %v4379 = vunpack.c.l.b16 %v4371
    %v4380 = vpack.c.b16 %v4377, %v4376
    %v4381 = vpack.c.b16 %v4379, %v4378
    %4384 = vmatprep.subr.bf16.mxu0 0
    %4385 = vmatpush1.bf16.msra.mxu0 %v4380
    %4386 = vmatprep.subr.bf16.mxu0 0
    %4387 = vmatpush1.bf16.msra.mxu0 %v4381
    %4388 = vmatprep.subr.bf16.mxu0 0
    %4389 = vmatpush1.bf16.msra.mxu0 0
    %4390 = vmatprep.subr.bf16.mxu0 0
    %4391 = vmatpush1.bf16.msra.mxu0 0
    %4392 = vmatprep.subr.bf16.mxu0 0
    %4393 = vmatpush1.bf16.msra.mxu0 0
    %4394 = vmatprep.subr.bf16.mxu0 0
    %4395 = vmatpush1.bf16.msra.mxu0 0
    %4396 = vmatprep.subr.bf16.mxu0 0
    %4397 = vmatpush1.bf16.msra.mxu0 0
    %4398 = vmatprep.subr.bf16.mxu0 0
    %4399 = vmatpush1.bf16.msra.mxu0 0
    %4400 = vmatprep.subr.bf16.mxu0 0
    %4401 = vmatpush1.bf16.msra.mxu0 0
    %4402 = vmatprep.subr.bf16.mxu0 0
    %4403 = vmatpush1.bf16.msra.mxu0 0
    %4404 = vmatprep.subr.bf16.mxu0 0
    %4405 = vmatpush1.bf16.msra.mxu0 0
    %4406 = vmatprep.subr.bf16.mxu0 0
    %4407 = vmatpush1.bf16.msra.mxu0 0
    %4408 = vmatprep.subr.bf16.mxu0 0
    %4409 = vmatpush1.bf16.msra.mxu0 0
    %4410 = vmatprep.subr.bf16.mxu0 0
    %4411 = vmatpush1.bf16.msra.mxu0 0
    %4412 = vmatprep.subr.bf16.mxu0 0
    %4413 = vmatpush1.bf16.msra.mxu0 0
    %4414 = vmatprep.subr.bf16.mxu0 0
    %4415 = vmatpush1.bf16.msra.mxu0 0
    %4416 = vmatprep.mubr.bf16.mxu0 0
    %4417 = vmatmul.mubr.bf16.gmra.mrb[0].mxu0 %v3943
    %v4418 = vpop.f32.mrb[0].mxu0
    %v4419 = vadd.f32 0.0, %v4418
    %v4420 = vpop.f32.mrb[0].mxu0
    %v4421 = vpop.f32.mrb[0].mxu0
    %v4422 = vpop.f32.mrb[0].mxu0
    %4423 = vdwg.mxu0
    %4425 = vrot.lane.b32.xlu0 %v4363, 32
    %v4426 = vpop.permute.xlu0 %4425
    %v4431 = vunpack.c.l.b16 %v4364
    %v4432 = vunpack.c.l.b16 %v4365
    %v4433 = vunpack.c.l.b16 %v4366
    %v4434 = vunpack.c.l.b16 %v4367
    %v4435 = vpack.c.b16 %v4432, %v4431
    %v4436 = vpack.c.b16 %v4434, %v4433
    %v4440 = vsel %vm381, %v4426, 0
    %4442 = vmatprep.subr.bf16.mxu0 0
    %4443 = vmatpush1.bf16.msra.mxu0 %v4435
    %4444 = vmatprep.subr.bf16.mxu0 0
    %4445 = vmatpush1.bf16.msra.mxu0 %v4436
    %4446 = vmatprep.subr.bf16.mxu0 0
    %4447 = vmatpush1.bf16.msra.mxu0 0
    %4448 = vmatprep.subr.bf16.mxu0 0
    %4449 = vmatpush1.bf16.msra.mxu0 0
    %4450 = vmatprep.subr.bf16.mxu0 0
    %4451 = vmatpush1.bf16.msra.mxu0 0
    %4452 = vmatprep.subr.bf16.mxu0 0
    %4453 = vmatpush1.bf16.msra.mxu0 0
    %4454 = vmatprep.subr.bf16.mxu0 0
    %4455 = vmatpush1.bf16.msra.mxu0 0
    %4456 = vmatprep.subr.bf16.mxu0 0
    %4457 = vmatpush1.bf16.msra.mxu0 0
    %4458 = vmatprep.subr.bf16.mxu0 0
    %4459 = vmatpush1.bf16.msra.mxu0 0
    %4460 = vmatprep.subr.bf16.mxu0 0
    %4461 = vmatpush1.bf16.msra.mxu0 0
    %4462 = vmatprep.subr.bf16.mxu0 0
    %4463 = vmatpush1.bf16.msra.mxu0 0
    %4464 = vmatprep.subr.bf16.mxu0 0
    %4465 = vmatpush1.bf16.msra.mxu0 0
    %4466 = vmatprep.subr.bf16.mxu0 0
    %4467 = vmatpush1.bf16.msra.mxu0 0
    %4468 = vmatprep.subr.bf16.mxu0 0
    %4469 = vmatpush1.bf16.msra.mxu0 0
    %4470 = vmatprep.subr.bf16.mxu0 0
    %4471 = vmatpush1.bf16.msra.mxu0 0
    %4472 = vmatprep.subr.bf16.mxu0 0
    %4473 = vmatpush1.bf16.msra.mxu0 0
    %4474 = vmatprep.mubr.bf16.mxu0 0
    %4475 = vmatmul.mubr.bf16.gmra.mrb[0].mxu0 %v4440
    %v4476 = vpop.f32.mrb[0].mxu0
    %v4477 = vadd.f32 %v4419, %v4476
    %v4478 = vpop.f32.mrb[0].mxu0
    %v4479 = vpop.f32.mrb[0].mxu0
    %v4480 = vpop.f32.mrb[0].mxu0
    %4481 = vdwg.mxu0
    %v4482 = vld [vmem:[%s929] sm:$0xff]
    %v4483 = vadd.f32 %v4477, %v4482
    %v4484 = vxor.u32 %v4483, 2147483648
    %v4485 = vmul.f32 %v4484, 1.442695
    %v4486 = vpow.pop %v4485
    %v4487 = vadd.f32 %v4486, 1.0
    %v4488 = vrcp.pop %v4487
    %v4489 = vmul.f32 1.0, %v4488
    %v4490 = vtanh.pop %v4483
    %v4491 = vmul.f32 %v4489, %v3909
    %4493 = vrot.lane.b32.xlu0 %v4490, 64
    %v4494 = vpop.permute.xlu0 %4493
    %v4496 = vmul.f32 %v4489, %v4494
    %4498 = vrot.lane.b32.xlu0 %v4496, 32
    %v4499 = vpop.permute.xlu0 %4498
    %v4501 = vadd.f32 %v4491, %v4499
    %v4502 = vtanh.pop %v4501
    %4504 = vrot.lane.b32.xlu0 %v4502, 64
    %v4505 = vpop.permute.xlu0 %4504
    %v4507 = vmul.f32 %v4489, %v4505
    %4509 = vrot.lane.b32.xlu0 %v4507, 32
    %v4510 = vpop.permute.xlu0 %4509
    %4512 = vst.msk [vmem:[#allocation5 + $0x30] sm:$0xff] %vm381, %v4510
    %v4513 = vld [vmem:[#allocation2 + $0x38] sm:$0xff]
    %v4514 = vpack.c.bf16 %v4507, %v4507
    %v4515 = vld [vmem:[%s6] sm:$0xf]
    %v4516 = vld [vmem:[%s6 + $0x4] sm:$0xf]
    %v4517 = vld [vmem:[%s6 + $0x8] sm:$0xf]
    %v4518 = vld [vmem:[%s6 + $0xc] sm:$0xf]
    %4520 = vrot.lane.b32.xlu0 %v4514, 32
    %v4521 = vpop.permute.xlu0 %4520
    %v4526 = vunpack.c.l.b16 %v4515
    %v4527 = vunpack.c.l.b16 %v4516
    %v4528 = vunpack.c.l.b16 %v4517
    %v4529 = vunpack.c.l.b16 %v4518
    %v4530 = vpack.c.b16 %v4527, %v4526
    %v4531 = vpack.c.b16 %v4529, %v4528
    %v4535 = vsel %vm381, %v4521, 0
    %4537 = vmatprep.subr.bf16.mxu0 0
    %4538 = vmatpush1.bf16.msra.mxu0 %v4530
    %4539 = vmatprep.subr.bf16.mxu0 0
    %4540 = vmatpush1.bf16.msra.mxu0 %v4531
    %4541 = vmatprep.subr.bf16.mxu0 0
    %4542 = vmatpush1.bf16.msra.mxu0 0
    %4543 = vmatprep.subr.bf16.mxu0 0
    %4544 = vmatpush1.bf16.msra.mxu0 0
    %4545 = vmatprep.subr.bf16.mxu0 0
    %4546 = vmatpush1.bf16.msra.mxu0 0
    %4547 = vmatprep.subr.bf16.mxu0 0
    %4548 = vmatpush1.bf16.msra.mxu0 0
    %4549 = vmatprep.subr.bf16.mxu0 0
    %4550 = vmatpush1.bf16.msra.mxu0 0
    %4551 = vmatprep.subr.bf16.mxu0 0
    %4552 = vmatpush1.bf16.msra.mxu0 0
    %4553 = vmatprep.subr.bf16.mxu0 0
    %4554 = vmatpush1.bf16.msra.mxu0 0
    %4555 = vmatprep.subr.bf16.mxu0 0
    %4556 = vmatpush1.bf16.msra.mxu0 0
    %4557 = vmatprep.subr.bf16.mxu0 0
    %4558 = vmatpush1.bf16.msra.mxu0 0
    %4559 = vmatprep.subr.bf16.mxu0 0
    %4560 = vmatpush1.bf16.msra.mxu0 0
    %4561 = vmatprep.subr.bf16.mxu0 0
    %4562 = vmatpush1.bf16.msra.mxu0 0
    %4563 = vmatprep.subr.bf16.mxu0 0
    %4564 = vmatpush1.bf16.msra.mxu0 0
    %4565 = vmatprep.subr.bf16.mxu0 0
    %4566 = vmatpush1.bf16.msra.mxu0 0
    %4567 = vmatprep.subr.bf16.mxu0 0
    %4568 = vmatpush1.bf16.msra.mxu0 0
    %4569 = vmatprep.mubr.bf16.mxu0 0
    %4570 = vmatmul.mubr.bf16.gmra.mrb[0].mxu0 %v4535
    %v4571 = vpop.f32.mrb[0].mxu0
    %v4572 = vadd.f32 0.0, %v4571
    %v4573 = vpop.f32.mrb[0].mxu0
    %v4574 = vpop.f32.mrb[0].mxu0
    %v4575 = vpop.f32.mrb[0].mxu0
    %4576 = vdwg.mxu0
    %v4577 = vadd.f32 %v4513, %v4572
    %v4578 = vld [vmem:[%s426] sm:$0xf]
    %v4579 = vld [vmem:[%s426 + $0x4] sm:$0xf]
    %v4580 = vld [vmem:[%s426 + $0x8] sm:$0xf]
    %v4581 = vld [vmem:[%s426 + $0xc] sm:$0xf]
    %v4586 = vunpack.c.l.b16 %v4578
    %v4587 = vunpack.c.l.b16 %v4579
    %v4588 = vunpack.c.l.b16 %v4580
    %v4589 = vunpack.c.l.b16 %v4581
    %v4590 = vpack.c.b16 %v4587, %v4586
    %v4591 = vpack.c.b16 %v4589, %v4588
    %4594 = vmatprep.subr.bf16.mxu0 0
    %4595 = vmatpush1.bf16.msra.mxu0 %v4590
    %4596 = vmatprep.subr.bf16.mxu0 0
    %4597 = vmatpush1.bf16.msra.mxu0 %v4591
    %4598 = vmatprep.subr.bf16.mxu0 0
    %4599 = vmatpush1.bf16.msra.mxu0 0
    %4600 = vmatprep.subr.bf16.mxu0 0
    %4601 = vmatpush1.bf16.msra.mxu0 0
    %4602 = vmatprep.subr.bf16.mxu0 0
    %4603 = vmatpush1.bf16.msra.mxu0 0
    %4604 = vmatprep.subr.bf16.mxu0 0
    %4605 = vmatpush1.bf16.msra.mxu0 0
    %4606 = vmatprep.subr.bf16.mxu0 0
    %4607 = vmatpush1.bf16.msra.mxu0 0
    %4608 = vmatprep.subr.bf16.mxu0 0
    %4609 = vmatpush1.bf16.msra.mxu0 0
    %4610 = vmatprep.subr.bf16.mxu0 0
    %4611 = vmatpush1.bf16.msra.mxu0 0
    %4612 = vmatprep.subr.bf16.mxu0 0
    %4613 = vmatpush1.bf16.msra.mxu0 0
    %4614 = vmatprep.subr.bf16.mxu0 0
    %4615 = vmatpush1.bf16.msra.mxu0 0
    %4616 = vmatprep.subr.bf16.mxu0 0
    %4617 = vmatpush1.bf16.msra.mxu0 0
    %4618 = vmatprep.subr.bf16.mxu0 0
    %4619 = vmatpush1.bf16.msra.mxu0 0
    %4620 = vmatprep.subr.bf16.mxu0 0
    %4621 = vmatpush1.bf16.msra.mxu0 0
    %4622 = vmatprep.subr.bf16.mxu0 0
    %4623 = vmatpush1.bf16.msra.mxu0 0
    %4624 = vmatprep.subr.bf16.mxu0 0
    %4625 = vmatpush1.bf16.msra.mxu0 0
    %4626 = vmatprep.mubr.bf16.mxu0 0
    %4627 = vmatmul.mubr.bf16.gmra.mrb[0].mxu0 %v4144
    %v4628 = vpop.f32.mrb[0].mxu0
    %v4629 = vadd.f32 0.0, %v4628
    %v4630 = vpop.f32.mrb[0].mxu0
    %v4631 = vpop.f32.mrb[0].mxu0
    %v4632 = vpop.f32.mrb[0].mxu0
    %4633 = vdwg.mxu0
    %v4634 = vadd.f32 %v4577, %v4629
    %v4635 = vxor.u32 %v4634, 2147483648
    %v4636 = vmul.f32 %v4635, 1.442695
    %v4637 = vpow.pop %v4636
    %v4638 = vadd.f32 %v4637, 1.0
    %v4639 = vrcp.pop %v4638
    %v4640 = vmul.f32 1.0, %v4639
    %v4641 = vtanh.pop %v4634
    %v4642 = vmul.f32 %v4640, %v4060
    %4644 = vrot.lane.b32.xlu0 %v4641, 64
    %v4645 = vpop.permute.xlu0 %4644
    %v4647 = vmul.f32 %v4640, %v4645
    %4649 = vrot.lane.b32.xlu0 %v4647, 32
    %v4650 = vpop.permute.xlu0 %4649
    %v4652 = vadd.f32 %v4642, %v4650
    %v4653 = vtanh.pop %v4652
    %4655 = vrot.lane.b32.xlu0 %v4653, 64
    %v4656 = vpop.permute.xlu0 %4655
    %v4658 = vmul.f32 %v4640, %v4656
    %v4659 = vpack.c.bf16 %v4658, %v4658
    %v4660 = vld [vmem:[%s509] sm:$0xf]
    %v4661 = vld [vmem:[%s509 + $0x4] sm:$0xf]
    %v4662 = vld [vmem:[%s509 + $0x8] sm:$0xf]
    %v4663 = vld [vmem:[%s509 + $0xc] sm:$0xf]
    %v4664 = vld [vmem:[%s514] sm:$0xf]
    %v4665 = vld [vmem:[%s514 + $0x4] sm:$0xf]
    %v4666 = vld [vmem:[%s514 + $0x8] sm:$0xf]
    %v4667 = vld [vmem:[%s514 + $0xc] sm:$0xf]
    %v4672 = vunpack.c.l.b16 %v4664
    %v4673 = vunpack.c.l.b16 %v4665
    %v4674 = vunpack.c.l.b16 %v4666
    %v4675 = vunpack.c.l.b16 %v4667
    %v4676 = vpack.c.b16 %v4673, %v4672
    %v4677 = vpack.c.b16 %v4675, %v4674
    %4680 = vmatprep.subr.bf16.mxu0 0
    %4681 = vmatpush1.bf16.msra.mxu0 %v4676
    %4682 = vmatprep.subr.bf16.mxu0 0
    %4683 = vmatpush1.bf16.msra.mxu0 %v4677
    %4684 = vmatprep.subr.bf16.mxu0 0
    %4685 = vmatpush1.bf16.msra.mxu0 0
    %4686 = vmatprep.subr.bf16.mxu0 0
    %4687 = vmatpush1.bf16.msra.mxu0 0
    %4688 = vmatprep.subr.bf16.mxu0 0
    %4689 = vmatpush1.bf16.msra.mxu0 0
    %4690 = vmatprep.subr.bf16.mxu0 0
    %4691 = vmatpush1.bf16.msra.mxu0 0
    %4692 = vmatprep.subr.bf16.mxu0 0
    %4693 = vmatpush1.bf16.msra.mxu0 0
    %4694 = vmatprep.subr.bf16.mxu0 0
    %4695 = vmatpush1.bf16.msra.mxu0 0
    %4696 = vmatprep.subr.bf16.mxu0 0
    %4697 = vmatpush1.bf16.msra.mxu0 0
    %4698 = vmatprep.subr.bf16.mxu0 0
    %4699 = vmatpush1.bf16.msra.mxu0 0
    %4700 = vmatprep.subr.bf16.mxu0 0
    %4701 = vmatpush1.bf16.msra.mxu0 0
    %4702 = vmatprep.subr.bf16.mxu0 0
    %4703 = vmatpush1.bf16.msra.mxu0 0
    %4704 = vmatprep.subr.bf16.mxu0 0
    %4705 = vmatpush1.bf16.msra.mxu0 0
    %4706 = vmatprep.subr.bf16.mxu0 0
    %4707 = vmatpush1.bf16.msra.mxu0 0
    %4708 = vmatprep.subr.bf16.mxu0 0
    %4709 = vmatpush1.bf16.msra.mxu0 0
    %4710 = vmatprep.subr.bf16.mxu0 0
    %4711 = vmatpush1.bf16.msra.mxu0 0
    %4712 = vmatprep.mubr.bf16.mxu0 0
    %4713 = vmatmul.mubr.bf16.gmra.mrb[0].mxu0 %v4239
    %v4714 = vpop.f32.mrb[0].mxu0
    %v4715 = vadd.f32 0.0, %v4714
    %v4716 = vpop.f32.mrb[0].mxu0
    %v4717 = vpop.f32.mrb[0].mxu0
    %v4718 = vpop.f32.mrb[0].mxu0
    %4719 = vdwg.mxu0
    %4721 = vrot.lane.b32.xlu0 %v4659, 32
    %v4722 = vpop.permute.xlu0 %4721
    %v4727 = vunpack.c.l.b16 %v4660
    %v4728 = vunpack.c.l.b16 %v4661
    %v4729 = vunpack.c.l.b16 %v4662
    %v4730 = vunpack.c.l.b16 %v4663
    %v4731 = vpack.c.b16 %v4728, %v4727
    %v4732 = vpack.c.b16 %v4730, %v4729
    %v4736 = vsel %vm381, %v4722, 0
    %4738 = vmatprep.subr.bf16.mxu0 0
    %4739 = vmatpush1.bf16.msra.mxu0 %v4731
    %4740 = vmatprep.subr.bf16.mxu0 0
    %4741 = vmatpush1.bf16.msra.mxu0 %v4732
    %4742 = vmatprep.subr.bf16.mxu0 0
    %4743 = vmatpush1.bf16.msra.mxu0 0
    %4744 = vmatprep.subr.bf16.mxu0 0
    %4745 = vmatpush1.bf16.msra.mxu0 0
    %4746 = vmatprep.subr.bf16.mxu0 0
    %4747 = vmatpush1.bf16.msra.mxu0 0
    %4748 = vmatprep.subr.bf16.mxu0 0
    %4749 = vmatpush1.bf16.msra.mxu0 0
    %4750 = vmatprep.subr.bf16.mxu0 0
    %4751 = vmatpush1.bf16.msra.mxu0 0
    %4752 = vmatprep.subr.bf16.mxu0 0
    %4753 = vmatpush1.bf16.msra.mxu0 0
    %4754 = vmatprep.subr.bf16.mxu0 0
    %4755 = vmatpush1.bf16.msra.mxu0 0
    %4756 = vmatprep.subr.bf16.mxu0 0
    %4757 = vmatpush1.bf16.msra.mxu0 0
    %4758 = vmatprep.subr.bf16.mxu0 0
    %4759 = vmatpush1.bf16.msra.mxu0 0
    %4760 = vmatprep.subr.bf16.mxu0 0
    %4761 = vmatpush1.bf16.msra.mxu0 0
    %4762 = vmatprep.subr.bf16.mxu0 0
    %4763 = vmatpush1.bf16.msra.mxu0 0
    %4764 = vmatprep.subr.bf16.mxu0 0
    %4765 = vmatpush1.bf16.msra.mxu0 0
    %4766 = vmatprep.subr.bf16.mxu0 0
    %4767 = vmatpush1.bf16.msra.mxu0 0
    %4768 = vmatprep.subr.bf16.mxu0 0
    %4769 = vmatpush1.bf16.msra.mxu0 0
    %4770 = vmatprep.mubr.bf16.mxu0 0
    %4771 = vmatmul.mubr.bf16.gmra.mrb[0].mxu0 %v4736
    %v4772 = vpop.f32.mrb[0].mxu0
    %v4773 = vadd.f32 %v4715, %v4772
    %v4774 = vpop.f32.mrb[0].mxu0
    %v4775 = vpop.f32.mrb[0].mxu0
    %v4776 = vpop.f32.mrb[0].mxu0
    %4777 = vdwg.mxu0
    %v4778 = vld [vmem:[#allocation12] sm:$0xff]
    %v4779 = vadd.f32 %v4773, %v4778
    %v4780 = vxor.u32 %v4779, 2147483648
    %v4781 = vmul.f32 %v4780, 1.442695
    %v4782 = vpow.pop %v4781
    %v4783 = vadd.f32 %v4782, 1.0
    %v4784 = vrcp.pop %v4783
    %v4785 = vmul.f32 1.0, %v4784
    %v4786 = vtanh.pop %v4779
    %v4787 = vmul.f32 %v4785, %v4205
    %4789 = vrot.lane.b32.xlu0 %v4786, 64
    %v4790 = vpop.permute.xlu0 %4789
    %v4792 = vmul.f32 %v4785, %v4790
    %4794 = vrot.lane.b32.xlu0 %v4792, 32
    %v4795 = vpop.permute.xlu0 %4794
    %v4797 = vadd.f32 %v4787, %v4795
    %v4798 = vtanh.pop %v4797
    %4800 = vrot.lane.b32.xlu0 %v4798, 64
    %v4801 = vpop.permute.xlu0 %4800
    %v4803 = vmul.f32 %v4785, %v4801
    %4805 = vrot.lane.b32.xlu0 %v4803, 32
    %v4806 = vpop.permute.xlu0 %4805
    %4808 = vst.msk [vmem:[#allocation4 + $0x38] sm:$0xff] %vm381, %v4806
    %v4809 = vld [vmem:[#allocation3 + $0x38] sm:$0xff]
    %v4810 = vpack.c.bf16 %v4803, %v4803
    %v4811 = vld [vmem:[%s662] sm:$0xf]
    %v4812 = vld [vmem:[%s662 + $0x4] sm:$0xf]
    %v4813 = vld [vmem:[%s662 + $0x8] sm:$0xf]
    %v4814 = vld [vmem:[%s662 + $0xc] sm:$0xf]
    %4816 = vrot.lane.b32.xlu0 %v4810, 32
    %v4817 = vpop.permute.xlu0 %4816
    %v4822 = vunpack.c.l.b16 %v4811
    %v4823 = vunpack.c.l.b16 %v4812
    %v4824 = vunpack.c.l.b16 %v4813
    %v4825 = vunpack.c.l.b16 %v4814
    %v4826 = vpack.c.b16 %v4823, %v4822
    %v4827 = vpack.c.b16 %v4825, %v4824
    %v4831 = vsel %vm381, %v4817, 0
    %4833 = vmatprep.subr.bf16.mxu0 0
    %4834 = vmatpush1.bf16.msra.mxu0 %v4826
    %4835 = vmatprep.subr.bf16.mxu0 0
    %4836 = vmatpush1.bf16.msra.mxu0 %v4827
    %4837 = vmatprep.subr.bf16.mxu0 0
    %4838 = vmatpush1.bf16.msra.mxu0 0
    %4839 = vmatprep.subr.bf16.mxu0 0
    %4840 = vmatpush1.bf16.msra.mxu0 0
    %4841 = vmatprep.subr.bf16.mxu0 0
    %4842 = vmatpush1.bf16.msra.mxu0 0
    %4843 = vmatprep.subr.bf16.mxu0 0
    %4844 = vmatpush1.bf16.msra.mxu0 0
    %4845 = vmatprep.subr.bf16.mxu0 0
    %4846 = vmatpush1.bf16.msra.mxu0 0
    %4847 = vmatprep.subr.bf16.mxu0 0
    %4848 = vmatpush1.bf16.msra.mxu0 0
    %4849 = vmatprep.subr.bf16.mxu0 0
    %4850 = vmatpush1.bf16.msra.mxu0 0
    %4851 = vmatprep.subr.bf16.mxu0 0
    %4852 = vmatpush1.bf16.msra.mxu0 0
    %4853 = vmatprep.subr.bf16.mxu0 0
    %4854 = vmatpush1.bf16.msra.mxu0 0
    %4855 = vmatprep.subr.bf16.mxu0 0
    %4856 = vmatpush1.bf16.msra.mxu0 0
    %4857 = vmatprep.subr.bf16.mxu0 0
    %4858 = vmatpush1.bf16.msra.mxu0 0
    %4859 = vmatprep.subr.bf16.mxu0 0
    %4860 = vmatpush1.bf16.msra.mxu0 0
    %4861 = vmatprep.subr.bf16.mxu0 0
    %4862 = vmatpush1.bf16.msra.mxu0 0
    %4863 = vmatprep.subr.bf16.mxu0 0
    %4864 = vmatpush1.bf16.msra.mxu0 0
    %4865 = vmatprep.mubr.bf16.mxu0 0
    %4866 = vmatmul.mubr.bf16.gmra.mrb[0].mxu0 %v4831
    %v4867 = vpop.f32.mrb[0].mxu0
    %v4868 = vadd.f32 0.0, %v4867
    %v4869 = vpop.f32.mrb[0].mxu0
    %v4870 = vpop.f32.mrb[0].mxu0
    %v4871 = vpop.f32.mrb[0].mxu0
    %4872 = vdwg.mxu0
    %v4873 = vadd.f32 %v4809, %v4868
    %v4874 = vld [vmem:[%s726] sm:$0xf]
    %v4875 = vld [vmem:[%s726 + $0x4] sm:$0xf]
    %v4876 = vld [vmem:[%s726 + $0x8] sm:$0xf]
    %v4877 = vld [vmem:[%s726 + $0xc] sm:$0xf]
    %v4882 = vunpack.c.l.b16 %v4874
    %v4883 = vunpack.c.l.b16 %v4875
    %v4884 = vunpack.c.l.b16 %v4876
    %v4885 = vunpack.c.l.b16 %v4877
    %v4886 = vpack.c.b16 %v4883, %v4882
    %v4887 = vpack.c.b16 %v4885, %v4884
    %4890 = vmatprep.subr.bf16.mxu0 0
    %4891 = vmatpush1.bf16.msra.mxu0 %v4886
    %4892 = vmatprep.subr.bf16.mxu0 0
    %4893 = vmatpush1.bf16.msra.mxu0 %v4887
    %4894 = vmatprep.subr.bf16.mxu0 0
    %4895 = vmatpush1.bf16.msra.mxu0 0
    %4896 = vmatprep.subr.bf16.mxu0 0
    %4897 = vmatpush1.bf16.msra.mxu0 0
    %4898 = vmatprep.subr.bf16.mxu0 0
    %4899 = vmatpush1.bf16.msra.mxu0 0
    %4900 = vmatprep.subr.bf16.mxu0 0
    %4901 = vmatpush1.bf16.msra.mxu0 0
    %4902 = vmatprep.subr.bf16.mxu0 0
    %4903 = vmatpush1.bf16.msra.mxu0 0
    %4904 = vmatprep.subr.bf16.mxu0 0
    %4905 = vmatpush1.bf16.msra.mxu0 0
    %4906 = vmatprep.subr.bf16.mxu0 0
    %4907 = vmatpush1.bf16.msra.mxu0 0
    %4908 = vmatprep.subr.bf16.mxu0 0
    %4909 = vmatpush1.bf16.msra.mxu0 0
    %4910 = vmatprep.subr.bf16.mxu0 0
    %4911 = vmatpush1.bf16.msra.mxu0 0
    %4912 = vmatprep.subr.bf16.mxu0 0
    %4913 = vmatpush1.bf16.msra.mxu0 0
    %4914 = vmatprep.subr.bf16.mxu0 0
    %4915 = vmatpush1.bf16.msra.mxu0 0
    %4916 = vmatprep.subr.bf16.mxu0 0
    %4917 = vmatpush1.bf16.msra.mxu0 0
    %4918 = vmatprep.subr.bf16.mxu0 0
    %4919 = vmatpush1.bf16.msra.mxu0 0
    %4920 = vmatprep.subr.bf16.mxu0 0
    %4921 = vmatpush1.bf16.msra.mxu0 0
    %4922 = vmatprep.mubr.bf16.mxu0 0
    %4923 = vmatmul.mubr.bf16.gmra.mrb[0].mxu0 %v4440
    %v4924 = vpop.f32.mrb[0].mxu0
    %v4925 = vadd.f32 0.0, %v4924
    %v4926 = vpop.f32.mrb[0].mxu0
    %v4927 = vpop.f32.mrb[0].mxu0
    %v4928 = vpop.f32.mrb[0].mxu0
    %4929 = vdwg.mxu0
    %v4930 = vadd.f32 %v4873, %v4925
    %v4931 = vxor.u32 %v4930, 2147483648
    %v4932 = vmul.f32 %v4931, 1.442695
    %v4933 = vpow.pop %v4932
    %v4934 = vadd.f32 %v4933, 1.0
    %v4935 = vrcp.pop %v4934
    %v4936 = vmul.f32 1.0, %v4935
    %v4937 = vtanh.pop %v4930
    %v4938 = vmul.f32 %v4936, %v4356
    %4940 = vrot.lane.b32.xlu0 %v4937, 64
    %v4941 = vpop.permute.xlu0 %4940
    %v4943 = vmul.f32 %v4936, %v4941
    %4945 = vrot.lane.b32.xlu0 %v4943, 32
    %v4946 = vpop.permute.xlu0 %4945
    %v4948 = vadd.f32 %v4938, %v4946
    %v4949 = vtanh.pop %v4948
    %4951 = vrot.lane.b32.xlu0 %v4949, 64
    %v4952 = vpop.permute.xlu0 %4951
    %v4954 = vmul.f32 %v4936, %v4952
    %v4955 = vpack.c.bf16 %v4954, %v4954
    %v4956 = vld [vmem:[%s809] sm:$0xf]
    %v4957 = vld [vmem:[%s809 + $0x4] sm:$0xf]
    %v4958 = vld [vmem:[%s809 + $0x8] sm:$0xf]
    %v4959 = vld [vmem:[%s809 + $0xc] sm:$0xf]
    %v4960 = vld [vmem:[%s814] sm:$0xf]
    %v4961 = vld [vmem:[%s814 + $0x4] sm:$0xf]
    %v4962 = vld [vmem:[%s814 + $0x8] sm:$0xf]
    %v4963 = vld [vmem:[%s814 + $0xc] sm:$0xf]
    %v4968 = vunpack.c.l.b16 %v4960
    %v4969 = vunpack.c.l.b16 %v4961
    %v4970 = vunpack.c.l.b16 %v4962
    %v4971 = vunpack.c.l.b16 %v4963
    %v4972 = vpack.c.b16 %v4969, %v4968
    %v4973 = vpack.c.b16 %v4971, %v4970
    %4976 = vmatprep.subr.bf16.mxu0 0
    %4977 = vmatpush1.bf16.msra.mxu0 %v4972
    %4978 = vmatprep.subr.bf16.mxu0 0
    %4979 = vmatpush1.bf16.msra.mxu0 %v4973
    %4980 = vmatprep.subr.bf16.mxu0 0
    %4981 = vmatpush1.bf16.msra.mxu0 0
    %4982 = vmatprep.subr.bf16.mxu0 0
    %4983 = vmatpush1.bf16.msra.mxu0 0
    %4984 = vmatprep.subr.bf16.mxu0 0
    %4985 = vmatpush1.bf16.msra.mxu0 0
    %4986 = vmatprep.subr.bf16.mxu0 0
    %4987 = vmatpush1.bf16.msra.mxu0 0
    %4988 = vmatprep.subr.bf16.mxu0 0
    %4989 = vmatpush1.bf16.msra.mxu0 0
    %4990 = vmatprep.subr.bf16.mxu0 0
    %4991 = vmatpush1.bf16.msra.mxu0 0
    %4992 = vmatprep.subr.bf16.mxu0 0
    %4993 = vmatpush1.bf16.msra.mxu0 0
    %4994 = vmatprep.subr.bf16.mxu0 0
    %4995 = vmatpush1.bf16.msra.mxu0 0
    %4996 = vmatprep.subr.bf16.mxu0 0
    %4997 = vmatpush1.bf16.msra.mxu0 0
    %4998 = vmatprep.subr.bf16.mxu0 0
    %4999 = vmatpush1.bf16.msra.mxu0 0
    %5000 = vmatprep.subr.bf16.mxu0 0
    %5001 = vmatpush1.bf16.msra.mxu0 0
    %5002 = vmatprep.subr.bf16.mxu0 0
    %5003 = vmatpush1.bf16.msra.mxu0 0
    %5004 = vmatprep.subr.bf16.mxu0 0
    %5005 = vmatpush1.bf16.msra.mxu0 0
    %5006 = vmatprep.subr.bf16.mxu0 0
    %5007 = vmatpush1.bf16.msra.mxu0 0
    %5008 = vmatprep.mubr.bf16.mxu0 0
    %5009 = vmatmul.mubr.bf16.gmra.mrb[0].mxu0 %v4535
    %v5010 = vpop.f32.mrb[0].mxu0
    %v5011 = vadd.f32 0.0, %v5010
    %v5012 = vpop.f32.mrb[0].mxu0
    %v5013 = vpop.f32.mrb[0].mxu0
    %v5014 = vpop.f32.mrb[0].mxu0
    %5015 = vdwg.mxu0
    %5017 = vrot.lane.b32.xlu0 %v4955, 32
    %v5018 = vpop.permute.xlu0 %5017
    %v5023 = vunpack.c.l.b16 %v4956
    %v5024 = vunpack.c.l.b16 %v4957
    %v5025 = vunpack.c.l.b16 %v4958
    %v5026 = vunpack.c.l.b16 %v4959
    %v5027 = vpack.c.b16 %v5024, %v5023
    %v5028 = vpack.c.b16 %v5026, %v5025
    %v5032 = vsel %vm381, %v5018, 0
    %5034 = vmatprep.subr.bf16.mxu0 0
    %5035 = vmatpush1.bf16.msra.mxu0 %v5027
    %5036 = vmatprep.subr.bf16.mxu0 0
    %5037 = vmatpush1.bf16.msra.mxu0 %v5028
    %5038 = vmatprep.subr.bf16.mxu0 0
    %5039 = vmatpush1.bf16.msra.mxu0 0
    %5040 = vmatprep.subr.bf16.mxu0 0
    %5041 = vmatpush1.bf16.msra.mxu0 0
    %5042 = vmatprep.subr.bf16.mxu0 0
    %5043 = vmatpush1.bf16.msra.mxu0 0
    %5044 = vmatprep.subr.bf16.mxu0 0
    %5045 = vmatpush1.bf16.msra.mxu0 0
    %5046 = vmatprep.subr.bf16.mxu0 0
    %5047 = vmatpush1.bf16.msra.mxu0 0
    %5048 = vmatprep.subr.bf16.mxu0 0
    %5049 = vmatpush1.bf16.msra.mxu0 0
    %5050 = vmatprep.subr.bf16.mxu0 0
    %5051 = vmatpush1.bf16.msra.mxu0 0
    %5052 = vmatprep.subr.bf16.mxu0 0
    %5053 = vmatpush1.bf16.msra.mxu0 0
    %5054 = vmatprep.subr.bf16.mxu0 0
    %5055 = vmatpush1.bf16.msra.mxu0 0
    %5056 = vmatprep.subr.bf16.mxu0 0
    %5057 = vmatpush1.bf16.msra.mxu0 0
    %5058 = vmatprep.subr.bf16.mxu0 0
    %5059 = vmatpush1.bf16.msra.mxu0 0
    %5060 = vmatprep.subr.bf16.mxu0 0
    %5061 = vmatpush1.bf16.msra.mxu0 0
    %5062 = vmatprep.subr.bf16.mxu0 0
    %5063 = vmatpush1.bf16.msra.mxu0 0
    %5064 = vmatprep.subr.bf16.mxu0 0
    %5065 = vmatpush1.bf16.msra.mxu0 0
    %5066 = vmatprep.mubr.bf16.mxu0 0
    %5067 = vmatmul.mubr.bf16.gmra.mrb[0].mxu0 %v5032
    %v5068 = vpop.f32.mrb[0].mxu0
    %v5069 = vadd.f32 %v5011, %v5068
    %v5070 = vpop.f32.mrb[0].mxu0
    %v5071 = vpop.f32.mrb[0].mxu0
    %v5072 = vpop.f32.mrb[0].mxu0
    %5073 = vdwg.mxu0
    %v5074 = vld [vmem:[%s929] sm:$0xff]
    %v5075 = vadd.f32 %v5069, %v5074
    %v5076 = vxor.u32 %v5075, 2147483648
    %v5077 = vmul.f32 %v5076, 1.442695
    %v5078 = vpow.pop %v5077
    %v5079 = vadd.f32 %v5078, 1.0
    %v5080 = vrcp.pop %v5079
    %v5081 = vmul.f32 1.0, %v5080
    %v5082 = vtanh.pop %v5075
    %v5083 = vmul.f32 %v5081, %v4501
    %5085 = vrot.lane.b32.xlu0 %v5082, 64
    %v5086 = vpop.permute.xlu0 %5085
    %v5088 = vmul.f32 %v5081, %v5086
    %5090 = vrot.lane.b32.xlu0 %v5088, 32
    %v5091 = vpop.permute.xlu0 %5090
    %v5093 = vadd.f32 %v5083, %v5091
    %v5094 = vtanh.pop %v5093
    %5096 = vrot.lane.b32.xlu0 %v5094, 64
    %v5097 = vpop.permute.xlu0 %5096
    %v5099 = vmul.f32 %v5081, %v5097
    %5101 = vrot.lane.b32.xlu0 %v5099, 32
    %v5102 = vpop.permute.xlu0 %5101
    %5104 = vst.msk [vmem:[#allocation5 + $0x38] sm:$0xff] %vm381, %v5102
    %v5105 = vld [vmem:[#allocation4] sm:$0xff]
    %v5106 = vld [vmem:[#allocation4 + $0x8] sm:$0xff]
    %v5107 = vld [vmem:[#allocation4 + $0x10] sm:$0xff]
    %v5108 = vld [vmem:[#allocation4 + $0x18] sm:$0xff]
    %v5109 = vld [vmem:[#allocation4 + $0x20] sm:$0xff]
    %v5110 = vld [vmem:[#allocation4 + $0x28] sm:$0xff]
    %v5111 = vld [vmem:[#allocation4 + $0x30] sm:$0xff]
    %v5112 = vld [vmem:[#allocation4 + $0x38] sm:$0xff]
    %v5113 = vld [vmem:[%s8] sm:$0xff]
    %v5114 = vld [vmem:[%s8 + $0x8] sm:$0xff]
    %v5115 = vld [vmem:[%s8 + $0x10] sm:$0xff]
    %v5116 = vld [vmem:[%s8 + $0x18] sm:$0xff]
    %v5117 = vld [vmem:[#allocation14] sm:$0x1]
    %v5119 = vlaneseq
    %v5120 = vshrl.u32 %v5119, 7
    %v5121 = vsub.s32 0, %v5120
    %v5122 = vrot.slane %v5117, %v5121
    %v5125 = vsel %vm381, %v5105, 0
    %v5128 = vsel %vm381, %v5106, 0
    %v5131 = vsel %vm381, %v5107, 0
    %v5134 = vsel %vm381, %v5108, 0
    %v5137 = vsel %vm381, %v5109, 0
    %v5140 = vsel %vm381, %v5110, 0
    %v5143 = vsel %vm381, %v5111, 0
    %v5146 = vsel %vm381, %v5112, 0
    %5148 = vmatprep.subr.mxu0 0.0
    %5149 = vmatpush1.msra.mxu0 %v5113
    %5150 = vmatprep.subr.mxu0 0.0
    %5151 = vmatpush1.msra.mxu0 %v5114
    %5152 = vmatprep.subr.mxu0 0.0
    %5153 = vmatpush1.msra.mxu0 %v5115
    %5154 = vmatprep.subr.mxu0 0.0
    %5155 = vmatpush1.msra.mxu0 %v5116
    %5156 = vmatprep.subr.mxu0 0.0
    %5157 = vmatpush1.msra.mxu0 0.0
    %5158 = vmatprep.subr.mxu0 0.0
    %5159 = vmatpush1.msra.mxu0 0.0
    %5160 = vmatprep.subr.mxu0 0.0
    %5161 = vmatpush1.msra.mxu0 0.0
    %5162 = vmatprep.subr.mxu0 0.0
    %5163 = vmatpush1.msra.mxu0 0.0
    %5164 = vmatprep.subr.mxu0 0.0
    %5165 = vmatpush1.msra.mxu0 0.0
    %5166 = vmatprep.subr.mxu0 0.0
    %5167 = vmatpush1.msra.mxu0 0.0
    %5168 = vmatprep.subr.mxu0 0.0
    %5169 = vmatpush1.msra.mxu0 0.0
    %5170 = vmatprep.subr.mxu0 0.0
    %5171 = vmatpush1.msra.mxu0 0.0
    %5172 = vmatprep.subr.mxu0 0.0
    %5173 = vmatpush1.msra.mxu0 0.0
    %5174 = vmatprep.subr.mxu0 0.0
    %5175 = vmatpush1.msra.mxu0 0.0
    %5176 = vmatprep.subr.mxu0 0.0
    %5177 = vmatpush1.msra.mxu0 0.0
    %5178 = vmatprep.subr.mxu0 0.0
    %5179 = vmatpush1.msra.mxu0 0.0
    %5180 = vmatprep.subr.mxu0 0.0
    %5181 = vmatpush1.msra.mxu0 0.0
    %5182 = vmatprep.subr.mxu0 0.0
    %5183 = vmatpush1.msra.mxu0 0.0
    %5184 = vmatprep.subr.mxu0 0.0
    %5185 = vmatpush1.msra.mxu0 0.0
    %5186 = vmatprep.subr.mxu0 0.0
    %5187 = vmatpush1.msra.mxu0 0.0
    %5188 = vmatprep.subr.mxu0 0.0
    %5189 = vmatpush1.msra.mxu0 0.0
    %5190 = vmatprep.subr.mxu0 0.0
    %5191 = vmatpush1.msra.mxu0 0.0
    %5192 = vmatprep.subr.mxu0 0.0
    %5193 = vmatpush1.msra.mxu0 0.0
    %5194 = vmatprep.subr.mxu0 0.0
    %5195 = vmatpush1.msra.mxu0 0.0
    %5196 = vmatprep.subr.mxu0 0.0
    %5197 = vmatpush1.msra.mxu0 0.0
    %5198 = vmatprep.subr.mxu0 0.0
    %5199 = vmatpush1.msra.mxu0 0.0
    %5200 = vmatprep.subr.mxu0 0.0
    %5201 = vmatpush1.msra.mxu0 0.0
    %5202 = vmatprep.subr.mxu0 0.0
    %5203 = vmatpush1.msra.mxu0 0.0
    %5204 = vmatprep.subr.mxu0 0.0
    %5205 = vmatpush1.msra.mxu0 0.0
    %5206 = vmatprep.subr.mxu0 0.0
    %5207 = vmatpush1.msra.mxu0 0.0
    %5208 = vmatprep.subr.mxu0 0.0
    %5209 = vmatpush1.msra.mxu0 0.0
    %5210 = vmatprep.subr.mxu0 0.0
    %5211 = vmatpush1.msra.mxu0 0.0
    %5212 = vmatprep.mubr.f32.mxu0 0.0
    %5213 = vmatmul.mubr.f32.gmra.mrb[0].mxu0 %v5125
    %v5214 = vpop.f32.mrb[0].mxu0
    %v5215 = vadd.f32 %v5122, %v5214
    %v5216 = vpop.f32.mrb[0].mxu0
    %5217 = vmatprep.mubr.f32.mxu0 0.0
    %5218 = vmatmul.mubr.f32.gmra.mrb[0].mxu0 %v5128
    %v5219 = vpop.f32.mrb[0].mxu0
    %v5220 = vadd.f32 %v5122, %v5219
    %v5221 = vpop.f32.mrb[0].mxu0
    %5222 = vmatprep.mubr.f32.mxu0 0.0
    %5223 = vmatmul.mubr.f32.gmra.mrb[0].mxu0 %v5131
    %v5224 = vpop.f32.mrb[0].mxu0
    %v5225 = vadd.f32 %v5122, %v5224
    %v5226 = vpop.f32.mrb[0].mxu0
    %5227 = vmatprep.mubr.f32.mxu0 0.0
    %5228 = vmatmul.mubr.f32.gmra.mrb[0].mxu0 %v5134
    %v5229 = vpop.f32.mrb[0].mxu0
    %v5230 = vadd.f32 %v5122, %v5229
    %v5231 = vpop.f32.mrb[0].mxu0
    %5232 = vmatprep.mubr.f32.mxu0 0.0
    %5233 = vmatmul.mubr.f32.gmra.mrb[0].mxu0 %v5137
    %v5234 = vpop.f32.mrb[0].mxu0
    %v5235 = vadd.f32 %v5122, %v5234
    %v5236 = vpop.f32.mrb[0].mxu0
    %5237 = vmatprep.mubr.f32.mxu0 0.0
    %5238 = vmatmul.mubr.f32.gmra.mrb[0].mxu0 %v5140
    %v5239 = vpop.f32.mrb[0].mxu0
    %v5240 = vadd.f32 %v5122, %v5239
    %v5241 = vpop.f32.mrb[0].mxu0
    %5242 = vmatprep.mubr.f32.mxu0 0.0
    %5243 = vmatmul.mubr.f32.gmra.mrb[0].mxu0 %v5143
    %v5244 = vpop.f32.mrb[0].mxu0
    %v5245 = vadd.f32 %v5122, %v5244
    %v5246 = vpop.f32.mrb[0].mxu0
    %5247 = vmatprep.mubr.f32.mxu0 0.0
    %5248 = vmatmul.mubr.f32.gmra.mrb[0].mxu0 %v5146
    %v5249 = vpop.f32.mrb[0].mxu0
    %v5250 = vadd.f32 %v5122, %v5249
    %v5251 = vpop.f32.mrb[0].mxu0
    %5252 = vdwg.mxu0
    %v5253 = vld [vmem:[#allocation5] sm:$0xff]
    %v5254 = vld [vmem:[#allocation5 + $0x8] sm:$0xff]
    %v5255 = vld [vmem:[#allocation5 + $0x10] sm:$0xff]
    %v5256 = vld [vmem:[#allocation5 + $0x18] sm:$0xff]
    %v5257 = vld [vmem:[#allocation5 + $0x20] sm:$0xff]
    %v5258 = vld [vmem:[#allocation5 + $0x28] sm:$0xff]
    %v5259 = vld [vmem:[#allocation5 + $0x30] sm:$0xff]
    %v5260 = vld [vmem:[#allocation5 + $0x38] sm:$0xff]
    %v5261 = vld [vmem:[%s10] sm:$0xff]
    %v5262 = vld [vmem:[%s10 + $0x8] sm:$0xff]
    %v5263 = vld [vmem:[%s10 + $0x10] sm:$0xff]
    %v5264 = vld [vmem:[%s10 + $0x18] sm:$0xff]
    %v5265 = vld [vmem:[%s11] sm:$0x1]
    %v5267 = vlaneseq
    %v5268 = vshrl.u32 %v5267, 7
    %v5269 = vsub.s32 0, %v5268
    %v5270 = vrot.slane %v5265, %v5269
    %v5273 = vsel %vm381, %v5253, 0
    %v5276 = vsel %vm381, %v5254, 0
    %v5279 = vsel %vm381, %v5255, 0
    %v5282 = vsel %vm381, %v5256, 0
    %v5285 = vsel %vm381, %v5257, 0
    %v5288 = vsel %vm381, %v5258, 0
    %v5291 = vsel %vm381, %v5259, 0
    %v5294 = vsel %vm381, %v5260, 0
    %5296 = vmatprep.subr.mxu0 0.0
    %5297 = vmatpush1.msra.mxu0 %v5261
    %5298 = vmatprep.subr.mxu0 0.0
    %5299 = vmatpush1.msra.mxu0 %v5262
    %5300 = vmatprep.subr.mxu0 0.0
    %5301 = vmatpush1.msra.mxu0 %v5263
    %5302 = vmatprep.subr.mxu0 0.0
    %5303 = vmatpush1.msra.mxu0 %v5264
    %5304 = vmatprep.subr.mxu0 0.0
    %5305 = vmatpush1.msra.mxu0 0.0
    %5306 = vmatprep.subr.mxu0 0.0
    %5307 = vmatpush1.msra.mxu0 0.0
    %5308 = vmatprep.subr.mxu0 0.0
    %5309 = vmatpush1.msra.mxu0 0.0
    %5310 = vmatprep.subr.mxu0 0.0
    %5311 = vmatpush1.msra.mxu0 0.0
    %5312 = vmatprep.subr.mxu0 0.0
    %5313 = vmatpush1.msra.mxu0 0.0
    %5314 = vmatprep.subr.mxu0 0.0
    %5315 = vmatpush1.msra.mxu0 0.0
    %5316 = vmatprep.subr.mxu0 0.0
    %5317 = vmatpush1.msra.mxu0 0.0
    %5318 = vmatprep.subr.mxu0 0.0
    %5319 = vmatpush1.msra.mxu0 0.0
    %5320 = vmatprep.subr.mxu0 0.0
    %5321 = vmatpush1.msra.mxu0 0.0
    %5322 = vmatprep.subr.mxu0 0.0
    %5323 = vmatpush1.msra.mxu0 0.0
    %5324 = vmatprep.subr.mxu0 0.0
    %5325 = vmatpush1.msra.mxu0 0.0
    %5326 = vmatprep.subr.mxu0 0.0
    %5327 = vmatpush1.msra.mxu0 0.0
    %5328 = vmatprep.subr.mxu0 0.0
    %5329 = vmatpush1.msra.mxu0 0.0
    %5330 = vmatprep.subr.mxu0 0.0
    %5331 = vmatpush1.msra.mxu0 0.0
    %5332 = vmatprep.subr.mxu0 0.0
    %5333 = vmatpush1.msra.mxu0 0.0
    %5334 = vmatprep.subr.mxu0 0.0
    %5335 = vmatpush1.msra.mxu0 0.0
    %5336 = vmatprep.subr.mxu0 0.0
    %5337 = vmatpush1.msra.mxu0 0.0
    %5338 = vmatprep.subr.mxu0 0.0
    %5339 = vmatpush1.msra.mxu0 0.0
    %5340 = vmatprep.subr.mxu0 0.0
    %5341 = vmatpush1.msra.mxu0 0.0
    %5342 = vmatprep.subr.mxu0 0.0
    %5343 = vmatpush1.msra.mxu0 0.0
    %5344 = vmatprep.subr.mxu0 0.0
    %5345 = vmatpush1.msra.mxu0 0.0
    %5346 = vmatprep.subr.mxu0 0.0
    %5347 = vmatpush1.msra.mxu0 0.0
    %5348 = vmatprep.subr.mxu0 0.0
    %5349 = vmatpush1.msra.mxu0 0.0
    %5350 = vmatprep.subr.mxu0 0.0
    %5351 = vmatpush1.msra.mxu0 0.0
    %5352 = vmatprep.subr.mxu0 0.0
    %5353 = vmatpush1.msra.mxu0 0.0
    %5354 = vmatprep.subr.mxu0 0.0
    %5355 = vmatpush1.msra.mxu0 0.0
    %5356 = vmatprep.subr.mxu0 0.0
    %5357 = vmatpush1.msra.mxu0 0.0
    %5358 = vmatprep.subr.mxu0 0.0
    %5359 = vmatpush1.msra.mxu0 0.0
    %5360 = vmatprep.mubr.f32.mxu0 0.0
    %5361 = vmatmul.mubr.f32.gmra.mrb[0].mxu0 %v5273
    %v5362 = vpop.f32.mrb[0].mxu0
    %v5363 = vadd.f32 %v5270, %v5362
    %v5364 = vpop.f32.mrb[0].mxu0
    %5365 = vmatprep.mubr.f32.mxu0 0.0
    %5366 = vmatmul.mubr.f32.gmra.mrb[0].mxu0 %v5276
    %v5367 = vpop.f32.mrb[0].mxu0
    %v5368 = vadd.f32 %v5270, %v5367
    %v5369 = vpop.f32.mrb[0].mxu0
    %5370 = vmatprep.mubr.f32.mxu0 0.0
    %5371 = vmatmul.mubr.f32.gmra.mrb[0].mxu0 %v5279
    %v5372 = vpop.f32.mrb[0].mxu0
    %v5373 = vadd.f32 %v5270, %v5372
    %v5374 = vpop.f32.mrb[0].mxu0
    %5375 = vmatprep.mubr.f32.mxu0 0.0
    %5376 = vmatmul.mubr.f32.gmra.mrb[0].mxu0 %v5282
    %v5377 = vpop.f32.mrb[0].mxu0
    %v5378 = vadd.f32 %v5270, %v5377
    %v5379 = vpop.f32.mrb[0].mxu0
    %5380 = vmatprep.mubr.f32.mxu0 0.0
    %5381 = vmatmul.mubr.f32.gmra.mrb[0].mxu0 %v5285
    %v5382 = vpop.f32.mrb[0].mxu0
    %v5383 = vadd.f32 %v5270, %v5382
    %v5384 = vpop.f32.mrb[0].mxu0
    %5385 = vmatprep.mubr.f32.mxu0 0.0
    %5386 = vmatmul.mubr.f32.gmra.mrb[0].mxu0 %v5288
    %v5387 = vpop.f32.mrb[0].mxu0
    %v5388 = vadd.f32 %v5270, %v5387
    %v5389 = vpop.f32.mrb[0].mxu0
    %5390 = vmatprep.mubr.f32.mxu0 0.0
    %5391 = vmatmul.mubr.f32.gmra.mrb[0].mxu0 %v5291
    %v5392 = vpop.f32.mrb[0].mxu0
    %v5393 = vadd.f32 %v5270, %v5392
    %v5394 = vpop.f32.mrb[0].mxu0
    %5395 = vmatprep.mubr.f32.mxu0 0.0
    %5396 = vmatmul.mubr.f32.gmra.mrb[0].mxu0 %v5294
    %v5397 = vpop.f32.mrb[0].mxu0
    %v5398 = vadd.f32 %v5270, %v5397
    %v5399 = vpop.f32.mrb[0].mxu0
    %5400 = vdwg.mxu0
    %v5401 = vsel %vm278, %v5215, -inf
    %5402 = vmax.xlane.f32.xlu0 %v5401
    %v5403 = vpop.xlane.xlu0 %5402
    %v5404 = vsel %vm278, %v5220, -inf
    %5405 = vmax.xlane.f32.xlu0 %v5404
    %v5406 = vpop.xlane.xlu0 %5405
    %v5407 = vsel %vm278, %v5225, -inf
    %5408 = vmax.xlane.f32.xlu0 %v5407
    %v5409 = vpop.xlane.xlu0 %5408
    %v5410 = vsel %vm278, %v5230, -inf
    %5411 = vmax.xlane.f32.xlu0 %v5410
    %v5412 = vpop.xlane.xlu0 %5411
    %v5413 = vsel %vm278, %v5235, -inf
    %5414 = vmax.xlane.f32.xlu0 %v5413
    %v5415 = vpop.xlane.xlu0 %5414
    %v5416 = vsel %vm278, %v5240, -inf
    %5417 = vmax.xlane.f32.xlu0 %v5416
    %v5418 = vpop.xlane.xlu0 %5417
    %v5419 = vsel %vm278, %v5245, -inf
    %5420 = vmax.xlane.f32.xlu0 %v5419
    %v5421 = vpop.xlane.xlu0 %5420
    %v5422 = vsel %vm278, %v5250, -inf
    %5423 = vmax.xlane.f32.xlu0 %v5422
    %v5424 = vpop.xlane.xlu0 %5423
    %v5425 = vsub.f32 %v5215, %v5403
    %v5426 = vsub.f32 %v5220, %v5406
    %v5427 = vsub.f32 %v5225, %v5409
    %v5428 = vsub.f32 %v5230, %v5412
    %v5429 = vsub.f32 %v5235, %v5415
    %v5430 = vsub.f32 %v5240, %v5418
    %v5431 = vsub.f32 %v5245, %v5421
    %v5432 = vsub.f32 %v5250, %v5424
    %v5433 = vmul.f32 %v5425, 1.442695
    %v5434 = vpow.pop %v5433
    %v5435 = vmul.f32 %v5426, 1.442695
    %v5436 = vpow.pop %v5435
    %v5437 = vmul.f32 %v5427, 1.442695
    %v5438 = vpow.pop %v5437
    %v5439 = vmul.f32 %v5428, 1.442695
    %v5440 = vpow.pop %v5439
    %v5441 = vmul.f32 %v5429, 1.442695
    %v5442 = vpow.pop %v5441
    %v5443 = vmul.f32 %v5430, 1.442695
    %v5444 = vpow.pop %v5443
    %v5445 = vmul.f32 %v5431, 1.442695
    %v5446 = vpow.pop %v5445
    %v5447 = vmul.f32 %v5432, 1.442695
    %v5448 = vpow.pop %v5447
    %v5449 = vsel %vm278, %v5434, 0.0
    %5450 = vadd.xlane.f32.xlu0 %v5449
    %v5451 = vpop.xlane.xlu0 %5450
    %v5452 = vsel %vm278, %v5436, 0.0
    %5453 = vadd.xlane.f32.xlu0 %v5452
    %v5454 = vpop.xlane.xlu0 %5453
    %v5455 = vsel %vm278, %v5438, 0.0
    %5456 = vadd.xlane.f32.xlu0 %v5455
    %v5457 = vpop.xlane.xlu0 %5456
    %v5458 = vsel %vm278, %v5440, 0.0
    %5459 = vadd.xlane.f32.xlu0 %v5458
    %v5460 = vpop.xlane.xlu0 %5459
    %v5461 = vsel %vm278, %v5442, 0.0
    %5462 = vadd.xlane.f32.xlu0 %v5461
    %v5463 = vpop.xlane.xlu0 %5462
    %v5464 = vsel %vm278, %v5444, 0.0
    %5465 = vadd.xlane.f32.xlu0 %v5464
    %v5466 = vpop.xlane.xlu0 %5465
    %v5467 = vsel %vm278, %v5446, 0.0
    %5468 = vadd.xlane.f32.xlu0 %v5467
    %v5469 = vpop.xlane.xlu0 %5468
    %v5470 = vsel %vm278, %v5448, 0.0
    %5471 = vadd.xlane.f32.xlu0 %v5470
    %v5472 = vpop.xlane.xlu0 %5471
    %v5473 = vlog2.pop %v5451
    %v5474 = vmul.f32 %v5473, 0.6931472
    %v5475 = vlog2.pop %v5454
    %v5476 = vmul.f32 %v5475, 0.6931472
    %v5477 = vlog2.pop %v5457
    %v5478 = vmul.f32 %v5477, 0.6931472
    %v5479 = vlog2.pop %v5460
    %v5480 = vmul.f32 %v5479, 0.6931472
    %v5481 = vlog2.pop %v5463
    %v5482 = vmul.f32 %v5481, 0.6931472
    %v5483 = vlog2.pop %v5466
    %v5484 = vmul.f32 %v5483, 0.6931472
    %v5485 = vlog2.pop %v5469
    %v5486 = vmul.f32 %v5485, 0.6931472
    %v5487 = vlog2.pop %v5472
    %v5488 = vmul.f32 %v5487, 0.6931472
    %v5489 = vsub.f32 %v5425, %v5474
    %v5490 = vsub.f32 %v5426, %v5476
    %v5491 = vsub.f32 %v5427, %v5478
    %v5492 = vsub.f32 %v5428, %v5480
    %v5493 = vsub.f32 %v5429, %v5482
    %v5494 = vsub.f32 %v5430, %v5484
    %v5495 = vsub.f32 %v5431, %v5486
    %v5496 = vsub.f32 %v5432, %v5488
    %5497 = vst.msk [vmem:[%s12] sm:$0xff] %vm278, %v5489
    %5498 = vst.msk [vmem:[%s12 + $0x8] sm:$0xff] %vm278, %v5490
    %5499 = vst.msk [vmem:[%s12 + $0x10] sm:$0xff] %vm278, %v5491
    %5500 = vst.msk [vmem:[%s12 + $0x18] sm:$0xff] %vm278, %v5492
    %5501 = vst.msk [vmem:[%s12 + $0x20] sm:$0xff] %vm278, %v5493
    %5502 = vst.msk [vmem:[%s12 + $0x28] sm:$0xff] %vm278, %v5494
    %5503 = vst.msk [vmem:[%s12 + $0x30] sm:$0xff] %vm278, %v5495
    %5504 = vst.msk [vmem:[%s12 + $0x38] sm:$0xff] %vm278, %v5496
    %vm5505 = vcmask 523264
    %v5506 = vsel %vm5505, %v5363, -inf
    %5507 = vmax.xlane.f32.xlu0 %v5506
    %v5508 = vpop.xlane.xlu0 %5507
    %v5509 = vsel %vm5505, %v5368, -inf
    %5510 = vmax.xlane.f32.xlu0 %v5509
    %v5511 = vpop.xlane.xlu0 %5510
    %v5512 = vsel %vm5505, %v5373, -inf
    %5513 = vmax.xlane.f32.xlu0 %v5512
    %v5514 = vpop.xlane.xlu0 %5513
    %v5515 = vsel %vm5505, %v5378, -inf
    %5516 = vmax.xlane.f32.xlu0 %v5515
    %v5517 = vpop.xlane.xlu0 %5516
    %v5518 = vsel %vm5505, %v5383, -inf
    %5519 = vmax.xlane.f32.xlu0 %v5518
    %v5520 = vpop.xlane.xlu0 %5519
    %v5521 = vsel %vm5505, %v5388, -inf
    %5522 = vmax.xlane.f32.xlu0 %v5521
    %v5523 = vpop.xlane.xlu0 %5522
    %v5524 = vsel %vm5505, %v5393, -inf
    %5525 = vmax.xlane.f32.xlu0 %v5524
    %v5526 = vpop.xlane.xlu0 %5525
    %v5527 = vsel %vm5505, %v5398, -inf
    %5528 = vmax.xlane.f32.xlu0 %v5527
    %v5529 = vpop.xlane.xlu0 %5528
    %v5530 = vsub.f32 %v5363, %v5508
    %v5531 = vsub.f32 %v5368, %v5511
    %v5532 = vsub.f32 %v5373, %v5514
    %v5533 = vsub.f32 %v5378, %v5517
    %v5534 = vsub.f32 %v5383, %v5520
    %v5535 = vsub.f32 %v5388, %v5523
    %v5536 = vsub.f32 %v5393, %v5526
    %v5537 = vsub.f32 %v5398, %v5529
    %v5538 = vmul.f32 %v5530, 1.442695
    %v5539 = vpow.pop %v5538
    %v5540 = vmul.f32 %v5531, 1.442695
    %v5541 = vpow.pop %v5540
    %v5542 = vmul.f32 %v5532, 1.442695
    %v5543 = vpow.pop %v5542
    %v5544 = vmul.f32 %v5533, 1.442695
    %v5545 = vpow.pop %v5544
    %v5546 = vmul.f32 %v5534, 1.442695
    %v5547 = vpow.pop %v5546
    %v5548 = vmul.f32 %v5535, 1.442695
    %v5549 = vpow.pop %v5548
    %v5550 = vmul.f32 %v5536, 1.442695
    %v5551 = vpow.pop %v5550
    %v5552 = vmul.f32 %v5537, 1.442695
    %v5553 = vpow.pop %v5552
    %v5554 = vsel %vm5505, %v5539, 0.0
    %5555 = vadd.xlane.f32.xlu0 %v5554
    %v5556 = vpop.xlane.xlu0 %5555
    %v5557 = vsel %vm5505, %v5541, 0.0
    %5558 = vadd.xlane.f32.xlu0 %v5557
    %v5559 = vpop.xlane.xlu0 %5558
    %v5560 = vsel %vm5505, %v5543, 0.0
    %5561 = vadd.xlane.f32.xlu0 %v5560
    %v5562 = vpop.xlane.xlu0 %5561
    %v5563 = vsel %vm5505, %v5545, 0.0
    %5564 = vadd.xlane.f32.xlu0 %v5563
    %v5565 = vpop.xlane.xlu0 %5564
    %v5566 = vsel %vm5505, %v5547, 0.0
    %5567 = vadd.xlane.f32.xlu0 %v5566
    %v5568 = vpop.xlane.xlu0 %5567
    %v5569 = vsel %vm5505, %v5549, 0.0
    %5570 = vadd.xlane.f32.xlu0 %v5569
    %v5571 = vpop.xlane.xlu0 %5570
    %v5572 = vsel %vm5505, %v5551, 0.0
    %5573 = vadd.xlane.f32.xlu0 %v5572
    %v5574 = vpop.xlane.xlu0 %5573
    %v5575 = vsel %vm5505, %v5553, 0.0
    %5576 = vadd.xlane.f32.xlu0 %v5575
    %v5577 = vpop.xlane.xlu0 %5576
    %v5578 = vlog2.pop %v5556
    %v5579 = vmul.f32 %v5578, 0.6931472
    %v5580 = vlog2.pop %v5559
    %v5581 = vmul.f32 %v5580, 0.6931472
    %v5582 = vlog2.pop %v5562
    %v5583 = vmul.f32 %v5582, 0.6931472
    %v5584 = vlog2.pop %v5565
    %v5585 = vmul.f32 %v5584, 0.6931472
    %v5586 = vlog2.pop %v5568
    %v5587 = vmul.f32 %v5586, 0.6931472
    %v5588 = vlog2.pop %v5571
    %v5589 = vmul.f32 %v5588, 0.6931472
    %v5590 = vlog2.pop %v5574
    %v5591 = vmul.f32 %v5590, 0.6931472
    %v5592 = vlog2.pop %v5577
    %v5593 = vmul.f32 %v5592, 0.6931472
    %v5594 = vsub.f32 %v5530, %v5579
    %v5595 = vsub.f32 %v5531, %v5581
    %v5596 = vsub.f32 %v5532, %v5583
    %v5597 = vsub.f32 %v5533, %v5585
    %v5598 = vsub.f32 %v5534, %v5587
    %v5599 = vsub.f32 %v5535, %v5589
    %v5600 = vsub.f32 %v5536, %v5591
    %v5601 = vsub.f32 %v5537, %v5593
    %5602 = vst.msk [vmem:[#allocation15] sm:$0xff] %vm5505, %v5594
    %5603 = vst.msk [vmem:[#allocation15 + $0x8] sm:$0xff] %vm5505, %v5595
    %5604 = vst.msk [vmem:[#allocation15 + $0x10] sm:$0xff] %vm5505, %v5596
    %5605 = vst.msk [vmem:[#allocation15 + $0x18] sm:$0xff] %vm5505, %v5597
    %5606 = vst.msk [vmem:[#allocation15 + $0x20] sm:$0xff] %vm5505, %v5598
    %5607 = vst.msk [vmem:[#allocation15 + $0x28] sm:$0xff] %vm5505, %v5599
    %5608 = vst.msk [vmem:[#allocation15 + $0x30] sm:$0xff] %vm5505, %v5600
    %5609 = vst.msk [vmem:[#allocation15 + $0x38] sm:$0xff] %vm5505, %v5601
    %5611 = vrot.lane.b32.xlu0 %v4658, 32
    %v5612 = vpop.permute.xlu0 %5611
    %5614 = vrot.lane.b32.xlu0 %v4803, 64
    %v5615 = vpop.permute.xlu0 %5614
    %5618 = vrot.lane.b32.xlu0 %v4652, 32
    %v5619 = vpop.permute.xlu0 %5618
    %5622 = vrot.lane.b32.xlu0 %v4797, 64
    %v5623 = vpop.permute.xlu0 %5622
    %5626 = vrot.lane.b32.xlu0 %v4954, 32
    %v5627 = vpop.permute.xlu0 %5626
    %5629 = vrot.lane.b32.xlu0 %v5099, 64
    %v5630 = vpop.permute.xlu0 %5629
    %5633 = vrot.lane.b32.xlu0 %v4948, 32
    %v5634 = vpop.permute.xlu0 %5633
    %5637 = vrot.lane.b32.xlu0 %v5093, 64
    %v5638 = vpop.permute.xlu0 %5637
    %v5640 = vsel %vm381, %v5612, %v5615
    %v5641 = vsel %vm5505, %v5640, %v5619
    %vm5642 = vcmask 785408
    %v5643 = vsel %vm5642, %v5641, %v5623
    %v5644 = vsel %vm381, %v5627, %v5630
    %v5645 = vsel %vm5505, %v5644, %v5634
    %v5646 = vsel %vm5642, %v5645, %v5638
    %5647 = vst [vmem:[#allocation16] sm:$0xff] %v5643
    %5648 = vst [vmem:[#allocation16 + $0x8] sm:$0xff] %v5646
    // Predicated region
    $region70: #{tpu_custom_call.1} parent=1 // pred_check
      _
    $region71: #{tpu_custom_call.1} parent=1 // pred_check_branch
      %5650 = sbr.rel (0) target = $region73
    $region72: #{tpu_custom_call.1} parent=1 // pred_region
      _
    $region73: #{tpu_custom_call.1} parent=1 // pred_fallthru
      _
    // Predicated region
    $region74: #{tpu_custom_call.1} parent=1 // pred_check
      _
    $region75: #{tpu_custom_call.1} parent=1 // pred_check_branch
      %5652 = sbr.rel (0) target = $region77
    $region76: #{tpu_custom_call.1} parent=1 // pred_region
      %s5654 = ssub.s32 1024, 1024
      %5655 = vsyncadd [#allocation8], %s5654
      %s5656 = sshll.u32 [#allocation15], 4
      %s5657 = int_to_ptr.vmem [resolvable:$true] %s5656
      %5662 = dma.vmem_to_hbm [thread:$0]  %s5657, 1024, %s13, [#allocation8], 128, 128, 8
    $region77: #{tpu_custom_call.1} parent=1 // pred_fallthru
      _
    // Predicated region
    $region78: #{tpu_custom_call.1} parent=1 // pred_check
      _
    $region79: #{tpu_custom_call.1} parent=1 // pred_check_branch
      %5664 = sbr.rel (0) target = $region81
    $region80: #{tpu_custom_call.1} parent=1 // pred_region
      %s5666 = ssub.s32 256, 256
      %5667 = vsyncadd [#allocation17], %s5666
      %s5669 = sshll.u32 [#allocation16], 4
      %s5670 = int_to_ptr.vmem [resolvable:$true] %s5669
      %5672 = dma.vmem_to_hbm [thread:$0]  %s5670, 256, %s14, [#allocation17]
    $region81: #{tpu_custom_call.1} parent=1 // pred_fallthru
      _
    // Predicated region
    $region82: #{tpu_custom_call.1} parent=1 // pred_check
      _
    $region83: #{tpu_custom_call.1} parent=1 // pred_check_branch
      %5674 = sbr.rel (0) target = $region85
    $region84: #{tpu_custom_call.1} parent=1 // pred_region
      _
    $region85: #{tpu_custom_call.1} parent=1 // pred_fallthru
      _
    // Predicated region
    $region86: #{tpu_custom_call.1} parent=1 // pred_check
      _
    $region87: #{tpu_custom_call.1} parent=1 // pred_check_branch
      %5676 = sbr.rel (0) target = $region89
    $region88: #{tpu_custom_call.1} parent=1 // pred_region
      %5677 = dma.done [#allocation8], 1024
    $region89: #{tpu_custom_call.1} parent=1 // pred_fallthru
      _
    // Predicated region
    $region90: #{tpu_custom_call.1} parent=1 // pred_check
      _
    $region91: #{tpu_custom_call.1} parent=1 // pred_check_branch
      %5679 = sbr.rel (0) target = $region93
    $region92: #{tpu_custom_call.1} parent=1 // pred_region
      %5680 = dma.done [#allocation17], 256
    $region93: #{tpu_custom_call.1} parent=1 // pred_fallthru
      _
    %5681 = vsyncpa [#allocation7], 1
    %5682 = vsyncpa [#allocation10], 1
    %5683 = vsyncpa [#allocation13], 1
    %5684 = vsyncpa [#allocation8], 1
    %5685 = vsyncpa [#allocation17], 1

</llo_original>
